<compile_context>
chip_gen: v5e
topology: v5e:2x2
jax: 0.10.0
libtpu: 0.0.40
codegen_flags: <defaults>
</compile_context>

<pallas_src>
import functools

import jax
import jax.numpy as jnp
from jax.experimental import pallas as pl
from jax.experimental.pallas import tpu as pltpu


def _round_up(x, m):
    return (x + m - 1) // m * m


# ----------------------------- tile-size policy -----------------------------

_TK_CAP = 2048
_TN_CAP = 512
_TM_CAP = 512


def _k_tiling(k):
    kp = _round_up(k, 128)
    if kp <= _TK_CAP:
        return kp, kp
    return _TK_CAP, _round_up(k, _TK_CAP)


def _n_tiling(cout):
    np_ = _round_up(cout, 128)
    if np_ <= _TN_CAP:
        return np_, np_
    return _TN_CAP, _round_up(cout, _TN_CAP)


def _m_tiling(m):
    mp = _round_up(m, 8)
    if mp <= _TM_CAP:
        return mp, mp
    return _TM_CAP, _round_up(m, _TM_CAP)


_COMPILER_PARAMS = pltpu.CompilerParams(
    dimension_semantics=("parallel", "parallel", "arbitrary"),
    vmem_limit_bytes=32 * 1024 * 1024,   # explicit budget; tiles here are << this
)


# ----------------------------- Pallas kernels -----------------------------

def _mm_bias_act_kernel(a_ref, b_ref, bias_ref, o_ref, acc_ref, *, apply_lrelu, slope):
    """o = A @ B + bias, optional LeakyReLU.  Grid = (Mi, Nj, Kk); f32 VMEM
    scratch accumulator, output stored in o_ref.dtype at the last K step."""
    k = pl.program_id(2)

    @pl.when(k == 0)
    def _():
        acc_ref[...] = jnp.zeros_like(acc_ref)

    acc_ref[...] += jnp.dot(a_ref[...], b_ref[...],
                            preferred_element_type=jnp.float32)

    @pl.when(k == pl.num_programs(2) - 1)
    def _():
        out = acc_ref[...] + bias_ref[...]
        if apply_lrelu:
            out = jnp.where(out >= 0, out, slope * out)
        o_ref[...] = out.astype(o_ref.dtype)


def _mm_bn_lrelu_kernel(a_ref, b_ref, gamma_ref, beta_ref, o_ref, acc_ref, *,
                        m_valid, eps, slope):
    """Matmul with BatchNorm (batch statistics over the full, single-tile M axis)
    + LeakyReLU(0.2) fused into the epilogue.  Requires grid dim 0 (M tiles) == 1
    so the whole batch column is resident in acc_ref at the last K step."""
    k = pl.program_id(2)

    @pl.when(k == 0)
    def _():
        acc_ref[...] = jnp.zeros_like(acc_ref)

    acc_ref[...] += jnp.dot(a_ref[...], b_ref[...],
                            preferred_element_type=jnp.float32)

    @pl.when(k == pl.num_programs(2) - 1)
    def _():
        x = acc_ref[...]                                      # (tm, tn) f32
        inv_cnt = 1.0 / m_valid
        mean = jnp.sum(x, axis=0, keepdims=True) * inv_cnt    # pad rows are zero -> exact
        rows = jax.lax.broadcasted_iota(jnp.int32, x.shape, 0)
        valid = rows < m_valid
        xc = jnp.where(valid, x - mean, 0.0)                  # centered two-pass variance
        var = jnp.sum(xc * xc, axis=0, keepdims=True) * inv_cnt
        scale = jax.lax.rsqrt(var + eps) * gamma_ref[...]
        y = xc * scale + beta_ref[...]
        y = jnp.where(y >= 0, y, slope * y)
        o_ref[...] = y.astype(o_ref.dtype)


def _bn_lrelu_kernel(x_ref, gamma_ref, beta_ref, o_ref, *, m_valid, eps, slope):
    """Standalone BN+LeakyReLU over one channel tile (large-image fallback only)."""
    x = x_ref[...].astype(jnp.float32)
    inv_cnt = 1.0 / m_valid
    mean = jnp.sum(x, axis=0, keepdims=True) * inv_cnt
    rows = jax.lax.broadcasted_iota(jnp.int32, x.shape, 0)
    valid = rows < m_valid
    xc = jnp.where(valid, x - mean, 0.0)
    var = jnp.sum(xc * xc, axis=0, keepdims=True) * inv_cnt
    scale = jax.lax.rsqrt(var + eps) * gamma_ref[...]
    y = xc * scale + beta_ref[...]
    o_ref[...] = jnp.where(y >= 0, y, slope * y).astype(o_ref.dtype)


# ----------------------------- Pallas wrappers -----------------------------

def _matmul_bias_act(a_bf16, w_pad, bias_pad, cout, *, apply_lrelu, out_dtype,
                     slope=0.2):
    """a_bf16: [M, K] bf16 patches; w_pad: [Kp, Np] bf16; bias_pad: [1, Np] f32."""
    M, K = a_bf16.shape
    Kp, Np = w_pad.shape
    tk, _ = _k_tiling(K)
    tn, _ = _n_tiling(cout)
    tm, Mp = _m_tiling(M)
    assert Kp % tk == 0 and Np % tn == 0 and Mp % tm == 0

    a_p = jnp.pad(a_bf16, ((0, Mp - M), (0, Kp - K)))

    kernel = functools.partial(_mm_bias_act_kernel, apply_lrelu=apply_lrelu, slope=slope)
    out = pl.pallas_call(
        kernel,
        out_shape=jax.ShapeDtypeStruct((Mp, Np), out_dtype),
        grid=(Mp // tm, Np // tn, Kp // tk),
        in_specs=[pl.BlockSpec((tm, tk), lambda i, j, k: (i, k)),
                  pl.BlockSpec((tk, tn), lambda i, j, k: (k, j)),
                  pl.BlockSpec((1, tn), lambda i, j, k: (0, j))],
        out_specs=pl.BlockSpec((tm, tn), lambda i, j, k: (i, j)),
        scratch_shapes=[pltpu.VMEM((tm, tn), jnp.float32)],
        compiler_params=_COMPILER_PARAMS,
    )(a_p, w_pad, bias_pad)
    return out[:M, :cout]


def _matmul_bn_lrelu(a_bf16, w_pad, gamma_pad, beta_pad, cout, *, eps=1e-5, slope=0.2):
    """Conv matmul with fused BatchNorm(batch stats)+LeakyReLU.  Requires the
    whole M dimension to fit one tile (caller guards)."""
    M, K = a_bf16.shape
    Kp, Np = w_pad.shape
    tk, _ = _k_tiling(K)
    tn, _ = _n_tiling(cout)
    tm, Mp = _m_tiling(M)
    assert Mp == tm, "fused-BN path requires a single M tile"
    assert Kp % tk == 0 and Np % tn == 0

    a_p = jnp.pad(a_bf16, ((0, Mp - M), (0, Kp - K)))

    kernel = functools.partial(_mm_bn_lrelu_kernel, m_valid=M, eps=eps, slope=slope)
    out = pl.pallas_call(
        kernel,
        out_shape=jax.ShapeDtypeStruct((Mp, Np), jnp.bfloat16),
        grid=(1, Np // tn, Kp // tk),
        in_specs=[pl.BlockSpec((tm, tk), lambda i, j, k: (i, k)),
                  pl.BlockSpec((tk, tn), lambda i, j, k: (k, j)),
                  pl.BlockSpec((1, tn), lambda i, j, k: (0, j)),
                  pl.BlockSpec((1, tn), lambda i, j, k: (0, j))],
        out_specs=pl.BlockSpec((tm, tn), lambda i, j, k: (i, j)),
        scratch_shapes=[pltpu.VMEM((tm, tn), jnp.float32)],
        compiler_params=_COMPILER_PARAMS,
    )(a_p, w_pad, gamma_pad, beta_pad)
    return out[:M, :cout]


def _bn_lrelu_pallas(x, gamma_pad, beta_pad, *, eps=1e-5, slope=0.2):
    """Large-image fallback: BN over rows per column + LeakyReLU.  x: [M, C]."""
    M, C = x.shape
    Mp = _round_up(M, 8)
    Cp = gamma_pad.shape[1]
    tc = Cp if Cp <= 512 else (512 if Cp % 512 == 0 else 128)
    x_p = jnp.pad(x, ((0, Mp - M), (0, Cp - C)))

    kernel = functools.partial(_bn_lrelu_kernel, m_valid=M, eps=eps, slope=slope)
    out = pl.pallas_call(
        kernel,
        out_shape=jax.ShapeDtypeStruct((Mp, Cp), x.dtype),
        grid=(Cp // tc,),
        in_specs=[pl.BlockSpec((Mp, tc), lambda j: (0, j)),
                  pl.BlockSpec((1, tc), lambda j: (0, j)),
                  pl.BlockSpec((1, tc), lambda j: (0, j))],
        out_specs=pl.BlockSpec((Mp, tc), lambda j: (0, j)),
        compiler_params=pltpu.CompilerParams(dimension_semantics=("parallel",)),
    )(x_p, gamma_pad, beta_pad)
    return out[:M, :C]


# ----------------------------- Conv glue (im2col) -----------------------------

def _im2col(x_nhwc, stride):
    """4x4 patches with reflect pad 1.  Returns ([N*Ho*Wo, 16*Cin] bf16, N, Ho, Wo)."""
    N, H, W, Cin = x_nhwc.shape
    xp = jnp.pad(x_nhwc, ((0, 0), (1, 1), (1, 1), (0, 0)), mode='reflect')
    Ho = (H + 2 - 4) // stride + 1
    Wo = (W + 2 - 4) // stride + 1
    cols = []
    for di in range(4):
        for dj in range(4):
            cols.append(xp[:, di:di + stride * (Ho - 1) + 1:stride,
                           dj:dj + stride * (Wo - 1) + 1:stride, :])
    patches = jnp.stack(cols, axis=3)                         # [N, Ho, Wo, 16, Cin]
    patches = patches.reshape(N * Ho * Wo, 16 * Cin).astype(jnp.bfloat16)
    return patches, N, Ho, Wo


def _conv_first(x_nhwc, layer):
    """Conv(2C->64, s2, bias) + LeakyReLU fused in matmul epilogue; bf16 out."""
    patches, N, Ho, Wo = _im2col(x_nhwc, 2)
    out = _matmul_bias_act(patches, layer['w'], layer['b'], layer['cout'],
                           apply_lrelu=True, out_dtype=jnp.bfloat16)
    return out.reshape(N, Ho, Wo, layer['cout'])


def _conv_block(x_nhwc, layer, bn, stride):
    """Conv(no bias) -> BatchNorm(batch stats) -> LeakyReLU(0.2); BN fused into
    the matmul epilogue when the whole batch column fits one M tile."""
    patches, N, Ho, Wo = _im2col(x_nhwc, stride)
    M = patches.shape[0]
    tm, Mp = _m_tiling(M)
    if Mp == tm:
        out = _matmul_bn_lrelu(patches, layer['w'], bn['gamma'], bn['beta'],
                               layer['cout'])
    else:
        # Large-image fallback: conv matmul, then standalone BN kernel.
        out = _matmul_bias_act(patches, layer['w'], layer['b'], layer['cout'],
                               apply_lrelu=False, out_dtype=jnp.bfloat16)
        out = _bn_lrelu_pallas(out, bn['gamma'], bn['beta'])
    return out.reshape(N, Ho, Wo, layer['cout'])


def _conv_final(x_nhwc, layer):
    """Conv(512->1, s1, bias), no activation, f32 output."""
    patches, N, Ho, Wo = _im2col(x_nhwc, 1)
    out = _matmul_bias_act(patches, layer['w'], layer['b'], layer['cout'],
                           apply_lrelu=False, out_dtype=jnp.float32)
    return out.reshape(N, Ho, Wo, layer['cout'])


# ----------------------------- Parameters -----------------------------

def init_params(key, in_channels):
    # (name, Cout, Cin) for each conv, matching the PyTorch module.
    specs = [
        ('conv0', 64, in_channels * 2),   # first_block conv (has bias)
        ('conv1', 128, 64),               # block1 (no bias)
        ('conv2', 256, 128),              # block2 (no bias)
        ('conv3', 512, 256),              # block3 (no bias)
        ('conv4', 1, 512),                # final_block conv (has bias)
    ]
    params = {}
    keys = jax.random.split(key, len(specs))
    for k_rng, (name, cout, cin) in zip(keys, specs):
        K = 16 * cin
        _, Kp = _k_tiling(K)
        _, Np = _n_tiling(cout)
        # Deterministic init mirroring Discriminator.initialize(): N(0, 0.02), zero bias.
        w_oihw = 0.02 * jax.random.normal(k_rng, (cout, cin, 4, 4), jnp.float32)
        w_kc = jnp.transpose(w_oihw, (2, 3, 1, 0)).reshape(K, cout)   # (kh, kw, cin) major
        w_pad = jnp.zeros((Kp, Np), jnp.bfloat16).at[:K, :cout].set(
            w_kc.astype(jnp.bfloat16))
        bias_pad = jnp.zeros((1, Np), jnp.float32)   # zero bias (or no bias / fallback)
        params[name] = {'w': w_pad, 'b': bias_pad, 'cout': cout}
    for name, cout in (('bn1', 128), ('bn2', 256), ('bn3', 512)):
        _, Np = _n_tiling(cout)
        params[name] = {
            'gamma': jnp.zeros((1, Np), jnp.float32).at[:, :cout].set(1.0),
            'beta': jnp.zeros((1, Np), jnp.float32),
        }
    return params


# ----------------------------- Forward -----------------------------

def discriminator_forward(params, x, y):
    """x, y: NCHW float32 -> NCHW f32 output (matches PyTorch Discriminator.forward)."""
    inp = jnp.concatenate([x, y], axis=1)                       # [N, 2*Cin, H, W]
    h = jnp.transpose(inp, (0, 2, 3, 1)).astype(jnp.bfloat16)   # NHWC bf16 MXU feed

    # first_block: Conv(2C->64, s2, bias) + LeakyReLU(0.2)
    h = _conv_first(h, params['conv0'])

    # block1..block3: Conv(no bias) -> BatchNorm(batch stats) -> LeakyReLU(0.2)
    for idx, stride in ((1, 2), (2, 2), (3, 1)):
        h = _conv_block(h, params[f'conv{idx}'], params[f'bn{idx}'], stride)

    # final_block: Conv(512->1, s1, bias), no activation
    h = _conv_final(h, params['conv4'])

    return jnp.transpose(h, (0, 3, 1, 2))  # back to NCHW


if __name__ == "__main__":
    key = jax.random.PRNGKey(0)
    kx, ky, kp = jax.random.split(key, 3)

    in_channels = 3
    x = jax.random.normal(kx, (2, in_channels, 32, 32), jnp.float32)
    y = jax.random.normal(ky, (2, in_channels, 32, 32), jnp.float32)
    params = init_params(kp, in_channels)

    fwd = jax.jit(functools.partial(discriminator_forward, params))
    out = fwd(x, y)
    jax.block_until_ready(out)

    # 32 -> 16 -> 8 -> 4 -> 3 -> 2 spatial; 1 output channel
    assert out.shape == (2, 1, 2, 2), out.shape
    print("KERNEL_OK")
</pallas_src>

<mosaic_0001>
module attributes {stable_mosaic.version = 11 : i64} {
  func.func @_mm_bias_act_kernel(%arg0: i32, %arg1: i32, %arg2: i32, %arg3: memref<512x128xbf16, #tpu.memory_space<vmem>>, %arg4: memref<128x128xbf16, #tpu.memory_space<vmem>>, %arg5: memref<1x128xf32, #tpu.memory_space<vmem>>, %arg6: memref<512x128xbf16, #tpu.memory_space<vmem>>, %arg7: memref<512x128xf32, #tpu.memory_space<vmem>>) attributes {dimension_semantics = [#tpu.dimension_semantics<parallel>, #tpu.dimension_semantics<parallel>, #tpu.dimension_semantics<arbitrary>], iteration_bounds = array<i64: 1, 1, 1>, scalar_prefetch = 0 : i64, scratch_operands = 1 : i64, tpu.core_type = #tpu.core_type<tc>, window_params = [{transform_indices = @transform_0, window_bounds = array<i64: 512, 128>}, {transform_indices = @transform_1, window_bounds = array<i64: 128, 128>}, {transform_indices = @transform_2, window_bounds = array<i64: 1, 128>}, {transform_indices = @transform_3, window_bounds = array<i64: 512, 128>}]} {
    %c0_i32 = arith.constant 0 : i32
    %0 = arith.cmpi eq, %arg2, %c0_i32 : i32
    %1 = arith.extui %0 : i1 to i32
    %c0_i32_0 = arith.constant 0 : i32
    %2 = arith.cmpi ne, %1, %c0_i32_0 : i32
    scf.if %2 {
      %cst_10 = arith.constant 0.000000e+00 : f32
      %12 = vector.broadcast %cst_10 : f32 to vector<512x128xf32>
      %c0_11 = arith.constant 0 : index
      %c0_12 = arith.constant 0 : index
      %13 = vector.load %arg7[%c0_11, %c0_12] : memref<512x128xf32, #tpu.memory_space<vmem>>, vector<512x128xf32>
      tpu.vector_store %arg7[%c0_11, %c0_12], %12 {strides = array<i32>} : memref<512x128xf32, #tpu.memory_space<vmem>>, vector<512x128xf32>,
    } else {
    }
    %c0 = arith.constant 0 : index
    %c0_1 = arith.constant 0 : index
    %3 = vector.load %arg7[%c0, %c0_1] : memref<512x128xf32, #tpu.memory_space<vmem>>, vector<512x128xf32>
    %c0_2 = arith.constant 0 : index
    %c0_3 = arith.constant 0 : index
    %4 = vector.load %arg3[%c0_2, %c0_3] : memref<512x128xbf16, #tpu.memory_space<vmem>>, vector<512x128xbf16>
    %c0_4 = arith.constant 0 : index
    %c0_5 = arith.constant 0 : index
    %5 = vector.load %arg4[%c0_4, %c0_5] : memref<128x128xbf16, #tpu.memory_space<vmem>>, vector<128x128xbf16>
    %cst = arith.constant dense<0.000000e+00> : vector<512x128xf32>
    %6 = tpu.matmul %4, %5, %cst {dimension_numbers = #tpu.dot_dimension_numbers<[1], [0], [0], [1], [0, 0, 1, 1], [], []>} : vector<512x128xbf16>, vector<128x128xbf16>, vector<512x128xf32> -> vector<512x128xf32>
    %7 = arith.addf %3, %6 : vector<512x128xf32>
    %c0_6 = arith.constant 0 : index
    %c0_7 = arith.constant 0 : index
    %8 = vector.load %arg7[%c0_6, %c0_7] : memref<512x128xf32, #tpu.memory_space<vmem>>, vector<512x128xf32>
    tpu.vector_store %arg7[%c0_6, %c0_7], %7 {strides = array<i32>} : memref<512x128xf32, #tpu.memory_space<vmem>>, vector<512x128xf32>,
    %c0_i32_8 = arith.constant 0 : i32
    %9 = arith.cmpi eq, %arg2, %c0_i32_8 : i32
    %10 = arith.extui %9 : i1 to i32
    %c0_i32_9 = arith.constant 0 : i32
    %11 = arith.cmpi ne, %10, %c0_i32_9 : i32
    scf.if %11 {
      %c0_10 = arith.constant 0 : index
      %c0_11 = arith.constant 0 : index
      %12 = vector.load %arg7[%c0_10, %c0_11] : memref<512x128xf32, #tpu.memory_space<vmem>>, vector<512x128xf32>
      %c0_12 = arith.constant 0 : index
      %c0_13 = arith.constant 0 : index
      %13 = vector.load %arg5[%c0_12, %c0_13] : memref<1x128xf32, #tpu.memory_space<vmem>>, vector<1x128xf32>
      %14 = vector.broadcast %13 : vector<1x128xf32> to vector<512x128xf32>
      %15 = arith.addf %12, %14 : vector<512x128xf32>
      %cst_14 = arith.constant 0.000000e+00 : f32
      %16 = vector.broadcast %cst_14 : f32 to vector<512x128xf32>
      %17 = arith.cmpf oge, %15, %16 : vector<512x128xf32>
      %cst_15 = arith.constant 2.000000e-01 : f32
      %18 = vector.broadcast %cst_15 : f32 to vector<512x128xf32>
      %19 = arith.mulf %18, %15 : vector<512x128xf32>
      %20 = arith.select %17, %15, %19 : vector<512x128xi1>, vector<512x128xf32>
      %21 = arith.truncf %20 : vector<512x128xf32> to vector<512x128xbf16>
      %c0_16 = arith.constant 0 : index
      %c0_17 = arith.constant 0 : index
      %22 = vector.load %arg6[%c0_16, %c0_17] : memref<512x128xbf16, #tpu.memory_space<vmem>>, vector<512x128xbf16>
      tpu.vector_store %arg6[%c0_16, %c0_17], %21 {strides = array<i32>} : memref<512x128xbf16, #tpu.memory_space<vmem>>, vector<512x128xbf16>,
    } else {
    }
    return
  }
  func.func @transform_0(%arg0: i32, %arg1: i32, %arg2: i32) -> (i32, i32) {
    %c0_i32 = arith.constant 0 : i32
    return %arg0, %arg2 : i32, i32
  }
  func.func @transform_1(%arg0: i32, %arg1: i32, %arg2: i32) -> (i32, i32) {
    %c0_i32 = arith.constant 0 : i32
    return %arg2, %arg1 : i32, i32
  }
  func.func @transform_2(%arg0: i32, %arg1: i32, %arg2: i32) -> (i32, i32) {
    %c0_i32 = arith.constant 0 : i32
    %c0_i32_0 = arith.constant 0 : i32
    return %c0_i32, %arg1 : i32, i32
  }
  func.func @transform_3(%arg0: i32, %arg1: i32, %arg2: i32) -> (i32, i32) {
    %c0_i32 = arith.constant 0 : i32
    return %arg0, %arg1 : i32, i32
  }
}

module attributes {stable_mosaic.version = 11 : i64} {
  func.func @_mm_bn_lrelu_kernel(%arg0: i32, %arg1: i32, %arg2: i32, %arg3: memref<128x1024xbf16, #tpu.memory_space<vmem>>, %arg4: memref<1024x128xbf16, #tpu.memory_space<vmem>>, %arg5: memref<1x128xf32, #tpu.memory_space<vmem>>, %arg6: memref<1x128xf32, #tpu.memory_space<vmem>>, %arg7: memref<128x128xbf16, #tpu.memory_space<vmem>>, %arg8: memref<128x128xf32, #tpu.memory_space<vmem>>) attributes {dimension_semantics = [#tpu.dimension_semantics<parallel>, #tpu.dimension_semantics<parallel>, #tpu.dimension_semantics<arbitrary>], iteration_bounds = array<i64: 1, 1, 1>, scalar_prefetch = 0 : i64, scratch_operands = 1 : i64, tpu.core_type = #tpu.core_type<tc>, window_params = [{transform_indices = @transform_0, window_bounds = array<i64: 128, 1024>}, {transform_indices = @transform_1, window_bounds = array<i64: 1024, 128>}, {transform_indices = @transform_2, window_bounds = array<i64: 1, 128>}, {transform_indices = @transform_3, window_bounds = array<i64: 1, 128>}, {transform_indices = @transform_4, window_bounds = array<i64: 128, 128>}]} {
    %c0_i32 = arith.constant 0 : i32
    %0 = arith.cmpi eq, %arg2, %c0_i32 : i32
    %1 = arith.extui %0 : i1 to i32
    %c0_i32_0 = arith.constant 0 : i32
    %2 = arith.cmpi ne, %1, %c0_i32_0 : i32
    scf.if %2 {
      %cst_10 = arith.constant 0.000000e+00 : f32
      %12 = vector.broadcast %cst_10 : f32 to vector<128x128xf32>
      %c0_11 = arith.constant 0 : index
      %c0_12 = arith.constant 0 : index
      %13 = vector.load %arg8[%c0_11, %c0_12] : memref<128x128xf32, #tpu.memory_space<vmem>>, vector<128x128xf32>
      tpu.vector_store %arg8[%c0_11, %c0_12], %12 {strides = array<i32>} : memref<128x128xf32, #tpu.memory_space<vmem>>, vector<128x128xf32>,
    } else {
    }
    %c0 = arith.constant 0 : index
    %c0_1 = arith.constant 0 : index
    %3 = vector.load %arg8[%c0, %c0_1] : memref<128x128xf32, #tpu.memory_space<vmem>>, vector<128x128xf32>
    %c0_2 = arith.constant 0 : index
    %c0_3 = arith.constant 0 : index
    %4 = vector.load %arg3[%c0_2, %c0_3] : memref<128x1024xbf16, #tpu.memory_space<vmem>>, vector<128x1024xbf16>
    %c0_4 = arith.constant 0 : index
    %c0_5 = arith.constant 0 : index
    %5 = vector.load %arg4[%c0_4, %c0_5] : memref<1024x128xbf16, #tpu.memory_space<vmem>>, vector<1024x128xbf16>
    %cst = arith.constant dense<0.000000e+00> : vector<128x128xf32>
    %6 = tpu.matmul %4, %5, %cst {dimension_numbers = #tpu.dot_dimension_numbers<[1], [0], [0], [1], [0, 0, 1, 1], [], []>} : vector<128x1024xbf16>, vector<1024x128xbf16>, vector<128x128xf32> -> vector<128x128xf32>
    %7 = arith.addf %3, %6 : vector<128x128xf32>
    %c0_6 = arith.constant 0 : index
    %c0_7 = arith.constant 0 : index
    %8 = vector.load %arg8[%c0_6, %c0_7] : memref<128x128xf32, #tpu.memory_space<vmem>>, vector<128x128xf32>
    tpu.vector_store %arg8[%c0_6, %c0_7], %7 {strides = array<i32>} : memref<128x128xf32, #tpu.memory_space<vmem>>, vector<128x128xf32>,
    %c0_i32_8 = arith.constant 0 : i32
    %9 = arith.cmpi eq, %arg2, %c0_i32_8 : i32
    %10 = arith.extui %9 : i1 to i32
    %c0_i32_9 = arith.constant 0 : i32
    %11 = arith.cmpi ne, %10, %c0_i32_9 : i32
    scf.if %11 {
      %c0_10 = arith.constant 0 : index
      %c0_11 = arith.constant 0 : index
      %12 = vector.load %arg8[%c0_10, %c0_11] : memref<128x128xf32, #tpu.memory_space<vmem>>, vector<128x128xf32>
      %cst_12 = arith.constant dense<0.000000e+00> : vector<128xf32>
      %13 = vector.multi_reduction <add>, %12, %cst_12 [0] : vector<128x128xf32> to vector<128xf32>
      %14 = vector.shape_cast %13 : vector<128xf32> to vector<1x128xf32>
      %cst_13 = arith.constant 7.812500e-03 : f32
      %15 = vector.broadcast %cst_13 : f32 to vector<1x128xf32>
      %16 = arith.mulf %14, %15 : vector<1x128xf32>
      %17 = tpu.iota {dimensions = array<i32: 0>} : vector<128x128xi32>
      %c128_i32 = arith.constant 128 : i32
      %18 = vector.broadcast %c128_i32 : i32 to vector<128x128xi32>
      %19 = arith.cmpi slt, %17, %18 : vector<128x128xi32>
      %20 = vector.broadcast %16 : vector<1x128xf32> to vector<128x128xf32>
      %21 = arith.subf %12, %20 : vector<128x128xf32>
      %cst_14 = arith.constant 0.000000e+00 : f32
      %22 = vector.broadcast %cst_14 : f32 to vector<128x128xf32>
      %23 = arith.select %19, %21, %22 : vector<128x128xi1>, vector<128x128xf32>
      %24 = arith.mulf %23, %23 : vector<128x128xf32>
      %cst_15 = arith.constant dense<0.000000e+00> : vector<128xf32>
      %25 = vector.multi_reduction <add>, %24, %cst_15 [0] : vector<128x128xf32> to vector<128xf32>
      %26 = vector.shape_cast %25 : vector<128xf32> to vector<1x128xf32>
      %cst_16 = arith.constant 7.812500e-03 : f32
      %27 = vector.broadcast %cst_16 : f32 to vector<1x128xf32>
      %28 = arith.mulf %26, %27 : vector<1x128xf32>
      %cst_17 = arith.constant 9.99999974E-6 : f32
      %29 = vector.broadcast %cst_17 : f32 to vector<1x128xf32>
      %30 = arith.addf %28, %29 : vector<1x128xf32>
      %31 = math.rsqrt %30 : vector<1x128xf32>
      %c0_18 = arith.constant 0 : index
      %c0_19 = arith.constant 0 : index
      %32 = vector.load %arg5[%c0_18, %c0_19] : memref<1x128xf32, #tpu.memory_space<vmem>>, vector<1x128xf32>
      %33 = arith.mulf %31, %32 : vector<1x128xf32>
      %34 = vector.broadcast %33 : vector<1x128xf32> to vector<128x128xf32>
      %35 = arith.mulf %23, %34 : vector<128x128xf32>
      %c0_20 = arith.constant 0 : index
      %c0_21 = arith.constant 0 : index
      %36 = vector.load %arg6[%c0_20, %c0_21] : memref<1x128xf32, #tpu.memory_space<vmem>>, vector<1x128xf32>
      %37 = vector.broadcast %36 : vector<1x128xf32> to vector<128x128xf32>
      %38 = arith.addf %35, %37 : vector<128x128xf32>
      %cst_22 = arith.constant 0.000000e+00 : f32
      %39 = vector.broadcast %cst_22 : f32 to vector<128x128xf32>
      %40 = arith.cmpf oge, %38, %39 : vector<128x128xf32>
      %cst_23 = arith.constant 2.000000e-01 : f32
      %41 = vector.broadcast %cst_23 : f32 to vector<128x128xf32>
      %42 = arith.mulf %41, %38 : vector<128x128xf32>
      %43 = arith.select %40, %38, %42 : vector<128x128xi1>, vector<128x128xf32>
      %44 = arith.truncf %43 : vector<128x128xf32> to vector<128x128xbf16>
      %c0_24 = arith.constant 0 : index
      %c0_25 = arith.constant 0 : index
      %45 = vector.load %arg7[%c0_24, %c0_25] : memref<128x128xbf16, #tpu.memory_space<vmem>>, vector<128x128xbf16>
      tpu.vector_store %arg7[%c0_24, %c0_25], %44 {strides = array<i32>} : memref<128x128xbf16, #tpu.memory_space<vmem>>, vector<128x128xbf16>,
    } else {
    }
    return
  }
  func.func @transform_0(%arg0: i32, %arg1: i32, %arg2: i32) -> (i32, i32) {
    %c0_i32 = arith.constant 0 : i32
    return %arg0, %arg2 : i32, i32
  }
  func.func @transform_1(%arg0: i32, %arg1: i32, %arg2: i32) -> (i32, i32) {
    %c0_i32 = arith.constant 0 : i32
    return %arg2, %arg1 : i32, i32
  }
  func.func @transform_2(%arg0: i32, %arg1: i32, %arg2: i32) -> (i32, i32) {
    %c0_i32 = arith.constant 0 : i32
    %c0_i32_0 = arith.constant 0 : i32
    return %c0_i32, %arg1 : i32, i32
  }
  func.func @transform_3(%arg0: i32, %arg1: i32, %arg2: i32) -> (i32, i32) {
    %c0_i32 = arith.constant 0 : i32
    %c0_i32_0 = arith.constant 0 : i32
    return %c0_i32, %arg1 : i32, i32
  }
  func.func @transform_4(%arg0: i32, %arg1: i32, %arg2: i32) -> (i32, i32) {
    %c0_i32 = arith.constant 0 : i32
    return %arg0, %arg1 : i32, i32
  }
}

module attributes {stable_mosaic.version = 11 : i64} {
  func.func @_mm_bn_lrelu_kernel(%arg0: i32, %arg1: i32, %arg2: i32, %arg3: memref<32x2048xbf16, #tpu.memory_space<vmem>>, %arg4: memref<2048x256xbf16, #tpu.memory_space<vmem>>, %arg5: memref<1x256xf32, #tpu.memory_space<vmem>>, %arg6: memref<1x256xf32, #tpu.memory_space<vmem>>, %arg7: memref<32x256xbf16, #tpu.memory_space<vmem>>, %arg8: memref<32x256xf32, #tpu.memory_space<vmem>>) attributes {dimension_semantics = [#tpu.dimension_semantics<parallel>, #tpu.dimension_semantics<parallel>, #tpu.dimension_semantics<arbitrary>], iteration_bounds = array<i64: 1, 1, 1>, scalar_prefetch = 0 : i64, scratch_operands = 1 : i64, tpu.core_type = #tpu.core_type<tc>, window_params = [{transform_indices = @transform_0, window_bounds = array<i64: 32, 2048>}, {transform_indices = @transform_1, window_bounds = array<i64: 2048, 256>}, {transform_indices = @transform_2, window_bounds = array<i64: 1, 256>}, {transform_indices = @transform_3, window_bounds = array<i64: 1, 256>}, {transform_indices = @transform_4, window_bounds = array<i64: 32, 256>}]} {
    %c0_i32 = arith.constant 0 : i32
    %0 = arith.cmpi eq, %arg2, %c0_i32 : i32
    %1 = arith.extui %0 : i1 to i32
    %c0_i32_0 = arith.constant 0 : i32
    %2 = arith.cmpi ne, %1, %c0_i32_0 : i32
    scf.if %2 {
      %cst_10 = arith.constant 0.000000e+00 : f32
      %12 = vector.broadcast %cst_10 : f32 to vector<32x256xf32>
      %c0_11 = arith.constant 0 : index
      %c0_12 = arith.constant 0 : index
      %13 = vector.load %arg8[%c0_11, %c0_12] : memref<32x256xf32, #tpu.memory_space<vmem>>, vector<32x256xf32>
      tpu.vector_store %arg8[%c0_11, %c0_12], %12 {strides = array<i32>} : memref<32x256xf32, #tpu.memory_space<vmem>>, vector<32x256xf32>,
    } else {
    }
    %c0 = arith.constant 0 : index
    %c0_1 = arith.constant 0 : index
    %3 = vector.load %arg8[%c0, %c0_1] : memref<32x256xf32, #tpu.memory_space<vmem>>, vector<32x256xf32>
    %c0_2 = arith.constant 0 : index
    %c0_3 = arith.constant 0 : index
    %4 = vector.load %arg3[%c0_2, %c0_3] : memref<32x2048xbf16, #tpu.memory_space<vmem>>, vector<32x2048xbf16>
    %c0_4 = arith.constant 0 : index
    %c0_5 = arith.constant 0 : index
    %5 = vector.load %arg4[%c0_4, %c0_5] : memref<2048x256xbf16, #tpu.memory_space<vmem>>, vector<2048x256xbf16>
    %cst = arith.constant dense<0.000000e+00> : vector<32x256xf32>
    %6 = tpu.matmul %4, %5, %cst {dimension_numbers = #tpu.dot_dimension_numbers<[1], [0], [0], [1], [0, 0, 1, 1], [], []>} : vector<32x2048xbf16>, vector<2048x256xbf16>, vector<32x256xf32> -> vector<32x256xf32>
    %7 = arith.addf %3, %6 : vector<32x256xf32>
    %c0_6 = arith.constant 0 : index
    %c0_7 = arith.constant 0 : index
    %8 = vector.load %arg8[%c0_6, %c0_7] : memref<32x256xf32, #tpu.memory_space<vmem>>, vector<32x256xf32>
    tpu.vector_store %arg8[%c0_6, %c0_7], %7 {strides = array<i32>} : memref<32x256xf32, #tpu.memory_space<vmem>>, vector<32x256xf32>,
    %c0_i32_8 = arith.constant 0 : i32
    %9 = arith.cmpi eq, %arg2, %c0_i32_8 : i32
    %10 = arith.extui %9 : i1 to i32
    %c0_i32_9 = arith.constant 0 : i32
    %11 = arith.cmpi ne, %10, %c0_i32_9 : i32
    scf.if %11 {
      %c0_10 = arith.constant 0 : index
      %c0_11 = arith.constant 0 : index
      %12 = vector.load %arg8[%c0_10, %c0_11] : memref<32x256xf32, #tpu.memory_space<vmem>>, vector<32x256xf32>
      %cst_12 = arith.constant dense<0.000000e+00> : vector<256xf32>
      %13 = vector.multi_reduction <add>, %12, %cst_12 [0] : vector<32x256xf32> to vector<256xf32>
      %14 = vector.shape_cast %13 : vector<256xf32> to vector<1x256xf32>
      %cst_13 = arith.constant 3.125000e-02 : f32
      %15 = vector.broadcast %cst_13 : f32 to vector<1x256xf32>
      %16 = arith.mulf %14, %15 : vector<1x256xf32>
      %17 = tpu.iota {dimensions = array<i32: 0>} : vector<32x256xi32>
      %c32_i32 = arith.constant 32 : i32
      %18 = vector.broadcast %c32_i32 : i32 to vector<32x256xi32>
      %19 = arith.cmpi slt, %17, %18 : vector<32x256xi32>
      %20 = vector.broadcast %16 : vector<1x256xf32> to vector<32x256xf32>
      %21 = arith.subf %12, %20 : vector<32x256xf32>
      %cst_14 = arith.constant 0.000000e+00 : f32
      %22 = vector.broadcast %cst_14 : f32 to vector<32x256xf32>
      %23 = arith.select %19, %21, %22 : vector<32x256xi1>, vector<32x256xf32>
      %24 = arith.mulf %23, %23 : vector<32x256xf32>
      %cst_15 = arith.constant dense<0.000000e+00> : vector<256xf32>
      %25 = vector.multi_reduction <add>, %24, %cst_15 [0] : vector<32x256xf32> to vector<256xf32>
      %26 = vector.shape_cast %25 : vector<256xf32> to vector<1x256xf32>
      %cst_16 = arith.constant 3.125000e-02 : f32
      %27 = vector.broadcast %cst_16 : f32 to vector<1x256xf32>
      %28 = arith.mulf %26, %27 : vector<1x256xf32>
      %cst_17 = arith.constant 9.99999974E-6 : f32
      %29 = vector.broadcast %cst_17 : f32 to vector<1x256xf32>
      %30 = arith.addf %28, %29 : vector<1x256xf32>
      %31 = math.rsqrt %30 : vector<1x256xf32>
      %c0_18 = arith.constant 0 : index
      %c0_19 = arith.constant 0 : index
      %32 = vector.load %arg5[%c0_18, %c0_19] : memref<1x256xf32, #tpu.memory_space<vmem>>, vector<1x256xf32>
      %33 = arith.mulf %31, %32 : vector<1x256xf32>
      %34 = vector.broadcast %33 : vector<1x256xf32> to vector<32x256xf32>
      %35 = arith.mulf %23, %34 : vector<32x256xf32>
      %c0_20 = arith.constant 0 : index
      %c0_21 = arith.constant 0 : index
      %36 = vector.load %arg6[%c0_20, %c0_21] : memref<1x256xf32, #tpu.memory_space<vmem>>, vector<1x256xf32>
      %37 = vector.broadcast %36 : vector<1x256xf32> to vector<32x256xf32>
      %38 = arith.addf %35, %37 : vector<32x256xf32>
      %cst_22 = arith.constant 0.000000e+00 : f32
      %39 = vector.broadcast %cst_22 : f32 to vector<32x256xf32>
      %40 = arith.cmpf oge, %38, %39 : vector<32x256xf32>
      %cst_23 = arith.constant 2.000000e-01 : f32
      %41 = vector.broadcast %cst_23 : f32 to vector<32x256xf32>
      %42 = arith.mulf %41, %38 : vector<32x256xf32>
      %43 = arith.select %40, %38, %42 : vector<32x256xi1>, vector<32x256xf32>
      %44 = arith.truncf %43 : vector<32x256xf32> to vector<32x256xbf16>
      %c0_24 = arith.constant 0 : index
      %c0_25 = arith.constant 0 : index
      %45 = vector.load %arg7[%c0_24, %c0_25] : memref<32x256xbf16, #tpu.memory_space<vmem>>, vector<32x256xbf16>
      tpu.vector_store %arg7[%c0_24, %c0_25], %44 {strides = array<i32>} : memref<32x256xbf16, #tpu.memory_space<vmem>>, vector<32x256xbf16>,
    } else {
    }
    return
  }
  func.func @transform_0(%arg0: i32, %arg1: i32, %arg2: i32) -> (i32, i32) {
    %c0_i32 = arith.constant 0 : i32
    return %arg0, %arg2 : i32, i32
  }
  func.func @transform_1(%arg0: i32, %arg1: i32, %arg2: i32) -> (i32, i32) {
    %c0_i32 = arith.constant 0 : i32
    return %arg2, %arg1 : i32, i32
  }
  func.func @transform_2(%arg0: i32, %arg1: i32, %arg2: i32) -> (i32, i32) {
    %c0_i32 = arith.constant 0 : i32
    %c0_i32_0 = arith.constant 0 : i32
    return %c0_i32, %arg1 : i32, i32
  }
  func.func @transform_3(%arg0: i32, %arg1: i32, %arg2: i32) -> (i32, i32) {
    %c0_i32 = arith.constant 0 : i32
    %c0_i32_0 = arith.constant 0 : i32
    return %c0_i32, %arg1 : i32, i32
  }
  func.func @transform_4(%arg0: i32, %arg1: i32, %arg2: i32) -> (i32, i32) {
    %c0_i32 = arith.constant 0 : i32
    return %arg0, %arg1 : i32, i32
  }
}

module attributes {stable_mosaic.version = 11 : i64} {
  func.func @_mm_bn_lrelu_kernel(%arg0: i32, %arg1: i32, %arg2: i32, %arg3: memref<24x2048xbf16, #tpu.memory_space<vmem>>, %arg4: memref<2048x512xbf16, #tpu.memory_space<vmem>>, %arg5: memref<1x512xf32, #tpu.memory_space<vmem>>, %arg6: memref<1x512xf32, #tpu.memory_space<vmem>>, %arg7: memref<24x512xbf16, #tpu.memory_space<vmem>>, %arg8: memref<24x512xf32, #tpu.memory_space<vmem>>) attributes {dimension_semantics = [#tpu.dimension_semantics<parallel>, #tpu.dimension_semantics<parallel>, #tpu.dimension_semantics<arbitrary>], iteration_bounds = array<i64: 1, 1, 2>, scalar_prefetch = 0 : i64, scratch_operands = 1 : i64, tpu.core_type = #tpu.core_type<tc>, window_params = [{transform_indices = @transform_0, window_bounds = array<i64: 24, 2048>}, {transform_indices = @transform_1, window_bounds = array<i64: 2048, 512>}, {transform_indices = @transform_2, window_bounds = array<i64: 1, 512>}, {transform_indices = @transform_3, window_bounds = array<i64: 1, 512>}, {transform_indices = @transform_4, window_bounds = array<i64: 24, 512>}]} {
    %c0_i32 = arith.constant 0 : i32
    %0 = arith.cmpi eq, %arg2, %c0_i32 : i32
    %1 = arith.extui %0 : i1 to i32
    %c0_i32_0 = arith.constant 0 : i32
    %2 = arith.cmpi ne, %1, %c0_i32_0 : i32
    scf.if %2 {
      %cst_9 = arith.constant 0.000000e+00 : f32
      %12 = vector.broadcast %cst_9 : f32 to vector<24x512xf32>
      %c0_10 = arith.constant 0 : index
      %c0_11 = arith.constant 0 : index
      %13 = vector.load %arg8[%c0_10, %c0_11] : memref<24x512xf32, #tpu.memory_space<vmem>>, vector<24x512xf32>
      tpu.vector_store %arg8[%c0_10, %c0_11], %12 {strides = array<i32>} : memref<24x512xf32, #tpu.memory_space<vmem>>, vector<24x512xf32>,
    } else {
    }
    %c0 = arith.constant 0 : index
    %c0_1 = arith.constant 0 : index
    %3 = vector.load %arg8[%c0, %c0_1] : memref<24x512xf32, #tpu.memory_space<vmem>>, vector<24x512xf32>
    %c0_2 = arith.constant 0 : index
    %c0_3 = arith.constant 0 : index
    %4 = vector.load %arg3[%c0_2, %c0_3] : memref<24x2048xbf16, #tpu.memory_space<vmem>>, vector<24x2048xbf16>
    %c0_4 = arith.constant 0 : index
    %c0_5 = arith.constant 0 : index
    %5 = vector.load %arg4[%c0_4, %c0_5] : memref<2048x512xbf16, #tpu.memory_space<vmem>>, vector<2048x512xbf16>
    %cst = arith.constant dense<0.000000e+00> : vector<24x512xf32>
    %6 = tpu.matmul %4, %5, %cst {dimension_numbers = #tpu.dot_dimension_numbers<[1], [0], [0], [1], [0, 0, 1, 1], [], []>} : vector<24x2048xbf16>, vector<2048x512xbf16>, vector<24x512xf32> -> vector<24x512xf32>
    %7 = arith.addf %3, %6 : vector<24x512xf32>
    %c0_6 = arith.constant 0 : index
    %c0_7 = arith.constant 0 : index
    %8 = vector.load %arg8[%c0_6, %c0_7] : memref<24x512xf32, #tpu.memory_space<vmem>>, vector<24x512xf32>
    tpu.vector_store %arg8[%c0_6, %c0_7], %7 {strides = array<i32>} : memref<24x512xf32, #tpu.memory_space<vmem>>, vector<24x512xf32>,
    %c1_i32 = arith.constant 1 : i32
    %9 = arith.cmpi eq, %arg2, %c1_i32 : i32
    %10 = arith.extui %9 : i1 to i32
    %c0_i32_8 = arith.constant 0 : i32
    %11 = arith.cmpi ne, %10, %c0_i32_8 : i32
    scf.if %11 {
      %c0_9 = arith.constant 0 : index
      %c0_10 = arith.constant 0 : index
      %12 = vector.load %arg8[%c0_9, %c0_10] : memref<24x512xf32, #tpu.memory_space<vmem>>, vector<24x512xf32>
      %cst_11 = arith.constant dense<0.000000e+00> : vector<512xf32>
      %13 = vector.multi_reduction <add>, %12, %cst_11 [0] : vector<24x512xf32> to vector<512xf32>
      %14 = vector.shape_cast %13 : vector<512xf32> to vector<1x512xf32>
      %cst_12 = arith.constant 0.055555556 : f32
      %15 = vector.broadcast %cst_12 : f32 to vector<1x512xf32>
      %16 = arith.mulf %14, %15 : vector<1x512xf32>
      %17 = tpu.iota {dimensions = array<i32: 0>} : vector<24x512xi32>
      %c18_i32 = arith.constant 18 : i32
      %18 = vector.broadcast %c18_i32 : i32 to vector<24x512xi32>
      %19 = arith.cmpi slt, %17, %18 : vector<24x512xi32>
      %20 = vector.broadcast %16 : vector<1x512xf32> to vector<24x512xf32>
      %21 = arith.subf %12, %20 : vector<24x512xf32>
      %cst_13 = arith.constant 0.000000e+00 : f32
      %22 = vector.broadcast %cst_13 : f32 to vector<24x512xf32>
      %23 = arith.select %19, %21, %22 : vector<24x512xi1>, vector<24x512xf32>
      %24 = arith.mulf %23, %23 : vector<24x512xf32>
      %cst_14 = arith.constant dense<0.000000e+00> : vector<512xf32>
      %25 = vector.multi_reduction <add>, %24, %cst_14 [0] : vector<24x512xf32> to vector<512xf32>
      %26 = vector.shape_cast %25 : vector<512xf32> to vector<1x512xf32>
      %cst_15 = arith.constant 0.055555556 : f32
      %27 = vector.broadcast %cst_15 : f32 to vector<1x512xf32>
      %28 = arith.mulf %26, %27 : vector<1x512xf32>
      %cst_16 = arith.constant 9.99999974E-6 : f32
      %29 = vector.broadcast %cst_16 : f32 to vector<1x512xf32>
      %30 = arith.addf %28, %29 : vector<1x512xf32>
      %31 = math.rsqrt %30 : vector<1x512xf32>
      %c0_17 = arith.constant 0 : index
      %c0_18 = arith.constant 0 : index
      %32 = vector.load %arg5[%c0_17, %c0_18] : memref<1x512xf32, #tpu.memory_space<vmem>>, vector<1x512xf32>
      %33 = arith.mulf %31, %32 : vector<1x512xf32>
      %34 = vector.broadcast %33 : vector<1x512xf32> to vector<24x512xf32>
      %35 = arith.mulf %23, %34 : vector<24x512xf32>
      %c0_19 = arith.constant 0 : index
      %c0_20 = arith.constant 0 : index
      %36 = vector.load %arg6[%c0_19, %c0_20] : memref<1x512xf32, #tpu.memory_space<vmem>>, vector<1x512xf32>
      %37 = vector.broadcast %36 : vector<1x512xf32> to vector<24x512xf32>
      %38 = arith.addf %35, %37 : vector<24x512xf32>
      %cst_21 = arith.constant 0.000000e+00 : f32
      %39 = vector.broadcast %cst_21 : f32 to vector<24x512xf32>
      %40 = arith.cmpf oge, %38, %39 : vector<24x512xf32>
      %cst_22 = arith.constant 2.000000e-01 : f32
      %41 = vector.broadcast %cst_22 : f32 to vector<24x512xf32>
      %42 = arith.mulf %41, %38 : vector<24x512xf32>
      %43 = arith.select %40, %38, %42 : vector<24x512xi1>, vector<24x512xf32>
      %44 = arith.truncf %43 : vector<24x512xf32> to vector<24x512xbf16>
      %c0_23 = arith.constant 0 : index
      %c0_24 = arith.constant 0 : index
      %45 = vector.load %arg7[%c0_23, %c0_24] : memref<24x512xbf16, #tpu.memory_space<vmem>>, vector<24x512xbf16>
      tpu.vector_store %arg7[%c0_23, %c0_24], %44 {strides = array<i32>} : memref<24x512xbf16, #tpu.memory_space<vmem>>, vector<24x512xbf16>,
    } else {
    }
    return
  }
  func.func @transform_0(%arg0: i32, %arg1: i32, %arg2: i32) -> (i32, i32) {
    %c0_i32 = arith.constant 0 : i32
    return %arg0, %arg2 : i32, i32
  }
  func.func @transform_1(%arg0: i32, %arg1: i32, %arg2: i32) -> (i32, i32) {
    %c0_i32 = arith.constant 0 : i32
    return %arg2, %arg1 : i32, i32
  }
  func.func @transform_2(%arg0: i32, %arg1: i32, %arg2: i32) -> (i32, i32) {
    %c0_i32 = arith.constant 0 : i32
    %c0_i32_0 = arith.constant 0 : i32
    return %c0_i32, %arg1 : i32, i32
  }
  func.func @transform_3(%arg0: i32, %arg1: i32, %arg2: i32) -> (i32, i32) {
    %c0_i32 = arith.constant 0 : i32
    %c0_i32_0 = arith.constant 0 : i32
    return %c0_i32, %arg1 : i32, i32
  }
  func.func @transform_4(%arg0: i32, %arg1: i32, %arg2: i32) -> (i32, i32) {
    %c0_i32 = arith.constant 0 : i32
    return %arg0, %arg1 : i32, i32
  }
}

module attributes {stable_mosaic.version = 11 : i64} {
  func.func @_mm_bias_act_kernel(%arg0: i32, %arg1: i32, %arg2: i32, %arg3: memref<8x2048xbf16, #tpu.memory_space<vmem>>, %arg4: memref<2048x128xbf16, #tpu.memory_space<vmem>>, %arg5: memref<1x128xf32, #tpu.memory_space<vmem>>, %arg6: memref<8x128xf32, #tpu.memory_space<vmem>>, %arg7: memref<8x128xf32, #tpu.memory_space<vmem>>) attributes {dimension_semantics = [#tpu.dimension_semantics<parallel>, #tpu.dimension_semantics<parallel>, #tpu.dimension_semantics<arbitrary>], iteration_bounds = array<i64: 1, 1, 4>, scalar_prefetch = 0 : i64, scratch_operands = 1 : i64, tpu.core_type = #tpu.core_type<tc>, window_params = [{transform_indices = @transform_0, window_bounds = array<i64: 8, 2048>}, {transform_indices = @transform_1, window_bounds = array<i64: 2048, 128>}, {transform_indices = @transform_2, window_bounds = array<i64: 1, 128>}, {transform_indices = @transform_3, window_bounds = array<i64: 8, 128>}]} {
    %c0_i32 = arith.constant 0 : i32
    %0 = arith.cmpi eq, %arg2, %c0_i32 : i32
    %1 = arith.extui %0 : i1 to i32
    %c0_i32_0 = arith.constant 0 : i32
    %2 = arith.cmpi ne, %1, %c0_i32_0 : i32
    scf.if %2 {
      %cst_9 = arith.constant 0.000000e+00 : f32
      %12 = vector.broadcast %cst_9 : f32 to vector<8x128xf32>
      %c0_10 = arith.constant 0 : index
      %c0_11 = arith.constant 0 : index
      %13 = vector.load %arg7[%c0_10, %c0_11] : memref<8x128xf32, #tpu.memory_space<vmem>>, vector<8x128xf32>
      tpu.vector_store %arg7[%c0_10, %c0_11], %12 {strides = array<i32>} : memref<8x128xf32, #tpu.memory_space<vmem>>, vector<8x128xf32>,
    } else {
    }
    %c0 = arith.constant 0 : index
    %c0_1 = arith.constant 0 : index
    %3 = vector.load %arg7[%c0, %c0_1] : memref<8x128xf32, #tpu.memory_space<vmem>>, vector<8x128xf32>
    %c0_2 = arith.constant 0 : index
    %c0_3 = arith.constant 0 : index
    %4 = vector.load %arg3[%c0_2, %c0_3] : memref<8x2048xbf16, #tpu.memory_space<vmem>>, vector<8x2048xbf16>
    %c0_4 = arith.constant 0 : index
    %c0_5 = arith.constant 0 : index
    %5 = vector.load %arg4[%c0_4, %c0_5] : memref<2048x128xbf16, #tpu.memory_space<vmem>>, vector<2048x128xbf16>
    %cst = arith.constant dense<0.000000e+00> : vector<8x128xf32>
    %6 = tpu.matmul %4, %5, %cst {dimension_numbers = #tpu.dot_dimension_numbers<[1], [0], [0], [1], [0, 0, 1, 1], [], []>} : vector<8x2048xbf16>, vector<2048x128xbf16>, vector<8x128xf32> -> vector<8x128xf32>
    %7 = arith.addf %3, %6 : vector<8x128xf32>
    %c0_6 = arith.constant 0 : index
    %c0_7 = arith.constant 0 : index
    %8 = vector.load %arg7[%c0_6, %c0_7] : memref<8x128xf32, #tpu.memory_space<vmem>>, vector<8x128xf32>
    tpu.vector_store %arg7[%c0_6, %c0_7], %7 {strides = array<i32>} : memref<8x128xf32, #tpu.memory_space<vmem>>, vector<8x128xf32>,
    %c3_i32 = arith.constant 3 : i32
    %9 = arith.cmpi eq, %arg2, %c3_i32 : i32
    %10 = arith.extui %9 : i1 to i32
    %c0_i32_8 = arith.constant 0 : i32
    %11 = arith.cmpi ne, %10, %c0_i32_8 : i32
    scf.if %11 {
      %c0_9 = arith.constant 0 : index
      %c0_10 = arith.constant 0 : index
      %12 = vector.load %arg7[%c0_9, %c0_10] : memref<8x128xf32, #tpu.memory_space<vmem>>, vector<8x128xf32>
      %c0_11 = arith.constant 0 : index
      %c0_12 = arith.constant 0 : index
      %13 = vector.load %arg5[%c0_11, %c0_12] : memref<1x128xf32, #tpu.memory_space<vmem>>, vector<1x128xf32>
      %14 = vector.broadcast %13 : vector<1x128xf32> to vector<8x128xf32>
      %15 = arith.addf %12, %14 : vector<8x128xf32>
      %c0_13 = arith.constant 0 : index
      %c0_14 = arith.constant 0 : index
      %16 = vector.load %arg6[%c0_13, %c0_14] : memref<8x128xf32, #tpu.memory_space<vmem>>, vector<8x128xf32>
      tpu.vector_store %arg6[%c0_13, %c0_14], %15 {strides = array<i32>} : memref<8x128xf32, #tpu.memory_space<vmem>>, vector<8x128xf32>,
    } else {
    }
    return
  }
  func.func @transform_0(%arg0: i32, %arg1: i32, %arg2: i32) -> (i32, i32) {
    %c0_i32 = arith.constant 0 : i32
    return %arg0, %arg2 : i32, i32
  }
  func.func @transform_1(%arg0: i32, %arg1: i32, %arg2: i32) -> (i32, i32) {
    %c0_i32 = arith.constant 0 : i32
    return %arg2, %arg1 : i32, i32
  }
  func.func @transform_2(%arg0: i32, %arg1: i32, %arg2: i32) -> (i32, i32) {
    %c0_i32 = arith.constant 0 : i32
    %c0_i32_0 = arith.constant 0 : i32
    return %c0_i32, %arg1 : i32, i32
  }
  func.func @transform_3(%arg0: i32, %arg1: i32, %arg2: i32) -> (i32, i32) {
    %c0_i32 = arith.constant 0 : i32
    return %arg0, %arg1 : i32, i32
  }
}

</mosaic_0001>

<llo_original>
// kernel: discriminator_forward.5
$region0: #{discriminator_forward.5}
  #allocation0 [shape = 'u32[]', space=smem, size = 0x4, offset = 0x4, fixed_abs, tag = 'smem constant byte address 0x4 - core index']
  #allocation1 [shape = 'u32[72,128]{1,0:T(1,128)}', space=vmem, size = 0x9000, scoped, tag = 'internal scratch']
  #allocation2 [shape = 'f32[512,128]{1,0:T(8,128)}', space=vmem, size = 0x40000, scoped, tag = 'scratch operand']
  %s0 = inlined_call_operand.vmem [shape: bf16[512,128], index: 0, kind: input, shape index: {}]
  %s1 = inlined_call_operand.vmem [shape: bf16[128,128], index: 1, kind: input, shape index: {}]
  %s2 = inlined_call_operand.vmem [shape: f32[1,128], index: 2, kind: input, shape index: {}]
  %s3 = inlined_call_operand.vmem [shape: bf16[512,128], index: 3, kind: output, shape index: {}]
  %s4 = sld [smem:[#allocation0]]
  $region30: #{discriminator_forward.5} parent=0
    _
  %s6 = ssub.s32 1, %s4
  %s7 = scalar_select 0, %s6, %s4
  // Predicated region
  $region2: #{discriminator_forward.5} parent=0 // pred_check
    _
  $region3: #{discriminator_forward.5} parent=0 // pred_check_branch
    %9 = sbr.rel (0) target = $region5
  $region4: #{discriminator_forward.5} parent=0 // pred_region
    _
  $region5: #{discriminator_forward.5} parent=0 // pred_fallthru
    _
  // Predicated region
  $region6: #{discriminator_forward.5} parent=0 // pred_check
    _
  $region7: #{discriminator_forward.5} parent=0 // pred_check_branch
    %11 = sbr.rel (0) target = $region9
  $region8: #{discriminator_forward.5} parent=0 // pred_region
    _
  $region9: #{discriminator_forward.5} parent=0 // pred_fallthru
    _
  // Predicated region
  $region10: #{discriminator_forward.5} parent=0 // pred_check
    _
  $region11: #{discriminator_forward.5} parent=0 // pred_check_branch
    %13 = sbr.rel (0) target = $region13
  $region12: #{discriminator_forward.5} parent=0 // pred_region
    _
  $region13: #{discriminator_forward.5} parent=0 // pred_fallthru
    _
  %p14 = scmp.eq.s32.totalorder 0, 0
  // Predicated region
  $region14: #{discriminator_forward.5} parent=0 // pred_check
    %p15 = pneg %p14
  $region15: #{discriminator_forward.5} parent=0 // pred_check_branch
    %17 = sbr.rel (%p15) target = $region17
  $region16: #{discriminator_forward.5} parent=0 // pred_region
    %18 = vst [vmem:[#allocation2] sm:$0xff] 0.0
    %19 = vst [vmem:[#allocation2 + $0x8] sm:$0xff] 0.0
    %20 = vst [vmem:[#allocation2 + $0x10] sm:$0xff] 0.0
    %21 = vst [vmem:[#allocation2 + $0x18] sm:$0xff] 0.0
    %22 = vst [vmem:[#allocation2 + $0x20] sm:$0xff] 0.0
    %23 = vst [vmem:[#allocation2 + $0x28] sm:$0xff] 0.0
    %24 = vst [vmem:[#allocation2 + $0x30] sm:$0xff] 0.0
    %25 = vst [vmem:[#allocation2 + $0x38] sm:$0xff] 0.0
    %26 = vst [vmem:[#allocation2 + $0x40] sm:$0xff] 0.0
    %27 = vst [vmem:[#allocation2 + $0x48] sm:$0xff] 0.0
    %28 = vst [vmem:[#allocation2 + $0x50] sm:$0xff] 0.0
    %29 = vst [vmem:[#allocation2 + $0x58] sm:$0xff] 0.0
    %30 = vst [vmem:[#allocation2 + $0x60] sm:$0xff] 0.0
    %31 = vst [vmem:[#allocation2 + $0x68] sm:$0xff] 0.0
    %32 = vst [vmem:[#allocation2 + $0x70] sm:$0xff] 0.0
    %33 = vst [vmem:[#allocation2 + $0x78] sm:$0xff] 0.0
    %34 = vst [vmem:[#allocation2 + $0x80] sm:$0xff] 0.0
    %35 = vst [vmem:[#allocation2 + $0x88] sm:$0xff] 0.0
    %36 = vst [vmem:[#allocation2 + $0x90] sm:$0xff] 0.0
    %37 = vst [vmem:[#allocation2 + $0x98] sm:$0xff] 0.0
    %38 = vst [vmem:[#allocation2 + $0xa0] sm:$0xff] 0.0
    %39 = vst [vmem:[#allocation2 + $0xa8] sm:$0xff] 0.0
    %40 = vst [vmem:[#allocation2 + $0xb0] sm:$0xff] 0.0
    %41 = vst [vmem:[#allocation2 + $0xb8] sm:$0xff] 0.0
    %42 = vst [vmem:[#allocation2 + $0xc0] sm:$0xff] 0.0
    %43 = vst [vmem:[#allocation2 + $0xc8] sm:$0xff] 0.0
    %44 = vst [vmem:[#allocation2 + $0xd0] sm:$0xff] 0.0
    %45 = vst [vmem:[#allocation2 + $0xd8] sm:$0xff] 0.0
    %46 = vst [vmem:[#allocation2 + $0xe0] sm:$0xff] 0.0
    %47 = vst [vmem:[#allocation2 + $0xe8] sm:$0xff] 0.0
    %48 = vst [vmem:[#allocation2 + $0xf0] sm:$0xff] 0.0
    %49 = vst [vmem:[#allocation2 + $0xf8] sm:$0xff] 0.0
    %50 = vst [vmem:[#allocation2 + $0x100] sm:$0xff] 0.0
    %51 = vst [vmem:[#allocation2 + $0x108] sm:$0xff] 0.0
    %52 = vst [vmem:[#allocation2 + $0x110] sm:$0xff] 0.0
    %53 = vst [vmem:[#allocation2 + $0x118] sm:$0xff] 0.0
    %54 = vst [vmem:[#allocation2 + $0x120] sm:$0xff] 0.0
    %55 = vst [vmem:[#allocation2 + $0x128] sm:$0xff] 0.0
    %56 = vst [vmem:[#allocation2 + $0x130] sm:$0xff] 0.0
    %57 = vst [vmem:[#allocation2 + $0x138] sm:$0xff] 0.0
    %58 = vst [vmem:[#allocation2 + $0x140] sm:$0xff] 0.0
    %59 = vst [vmem:[#allocation2 + $0x148] sm:$0xff] 0.0
    %60 = vst [vmem:[#allocation2 + $0x150] sm:$0xff] 0.0
    %61 = vst [vmem:[#allocation2 + $0x158] sm:$0xff] 0.0
    %62 = vst [vmem:[#allocation2 + $0x160] sm:$0xff] 0.0
    %63 = vst [vmem:[#allocation2 + $0x168] sm:$0xff] 0.0
    %64 = vst [vmem:[#allocation2 + $0x170] sm:$0xff] 0.0
    %65 = vst [vmem:[#allocation2 + $0x178] sm:$0xff] 0.0
    %66 = vst [vmem:[#allocation2 + $0x180] sm:$0xff] 0.0
    %67 = vst [vmem:[#allocation2 + $0x188] sm:$0xff] 0.0
    %68 = vst [vmem:[#allocation2 + $0x190] sm:$0xff] 0.0
    %69 = vst [vmem:[#allocation2 + $0x198] sm:$0xff] 0.0
    %70 = vst [vmem:[#allocation2 + $0x1a0] sm:$0xff] 0.0
    %71 = vst [vmem:[#allocation2 + $0x1a8] sm:$0xff] 0.0
    %72 = vst [vmem:[#allocation2 + $0x1b0] sm:$0xff] 0.0
    %73 = vst [vmem:[#allocation2 + $0x1b8] sm:$0xff] 0.0
    %74 = vst [vmem:[#allocation2 + $0x1c0] sm:$0xff] 0.0
    %75 = vst [vmem:[#allocation2 + $0x1c8] sm:$0xff] 0.0
    %76 = vst [vmem:[#allocation2 + $0x1d0] sm:$0xff] 0.0
    %77 = vst [vmem:[#allocation2 + $0x1d8] sm:$0xff] 0.0
    %78 = vst [vmem:[#allocation2 + $0x1e0] sm:$0xff] 0.0
    %79 = vst [vmem:[#allocation2 + $0x1e8] sm:$0xff] 0.0
    %80 = vst [vmem:[#allocation2 + $0x1f0] sm:$0xff] 0.0
    %81 = vst [vmem:[#allocation2 + $0x1f8] sm:$0xff] 0.0
  $region17: #{discriminator_forward.5} parent=0 // pred_fallthru
    _
  %v82 = vld [vmem:[#allocation2] sm:$0xff]
  %v83 = vld [vmem:[#allocation2 + $0x8] sm:$0xff]
  %v84 = vld [vmem:[#allocation2 + $0x10] sm:$0xff]
  %v85 = vld [vmem:[#allocation2 + $0x18] sm:$0xff]
  %v86 = vld [vmem:[#allocation2 + $0x20] sm:$0xff]
  %v87 = vld [vmem:[#allocation2 + $0x28] sm:$0xff]
  %v88 = vld [vmem:[#allocation2 + $0x30] sm:$0xff]
  %v89 = vld [vmem:[#allocation2 + $0x38] sm:$0xff]
  %v90 = vld [vmem:[#allocation2 + $0x40] sm:$0xff]
  %v91 = vld [vmem:[#allocation2 + $0x48] sm:$0xff]
  %v92 = vld [vmem:[#allocation2 + $0x50] sm:$0xff]
  %v93 = vld [vmem:[#allocation2 + $0x58] sm:$0xff]
  %v94 = vld [vmem:[#allocation2 + $0x60] sm:$0xff]
  %v95 = vld [vmem:[#allocation2 + $0x68] sm:$0xff]
  %v96 = vld [vmem:[#allocation2 + $0x70] sm:$0xff]
  %v97 = vld [vmem:[#allocation2 + $0x78] sm:$0xff]
  %v98 = vld [vmem:[#allocation2 + $0x80] sm:$0xff]
  %v99 = vld [vmem:[#allocation2 + $0x88] sm:$0xff]
  %v100 = vld [vmem:[#allocation2 + $0x90] sm:$0xff]
  %v101 = vld [vmem:[#allocation2 + $0x98] sm:$0xff]
  %v102 = vld [vmem:[#allocation2 + $0xa0] sm:$0xff]
  %v103 = vld [vmem:[#allocation2 + $0xa8] sm:$0xff]
  %v104 = vld [vmem:[#allocation2 + $0xb0] sm:$0xff]
  %v105 = vld [vmem:[#allocation2 + $0xb8] sm:$0xff]
  %v106 = vld [vmem:[#allocation2 + $0xc0] sm:$0xff]
  %v107 = vld [vmem:[#allocation2 + $0xc8] sm:$0xff]
  %v108 = vld [vmem:[#allocation2 + $0xd0] sm:$0xff]
  %v109 = vld [vmem:[#allocation2 + $0xd8] sm:$0xff]
  %v110 = vld [vmem:[#allocation2 + $0xe0] sm:$0xff]
  %v111 = vld [vmem:[#allocation2 + $0xe8] sm:$0xff]
  %v112 = vld [vmem:[#allocation2 + $0xf0] sm:$0xff]
  %v113 = vld [vmem:[#allocation2 + $0xf8] sm:$0xff]
  %v114 = vld [vmem:[#allocation2 + $0x100] sm:$0xff]
  %v115 = vld [vmem:[#allocation2 + $0x108] sm:$0xff]
  %v116 = vld [vmem:[#allocation2 + $0x110] sm:$0xff]
  %v117 = vld [vmem:[#allocation2 + $0x118] sm:$0xff]
  %v118 = vld [vmem:[#allocation2 + $0x120] sm:$0xff]
  %v119 = vld [vmem:[#allocation2 + $0x128] sm:$0xff]
  %v120 = vld [vmem:[#allocation2 + $0x130] sm:$0xff]
  %v121 = vld [vmem:[#allocation2 + $0x138] sm:$0xff]
  %v122 = vld [vmem:[#allocation2 + $0x140] sm:$0xff]
  %v123 = vld [vmem:[#allocation2 + $0x148] sm:$0xff]
  %v124 = vld [vmem:[#allocation2 + $0x150] sm:$0xff]
  %v125 = vld [vmem:[#allocation2 + $0x158] sm:$0xff]
  %v126 = vld [vmem:[#allocation2 + $0x160] sm:$0xff]
  %v127 = vld [vmem:[#allocation2 + $0x168] sm:$0xff]
  %v128 = vld [vmem:[#allocation2 + $0x170] sm:$0xff]
  %v129 = vld [vmem:[#allocation2 + $0x178] sm:$0xff]
  %v130 = vld [vmem:[#allocation2 + $0x180] sm:$0xff]
  %v131 = vld [vmem:[#allocation2 + $0x188] sm:$0xff]
  %v132 = vld [vmem:[#allocation2 + $0x190] sm:$0xff]
  %v133 = vld [vmem:[#allocation2 + $0x198] sm:$0xff]
  %v134 = vld [vmem:[#allocation2 + $0x1a0] sm:$0xff]
  %v135 = vld [vmem:[#allocation2 + $0x1a8] sm:$0xff]
  %v136 = vld [vmem:[#allocation2 + $0x1b0] sm:$0xff]
  %v137 = vld [vmem:[#allocation2 + $0x1b8] sm:$0xff]
  %v138 = vld [vmem:[#allocation2 + $0x1c0] sm:$0xff]
  %v139 = vld [vmem:[#allocation2 + $0x1c8] sm:$0xff]
  %v140 = vld [vmem:[#allocation2 + $0x1d0] sm:$0xff]
  %v141 = vld [vmem:[#allocation2 + $0x1d8] sm:$0xff]
  %v142 = vld [vmem:[#allocation2 + $0x1e0] sm:$0xff]
  %v143 = vld [vmem:[#allocation2 + $0x1e8] sm:$0xff]
  %v144 = vld [vmem:[#allocation2 + $0x1f0] sm:$0xff]
  %v145 = vld [vmem:[#allocation2 + $0x1f8] sm:$0xff]
  %v146 = vld [vmem:[%s0] sm:$0xf]
  %v147 = vld [vmem:[%s0 + $0x4] sm:$0xf]
  %v148 = vld [vmem:[%s0 + $0x8] sm:$0xf]
  %v149 = vld [vmem:[%s0 + $0xc] sm:$0xf]
  %v150 = vld [vmem:[%s0 + $0x10] sm:$0xf]
  %v151 = vld [vmem:[%s0 + $0x14] sm:$0xf]
  %v152 = vld [vmem:[%s0 + $0x18] sm:$0xf]
  %v153 = vld [vmem:[%s0 + $0x1c] sm:$0xf]
  %v154 = vld [vmem:[%s0 + $0x20] sm:$0xf]
  %v155 = vld [vmem:[%s0 + $0x24] sm:$0xf]
  %v156 = vld [vmem:[%s0 + $0x28] sm:$0xf]
  %v157 = vld [vmem:[%s0 + $0x2c] sm:$0xf]
  %v158 = vld [vmem:[%s0 + $0x30] sm:$0xf]
  %v159 = vld [vmem:[%s0 + $0x34] sm:$0xf]
  %v160 = vld [vmem:[%s0 + $0x38] sm:$0xf]
  %v161 = vld [vmem:[%s0 + $0x3c] sm:$0xf]
  %v162 = vld [vmem:[%s0 + $0x40] sm:$0xf]
  %v163 = vld [vmem:[%s0 + $0x44] sm:$0xf]
  %v164 = vld [vmem:[%s0 + $0x48] sm:$0xf]
  %v165 = vld [vmem:[%s0 + $0x4c] sm:$0xf]
  %v166 = vld [vmem:[%s0 + $0x50] sm:$0xf]
  %v167 = vld [vmem:[%s0 + $0x54] sm:$0xf]
  %v168 = vld [vmem:[%s0 + $0x58] sm:$0xf]
  %v169 = vld [vmem:[%s0 + $0x5c] sm:$0xf]
  %v170 = vld [vmem:[%s0 + $0x60] sm:$0xf]
  %v171 = vld [vmem:[%s0 + $0x64] sm:$0xf]
  %v172 = vld [vmem:[%s0 + $0x68] sm:$0xf]
  %v173 = vld [vmem:[%s0 + $0x6c] sm:$0xf]
  %v174 = vld [vmem:[%s0 + $0x70] sm:$0xf]
  %v175 = vld [vmem:[%s0 + $0x74] sm:$0xf]
  %v176 = vld [vmem:[%s0 + $0x78] sm:$0xf]
  %v177 = vld [vmem:[%s0 + $0x7c] sm:$0xf]
  %v178 = vld [vmem:[%s0 + $0x80] sm:$0xf]
  %v179 = vld [vmem:[%s0 + $0x84] sm:$0xf]
  %v180 = vld [vmem:[%s0 + $0x88] sm:$0xf]
  %v181 = vld [vmem:[%s0 + $0x8c] sm:$0xf]
  %v182 = vld [vmem:[%s0 + $0x90] sm:$0xf]
  %v183 = vld [vmem:[%s0 + $0x94] sm:$0xf]
  %v184 = vld [vmem:[%s0 + $0x98] sm:$0xf]
  %v185 = vld [vmem:[%s0 + $0x9c] sm:$0xf]
  %v186 = vld [vmem:[%s0 + $0xa0] sm:$0xf]
  %v187 = vld [vmem:[%s0 + $0xa4] sm:$0xf]
  %v188 = vld [vmem:[%s0 + $0xa8] sm:$0xf]
  %v189 = vld [vmem:[%s0 + $0xac] sm:$0xf]
  %v190 = vld [vmem:[%s0 + $0xb0] sm:$0xf]
  %v191 = vld [vmem:[%s0 + $0xb4] sm:$0xf]
  %v192 = vld [vmem:[%s0 + $0xb8] sm:$0xf]
  %v193 = vld [vmem:[%s0 + $0xbc] sm:$0xf]
  %v194 = vld [vmem:[%s0 + $0xc0] sm:$0xf]
  %v195 = vld [vmem:[%s0 + $0xc4] sm:$0xf]
  %v196 = vld [vmem:[%s0 + $0xc8] sm:$0xf]
  %v197 = vld [vmem:[%s0 + $0xcc] sm:$0xf]
  %v198 = vld [vmem:[%s0 + $0xd0] sm:$0xf]
  %v199 = vld [vmem:[%s0 + $0xd4] sm:$0xf]
  %v200 = vld [vmem:[%s0 + $0xd8] sm:$0xf]
  %v201 = vld [vmem:[%s0 + $0xdc] sm:$0xf]
  %v202 = vld [vmem:[%s0 + $0xe0] sm:$0xf]
  %v203 = vld [vmem:[%s0 + $0xe4] sm:$0xf]
  %v204 = vld [vmem:[%s0 + $0xe8] sm:$0xf]
  %v205 = vld [vmem:[%s0 + $0xec] sm:$0xf]
  %v206 = vld [vmem:[%s0 + $0xf0] sm:$0xf]
  %v207 = vld [vmem:[%s0 + $0xf4] sm:$0xf]
  %v208 = vld [vmem:[%s0 + $0xf8] sm:$0xf]
  %v209 = vld [vmem:[%s0 + $0xfc] sm:$0xf]
  %v210 = vld [vmem:[%s1] sm:$0xf]
  %v211 = vld [vmem:[%s1 + $0x4] sm:$0xf]
  %v212 = vld [vmem:[%s1 + $0x8] sm:$0xf]
  %v213 = vld [vmem:[%s1 + $0xc] sm:$0xf]
  %v214 = vld [vmem:[%s1 + $0x10] sm:$0xf]
  %v215 = vld [vmem:[%s1 + $0x14] sm:$0xf]
  %v216 = vld [vmem:[%s1 + $0x18] sm:$0xf]
  %v217 = vld [vmem:[%s1 + $0x1c] sm:$0xf]
  %v218 = vld [vmem:[%s1 + $0x20] sm:$0xf]
  %v219 = vld [vmem:[%s1 + $0x24] sm:$0xf]
  %v220 = vld [vmem:[%s1 + $0x28] sm:$0xf]
  %v221 = vld [vmem:[%s1 + $0x2c] sm:$0xf]
  %v222 = vld [vmem:[%s1 + $0x30] sm:$0xf]
  %v223 = vld [vmem:[%s1 + $0x34] sm:$0xf]
  %v224 = vld [vmem:[%s1 + $0x38] sm:$0xf]
  %v225 = vld [vmem:[%s1 + $0x3c] sm:$0xf]
  %v290 = vunpack.c.l.b16 %v146
  %v291 = vunpack.c.l.b16 %v147
  %v292 = vunpack.c.l.b16 %v148
  %v293 = vunpack.c.l.b16 %v149
  %v294 = vunpack.c.l.b16 %v150
  %v295 = vunpack.c.l.b16 %v151
  %v296 = vunpack.c.l.b16 %v152
  %v297 = vunpack.c.l.b16 %v153
  %v298 = vunpack.c.l.b16 %v154
  %v299 = vunpack.c.l.b16 %v155
  %v300 = vunpack.c.l.b16 %v156
  %v301 = vunpack.c.l.b16 %v157
  %v302 = vunpack.c.l.b16 %v158
  %v303 = vunpack.c.l.b16 %v159
  %v304 = vunpack.c.l.b16 %v160
  %v305 = vunpack.c.l.b16 %v161
  %v306 = vunpack.c.l.b16 %v162
  %v307 = vunpack.c.l.b16 %v163
  %v308 = vunpack.c.l.b16 %v164
  %v309 = vunpack.c.l.b16 %v165
  %v310 = vunpack.c.l.b16 %v166
  %v311 = vunpack.c.l.b16 %v167
  %v312 = vunpack.c.l.b16 %v168
  %v313 = vunpack.c.l.b16 %v169
  %v314 = vunpack.c.l.b16 %v170
  %v315 = vunpack.c.l.b16 %v171
  %v316 = vunpack.c.l.b16 %v172
  %v317 = vunpack.c.l.b16 %v173
  %v318 = vunpack.c.l.b16 %v174
  %v319 = vunpack.c.l.b16 %v175
  %v320 = vunpack.c.l.b16 %v176
  %v321 = vunpack.c.l.b16 %v177
  %v322 = vunpack.c.l.b16 %v178
  %v323 = vunpack.c.l.b16 %v179
  %v324 = vunpack.c.l.b16 %v180
  %v325 = vunpack.c.l.b16 %v181
  %v326 = vunpack.c.l.b16 %v182
  %v327 = vunpack.c.l.b16 %v183
  %v328 = vunpack.c.l.b16 %v184
  %v329 = vunpack.c.l.b16 %v185
  %v330 = vunpack.c.l.b16 %v186
  %v331 = vunpack.c.l.b16 %v187
  %v332 = vunpack.c.l.b16 %v188
  %v333 = vunpack.c.l.b16 %v189
  %v334 = vunpack.c.l.b16 %v190
  %v335 = vunpack.c.l.b16 %v191
  %v336 = vunpack.c.l.b16 %v192
  %v337 = vunpack.c.l.b16 %v193
  %v338 = vunpack.c.l.b16 %v194
  %v339 = vunpack.c.l.b16 %v195
  %v340 = vunpack.c.l.b16 %v196
  %v341 = vunpack.c.l.b16 %v197
  %v342 = vunpack.c.l.b16 %v198
  %v343 = vunpack.c.l.b16 %v199
  %v344 = vunpack.c.l.b16 %v200
  %v345 = vunpack.c.l.b16 %v201
  %v346 = vunpack.c.l.b16 %v202
  %v347 = vunpack.c.l.b16 %v203
  %v348 = vunpack.c.l.b16 %v204
  %v349 = vunpack.c.l.b16 %v205
  %v350 = vunpack.c.l.b16 %v206
  %v351 = vunpack.c.l.b16 %v207
  %v352 = vunpack.c.l.b16 %v208
  %v353 = vunpack.c.l.b16 %v209
  %v354 = vpack.c.b16 %v291, %v290
  %v355 = vpack.c.b16 %v293, %v292
  %v356 = vpack.c.b16 %v295, %v294
  %v357 = vpack.c.b16 %v297, %v296
  %v358 = vpack.c.b16 %v299, %v298
  %v359 = vpack.c.b16 %v301, %v300
  %v360 = vpack.c.b16 %v303, %v302
  %v361 = vpack.c.b16 %v305, %v304
  %v362 = vpack.c.b16 %v307, %v306
  %v363 = vpack.c.b16 %v309, %v308
  %v364 = vpack.c.b16 %v311, %v310
  %v365 = vpack.c.b16 %v313, %v312
  %v366 = vpack.c.b16 %v315, %v314
  %v367 = vpack.c.b16 %v317, %v316
  %v368 = vpack.c.b16 %v319, %v318
  %v369 = vpack.c.b16 %v321, %v320
  %v370 = vpack.c.b16 %v323, %v322
  %v371 = vpack.c.b16 %v325, %v324
  %v372 = vpack.c.b16 %v327, %v326
  %v373 = vpack.c.b16 %v329, %v328
  %v374 = vpack.c.b16 %v331, %v330
  %v375 = vpack.c.b16 %v333, %v332
  %v376 = vpack.c.b16 %v335, %v334
  %v377 = vpack.c.b16 %v337, %v336
  %v378 = vpack.c.b16 %v339, %v338
  %v379 = vpack.c.b16 %v341, %v340
  %v380 = vpack.c.b16 %v343, %v342
  %v381 = vpack.c.b16 %v345, %v344
  %v382 = vpack.c.b16 %v347, %v346
  %v383 = vpack.c.b16 %v349, %v348
  %v384 = vpack.c.b16 %v351, %v350
  %v385 = vpack.c.b16 %v353, %v352
  %v434 = vunpack.c.l.b16 %v210
  %v435 = vunpack.c.l.b16 %v211
  %v436 = vunpack.c.l.b16 %v212
  %v437 = vunpack.c.l.b16 %v213
  %v438 = vunpack.c.l.b16 %v214
  %v439 = vunpack.c.l.b16 %v215
  %v440 = vunpack.c.l.b16 %v216
  %v441 = vunpack.c.l.b16 %v217
  %v442 = vunpack.c.l.b16 %v218
  %v443 = vunpack.c.l.b16 %v219
  %v444 = vunpack.c.l.b16 %v220
  %v445 = vunpack.c.l.b16 %v221
  %v446 = vunpack.c.l.b16 %v222
  %v447 = vunpack.c.l.b16 %v223
  %v448 = vunpack.c.l.b16 %v224
  %v449 = vunpack.c.l.b16 %v225
  %v450 = vpack.c.b16 %v435, %v434
  %v451 = vpack.c.b16 %v437, %v436
  %v452 = vpack.c.b16 %v439, %v438
  %v453 = vpack.c.b16 %v441, %v440
  %v454 = vpack.c.b16 %v443, %v442
  %v455 = vpack.c.b16 %v445, %v444
  %v456 = vpack.c.b16 %v447, %v446
  %v457 = vpack.c.b16 %v449, %v448
  %466 = vmatpush.bf16.msra.mxu0 %v457
  %467 = vmatpush.bf16.msra.mxu0 %v456
  %468 = vmatpush.bf16.msra.mxu0 %v455
  %469 = vmatpush.bf16.msra.mxu0 %v454
  %470 = vmatpush.bf16.msra.mxu0 %v453
  %471 = vmatpush.bf16.msra.mxu0 %v452
  %472 = vmatpush.bf16.msra.mxu0 %v451
  %473 = vmatpush.bf16.msra.mxu0 %v450
  %474 = vmatmul.bf16.gmra.mxu0 %v354
  %v475 = vpop.f32.mrf.mxu0
  %v476 = vadd.f32 0.0, %v475
  %v477 = vpop.f32.mrf.mxu0
  %v478 = vadd.f32 0.0, %v477
  %479 = vmatmul.bf16.gmra.mxu0 %v355
  %v480 = vpop.f32.mrf.mxu0
  %v481 = vadd.f32 0.0, %v480
  %v482 = vpop.f32.mrf.mxu0
  %v483 = vadd.f32 0.0, %v482
  %484 = vmatmul.bf16.gmra.mxu0 %v356
  %v485 = vpop.f32.mrf.mxu0
  %v486 = vadd.f32 0.0, %v485
  %v487 = vpop.f32.mrf.mxu0
  %v488 = vadd.f32 0.0, %v487
  %489 = vmatmul.bf16.gmra.mxu0 %v357
  %v490 = vpop.f32.mrf.mxu0
  %v491 = vadd.f32 0.0, %v490
  %v492 = vpop.f32.mrf.mxu0
  %v493 = vadd.f32 0.0, %v492
  %494 = vmatmul.bf16.gmra.mxu0 %v358
  %v495 = vpop.f32.mrf.mxu0
  %v496 = vadd.f32 0.0, %v495
  %v497 = vpop.f32.mrf.mxu0
  %v498 = vadd.f32 0.0, %v497
  %499 = vmatmul.bf16.gmra.mxu0 %v359
  %v500 = vpop.f32.mrf.mxu0
  %v501 = vadd.f32 0.0, %v500
  %v502 = vpop.f32.mrf.mxu0
  %v503 = vadd.f32 0.0, %v502
  %504 = vmatmul.bf16.gmra.mxu0 %v360
  %v505 = vpop.f32.mrf.mxu0
  %v506 = vadd.f32 0.0, %v505
  %v507 = vpop.f32.mrf.mxu0
  %v508 = vadd.f32 0.0, %v507
  %509 = vmatmul.bf16.gmra.mxu0 %v361
  %v510 = vpop.f32.mrf.mxu0
  %v511 = vadd.f32 0.0, %v510
  %v512 = vpop.f32.mrf.mxu0
  %v513 = vadd.f32 0.0, %v512
  %514 = vmatmul.bf16.gmra.mxu0 %v362
  %v515 = vpop.f32.mrf.mxu0
  %v516 = vadd.f32 0.0, %v515
  %v517 = vpop.f32.mrf.mxu0
  %v518 = vadd.f32 0.0, %v517
  %519 = vmatmul.bf16.gmra.mxu0 %v363
  %v520 = vpop.f32.mrf.mxu0
  %v521 = vadd.f32 0.0, %v520
  %v522 = vpop.f32.mrf.mxu0
  %v523 = vadd.f32 0.0, %v522
  %524 = vmatmul.bf16.gmra.mxu0 %v364
  %v525 = vpop.f32.mrf.mxu0
  %v526 = vadd.f32 0.0, %v525
  %v527 = vpop.f32.mrf.mxu0
  %v528 = vadd.f32 0.0, %v527
  %529 = vmatmul.bf16.gmra.mxu0 %v365
  %v530 = vpop.f32.mrf.mxu0
  %v531 = vadd.f32 0.0, %v530
  %v532 = vpop.f32.mrf.mxu0
  %v533 = vadd.f32 0.0, %v532
  %534 = vmatmul.bf16.gmra.mxu0 %v366
  %v535 = vpop.f32.mrf.mxu0
  %v536 = vadd.f32 0.0, %v535
  %v537 = vpop.f32.mrf.mxu0
  %v538 = vadd.f32 0.0, %v537
  %539 = vmatmul.bf16.gmra.mxu0 %v367
  %v540 = vpop.f32.mrf.mxu0
  %v541 = vadd.f32 0.0, %v540
  %v542 = vpop.f32.mrf.mxu0
  %v543 = vadd.f32 0.0, %v542
  %544 = vmatmul.bf16.gmra.mxu0 %v368
  %v545 = vpop.f32.mrf.mxu0
  %v546 = vadd.f32 0.0, %v545
  %v547 = vpop.f32.mrf.mxu0
  %v548 = vadd.f32 0.0, %v547
  %549 = vmatmul.bf16.gmra.mxu0 %v369
  %v550 = vpop.f32.mrf.mxu0
  %v551 = vadd.f32 0.0, %v550
  %v552 = vpop.f32.mrf.mxu0
  %v553 = vadd.f32 0.0, %v552
  %554 = vmatmul.bf16.gmra.mxu0 %v370
  %v555 = vpop.f32.mrf.mxu0
  %v556 = vadd.f32 0.0, %v555
  %v557 = vpop.f32.mrf.mxu0
  %v558 = vadd.f32 0.0, %v557
  %559 = vmatmul.bf16.gmra.mxu0 %v371
  %v560 = vpop.f32.mrf.mxu0
  %v561 = vadd.f32 0.0, %v560
  %v562 = vpop.f32.mrf.mxu0
  %v563 = vadd.f32 0.0, %v562
  %564 = vmatmul.bf16.gmra.mxu0 %v372
  %v565 = vpop.f32.mrf.mxu0
  %v566 = vadd.f32 0.0, %v565
  %v567 = vpop.f32.mrf.mxu0
  %v568 = vadd.f32 0.0, %v567
  %569 = vmatmul.bf16.gmra.mxu0 %v373
  %v570 = vpop.f32.mrf.mxu0
  %v571 = vadd.f32 0.0, %v570
  %v572 = vpop.f32.mrf.mxu0
  %v573 = vadd.f32 0.0, %v572
  %574 = vmatmul.bf16.gmra.mxu0 %v374
  %v575 = vpop.f32.mrf.mxu0
  %v576 = vadd.f32 0.0, %v575
  %v577 = vpop.f32.mrf.mxu0
  %v578 = vadd.f32 0.0, %v577
  %579 = vmatmul.bf16.gmra.mxu0 %v375
  %v580 = vpop.f32.mrf.mxu0
  %v581 = vadd.f32 0.0, %v580
  %v582 = vpop.f32.mrf.mxu0
  %v583 = vadd.f32 0.0, %v582
  %584 = vmatmul.bf16.gmra.mxu0 %v376
  %v585 = vpop.f32.mrf.mxu0
  %v586 = vadd.f32 0.0, %v585
  %v587 = vpop.f32.mrf.mxu0
  %v588 = vadd.f32 0.0, %v587
  %589 = vmatmul.bf16.gmra.mxu0 %v377
  %v590 = vpop.f32.mrf.mxu0
  %v591 = vadd.f32 0.0, %v590
  %v592 = vpop.f32.mrf.mxu0
  %v593 = vadd.f32 0.0, %v592
  %594 = vmatmul.bf16.gmra.mxu0 %v378
  %v595 = vpop.f32.mrf.mxu0
  %v596 = vadd.f32 0.0, %v595
  %v597 = vpop.f32.mrf.mxu0
  %v598 = vadd.f32 0.0, %v597
  %599 = vmatmul.bf16.gmra.mxu0 %v379
  %v600 = vpop.f32.mrf.mxu0
  %v601 = vadd.f32 0.0, %v600
  %v602 = vpop.f32.mrf.mxu0
  %v603 = vadd.f32 0.0, %v602
  %604 = vmatmul.bf16.gmra.mxu0 %v380
  %v605 = vpop.f32.mrf.mxu0
  %v606 = vadd.f32 0.0, %v605
  %v607 = vpop.f32.mrf.mxu0
  %v608 = vadd.f32 0.0, %v607
  %609 = vmatmul.bf16.gmra.mxu0 %v381
  %v610 = vpop.f32.mrf.mxu0
  %v611 = vadd.f32 0.0, %v610
  %v612 = vpop.f32.mrf.mxu0
  %v613 = vadd.f32 0.0, %v612
  %614 = vmatmul.bf16.gmra.mxu0 %v382
  %v615 = vpop.f32.mrf.mxu0
  %v616 = vadd.f32 0.0, %v615
  %v617 = vpop.f32.mrf.mxu0
  %v618 = vadd.f32 0.0, %v617
  %619 = vmatmul.bf16.gmra.mxu0 %v383
  %v620 = vpop.f32.mrf.mxu0
  %v621 = vadd.f32 0.0, %v620
  %v622 = vpop.f32.mrf.mxu0
  %v623 = vadd.f32 0.0, %v622
  %624 = vmatmul.bf16.gmra.mxu0 %v384
  %v625 = vpop.f32.mrf.mxu0
  %v626 = vadd.f32 0.0, %v625
  %v627 = vpop.f32.mrf.mxu0
  %v628 = vadd.f32 0.0, %v627
  %629 = vmatmul.bf16.gmra.mxu0 %v385
  %v630 = vpop.f32.mrf.mxu0
  %v631 = vadd.f32 0.0, %v630
  %v632 = vpop.f32.mrf.mxu0
  %v633 = vadd.f32 0.0, %v632
  %634 = vdwg.mxu0
  %v635 = vadd.f32 %v82, %v476
  %v636 = vadd.f32 %v83, %v478
  %v637 = vadd.f32 %v84, %v481
  %v638 = vadd.f32 %v85, %v483
  %v639 = vadd.f32 %v86, %v486
  %v640 = vadd.f32 %v87, %v488
  %v641 = vadd.f32 %v88, %v491
  %v642 = vadd.f32 %v89, %v493
  %v643 = vadd.f32 %v90, %v496
  %v644 = vadd.f32 %v91, %v498
  %v645 = vadd.f32 %v92, %v501
  %v646 = vadd.f32 %v93, %v503
  %v647 = vadd.f32 %v94, %v506
  %v648 = vadd.f32 %v95, %v508
  %v649 = vadd.f32 %v96, %v511
  %v650 = vadd.f32 %v97, %v513
  %v651 = vadd.f32 %v98, %v516
  %v652 = vadd.f32 %v99, %v518
  %v653 = vadd.f32 %v100, %v521
  %v654 = vadd.f32 %v101, %v523
  %v655 = vadd.f32 %v102, %v526
  %v656 = vadd.f32 %v103, %v528
  %v657 = vadd.f32 %v104, %v531
  %v658 = vadd.f32 %v105, %v533
  %v659 = vadd.f32 %v106, %v536
  %v660 = vadd.f32 %v107, %v538
  %v661 = vadd.f32 %v108, %v541
  %v662 = vadd.f32 %v109, %v543
  %v663 = vadd.f32 %v110, %v546
  %v664 = vadd.f32 %v111, %v548
  %v665 = vadd.f32 %v112, %v551
  %v666 = vadd.f32 %v113, %v553
  %v667 = vadd.f32 %v114, %v556
  %v668 = vadd.f32 %v115, %v558
  %v669 = vadd.f32 %v116, %v561
  %v670 = vadd.f32 %v117, %v563
  %v671 = vadd.f32 %v118, %v566
  %v672 = vadd.f32 %v119, %v568
  %v673 = vadd.f32 %v120, %v571
  %v674 = vadd.f32 %v121, %v573
  %v675 = vadd.f32 %v122, %v576
  %v676 = vadd.f32 %v123, %v578
  %v677 = vadd.f32 %v124, %v581
  %v678 = vadd.f32 %v125, %v583
  %v679 = vadd.f32 %v126, %v586
  %v680 = vadd.f32 %v127, %v588
  %v681 = vadd.f32 %v128, %v591
  %v682 = vadd.f32 %v129, %v593
  %v683 = vadd.f32 %v130, %v596
  %v684 = vadd.f32 %v131, %v598
  %v685 = vadd.f32 %v132, %v601
  %v686 = vadd.f32 %v133, %v603
  %v687 = vadd.f32 %v134, %v606
  %v688 = vadd.f32 %v135, %v608
  %v689 = vadd.f32 %v136, %v611
  %v690 = vadd.f32 %v137, %v613
  %v691 = vadd.f32 %v138, %v616
  %v692 = vadd.f32 %v139, %v618
  %v693 = vadd.f32 %v140, %v621
  %v694 = vadd.f32 %v141, %v623
  %v695 = vadd.f32 %v142, %v626
  %v696 = vadd.f32 %v143, %v628
  %v697 = vadd.f32 %v144, %v631
  %v698 = vadd.f32 %v145, %v633
  %699 = vst [vmem:[#allocation2] sm:$0xff] %v635
  %700 = vst [vmem:[#allocation2 + $0x8] sm:$0xff] %v636
  %701 = vst [vmem:[#allocation2 + $0x10] sm:$0xff] %v637
  %702 = vst [vmem:[#allocation2 + $0x18] sm:$0xff] %v638
  %703 = vst [vmem:[#allocation2 + $0x20] sm:$0xff] %v639
  %704 = vst [vmem:[#allocation2 + $0x28] sm:$0xff] %v640
  %705 = vst [vmem:[#allocation2 + $0x30] sm:$0xff] %v641
  %706 = vst [vmem:[#allocation2 + $0x38] sm:$0xff] %v642
  %707 = vst [vmem:[#allocation2 + $0x40] sm:$0xff] %v643
  %708 = vst [vmem:[#allocation2 + $0x48] sm:$0xff] %v644
  %709 = vst [vmem:[#allocation2 + $0x50] sm:$0xff] %v645
  %710 = vst [vmem:[#allocation2 + $0x58] sm:$0xff] %v646
  %711 = vst [vmem:[#allocation2 + $0x60] sm:$0xff] %v647
  %712 = vst [vmem:[#allocation2 + $0x68] sm:$0xff] %v648
  %713 = vst [vmem:[#allocation2 + $0x70] sm:$0xff] %v649
  %714 = vst [vmem:[#allocation2 + $0x78] sm:$0xff] %v650
  %715 = vst [vmem:[#allocation2 + $0x80] sm:$0xff] %v651
  %716 = vst [vmem:[#allocation2 + $0x88] sm:$0xff] %v652
  %717 = vst [vmem:[#allocation2 + $0x90] sm:$0xff] %v653
  %718 = vst [vmem:[#allocation2 + $0x98] sm:$0xff] %v654
  %719 = vst [vmem:[#allocation2 + $0xa0] sm:$0xff] %v655
  %720 = vst [vmem:[#allocation2 + $0xa8] sm:$0xff] %v656
  %721 = vst [vmem:[#allocation2 + $0xb0] sm:$0xff] %v657
  %722 = vst [vmem:[#allocation2 + $0xb8] sm:$0xff] %v658
  %723 = vst [vmem:[#allocation2 + $0xc0] sm:$0xff] %v659
  %724 = vst [vmem:[#allocation2 + $0xc8] sm:$0xff] %v660
  %725 = vst [vmem:[#allocation2 + $0xd0] sm:$0xff] %v661
  %726 = vst [vmem:[#allocation2 + $0xd8] sm:$0xff] %v662
  %727 = vst [vmem:[#allocation2 + $0xe0] sm:$0xff] %v663
  %728 = vst [vmem:[#allocation2 + $0xe8] sm:$0xff] %v664
  %729 = vst [vmem:[#allocation2 + $0xf0] sm:$0xff] %v665
  %730 = vst [vmem:[#allocation2 + $0xf8] sm:$0xff] %v666
  %731 = vst [vmem:[#allocation2 + $0x100] sm:$0xff] %v667
  %732 = vst [vmem:[#allocation2 + $0x108] sm:$0xff] %v668
  %733 = vst [vmem:[#allocation2 + $0x110] sm:$0xff] %v669
  %734 = vst [vmem:[#allocation2 + $0x118] sm:$0xff] %v670
  %735 = vst [vmem:[#allocation2 + $0x120] sm:$0xff] %v671
  %736 = vst [vmem:[#allocation2 + $0x128] sm:$0xff] %v672
  %737 = vst [vmem:[#allocation2 + $0x130] sm:$0xff] %v673
  %738 = vst [vmem:[#allocation2 + $0x138] sm:$0xff] %v674
  %739 = vst [vmem:[#allocation2 + $0x140] sm:$0xff] %v675
  %740 = vst [vmem:[#allocation2 + $0x148] sm:$0xff] %v676
  %741 = vst [vmem:[#allocation2 + $0x150] sm:$0xff] %v677
  %742 = vst [vmem:[#allocation2 + $0x158] sm:$0xff] %v678
  %743 = vst [vmem:[#allocation2 + $0x160] sm:$0xff] %v679
  %744 = vst [vmem:[#allocation2 + $0x168] sm:$0xff] %v680
  %745 = vst [vmem:[#allocation2 + $0x170] sm:$0xff] %v681
  %746 = vst [vmem:[#allocation2 + $0x178] sm:$0xff] %v682
  %747 = vst [vmem:[#allocation2 + $0x180] sm:$0xff] %v683
  %748 = vst [vmem:[#allocation2 + $0x188] sm:$0xff] %v684
  %749 = vst [vmem:[#allocation2 + $0x190] sm:$0xff] %v685
  %750 = vst [vmem:[#allocation2 + $0x198] sm:$0xff] %v686
  %751 = vst [vmem:[#allocation2 + $0x1a0] sm:$0xff] %v687
  %752 = vst [vmem:[#allocation2 + $0x1a8] sm:$0xff] %v688
  %753 = vst [vmem:[#allocation2 + $0x1b0] sm:$0xff] %v689
  %754 = vst [vmem:[#allocation2 + $0x1b8] sm:$0xff] %v690
  %755 = vst [vmem:[#allocation2 + $0x1c0] sm:$0xff] %v691
  %756 = vst [vmem:[#allocation2 + $0x1c8] sm:$0xff] %v692
  %757 = vst [vmem:[#allocation2 + $0x1d0] sm:$0xff] %v693
  %758 = vst [vmem:[#allocation2 + $0x1d8] sm:$0xff] %v694
  %759 = vst [vmem:[#allocation2 + $0x1e0] sm:$0xff] %v695
  %760 = vst [vmem:[#allocation2 + $0x1e8] sm:$0xff] %v696
  %761 = vst [vmem:[#allocation2 + $0x1f0] sm:$0xff] %v697
  %762 = vst [vmem:[#allocation2 + $0x1f8] sm:$0xff] %v698
  // Predicated region
  $region18: #{discriminator_forward.5} parent=0 // pred_check
    %p763 = pneg %p14
  $region19: #{discriminator_forward.5} parent=0 // pred_check_branch
    %765 = sbr.rel (%p763) target = $region21
  $region20: #{discriminator_forward.5} parent=0 // pred_region
    %v766 = vld [vmem:[#allocation2] sm:$0xff]
    %v767 = vld [vmem:[#allocation2 + $0x8] sm:$0xff]
    %v768 = vld [vmem:[#allocation2 + $0x10] sm:$0xff]
    %v769 = vld [vmem:[#allocation2 + $0x18] sm:$0xff]
    %v770 = vld [vmem:[#allocation2 + $0x20] sm:$0xff]
    %v771 = vld [vmem:[#allocation2 + $0x28] sm:$0xff]
    %v772 = vld [vmem:[#allocation2 + $0x30] sm:$0xff]
    %v773 = vld [vmem:[#allocation2 + $0x38] sm:$0xff]
    %v774 = vld [vmem:[#allocation2 + $0x40] sm:$0xff]
    %v775 = vld [vmem:[#allocation2 + $0x48] sm:$0xff]
    %v776 = vld [vmem:[#allocation2 + $0x50] sm:$0xff]
    %v777 = vld [vmem:[#allocation2 + $0x58] sm:$0xff]
    %v778 = vld [vmem:[#allocation2 + $0x60] sm:$0xff]
    %v779 = vld [vmem:[#allocation2 + $0x68] sm:$0xff]
    %v780 = vld [vmem:[#allocation2 + $0x70] sm:$0xff]
    %v781 = vld [vmem:[#allocation2 + $0x78] sm:$0xff]
    %v782 = vld [vmem:[#allocation2 + $0x80] sm:$0xff]
    %v783 = vld [vmem:[#allocation2 + $0x88] sm:$0xff]
    %v784 = vld [vmem:[#allocation2 + $0x90] sm:$0xff]
    %v785 = vld [vmem:[#allocation2 + $0x98] sm:$0xff]
    %v786 = vld [vmem:[#allocation2 + $0xa0] sm:$0xff]
    %v787 = vld [vmem:[#allocation2 + $0xa8] sm:$0xff]
    %v788 = vld [vmem:[#allocation2 + $0xb0] sm:$0xff]
    %v789 = vld [vmem:[#allocation2 + $0xb8] sm:$0xff]
    %v790 = vld [vmem:[#allocation2 + $0xc0] sm:$0xff]
    %v791 = vld [vmem:[#allocation2 + $0xc8] sm:$0xff]
    %v792 = vld [vmem:[#allocation2 + $0xd0] sm:$0xff]
    %v793 = vld [vmem:[#allocation2 + $0xd8] sm:$0xff]
    %v794 = vld [vmem:[#allocation2 + $0xe0] sm:$0xff]
    %v795 = vld [vmem:[#allocation2 + $0xe8] sm:$0xff]
    %v796 = vld [vmem:[#allocation2 + $0xf0] sm:$0xff]
    %v797 = vld [vmem:[#allocation2 + $0xf8] sm:$0xff]
    %v798 = vld [vmem:[#allocation2 + $0x100] sm:$0xff]
    %v799 = vld [vmem:[#allocation2 + $0x108] sm:$0xff]
    %v800 = vld [vmem:[#allocation2 + $0x110] sm:$0xff]
    %v801 = vld [vmem:[#allocation2 + $0x118] sm:$0xff]
    %v802 = vld [vmem:[#allocation2 + $0x120] sm:$0xff]
    %v803 = vld [vmem:[#allocation2 + $0x128] sm:$0xff]
    %v804 = vld [vmem:[#allocation2 + $0x130] sm:$0xff]
    %v805 = vld [vmem:[#allocation2 + $0x138] sm:$0xff]
    %v806 = vld [vmem:[#allocation2 + $0x140] sm:$0xff]
    %v807 = vld [vmem:[#allocation2 + $0x148] sm:$0xff]
    %v808 = vld [vmem:[#allocation2 + $0x150] sm:$0xff]
    %v809 = vld [vmem:[#allocation2 + $0x158] sm:$0xff]
    %v810 = vld [vmem:[#allocation2 + $0x160] sm:$0xff]
    %v811 = vld [vmem:[#allocation2 + $0x168] sm:$0xff]
    %v812 = vld [vmem:[#allocation2 + $0x170] sm:$0xff]
    %v813 = vld [vmem:[#allocation2 + $0x178] sm:$0xff]
    %v814 = vld [vmem:[#allocation2 + $0x180] sm:$0xff]
    %v815 = vld [vmem:[#allocation2 + $0x188] sm:$0xff]
    %v816 = vld [vmem:[#allocation2 + $0x190] sm:$0xff]
    %v817 = vld [vmem:[#allocation2 + $0x198] sm:$0xff]
    %v818 = vld [vmem:[#allocation2 + $0x1a0] sm:$0xff]
    %v819 = vld [vmem:[#allocation2 + $0x1a8] sm:$0xff]
    %v820 = vld [vmem:[#allocation2 + $0x1b0] sm:$0xff]
    %v821 = vld [vmem:[#allocation2 + $0x1b8] sm:$0xff]
    %v822 = vld [vmem:[#allocation2 + $0x1c0] sm:$0xff]
    %v823 = vld [vmem:[#allocation2 + $0x1c8] sm:$0xff]
    %v824 = vld [vmem:[#allocation2 + $0x1d0] sm:$0xff]
    %v825 = vld [vmem:[#allocation2 + $0x1d8] sm:$0xff]
    %v826 = vld [vmem:[#allocation2 + $0x1e0] sm:$0xff]
    %v827 = vld [vmem:[#allocation2 + $0x1e8] sm:$0xff]
    %v828 = vld [vmem:[#allocation2 + $0x1f0] sm:$0xff]
    %v829 = vld [vmem:[#allocation2 + $0x1f8] sm:$0xff]
    %v830 = vld [vmem:[%s2] sm:$0x1]
    %v832 = vperm.slane %v830, 0
    %v834 = vadd.f32 %v766, %v832
    %v835 = vadd.f32 %v767, %v832
    %v836 = vadd.f32 %v768, %v832
    %v837 = vadd.f32 %v769, %v832
    %v838 = vadd.f32 %v770, %v832
    %v839 = vadd.f32 %v771, %v832
    %v840 = vadd.f32 %v772, %v832
    %v841 = vadd.f32 %v773, %v832
    %v842 = vadd.f32 %v774, %v832
    %v843 = vadd.f32 %v775, %v832
    %v844 = vadd.f32 %v776, %v832
    %v845 = vadd.f32 %v777, %v832
    %v846 = vadd.f32 %v778, %v832
    %v847 = vadd.f32 %v779, %v832
    %v848 = vadd.f32 %v780, %v832
    %v849 = vadd.f32 %v781, %v832
    %v850 = vadd.f32 %v782, %v832
    %v851 = vadd.f32 %v783, %v832
    %v852 = vadd.f32 %v784, %v832
    %v853 = vadd.f32 %v785, %v832
    %v854 = vadd.f32 %v786, %v832
    %v855 = vadd.f32 %v787, %v832
    %v856 = vadd.f32 %v788, %v832
    %v857 = vadd.f32 %v789, %v832
    %v858 = vadd.f32 %v790, %v832
    %v859 = vadd.f32 %v791, %v832
    %v860 = vadd.f32 %v792, %v832
    %v861 = vadd.f32 %v793, %v832
    %v862 = vadd.f32 %v794, %v832
    %v863 = vadd.f32 %v795, %v832
    %v864 = vadd.f32 %v796, %v832
    %v865 = vadd.f32 %v797, %v832
    %v866 = vadd.f32 %v798, %v832
    %v867 = vadd.f32 %v799, %v832
    %v868 = vadd.f32 %v800, %v832
    %v869 = vadd.f32 %v801, %v832
    %v870 = vadd.f32 %v802, %v832
    %v871 = vadd.f32 %v803, %v832
    %v872 = vadd.f32 %v804, %v832
    %v873 = vadd.f32 %v805, %v832
    %v874 = vadd.f32 %v806, %v832
    %v875 = vadd.f32 %v807, %v832
    %v876 = vadd.f32 %v808, %v832
    %v877 = vadd.f32 %v809, %v832
    %v878 = vadd.f32 %v810, %v832
    %v879 = vadd.f32 %v811, %v832
    %v880 = vadd.f32 %v812, %v832
    %v881 = vadd.f32 %v813, %v832
    %v882 = vadd.f32 %v814, %v832
    %v883 = vadd.f32 %v815, %v832
    %v884 = vadd.f32 %v816, %v832
    %v885 = vadd.f32 %v817, %v832
    %v886 = vadd.f32 %v818, %v832
    %v887 = vadd.f32 %v819, %v832
    %v888 = vadd.f32 %v820, %v832
    %v889 = vadd.f32 %v821, %v832
    %v890 = vadd.f32 %v822, %v832
    %v891 = vadd.f32 %v823, %v832
    %v892 = vadd.f32 %v824, %v832
    %v893 = vadd.f32 %v825, %v832
    %v894 = vadd.f32 %v826, %v832
    %v895 = vadd.f32 %v827, %v832
    %v896 = vadd.f32 %v828, %v832
    %v897 = vadd.f32 %v829, %v832
    %vm898 = vcmp.ge.f32.partialorder %v834, 0.0
    %vm899 = vcmp.ge.f32.partialorder %v835, 0.0
    %vm900 = vcmp.ge.f32.partialorder %v836, 0.0
    %vm901 = vcmp.ge.f32.partialorder %v837, 0.0
    %vm902 = vcmp.ge.f32.partialorder %v838, 0.0
    %vm903 = vcmp.ge.f32.partialorder %v839, 0.0
    %vm904 = vcmp.ge.f32.partialorder %v840, 0.0
    %vm905 = vcmp.ge.f32.partialorder %v841, 0.0
    %vm906 = vcmp.ge.f32.partialorder %v842, 0.0
    %vm907 = vcmp.ge.f32.partialorder %v843, 0.0
    %vm908 = vcmp.ge.f32.partialorder %v844, 0.0
    %vm909 = vcmp.ge.f32.partialorder %v845, 0.0
    %vm910 = vcmp.ge.f32.partialorder %v846, 0.0
    %vm911 = vcmp.ge.f32.partialorder %v847, 0.0
    %vm912 = vcmp.ge.f32.partialorder %v848, 0.0
    %vm913 = vcmp.ge.f32.partialorder %v849, 0.0
    %vm914 = vcmp.ge.f32.partialorder %v850, 0.0
    %vm915 = vcmp.ge.f32.partialorder %v851, 0.0
    %vm916 = vcmp.ge.f32.partialorder %v852, 0.0
    %vm917 = vcmp.ge.f32.partialorder %v853, 0.0
    %vm918 = vcmp.ge.f32.partialorder %v854, 0.0
    %vm919 = vcmp.ge.f32.partialorder %v855, 0.0
    %vm920 = vcmp.ge.f32.partialorder %v856, 0.0
    %vm921 = vcmp.ge.f32.partialorder %v857, 0.0
    %vm922 = vcmp.ge.f32.partialorder %v858, 0.0
    %vm923 = vcmp.ge.f32.partialorder %v859, 0.0
    %vm924 = vcmp.ge.f32.partialorder %v860, 0.0
    %vm925 = vcmp.ge.f32.partialorder %v861, 0.0
    %vm926 = vcmp.ge.f32.partialorder %v862, 0.0
    %vm927 = vcmp.ge.f32.partialorder %v863, 0.0
    %vm928 = vcmp.ge.f32.partialorder %v864, 0.0
    %vm929 = vcmp.ge.f32.partialorder %v865, 0.0
    %vm930 = vcmp.ge.f32.partialorder %v866, 0.0
    %vm931 = vcmp.ge.f32.partialorder %v867, 0.0
    %vm932 = vcmp.ge.f32.partialorder %v868, 0.0
    %vm933 = vcmp.ge.f32.partialorder %v869, 0.0
    %vm934 = vcmp.ge.f32.partialorder %v870, 0.0
    %vm935 = vcmp.ge.f32.partialorder %v871, 0.0
    %vm936 = vcmp.ge.f32.partialorder %v872, 0.0
    %vm937 = vcmp.ge.f32.partialorder %v873, 0.0
    %vm938 = vcmp.ge.f32.partialorder %v874, 0.0
    %vm939 = vcmp.ge.f32.partialorder %v875, 0.0
    %vm940 = vcmp.ge.f32.partialorder %v876, 0.0
    %vm941 = vcmp.ge.f32.partialorder %v877, 0.0
    %vm942 = vcmp.ge.f32.partialorder %v878, 0.0
    %vm943 = vcmp.ge.f32.partialorder %v879, 0.0
    %vm944 = vcmp.ge.f32.partialorder %v880, 0.0
    %vm945 = vcmp.ge.f32.partialorder %v881, 0.0
    %vm946 = vcmp.ge.f32.partialorder %v882, 0.0
    %vm947 = vcmp.ge.f32.partialorder %v883, 0.0
    %vm948 = vcmp.ge.f32.partialorder %v884, 0.0
    %vm949 = vcmp.ge.f32.partialorder %v885, 0.0
    %vm950 = vcmp.ge.f32.partialorder %v886, 0.0
    %vm951 = vcmp.ge.f32.partialorder %v887, 0.0
    %vm952 = vcmp.ge.f32.partialorder %v888, 0.0
    %vm953 = vcmp.ge.f32.partialorder %v889, 0.0
    %vm954 = vcmp.ge.f32.partialorder %v890, 0.0
    %vm955 = vcmp.ge.f32.partialorder %v891, 0.0
    %vm956 = vcmp.ge.f32.partialorder %v892, 0.0
    %vm957 = vcmp.ge.f32.partialorder %v893, 0.0
    %vm958 = vcmp.ge.f32.partialorder %v894, 0.0
    %vm959 = vcmp.ge.f32.partialorder %v895, 0.0
    %vm960 = vcmp.ge.f32.partialorder %v896, 0.0
    %vm961 = vcmp.ge.f32.partialorder %v897, 0.0
    %v962 = vmul.f32 %v834, 0.2
    %v963 = vmul.f32 %v835, 0.2
    %v964 = vmul.f32 %v836, 0.2
    %v965 = vmul.f32 %v837, 0.2
    %v966 = vmul.f32 %v838, 0.2
    %v967 = vmul.f32 %v839, 0.2
    %v968 = vmul.f32 %v840, 0.2
    %v969 = vmul.f32 %v841, 0.2
    %v970 = vmul.f32 %v842, 0.2
    %v971 = vmul.f32 %v843, 0.2
    %v972 = vmul.f32 %v844, 0.2
    %v973 = vmul.f32 %v845, 0.2
    %v974 = vmul.f32 %v846, 0.2
    %v975 = vmul.f32 %v847, 0.2
    %v976 = vmul.f32 %v848, 0.2
    %v977 = vmul.f32 %v849, 0.2
    %v978 = vmul.f32 %v850, 0.2
    %v979 = vmul.f32 %v851, 0.2
    %v980 = vmul.f32 %v852, 0.2
    %v981 = vmul.f32 %v853, 0.2
    %v982 = vmul.f32 %v854, 0.2
    %v983 = vmul.f32 %v855, 0.2
    %v984 = vmul.f32 %v856, 0.2
    %v985 = vmul.f32 %v857, 0.2
    %v986 = vmul.f32 %v858, 0.2
    %v987 = vmul.f32 %v859, 0.2
    %v988 = vmul.f32 %v860, 0.2
    %v989 = vmul.f32 %v861, 0.2
    %v990 = vmul.f32 %v862, 0.2
    %v991 = vmul.f32 %v863, 0.2
    %v992 = vmul.f32 %v864, 0.2
    %v993 = vmul.f32 %v865, 0.2
    %v994 = vmul.f32 %v866, 0.2
    %v995 = vmul.f32 %v867, 0.2
    %v996 = vmul.f32 %v868, 0.2
    %v997 = vmul.f32 %v869, 0.2
    %v998 = vmul.f32 %v870, 0.2
    %v999 = vmul.f32 %v871, 0.2
    %v1000 = vmul.f32 %v872, 0.2
    %v1001 = vmul.f32 %v873, 0.2
    %v1002 = vmul.f32 %v874, 0.2
    %v1003 = vmul.f32 %v875, 0.2
    %v1004 = vmul.f32 %v876, 0.2
    %v1005 = vmul.f32 %v877, 0.2
    %v1006 = vmul.f32 %v878, 0.2
    %v1007 = vmul.f32 %v879, 0.2
    %v1008 = vmul.f32 %v880, 0.2
    %v1009 = vmul.f32 %v881, 0.2
    %v1010 = vmul.f32 %v882, 0.2
    %v1011 = vmul.f32 %v883, 0.2
    %v1012 = vmul.f32 %v884, 0.2
    %v1013 = vmul.f32 %v885, 0.2
    %v1014 = vmul.f32 %v886, 0.2
    %v1015 = vmul.f32 %v887, 0.2
    %v1016 = vmul.f32 %v888, 0.2
    %v1017 = vmul.f32 %v889, 0.2
    %v1018 = vmul.f32 %v890, 0.2
    %v1019 = vmul.f32 %v891, 0.2
    %v1020 = vmul.f32 %v892, 0.2
    %v1021 = vmul.f32 %v893, 0.2
    %v1022 = vmul.f32 %v894, 0.2
    %v1023 = vmul.f32 %v895, 0.2
    %v1024 = vmul.f32 %v896, 0.2
    %v1025 = vmul.f32 %v897, 0.2
    %v1026 = vsel %vm898, %v834, %v962
    %v1027 = vsel %vm899, %v835, %v963
    %v1028 = vsel %vm900, %v836, %v964
    %v1029 = vsel %vm901, %v837, %v965
    %v1030 = vsel %vm902, %v838, %v966
    %v1031 = vsel %vm903, %v839, %v967
    %v1032 = vsel %vm904, %v840, %v968
    %v1033 = vsel %vm905, %v841, %v969
    %v1034 = vsel %vm906, %v842, %v970
    %v1035 = vsel %vm907, %v843, %v971
    %v1036 = vsel %vm908, %v844, %v972
    %v1037 = vsel %vm909, %v845, %v973
    %v1038 = vsel %vm910, %v846, %v974
    %v1039 = vsel %vm911, %v847, %v975
    %v1040 = vsel %vm912, %v848, %v976
    %v1041 = vsel %vm913, %v849, %v977
    %v1042 = vsel %vm914, %v850, %v978
    %v1043 = vsel %vm915, %v851, %v979
    %v1044 = vsel %vm916, %v852, %v980
    %v1045 = vsel %vm917, %v853, %v981
    %v1046 = vsel %vm918, %v854, %v982
    %v1047 = vsel %vm919, %v855, %v983
    %v1048 = vsel %vm920, %v856, %v984
    %v1049 = vsel %vm921, %v857, %v985
    %v1050 = vsel %vm922, %v858, %v986
    %v1051 = vsel %vm923, %v859, %v987
    %v1052 = vsel %vm924, %v860, %v988
    %v1053 = vsel %vm925, %v861, %v989
    %v1054 = vsel %vm926, %v862, %v990
    %v1055 = vsel %vm927, %v863, %v991
    %v1056 = vsel %vm928, %v864, %v992
    %v1057 = vsel %vm929, %v865, %v993
    %v1058 = vsel %vm930, %v866, %v994
    %v1059 = vsel %vm931, %v867, %v995
    %v1060 = vsel %vm932, %v868, %v996
    %v1061 = vsel %vm933, %v869, %v997
    %v1062 = vsel %vm934, %v870, %v998
    %v1063 = vsel %vm935, %v871, %v999
    %v1064 = vsel %vm936, %v872, %v1000
    %v1065 = vsel %vm937, %v873, %v1001
    %v1066 = vsel %vm938, %v874, %v1002
    %v1067 = vsel %vm939, %v875, %v1003
    %v1068 = vsel %vm940, %v876, %v1004
    %v1069 = vsel %vm941, %v877, %v1005
    %v1070 = vsel %vm942, %v878, %v1006
    %v1071 = vsel %vm943, %v879, %v1007
    %v1072 = vsel %vm944, %v880, %v1008
    %v1073 = vsel %vm945, %v881, %v1009
    %v1074 = vsel %vm946, %v882, %v1010
    %v1075 = vsel %vm947, %v883, %v1011
    %v1076 = vsel %vm948, %v884, %v1012
    %v1077 = vsel %vm949, %v885, %v1013
    %v1078 = vsel %vm950, %v886, %v1014
    %v1079 = vsel %vm951, %v887, %v1015
    %v1080 = vsel %vm952, %v888, %v1016
    %v1081 = vsel %vm953, %v889, %v1017
    %v1082 = vsel %vm954, %v890, %v1018
    %v1083 = vsel %vm955, %v891, %v1019
    %v1084 = vsel %vm956, %v892, %v1020
    %v1085 = vsel %vm957, %v893, %v1021
    %v1086 = vsel %vm958, %v894, %v1022
    %v1087 = vsel %vm959, %v895, %v1023
    %v1088 = vsel %vm960, %v896, %v1024
    %v1089 = vsel %vm961, %v897, %v1025
    %v1090 = vpack.c.bf16 %v1026, %v1026
    %v1091 = vpack.c.bf16 %v1027, %v1027
    %v1092 = vpack.c.bf16 %v1028, %v1028
    %v1093 = vpack.c.bf16 %v1029, %v1029
    %v1094 = vpack.c.bf16 %v1030, %v1030
    %v1095 = vpack.c.bf16 %v1031, %v1031
    %v1096 = vpack.c.bf16 %v1032, %v1032
    %v1097 = vpack.c.bf16 %v1033, %v1033
    %v1098 = vpack.c.bf16 %v1034, %v1034
    %v1099 = vpack.c.bf16 %v1035, %v1035
    %v1100 = vpack.c.bf16 %v1036, %v1036
    %v1101 = vpack.c.bf16 %v1037, %v1037
    %v1102 = vpack.c.bf16 %v1038, %v1038
    %v1103 = vpack.c.bf16 %v1039, %v1039
    %v1104 = vpack.c.bf16 %v1040, %v1040
    %v1105 = vpack.c.bf16 %v1041, %v1041
    %v1106 = vpack.c.bf16 %v1042, %v1042
    %v1107 = vpack.c.bf16 %v1043, %v1043
    %v1108 = vpack.c.bf16 %v1044, %v1044
    %v1109 = vpack.c.bf16 %v1045, %v1045
    %v1110 = vpack.c.bf16 %v1046, %v1046
    %v1111 = vpack.c.bf16 %v1047, %v1047
    %v1112 = vpack.c.bf16 %v1048, %v1048
    %v1113 = vpack.c.bf16 %v1049, %v1049
    %v1114 = vpack.c.bf16 %v1050, %v1050
    %v1115 = vpack.c.bf16 %v1051, %v1051
    %v1116 = vpack.c.bf16 %v1052, %v1052
    %v1117 = vpack.c.bf16 %v1053, %v1053
    %v1118 = vpack.c.bf16 %v1054, %v1054
    %v1119 = vpack.c.bf16 %v1055, %v1055
    %v1120 = vpack.c.bf16 %v1056, %v1056
    %v1121 = vpack.c.bf16 %v1057, %v1057
    %v1122 = vpack.c.bf16 %v1058, %v1058
    %v1123 = vpack.c.bf16 %v1059, %v1059
    %v1124 = vpack.c.bf16 %v1060, %v1060
    %v1125 = vpack.c.bf16 %v1061, %v1061
    %v1126 = vpack.c.bf16 %v1062, %v1062
    %v1127 = vpack.c.bf16 %v1063, %v1063
    %v1128 = vpack.c.bf16 %v1064, %v1064
    %v1129 = vpack.c.bf16 %v1065, %v1065
    %v1130 = vpack.c.bf16 %v1066, %v1066
    %v1131 = vpack.c.bf16 %v1067, %v1067
    %v1132 = vpack.c.bf16 %v1068, %v1068
    %v1133 = vpack.c.bf16 %v1069, %v1069
    %v1134 = vpack.c.bf16 %v1070, %v1070
    %v1135 = vpack.c.bf16 %v1071, %v1071
    %v1136 = vpack.c.bf16 %v1072, %v1072
    %v1137 = vpack.c.bf16 %v1073, %v1073
    %v1138 = vpack.c.bf16 %v1074, %v1074
    %v1139 = vpack.c.bf16 %v1075, %v1075
    %v1140 = vpack.c.bf16 %v1076, %v1076
    %v1141 = vpack.c.bf16 %v1077, %v1077
    %v1142 = vpack.c.bf16 %v1078, %v1078
    %v1143 = vpack.c.bf16 %v1079, %v1079
    %v1144 = vpack.c.bf16 %v1080, %v1080
    %v1145 = vpack.c.bf16 %v1081, %v1081
    %v1146 = vpack.c.bf16 %v1082, %v1082
    %v1147 = vpack.c.bf16 %v1083, %v1083
    %v1148 = vpack.c.bf16 %v1084, %v1084
    %v1149 = vpack.c.bf16 %v1085, %v1085
    %v1150 = vpack.c.bf16 %v1086, %v1086
    %v1151 = vpack.c.bf16 %v1087, %v1087
    %v1152 = vpack.c.bf16 %v1088, %v1088
    %v1153 = vpack.c.bf16 %v1089, %v1089
    %1154 = vst [vmem:[%s3] sm:$0xf] %v1090
    %1155 = vst [vmem:[%s3 + $0x4] sm:$0xf] %v1091
    %1156 = vst [vmem:[%s3 + $0x8] sm:$0xf] %v1092
    %1157 = vst [vmem:[%s3 + $0xc] sm:$0xf] %v1093
    %1158 = vst [vmem:[%s3 + $0x10] sm:$0xf] %v1094
    %1159 = vst [vmem:[%s3 + $0x14] sm:$0xf] %v1095
    %1160 = vst [vmem:[%s3 + $0x18] sm:$0xf] %v1096
    %1161 = vst [vmem:[%s3 + $0x1c] sm:$0xf] %v1097
    %1162 = vst [vmem:[%s3 + $0x20] sm:$0xf] %v1098
    %1163 = vst [vmem:[%s3 + $0x24] sm:$0xf] %v1099
    %1164 = vst [vmem:[%s3 + $0x28] sm:$0xf] %v1100
    %1165 = vst [vmem:[%s3 + $0x2c] sm:$0xf] %v1101
    %1166 = vst [vmem:[%s3 + $0x30] sm:$0xf] %v1102
    %1167 = vst [vmem:[%s3 + $0x34] sm:$0xf] %v1103
    %1168 = vst [vmem:[%s3 + $0x38] sm:$0xf] %v1104
    %1169 = vst [vmem:[%s3 + $0x3c] sm:$0xf] %v1105
    %1170 = vst [vmem:[%s3 + $0x40] sm:$0xf] %v1106
    %1171 = vst [vmem:[%s3 + $0x44] sm:$0xf] %v1107
    %1172 = vst [vmem:[%s3 + $0x48] sm:$0xf] %v1108
    %1173 = vst [vmem:[%s3 + $0x4c] sm:$0xf] %v1109
    %1174 = vst [vmem:[%s3 + $0x50] sm:$0xf] %v1110
    %1175 = vst [vmem:[%s3 + $0x54] sm:$0xf] %v1111
    %1176 = vst [vmem:[%s3 + $0x58] sm:$0xf] %v1112
    %1177 = vst [vmem:[%s3 + $0x5c] sm:$0xf] %v1113
    %1178 = vst [vmem:[%s3 + $0x60] sm:$0xf] %v1114
    %1179 = vst [vmem:[%s3 + $0x64] sm:$0xf] %v1115
    %1180 = vst [vmem:[%s3 + $0x68] sm:$0xf] %v1116
    %1181 = vst [vmem:[%s3 + $0x6c] sm:$0xf] %v1117
    %1182 = vst [vmem:[%s3 + $0x70] sm:$0xf] %v1118
    %1183 = vst [vmem:[%s3 + $0x74] sm:$0xf] %v1119
    %1184 = vst [vmem:[%s3 + $0x78] sm:$0xf] %v1120
    %1185 = vst [vmem:[%s3 + $0x7c] sm:$0xf] %v1121
    %1186 = vst [vmem:[%s3 + $0x80] sm:$0xf] %v1122
    %1187 = vst [vmem:[%s3 + $0x84] sm:$0xf] %v1123
    %1188 = vst [vmem:[%s3 + $0x88] sm:$0xf] %v1124
    %1189 = vst [vmem:[%s3 + $0x8c] sm:$0xf] %v1125
    %1190 = vst [vmem:[%s3 + $0x90] sm:$0xf] %v1126
    %1191 = vst [vmem:[%s3 + $0x94] sm:$0xf] %v1127
    %1192 = vst [vmem:[%s3 + $0x98] sm:$0xf] %v1128
    %1193 = vst [vmem:[%s3 + $0x9c] sm:$0xf] %v1129
    %1194 = vst [vmem:[%s3 + $0xa0] sm:$0xf] %v1130
    %1195 = vst [vmem:[%s3 + $0xa4] sm:$0xf] %v1131
    %1196 = vst [vmem:[%s3 + $0xa8] sm:$0xf] %v1132
    %1197 = vst [vmem:[%s3 + $0xac] sm:$0xf] %v1133
    %1198 = vst [vmem:[%s3 + $0xb0] sm:$0xf] %v1134
    %1199 = vst [vmem:[%s3 + $0xb4] sm:$0xf] %v1135
    %1200 = vst [vmem:[%s3 + $0xb8] sm:$0xf] %v1136
    %1201 = vst [vmem:[%s3 + $0xbc] sm:$0xf] %v1137
    %1202 = vst [vmem:[%s3 + $0xc0] sm:$0xf] %v1138
    %1203 = vst [vmem:[%s3 + $0xc4] sm:$0xf] %v1139
    %1204 = vst [vmem:[%s3 + $0xc8] sm:$0xf] %v1140
    %1205 = vst [vmem:[%s3 + $0xcc] sm:$0xf] %v1141
    %1206 = vst [vmem:[%s3 + $0xd0] sm:$0xf] %v1142
    %1207 = vst [vmem:[%s3 + $0xd4] sm:$0xf] %v1143
    %1208 = vst [vmem:[%s3 + $0xd8] sm:$0xf] %v1144
    %1209 = vst [vmem:[%s3 + $0xdc] sm:$0xf] %v1145
    %1210 = vst [vmem:[%s3 + $0xe0] sm:$0xf] %v1146
    %1211 = vst [vmem:[%s3 + $0xe4] sm:$0xf] %v1147
    %1212 = vst [vmem:[%s3 + $0xe8] sm:$0xf] %v1148
    %1213 = vst [vmem:[%s3 + $0xec] sm:$0xf] %v1149
    %1214 = vst [vmem:[%s3 + $0xf0] sm:$0xf] %v1150
    %1215 = vst [vmem:[%s3 + $0xf4] sm:$0xf] %v1151
    %1216 = vst [vmem:[%s3 + $0xf8] sm:$0xf] %v1152
    %1217 = vst [vmem:[%s3 + $0xfc] sm:$0xf] %v1153
  $region21: #{discriminator_forward.5} parent=0 // pred_fallthru
    _
  // Predicated region
  $region22: #{discriminator_forward.5} parent=0 // pred_check
    _
  $region23: #{discriminator_forward.5} parent=0 // pred_check_branch
    %1219 = sbr.rel (0) target = $region25
  $region24: #{discriminator_forward.5} parent=0 // pred_region
    _
  $region25: #{discriminator_forward.5} parent=0 // pred_fallthru
    _
  // Predicated region
  $region26: #{discriminator_forward.5} parent=0 // pred_check
    _
  $region27: #{discriminator_forward.5} parent=0 // pred_check_branch
    %1221 = sbr.rel (0) target = $region29
  $region28: #{discriminator_forward.5} parent=0 // pred_region
    _
  $region29: #{discriminator_forward.5} parent=0 // pred_fallthru
    _

// kernel: discriminator_forward.6
$region0: #{discriminator_forward.6}
  #allocation0 [shape = 'u32[]', space=smem, size = 0x4, offset = 0x4, fixed_abs, tag = 'smem constant byte address 0x4 - core index']
  #allocation1 [shape = 'u32[72,128]{1,0:T(1,128)}', space=vmem, size = 0x9000, scoped, tag = 'internal scratch']
  #allocation2 [shape = 'f32[128,128]{1,0:T(8,128)}', space=vmem, size = 0x10000, scoped, tag = 'scratch operand']
  %s0 = inlined_call_operand.vmem [shape: bf16[128,1024], index: 0, kind: input, shape index: {}]
  %s1 = inlined_call_operand.vmem [shape: bf16[1024,128], index: 1, kind: input, shape index: {}]
  %s2 = inlined_call_operand.vmem [shape: f32[1,128], index: 2, kind: input, shape index: {}]
  %s3 = inlined_call_operand.vmem [shape: f32[1,128], index: 3, kind: input, shape index: {}]
  %s4 = inlined_call_operand.vmem [shape: bf16[128,128], index: 4, kind: output, shape index: {}]
  %s5 = sld [smem:[#allocation0]]
  $region34: #{discriminator_forward.6} parent=0
    _
  %s7 = ssub.s32 1, %s5
  %s8 = scalar_select 0, %s7, %s5
  // Predicated region
  $region2: #{discriminator_forward.6} parent=0 // pred_check
    _
  $region3: #{discriminator_forward.6} parent=0 // pred_check_branch
    %10 = sbr.rel (0) target = $region5
  $region4: #{discriminator_forward.6} parent=0 // pred_region
    _
  $region5: #{discriminator_forward.6} parent=0 // pred_fallthru
    _
  // Predicated region
  $region6: #{discriminator_forward.6} parent=0 // pred_check
    _
  $region7: #{discriminator_forward.6} parent=0 // pred_check_branch
    %12 = sbr.rel (0) target = $region9
  $region8: #{discriminator_forward.6} parent=0 // pred_region
    _
  $region9: #{discriminator_forward.6} parent=0 // pred_fallthru
    _
  // Predicated region
  $region10: #{discriminator_forward.6} parent=0 // pred_check
    _
  $region11: #{discriminator_forward.6} parent=0 // pred_check_branch
    %14 = sbr.rel (0) target = $region13
  $region12: #{discriminator_forward.6} parent=0 // pred_region
    _
  $region13: #{discriminator_forward.6} parent=0 // pred_fallthru
    _
  // Predicated region
  $region14: #{discriminator_forward.6} parent=0 // pred_check
    _
  $region15: #{discriminator_forward.6} parent=0 // pred_check_branch
    %16 = sbr.rel (0) target = $region17
  $region16: #{discriminator_forward.6} parent=0 // pred_region
    _
  $region17: #{discriminator_forward.6} parent=0 // pred_fallthru
    _
  %p17 = scmp.eq.s32.totalorder 0, 0
  // Predicated region
  $region18: #{discriminator_forward.6} parent=0 // pred_check
    %p18 = pneg %p17
  $region19: #{discriminator_forward.6} parent=0 // pred_check_branch
    %20 = sbr.rel (%p18) target = $region21
  $region20: #{discriminator_forward.6} parent=0 // pred_region
    %21 = vst [vmem:[#allocation2] sm:$0xff] 0.0
    %22 = vst [vmem:[#allocation2 + $0x8] sm:$0xff] 0.0
    %23 = vst [vmem:[#allocation2 + $0x10] sm:$0xff] 0.0
    %24 = vst [vmem:[#allocation2 + $0x18] sm:$0xff] 0.0
    %25 = vst [vmem:[#allocation2 + $0x20] sm:$0xff] 0.0
    %26 = vst [vmem:[#allocation2 + $0x28] sm:$0xff] 0.0
    %27 = vst [vmem:[#allocation2 + $0x30] sm:$0xff] 0.0
    %28 = vst [vmem:[#allocation2 + $0x38] sm:$0xff] 0.0
    %29 = vst [vmem:[#allocation2 + $0x40] sm:$0xff] 0.0
    %30 = vst [vmem:[#allocation2 + $0x48] sm:$0xff] 0.0
    %31 = vst [vmem:[#allocation2 + $0x50] sm:$0xff] 0.0
    %32 = vst [vmem:[#allocation2 + $0x58] sm:$0xff] 0.0
    %33 = vst [vmem:[#allocation2 + $0x60] sm:$0xff] 0.0
    %34 = vst [vmem:[#allocation2 + $0x68] sm:$0xff] 0.0
    %35 = vst [vmem:[#allocation2 + $0x70] sm:$0xff] 0.0
    %36 = vst [vmem:[#allocation2 + $0x78] sm:$0xff] 0.0
  $region21: #{discriminator_forward.6} parent=0 // pred_fallthru
    _
  %v37 = vld [vmem:[#allocation2] sm:$0xff]
  %v38 = vld [vmem:[#allocation2 + $0x8] sm:$0xff]
  %v39 = vld [vmem:[#allocation2 + $0x10] sm:$0xff]
  %v40 = vld [vmem:[#allocation2 + $0x18] sm:$0xff]
  %v41 = vld [vmem:[#allocation2 + $0x20] sm:$0xff]
  %v42 = vld [vmem:[#allocation2 + $0x28] sm:$0xff]
  %v43 = vld [vmem:[#allocation2 + $0x30] sm:$0xff]
  %v44 = vld [vmem:[#allocation2 + $0x38] sm:$0xff]
  %v45 = vld [vmem:[#allocation2 + $0x40] sm:$0xff]
  %v46 = vld [vmem:[#allocation2 + $0x48] sm:$0xff]
  %v47 = vld [vmem:[#allocation2 + $0x50] sm:$0xff]
  %v48 = vld [vmem:[#allocation2 + $0x58] sm:$0xff]
  %v49 = vld [vmem:[#allocation2 + $0x60] sm:$0xff]
  %v50 = vld [vmem:[#allocation2 + $0x68] sm:$0xff]
  %v51 = vld [vmem:[#allocation2 + $0x70] sm:$0xff]
  %v52 = vld [vmem:[#allocation2 + $0x78] sm:$0xff]
  %v53 = vld [vmem:[%s0] sm:$0xff]
  %v54 = vld [vmem:[%s0 + $0x8] sm:$0xff]
  %v55 = vld [vmem:[%s0 + $0x10] sm:$0xff]
  %v56 = vld [vmem:[%s0 + $0x18] sm:$0xff]
  %v57 = vld [vmem:[%s0 + $0x20] sm:$0xff]
  %v58 = vld [vmem:[%s0 + $0x28] sm:$0xff]
  %v59 = vld [vmem:[%s0 + $0x30] sm:$0xff]
  %v60 = vld [vmem:[%s0 + $0x38] sm:$0xff]
  %v61 = vld [vmem:[%s0 + $0x40] sm:$0xff]
  %v62 = vld [vmem:[%s0 + $0x48] sm:$0xff]
  %v63 = vld [vmem:[%s0 + $0x50] sm:$0xff]
  %v64 = vld [vmem:[%s0 + $0x58] sm:$0xff]
  %v65 = vld [vmem:[%s0 + $0x60] sm:$0xff]
  %v66 = vld [vmem:[%s0 + $0x68] sm:$0xff]
  %v67 = vld [vmem:[%s0 + $0x70] sm:$0xff]
  %v68 = vld [vmem:[%s0 + $0x78] sm:$0xff]
  %v69 = vld [vmem:[%s0 + $0x80] sm:$0xff]
  %v70 = vld [vmem:[%s0 + $0x88] sm:$0xff]
  %v71 = vld [vmem:[%s0 + $0x90] sm:$0xff]
  %v72 = vld [vmem:[%s0 + $0x98] sm:$0xff]
  %v73 = vld [vmem:[%s0 + $0xa0] sm:$0xff]
  %v74 = vld [vmem:[%s0 + $0xa8] sm:$0xff]
  %v75 = vld [vmem:[%s0 + $0xb0] sm:$0xff]
  %v76 = vld [vmem:[%s0 + $0xb8] sm:$0xff]
  %v77 = vld [vmem:[%s0 + $0xc0] sm:$0xff]
  %v78 = vld [vmem:[%s0 + $0xc8] sm:$0xff]
  %v79 = vld [vmem:[%s0 + $0xd0] sm:$0xff]
  %v80 = vld [vmem:[%s0 + $0xd8] sm:$0xff]
  %v81 = vld [vmem:[%s0 + $0xe0] sm:$0xff]
  %v82 = vld [vmem:[%s0 + $0xe8] sm:$0xff]
  %v83 = vld [vmem:[%s0 + $0xf0] sm:$0xff]
  %v84 = vld [vmem:[%s0 + $0xf8] sm:$0xff]
  %v85 = vld [vmem:[%s0 + $0x100] sm:$0xff]
  %v86 = vld [vmem:[%s0 + $0x108] sm:$0xff]
  %v87 = vld [vmem:[%s0 + $0x110] sm:$0xff]
  %v88 = vld [vmem:[%s0 + $0x118] sm:$0xff]
  %v89 = vld [vmem:[%s0 + $0x120] sm:$0xff]
  %v90 = vld [vmem:[%s0 + $0x128] sm:$0xff]
  %v91 = vld [vmem:[%s0 + $0x130] sm:$0xff]
  %v92 = vld [vmem:[%s0 + $0x138] sm:$0xff]
  %v93 = vld [vmem:[%s0 + $0x140] sm:$0xff]
  %v94 = vld [vmem:[%s0 + $0x148] sm:$0xff]
  %v95 = vld [vmem:[%s0 + $0x150] sm:$0xff]
  %v96 = vld [vmem:[%s0 + $0x158] sm:$0xff]
  %v97 = vld [vmem:[%s0 + $0x160] sm:$0xff]
  %v98 = vld [vmem:[%s0 + $0x168] sm:$0xff]
  %v99 = vld [vmem:[%s0 + $0x170] sm:$0xff]
  %v100 = vld [vmem:[%s0 + $0x178] sm:$0xff]
  %v101 = vld [vmem:[%s0 + $0x180] sm:$0xff]
  %v102 = vld [vmem:[%s0 + $0x188] sm:$0xff]
  %v103 = vld [vmem:[%s0 + $0x190] sm:$0xff]
  %v104 = vld [vmem:[%s0 + $0x198] sm:$0xff]
  %v105 = vld [vmem:[%s0 + $0x1a0] sm:$0xff]
  %v106 = vld [vmem:[%s0 + $0x1a8] sm:$0xff]
  %v107 = vld [vmem:[%s0 + $0x1b0] sm:$0xff]
  %v108 = vld [vmem:[%s0 + $0x1b8] sm:$0xff]
  %v109 = vld [vmem:[%s0 + $0x1c0] sm:$0xff]
  %v110 = vld [vmem:[%s0 + $0x1c8] sm:$0xff]
  %v111 = vld [vmem:[%s0 + $0x1d0] sm:$0xff]
  %v112 = vld [vmem:[%s0 + $0x1d8] sm:$0xff]
  %v113 = vld [vmem:[%s0 + $0x1e0] sm:$0xff]
  %v114 = vld [vmem:[%s0 + $0x1e8] sm:$0xff]
  %v115 = vld [vmem:[%s0 + $0x1f0] sm:$0xff]
  %v116 = vld [vmem:[%s0 + $0x1f8] sm:$0xff]
  %v117 = vld [vmem:[%s1] sm:$0xf]
  %v118 = vld [vmem:[%s1 + $0x4] sm:$0xf]
  %v119 = vld [vmem:[%s1 + $0x8] sm:$0xf]
  %v120 = vld [vmem:[%s1 + $0xc] sm:$0xf]
  %v121 = vld [vmem:[%s1 + $0x10] sm:$0xf]
  %v122 = vld [vmem:[%s1 + $0x14] sm:$0xf]
  %v123 = vld [vmem:[%s1 + $0x18] sm:$0xf]
  %v124 = vld [vmem:[%s1 + $0x1c] sm:$0xf]
  %v125 = vld [vmem:[%s1 + $0x20] sm:$0xf]
  %v126 = vld [vmem:[%s1 + $0x24] sm:$0xf]
  %v127 = vld [vmem:[%s1 + $0x28] sm:$0xf]
  %v128 = vld [vmem:[%s1 + $0x2c] sm:$0xf]
  %v129 = vld [vmem:[%s1 + $0x30] sm:$0xf]
  %v130 = vld [vmem:[%s1 + $0x34] sm:$0xf]
  %v131 = vld [vmem:[%s1 + $0x38] sm:$0xf]
  %v132 = vld [vmem:[%s1 + $0x3c] sm:$0xf]
  %v133 = vld [vmem:[%s1 + $0x40] sm:$0xf]
  %v134 = vld [vmem:[%s1 + $0x44] sm:$0xf]
  %v135 = vld [vmem:[%s1 + $0x48] sm:$0xf]
  %v136 = vld [vmem:[%s1 + $0x4c] sm:$0xf]
  %v137 = vld [vmem:[%s1 + $0x50] sm:$0xf]
  %v138 = vld [vmem:[%s1 + $0x54] sm:$0xf]
  %v139 = vld [vmem:[%s1 + $0x58] sm:$0xf]
  %v140 = vld [vmem:[%s1 + $0x5c] sm:$0xf]
  %v141 = vld [vmem:[%s1 + $0x60] sm:$0xf]
  %v142 = vld [vmem:[%s1 + $0x64] sm:$0xf]
  %v143 = vld [vmem:[%s1 + $0x68] sm:$0xf]
  %v144 = vld [vmem:[%s1 + $0x6c] sm:$0xf]
  %v145 = vld [vmem:[%s1 + $0x70] sm:$0xf]
  %v146 = vld [vmem:[%s1 + $0x74] sm:$0xf]
  %v147 = vld [vmem:[%s1 + $0x78] sm:$0xf]
  %v148 = vld [vmem:[%s1 + $0x7c] sm:$0xf]
  %v149 = vld [vmem:[%s1 + $0x80] sm:$0xf]
  %v150 = vld [vmem:[%s1 + $0x84] sm:$0xf]
  %v151 = vld [vmem:[%s1 + $0x88] sm:$0xf]
  %v152 = vld [vmem:[%s1 + $0x8c] sm:$0xf]
  %v153 = vld [vmem:[%s1 + $0x90] sm:$0xf]
  %v154 = vld [vmem:[%s1 + $0x94] sm:$0xf]
  %v155 = vld [vmem:[%s1 + $0x98] sm:$0xf]
  %v156 = vld [vmem:[%s1 + $0x9c] sm:$0xf]
  %v157 = vld [vmem:[%s1 + $0xa0] sm:$0xf]
  %v158 = vld [vmem:[%s1 + $0xa4] sm:$0xf]
  %v159 = vld [vmem:[%s1 + $0xa8] sm:$0xf]
  %v160 = vld [vmem:[%s1 + $0xac] sm:$0xf]
  %v161 = vld [vmem:[%s1 + $0xb0] sm:$0xf]
  %v162 = vld [vmem:[%s1 + $0xb4] sm:$0xf]
  %v163 = vld [vmem:[%s1 + $0xb8] sm:$0xf]
  %v164 = vld [vmem:[%s1 + $0xbc] sm:$0xf]
  %v165 = vld [vmem:[%s1 + $0xc0] sm:$0xf]
  %v166 = vld [vmem:[%s1 + $0xc4] sm:$0xf]
  %v167 = vld [vmem:[%s1 + $0xc8] sm:$0xf]
  %v168 = vld [vmem:[%s1 + $0xcc] sm:$0xf]
  %v169 = vld [vmem:[%s1 + $0xd0] sm:$0xf]
  %v170 = vld [vmem:[%s1 + $0xd4] sm:$0xf]
  %v171 = vld [vmem:[%s1 + $0xd8] sm:$0xf]
  %v172 = vld [vmem:[%s1 + $0xdc] sm:$0xf]
  %v173 = vld [vmem:[%s1 + $0xe0] sm:$0xf]
  %v174 = vld [vmem:[%s1 + $0xe4] sm:$0xf]
  %v175 = vld [vmem:[%s1 + $0xe8] sm:$0xf]
  %v176 = vld [vmem:[%s1 + $0xec] sm:$0xf]
  %v177 = vld [vmem:[%s1 + $0xf0] sm:$0xf]
  %v178 = vld [vmem:[%s1 + $0xf4] sm:$0xf]
  %v179 = vld [vmem:[%s1 + $0xf8] sm:$0xf]
  %v180 = vld [vmem:[%s1 + $0xfc] sm:$0xf]
  %v181 = vld [vmem:[%s1 + $0x100] sm:$0xf]
  %v182 = vld [vmem:[%s1 + $0x104] sm:$0xf]
  %v183 = vld [vmem:[%s1 + $0x108] sm:$0xf]
  %v184 = vld [vmem:[%s1 + $0x10c] sm:$0xf]
  %v185 = vld [vmem:[%s1 + $0x110] sm:$0xf]
  %v186 = vld [vmem:[%s1 + $0x114] sm:$0xf]
  %v187 = vld [vmem:[%s1 + $0x118] sm:$0xf]
  %v188 = vld [vmem:[%s1 + $0x11c] sm:$0xf]
  %v189 = vld [vmem:[%s1 + $0x120] sm:$0xf]
  %v190 = vld [vmem:[%s1 + $0x124] sm:$0xf]
  %v191 = vld [vmem:[%s1 + $0x128] sm:$0xf]
  %v192 = vld [vmem:[%s1 + $0x12c] sm:$0xf]
  %v193 = vld [vmem:[%s1 + $0x130] sm:$0xf]
  %v194 = vld [vmem:[%s1 + $0x134] sm:$0xf]
  %v195 = vld [vmem:[%s1 + $0x138] sm:$0xf]
  %v196 = vld [vmem:[%s1 + $0x13c] sm:$0xf]
  %v197 = vld [vmem:[%s1 + $0x140] sm:$0xf]
  %v198 = vld [vmem:[%s1 + $0x144] sm:$0xf]
  %v199 = vld [vmem:[%s1 + $0x148] sm:$0xf]
  %v200 = vld [vmem:[%s1 + $0x14c] sm:$0xf]
  %v201 = vld [vmem:[%s1 + $0x150] sm:$0xf]
  %v202 = vld [vmem:[%s1 + $0x154] sm:$0xf]
  %v203 = vld [vmem:[%s1 + $0x158] sm:$0xf]
  %v204 = vld [vmem:[%s1 + $0x15c] sm:$0xf]
  %v205 = vld [vmem:[%s1 + $0x160] sm:$0xf]
  %v206 = vld [vmem:[%s1 + $0x164] sm:$0xf]
  %v207 = vld [vmem:[%s1 + $0x168] sm:$0xf]
  %v208 = vld [vmem:[%s1 + $0x16c] sm:$0xf]
  %v209 = vld [vmem:[%s1 + $0x170] sm:$0xf]
  %v210 = vld [vmem:[%s1 + $0x174] sm:$0xf]
  %v211 = vld [vmem:[%s1 + $0x178] sm:$0xf]
  %v212 = vld [vmem:[%s1 + $0x17c] sm:$0xf]
  %v213 = vld [vmem:[%s1 + $0x180] sm:$0xf]
  %v214 = vld [vmem:[%s1 + $0x184] sm:$0xf]
  %v215 = vld [vmem:[%s1 + $0x188] sm:$0xf]
  %v216 = vld [vmem:[%s1 + $0x18c] sm:$0xf]
  %v217 = vld [vmem:[%s1 + $0x190] sm:$0xf]
  %v218 = vld [vmem:[%s1 + $0x194] sm:$0xf]
  %v219 = vld [vmem:[%s1 + $0x198] sm:$0xf]
  %v220 = vld [vmem:[%s1 + $0x19c] sm:$0xf]
  %v221 = vld [vmem:[%s1 + $0x1a0] sm:$0xf]
  %v222 = vld [vmem:[%s1 + $0x1a4] sm:$0xf]
  %v223 = vld [vmem:[%s1 + $0x1a8] sm:$0xf]
  %v224 = vld [vmem:[%s1 + $0x1ac] sm:$0xf]
  %v225 = vld [vmem:[%s1 + $0x1b0] sm:$0xf]
  %v226 = vld [vmem:[%s1 + $0x1b4] sm:$0xf]
  %v227 = vld [vmem:[%s1 + $0x1b8] sm:$0xf]
  %v228 = vld [vmem:[%s1 + $0x1bc] sm:$0xf]
  %v229 = vld [vmem:[%s1 + $0x1c0] sm:$0xf]
  %v230 = vld [vmem:[%s1 + $0x1c4] sm:$0xf]
  %v231 = vld [vmem:[%s1 + $0x1c8] sm:$0xf]
  %v232 = vld [vmem:[%s1 + $0x1cc] sm:$0xf]
  %v233 = vld [vmem:[%s1 + $0x1d0] sm:$0xf]
  %v234 = vld [vmem:[%s1 + $0x1d4] sm:$0xf]
  %v235 = vld [vmem:[%s1 + $0x1d8] sm:$0xf]
  %v236 = vld [vmem:[%s1 + $0x1dc] sm:$0xf]
  %v237 = vld [vmem:[%s1 + $0x1e0] sm:$0xf]
  %v238 = vld [vmem:[%s1 + $0x1e4] sm:$0xf]
  %v239 = vld [vmem:[%s1 + $0x1e8] sm:$0xf]
  %v240 = vld [vmem:[%s1 + $0x1ec] sm:$0xf]
  %v241 = vld [vmem:[%s1 + $0x1f0] sm:$0xf]
  %v242 = vld [vmem:[%s1 + $0x1f4] sm:$0xf]
  %v243 = vld [vmem:[%s1 + $0x1f8] sm:$0xf]
  %v244 = vld [vmem:[%s1 + $0x1fc] sm:$0xf]
  %v309 = vunpack.c.l.b16 %v53
  %v310 = vunpack.c.h.b16 %v53
  %v311 = vunpack.c.l.b16 %v54
  %v312 = vunpack.c.h.b16 %v54
  %v313 = vunpack.c.l.b16 %v55
  %v314 = vunpack.c.h.b16 %v55
  %v315 = vunpack.c.l.b16 %v56
  %v316 = vunpack.c.h.b16 %v56
  %v317 = vunpack.c.l.b16 %v57
  %v318 = vunpack.c.h.b16 %v57
  %v319 = vunpack.c.l.b16 %v58
  %v320 = vunpack.c.h.b16 %v58
  %v321 = vunpack.c.l.b16 %v59
  %v322 = vunpack.c.h.b16 %v59
  %v323 = vunpack.c.l.b16 %v60
  %v324 = vunpack.c.h.b16 %v60
  %v325 = vunpack.c.l.b16 %v61
  %v326 = vunpack.c.h.b16 %v61
  %v327 = vunpack.c.l.b16 %v62
  %v328 = vunpack.c.h.b16 %v62
  %v329 = vunpack.c.l.b16 %v63
  %v330 = vunpack.c.h.b16 %v63
  %v331 = vunpack.c.l.b16 %v64
  %v332 = vunpack.c.h.b16 %v64
  %v333 = vunpack.c.l.b16 %v65
  %v334 = vunpack.c.h.b16 %v65
  %v335 = vunpack.c.l.b16 %v66
  %v336 = vunpack.c.h.b16 %v66
  %v337 = vunpack.c.l.b16 %v67
  %v338 = vunpack.c.h.b16 %v67
  %v339 = vunpack.c.l.b16 %v68
  %v340 = vunpack.c.h.b16 %v68
  %v341 = vunpack.c.l.b16 %v69
  %v342 = vunpack.c.h.b16 %v69
  %v343 = vunpack.c.l.b16 %v70
  %v344 = vunpack.c.h.b16 %v70
  %v345 = vunpack.c.l.b16 %v71
  %v346 = vunpack.c.h.b16 %v71
  %v347 = vunpack.c.l.b16 %v72
  %v348 = vunpack.c.h.b16 %v72
  %v349 = vunpack.c.l.b16 %v73
  %v350 = vunpack.c.h.b16 %v73
  %v351 = vunpack.c.l.b16 %v74
  %v352 = vunpack.c.h.b16 %v74
  %v353 = vunpack.c.l.b16 %v75
  %v354 = vunpack.c.h.b16 %v75
  %v355 = vunpack.c.l.b16 %v76
  %v356 = vunpack.c.h.b16 %v76
  %v357 = vunpack.c.l.b16 %v77
  %v358 = vunpack.c.h.b16 %v77
  %v359 = vunpack.c.l.b16 %v78
  %v360 = vunpack.c.h.b16 %v78
  %v361 = vunpack.c.l.b16 %v79
  %v362 = vunpack.c.h.b16 %v79
  %v363 = vunpack.c.l.b16 %v80
  %v364 = vunpack.c.h.b16 %v80
  %v365 = vunpack.c.l.b16 %v81
  %v366 = vunpack.c.h.b16 %v81
  %v367 = vunpack.c.l.b16 %v82
  %v368 = vunpack.c.h.b16 %v82
  %v369 = vunpack.c.l.b16 %v83
  %v370 = vunpack.c.h.b16 %v83
  %v371 = vunpack.c.l.b16 %v84
  %v372 = vunpack.c.h.b16 %v84
  %v373 = vunpack.c.l.b16 %v85
  %v374 = vunpack.c.h.b16 %v85
  %v375 = vunpack.c.l.b16 %v86
  %v376 = vunpack.c.h.b16 %v86
  %v377 = vunpack.c.l.b16 %v87
  %v378 = vunpack.c.h.b16 %v87
  %v379 = vunpack.c.l.b16 %v88
  %v380 = vunpack.c.h.b16 %v88
  %v381 = vunpack.c.l.b16 %v89
  %v382 = vunpack.c.h.b16 %v89
  %v383 = vunpack.c.l.b16 %v90
  %v384 = vunpack.c.h.b16 %v90
  %v385 = vunpack.c.l.b16 %v91
  %v386 = vunpack.c.h.b16 %v91
  %v387 = vunpack.c.l.b16 %v92
  %v388 = vunpack.c.h.b16 %v92
  %v389 = vunpack.c.l.b16 %v93
  %v390 = vunpack.c.h.b16 %v93
  %v391 = vunpack.c.l.b16 %v94
  %v392 = vunpack.c.h.b16 %v94
  %v393 = vunpack.c.l.b16 %v95
  %v394 = vunpack.c.h.b16 %v95
  %v395 = vunpack.c.l.b16 %v96
  %v396 = vunpack.c.h.b16 %v96
  %v397 = vunpack.c.l.b16 %v97
  %v398 = vunpack.c.h.b16 %v97
  %v399 = vunpack.c.l.b16 %v98
  %v400 = vunpack.c.h.b16 %v98
  %v401 = vunpack.c.l.b16 %v99
  %v402 = vunpack.c.h.b16 %v99
  %v403 = vunpack.c.l.b16 %v100
  %v404 = vunpack.c.h.b16 %v100
  %v405 = vunpack.c.l.b16 %v101
  %v406 = vunpack.c.h.b16 %v101
  %v407 = vunpack.c.l.b16 %v102
  %v408 = vunpack.c.h.b16 %v102
  %v409 = vunpack.c.l.b16 %v103
  %v410 = vunpack.c.h.b16 %v103
  %v411 = vunpack.c.l.b16 %v104
  %v412 = vunpack.c.h.b16 %v104
  %v413 = vunpack.c.l.b16 %v105
  %v414 = vunpack.c.h.b16 %v105
  %v415 = vunpack.c.l.b16 %v106
  %v416 = vunpack.c.h.b16 %v106
  %v417 = vunpack.c.l.b16 %v107
  %v418 = vunpack.c.h.b16 %v107
  %v419 = vunpack.c.l.b16 %v108
  %v420 = vunpack.c.h.b16 %v108
  %v421 = vunpack.c.l.b16 %v109
  %v422 = vunpack.c.h.b16 %v109
  %v423 = vunpack.c.l.b16 %v110
  %v424 = vunpack.c.h.b16 %v110
  %v425 = vunpack.c.l.b16 %v111
  %v426 = vunpack.c.h.b16 %v111
  %v427 = vunpack.c.l.b16 %v112
  %v428 = vunpack.c.h.b16 %v112
  %v429 = vunpack.c.l.b16 %v113
  %v430 = vunpack.c.h.b16 %v113
  %v431 = vunpack.c.l.b16 %v114
  %v432 = vunpack.c.h.b16 %v114
  %v433 = vunpack.c.l.b16 %v115
  %v434 = vunpack.c.h.b16 %v115
  %v435 = vunpack.c.l.b16 %v116
  %v436 = vunpack.c.h.b16 %v116
  %v437 = vpack.c.b16 %v317, %v309
  %v438 = vpack.c.b16 %v318, %v310
  %v439 = vpack.c.b16 %v319, %v311
  %v440 = vpack.c.b16 %v320, %v312
  %v441 = vpack.c.b16 %v321, %v313
  %v442 = vpack.c.b16 %v322, %v314
  %v443 = vpack.c.b16 %v323, %v315
  %v444 = vpack.c.b16 %v324, %v316
  %v445 = vpack.c.b16 %v333, %v325
  %v446 = vpack.c.b16 %v334, %v326
  %v447 = vpack.c.b16 %v335, %v327
  %v448 = vpack.c.b16 %v336, %v328
  %v449 = vpack.c.b16 %v337, %v329
  %v450 = vpack.c.b16 %v338, %v330
  %v451 = vpack.c.b16 %v339, %v331
  %v452 = vpack.c.b16 %v340, %v332
  %v453 = vpack.c.b16 %v349, %v341
  %v454 = vpack.c.b16 %v350, %v342
  %v455 = vpack.c.b16 %v351, %v343
  %v456 = vpack.c.b16 %v352, %v344
  %v457 = vpack.c.b16 %v353, %v345
  %v458 = vpack.c.b16 %v354, %v346
  %v459 = vpack.c.b16 %v355, %v347
  %v460 = vpack.c.b16 %v356, %v348
  %v461 = vpack.c.b16 %v365, %v357
  %v462 = vpack.c.b16 %v366, %v358
  %v463 = vpack.c.b16 %v367, %v359
  %v464 = vpack.c.b16 %v368, %v360
  %v465 = vpack.c.b16 %v369, %v361
  %v466 = vpack.c.b16 %v370, %v362
  %v467 = vpack.c.b16 %v371, %v363
  %v468 = vpack.c.b16 %v372, %v364
  %v469 = vpack.c.b16 %v381, %v373
  %v470 = vpack.c.b16 %v382, %v374
  %v471 = vpack.c.b16 %v383, %v375
  %v472 = vpack.c.b16 %v384, %v376
  %v473 = vpack.c.b16 %v385, %v377
  %v474 = vpack.c.b16 %v386, %v378
  %v475 = vpack.c.b16 %v387, %v379
  %v476 = vpack.c.b16 %v388, %v380
  %v477 = vpack.c.b16 %v397, %v389
  %v478 = vpack.c.b16 %v398, %v390
  %v479 = vpack.c.b16 %v399, %v391
  %v480 = vpack.c.b16 %v400, %v392
  %v481 = vpack.c.b16 %v401, %v393
  %v482 = vpack.c.b16 %v402, %v394
  %v483 = vpack.c.b16 %v403, %v395
  %v484 = vpack.c.b16 %v404, %v396
  %v485 = vpack.c.b16 %v413, %v405
  %v486 = vpack.c.b16 %v414, %v406
  %v487 = vpack.c.b16 %v415, %v407
  %v488 = vpack.c.b16 %v416, %v408
  %v489 = vpack.c.b16 %v417, %v409
  %v490 = vpack.c.b16 %v418, %v410
  %v491 = vpack.c.b16 %v419, %v411
  %v492 = vpack.c.b16 %v420, %v412
  %v493 = vpack.c.b16 %v429, %v421
  %v494 = vpack.c.b16 %v430, %v422
  %v495 = vpack.c.b16 %v431, %v423
  %v496 = vpack.c.b16 %v432, %v424
  %v497 = vpack.c.b16 %v433, %v425
  %v498 = vpack.c.b16 %v434, %v426
  %v499 = vpack.c.b16 %v435, %v427
  %v500 = vpack.c.b16 %v436, %v428
  %v693 = vunpack.c.l.b16 %v117
  %v694 = vunpack.c.l.b16 %v118
  %v695 = vunpack.c.l.b16 %v119
  %v696 = vunpack.c.l.b16 %v120
  %v697 = vunpack.c.l.b16 %v121
  %v698 = vunpack.c.l.b16 %v122
  %v699 = vunpack.c.l.b16 %v123
  %v700 = vunpack.c.l.b16 %v124
  %v701 = vunpack.c.l.b16 %v125
  %v702 = vunpack.c.l.b16 %v126
  %v703 = vunpack.c.l.b16 %v127
  %v704 = vunpack.c.l.b16 %v128
  %v705 = vunpack.c.l.b16 %v129
  %v706 = vunpack.c.l.b16 %v130
  %v707 = vunpack.c.l.b16 %v131
  %v708 = vunpack.c.l.b16 %v132
  %v709 = vunpack.c.l.b16 %v133
  %v710 = vunpack.c.l.b16 %v134
  %v711 = vunpack.c.l.b16 %v135
  %v712 = vunpack.c.l.b16 %v136
  %v713 = vunpack.c.l.b16 %v137
  %v714 = vunpack.c.l.b16 %v138
  %v715 = vunpack.c.l.b16 %v139
  %v716 = vunpack.c.l.b16 %v140
  %v717 = vunpack.c.l.b16 %v141
  %v718 = vunpack.c.l.b16 %v142
  %v719 = vunpack.c.l.b16 %v143
  %v720 = vunpack.c.l.b16 %v144
  %v721 = vunpack.c.l.b16 %v145
  %v722 = vunpack.c.l.b16 %v146
  %v723 = vunpack.c.l.b16 %v147
  %v724 = vunpack.c.l.b16 %v148
  %v725 = vunpack.c.l.b16 %v149
  %v726 = vunpack.c.l.b16 %v150
  %v727 = vunpack.c.l.b16 %v151
  %v728 = vunpack.c.l.b16 %v152
  %v729 = vunpack.c.l.b16 %v153
  %v730 = vunpack.c.l.b16 %v154
  %v731 = vunpack.c.l.b16 %v155
  %v732 = vunpack.c.l.b16 %v156
  %v733 = vunpack.c.l.b16 %v157
  %v734 = vunpack.c.l.b16 %v158
  %v735 = vunpack.c.l.b16 %v159
  %v736 = vunpack.c.l.b16 %v160
  %v737 = vunpack.c.l.b16 %v161
  %v738 = vunpack.c.l.b16 %v162
  %v739 = vunpack.c.l.b16 %v163
  %v740 = vunpack.c.l.b16 %v164
  %v741 = vunpack.c.l.b16 %v165
  %v742 = vunpack.c.l.b16 %v166
  %v743 = vunpack.c.l.b16 %v167
  %v744 = vunpack.c.l.b16 %v168
  %v745 = vunpack.c.l.b16 %v169
  %v746 = vunpack.c.l.b16 %v170
  %v747 = vunpack.c.l.b16 %v171
  %v748 = vunpack.c.l.b16 %v172
  %v749 = vunpack.c.l.b16 %v173
  %v750 = vunpack.c.l.b16 %v174
  %v751 = vunpack.c.l.b16 %v175
  %v752 = vunpack.c.l.b16 %v176
  %v753 = vunpack.c.l.b16 %v177
  %v754 = vunpack.c.l.b16 %v178
  %v755 = vunpack.c.l.b16 %v179
  %v756 = vunpack.c.l.b16 %v180
  %v757 = vunpack.c.l.b16 %v181
  %v758 = vunpack.c.l.b16 %v182
  %v759 = vunpack.c.l.b16 %v183
  %v760 = vunpack.c.l.b16 %v184
  %v761 = vunpack.c.l.b16 %v185
  %v762 = vunpack.c.l.b16 %v186
  %v763 = vunpack.c.l.b16 %v187
  %v764 = vunpack.c.l.b16 %v188
  %v765 = vunpack.c.l.b16 %v189
  %v766 = vunpack.c.l.b16 %v190
  %v767 = vunpack.c.l.b16 %v191
  %v768 = vunpack.c.l.b16 %v192
  %v769 = vunpack.c.l.b16 %v193
  %v770 = vunpack.c.l.b16 %v194
  %v771 = vunpack.c.l.b16 %v195
  %v772 = vunpack.c.l.b16 %v196
  %v773 = vunpack.c.l.b16 %v197
  %v774 = vunpack.c.l.b16 %v198
  %v775 = vunpack.c.l.b16 %v199
  %v776 = vunpack.c.l.b16 %v200
  %v777 = vunpack.c.l.b16 %v201
  %v778 = vunpack.c.l.b16 %v202
  %v779 = vunpack.c.l.b16 %v203
  %v780 = vunpack.c.l.b16 %v204
  %v781 = vunpack.c.l.b16 %v205
  %v782 = vunpack.c.l.b16 %v206
  %v783 = vunpack.c.l.b16 %v207
  %v784 = vunpack.c.l.b16 %v208
  %v785 = vunpack.c.l.b16 %v209
  %v786 = vunpack.c.l.b16 %v210
  %v787 = vunpack.c.l.b16 %v211
  %v788 = vunpack.c.l.b16 %v212
  %v789 = vunpack.c.l.b16 %v213
  %v790 = vunpack.c.l.b16 %v214
  %v791 = vunpack.c.l.b16 %v215
  %v792 = vunpack.c.l.b16 %v216
  %v793 = vunpack.c.l.b16 %v217
  %v794 = vunpack.c.l.b16 %v218
  %v795 = vunpack.c.l.b16 %v219
  %v796 = vunpack.c.l.b16 %v220
  %v797 = vunpack.c.l.b16 %v221
  %v798 = vunpack.c.l.b16 %v222
  %v799 = vunpack.c.l.b16 %v223
  %v800 = vunpack.c.l.b16 %v224
  %v801 = vunpack.c.l.b16 %v225
  %v802 = vunpack.c.l.b16 %v226
  %v803 = vunpack.c.l.b16 %v227
  %v804 = vunpack.c.l.b16 %v228
  %v805 = vunpack.c.l.b16 %v229
  %v806 = vunpack.c.l.b16 %v230
  %v807 = vunpack.c.l.b16 %v231
  %v808 = vunpack.c.l.b16 %v232
  %v809 = vunpack.c.l.b16 %v233
  %v810 = vunpack.c.l.b16 %v234
  %v811 = vunpack.c.l.b16 %v235
  %v812 = vunpack.c.l.b16 %v236
  %v813 = vunpack.c.l.b16 %v237
  %v814 = vunpack.c.l.b16 %v238
  %v815 = vunpack.c.l.b16 %v239
  %v816 = vunpack.c.l.b16 %v240
  %v817 = vunpack.c.l.b16 %v241
  %v818 = vunpack.c.l.b16 %v242
  %v819 = vunpack.c.l.b16 %v243
  %v820 = vunpack.c.l.b16 %v244
  %v821 = vpack.c.b16 %v694, %v693
  %v822 = vpack.c.b16 %v696, %v695
  %v823 = vpack.c.b16 %v698, %v697
  %v824 = vpack.c.b16 %v700, %v699
  %v825 = vpack.c.b16 %v702, %v701
  %v826 = vpack.c.b16 %v704, %v703
  %v827 = vpack.c.b16 %v706, %v705
  %v828 = vpack.c.b16 %v708, %v707
  %v829 = vpack.c.b16 %v710, %v709
  %v830 = vpack.c.b16 %v712, %v711
  %v831 = vpack.c.b16 %v714, %v713
  %v832 = vpack.c.b16 %v716, %v715
  %v833 = vpack.c.b16 %v718, %v717
  %v834 = vpack.c.b16 %v720, %v719
  %v835 = vpack.c.b16 %v722, %v721
  %v836 = vpack.c.b16 %v724, %v723
  %v837 = vpack.c.b16 %v726, %v725
  %v838 = vpack.c.b16 %v728, %v727
  %v839 = vpack.c.b16 %v730, %v729
  %v840 = vpack.c.b16 %v732, %v731
  %v841 = vpack.c.b16 %v734, %v733
  %v842 = vpack.c.b16 %v736, %v735
  %v843 = vpack.c.b16 %v738, %v737
  %v844 = vpack.c.b16 %v740, %v739
  %v845 = vpack.c.b16 %v742, %v741
  %v846 = vpack.c.b16 %v744, %v743
  %v847 = vpack.c.b16 %v746, %v745
  %v848 = vpack.c.b16 %v748, %v747
  %v849 = vpack.c.b16 %v750, %v749
  %v850 = vpack.c.b16 %v752, %v751
  %v851 = vpack.c.b16 %v754, %v753
  %v852 = vpack.c.b16 %v756, %v755
  %v853 = vpack.c.b16 %v758, %v757
  %v854 = vpack.c.b16 %v760, %v759
  %v855 = vpack.c.b16 %v762, %v761
  %v856 = vpack.c.b16 %v764, %v763
  %v857 = vpack.c.b16 %v766, %v765
  %v858 = vpack.c.b16 %v768, %v767
  %v859 = vpack.c.b16 %v770, %v769
  %v860 = vpack.c.b16 %v772, %v771
  %v861 = vpack.c.b16 %v774, %v773
  %v862 = vpack.c.b16 %v776, %v775
  %v863 = vpack.c.b16 %v778, %v777
  %v864 = vpack.c.b16 %v780, %v779
  %v865 = vpack.c.b16 %v782, %v781
  %v866 = vpack.c.b16 %v784, %v783
  %v867 = vpack.c.b16 %v786, %v785
  %v868 = vpack.c.b16 %v788, %v787
  %v869 = vpack.c.b16 %v790, %v789
  %v870 = vpack.c.b16 %v792, %v791
  %v871 = vpack.c.b16 %v794, %v793
  %v872 = vpack.c.b16 %v796, %v795
  %v873 = vpack.c.b16 %v798, %v797
  %v874 = vpack.c.b16 %v800, %v799
  %v875 = vpack.c.b16 %v802, %v801
  %v876 = vpack.c.b16 %v804, %v803
  %v877 = vpack.c.b16 %v806, %v805
  %v878 = vpack.c.b16 %v808, %v807
  %v879 = vpack.c.b16 %v810, %v809
  %v880 = vpack.c.b16 %v812, %v811
  %v881 = vpack.c.b16 %v814, %v813
  %v882 = vpack.c.b16 %v816, %v815
  %v883 = vpack.c.b16 %v818, %v817
  %v884 = vpack.c.b16 %v820, %v819
  %949 = vmatpush.bf16.msra.mxu0 %v828
  %950 = vmatpush.bf16.msra.mxu0 %v827
  %951 = vmatpush.bf16.msra.mxu0 %v826
  %952 = vmatpush.bf16.msra.mxu0 %v825
  %953 = vmatpush.bf16.msra.mxu0 %v824
  %954 = vmatpush.bf16.msra.mxu0 %v823
  %955 = vmatpush.bf16.msra.mxu0 %v822
  %956 = vmatpush.bf16.msra.mxu0 %v821
  %957 = vmatmul.bf16.gmra.mxu0 %v437
  %v958 = vpop.f32.mrf.mxu0
  %v959 = vadd.f32 0.0, %v958
  %v960 = vpop.f32.mrf.mxu0
  %v961 = vadd.f32 0.0, %v960
  %962 = vmatmul.bf16.gmra.mxu0 %v445
  %v963 = vpop.f32.mrf.mxu0
  %v964 = vadd.f32 0.0, %v963
  %v965 = vpop.f32.mrf.mxu0
  %v966 = vadd.f32 0.0, %v965
  %967 = vmatmul.bf16.gmra.mxu0 %v453
  %v968 = vpop.f32.mrf.mxu0
  %v969 = vadd.f32 0.0, %v968
  %v970 = vpop.f32.mrf.mxu0
  %v971 = vadd.f32 0.0, %v970
  %972 = vmatmul.bf16.gmra.mxu0 %v461
  %v973 = vpop.f32.mrf.mxu0
  %v974 = vadd.f32 0.0, %v973
  %v975 = vpop.f32.mrf.mxu0
  %v976 = vadd.f32 0.0, %v975
  %977 = vmatmul.bf16.gmra.mxu0 %v469
  %v978 = vpop.f32.mrf.mxu0
  %v979 = vadd.f32 0.0, %v978
  %v980 = vpop.f32.mrf.mxu0
  %v981 = vadd.f32 0.0, %v980
  %982 = vmatmul.bf16.gmra.mxu0 %v477
  %v983 = vpop.f32.mrf.mxu0
  %v984 = vadd.f32 0.0, %v983
  %v985 = vpop.f32.mrf.mxu0
  %v986 = vadd.f32 0.0, %v985
  %987 = vmatmul.bf16.gmra.mxu0 %v485
  %v988 = vpop.f32.mrf.mxu0
  %v989 = vadd.f32 0.0, %v988
  %v990 = vpop.f32.mrf.mxu0
  %v991 = vadd.f32 0.0, %v990
  %992 = vmatmul.bf16.gmra.mxu0 %v493
  %v993 = vpop.f32.mrf.mxu0
  %v994 = vadd.f32 0.0, %v993
  %v995 = vpop.f32.mrf.mxu0
  %v996 = vadd.f32 0.0, %v995
  %997 = vdwg.mxu0
  %998 = vmatpush.bf16.msra.mxu0 %v836
  %999 = vmatpush.bf16.msra.mxu0 %v835
  %1000 = vmatpush.bf16.msra.mxu0 %v834
  %1001 = vmatpush.bf16.msra.mxu0 %v833
  %1002 = vmatpush.bf16.msra.mxu0 %v832
  %1003 = vmatpush.bf16.msra.mxu0 %v831
  %1004 = vmatpush.bf16.msra.mxu0 %v830
  %1005 = vmatpush.bf16.msra.mxu0 %v829
  %1006 = vmatmul.bf16.gmra.mxu0 %v438
  %v1007 = vpop.f32.mrf.mxu0
  %v1008 = vadd.f32 %v959, %v1007
  %v1009 = vpop.f32.mrf.mxu0
  %v1010 = vadd.f32 %v961, %v1009
  %1011 = vmatmul.bf16.gmra.mxu0 %v446
  %v1012 = vpop.f32.mrf.mxu0
  %v1013 = vadd.f32 %v964, %v1012
  %v1014 = vpop.f32.mrf.mxu0
  %v1015 = vadd.f32 %v966, %v1014
  %1016 = vmatmul.bf16.gmra.mxu0 %v454
  %v1017 = vpop.f32.mrf.mxu0
  %v1018 = vadd.f32 %v969, %v1017
  %v1019 = vpop.f32.mrf.mxu0
  %v1020 = vadd.f32 %v971, %v1019
  %1021 = vmatmul.bf16.gmra.mxu0 %v462
  %v1022 = vpop.f32.mrf.mxu0
  %v1023 = vadd.f32 %v974, %v1022
  %v1024 = vpop.f32.mrf.mxu0
  %v1025 = vadd.f32 %v976, %v1024
  %1026 = vmatmul.bf16.gmra.mxu0 %v470
  %v1027 = vpop.f32.mrf.mxu0
  %v1028 = vadd.f32 %v979, %v1027
  %v1029 = vpop.f32.mrf.mxu0
  %v1030 = vadd.f32 %v981, %v1029
  %1031 = vmatmul.bf16.gmra.mxu0 %v478
  %v1032 = vpop.f32.mrf.mxu0
  %v1033 = vadd.f32 %v984, %v1032
  %v1034 = vpop.f32.mrf.mxu0
  %v1035 = vadd.f32 %v986, %v1034
  %1036 = vmatmul.bf16.gmra.mxu0 %v486
  %v1037 = vpop.f32.mrf.mxu0
  %v1038 = vadd.f32 %v989, %v1037
  %v1039 = vpop.f32.mrf.mxu0
  %v1040 = vadd.f32 %v991, %v1039
  %1041 = vmatmul.bf16.gmra.mxu0 %v494
  %v1042 = vpop.f32.mrf.mxu0
  %v1043 = vadd.f32 %v994, %v1042
  %v1044 = vpop.f32.mrf.mxu0
  %v1045 = vadd.f32 %v996, %v1044
  %1046 = vdwg.mxu0
  %1047 = vmatpush.bf16.msra.mxu0 %v844
  %1048 = vmatpush.bf16.msra.mxu0 %v843
  %1049 = vmatpush.bf16.msra.mxu0 %v842
  %1050 = vmatpush.bf16.msra.mxu0 %v841
  %1051 = vmatpush.bf16.msra.mxu0 %v840
  %1052 = vmatpush.bf16.msra.mxu0 %v839
  %1053 = vmatpush.bf16.msra.mxu0 %v838
  %1054 = vmatpush.bf16.msra.mxu0 %v837
  %1055 = vmatmul.bf16.gmra.mxu0 %v439
  %v1056 = vpop.f32.mrf.mxu0
  %v1057 = vadd.f32 %v1008, %v1056
  %v1058 = vpop.f32.mrf.mxu0
  %v1059 = vadd.f32 %v1010, %v1058
  %1060 = vmatmul.bf16.gmra.mxu0 %v447
  %v1061 = vpop.f32.mrf.mxu0
  %v1062 = vadd.f32 %v1013, %v1061
  %v1063 = vpop.f32.mrf.mxu0
  %v1064 = vadd.f32 %v1015, %v1063
  %1065 = vmatmul.bf16.gmra.mxu0 %v455
  %v1066 = vpop.f32.mrf.mxu0
  %v1067 = vadd.f32 %v1018, %v1066
  %v1068 = vpop.f32.mrf.mxu0
  %v1069 = vadd.f32 %v1020, %v1068
  %1070 = vmatmul.bf16.gmra.mxu0 %v463
  %v1071 = vpop.f32.mrf.mxu0
  %v1072 = vadd.f32 %v1023, %v1071
  %v1073 = vpop.f32.mrf.mxu0
  %v1074 = vadd.f32 %v1025, %v1073
  %1075 = vmatmul.bf16.gmra.mxu0 %v471
  %v1076 = vpop.f32.mrf.mxu0
  %v1077 = vadd.f32 %v1028, %v1076
  %v1078 = vpop.f32.mrf.mxu0
  %v1079 = vadd.f32 %v1030, %v1078
  %1080 = vmatmul.bf16.gmra.mxu0 %v479
  %v1081 = vpop.f32.mrf.mxu0
  %v1082 = vadd.f32 %v1033, %v1081
  %v1083 = vpop.f32.mrf.mxu0
  %v1084 = vadd.f32 %v1035, %v1083
  %1085 = vmatmul.bf16.gmra.mxu0 %v487
  %v1086 = vpop.f32.mrf.mxu0
  %v1087 = vadd.f32 %v1038, %v1086
  %v1088 = vpop.f32.mrf.mxu0
  %v1089 = vadd.f32 %v1040, %v1088
  %1090 = vmatmul.bf16.gmra.mxu0 %v495
  %v1091 = vpop.f32.mrf.mxu0
  %v1092 = vadd.f32 %v1043, %v1091
  %v1093 = vpop.f32.mrf.mxu0
  %v1094 = vadd.f32 %v1045, %v1093
  %1095 = vdwg.mxu0
  %1096 = vmatpush.bf16.msra.mxu0 %v852
  %1097 = vmatpush.bf16.msra.mxu0 %v851
  %1098 = vmatpush.bf16.msra.mxu0 %v850
  %1099 = vmatpush.bf16.msra.mxu0 %v849
  %1100 = vmatpush.bf16.msra.mxu0 %v848
  %1101 = vmatpush.bf16.msra.mxu0 %v847
  %1102 = vmatpush.bf16.msra.mxu0 %v846
  %1103 = vmatpush.bf16.msra.mxu0 %v845
  %1104 = vmatmul.bf16.gmra.mxu0 %v440
  %v1105 = vpop.f32.mrf.mxu0
  %v1106 = vadd.f32 %v1057, %v1105
  %v1107 = vpop.f32.mrf.mxu0
  %v1108 = vadd.f32 %v1059, %v1107
  %1109 = vmatmul.bf16.gmra.mxu0 %v448
  %v1110 = vpop.f32.mrf.mxu0
  %v1111 = vadd.f32 %v1062, %v1110
  %v1112 = vpop.f32.mrf.mxu0
  %v1113 = vadd.f32 %v1064, %v1112
  %1114 = vmatmul.bf16.gmra.mxu0 %v456
  %v1115 = vpop.f32.mrf.mxu0
  %v1116 = vadd.f32 %v1067, %v1115
  %v1117 = vpop.f32.mrf.mxu0
  %v1118 = vadd.f32 %v1069, %v1117
  %1119 = vmatmul.bf16.gmra.mxu0 %v464
  %v1120 = vpop.f32.mrf.mxu0
  %v1121 = vadd.f32 %v1072, %v1120
  %v1122 = vpop.f32.mrf.mxu0
  %v1123 = vadd.f32 %v1074, %v1122
  %1124 = vmatmul.bf16.gmra.mxu0 %v472
  %v1125 = vpop.f32.mrf.mxu0
  %v1126 = vadd.f32 %v1077, %v1125
  %v1127 = vpop.f32.mrf.mxu0
  %v1128 = vadd.f32 %v1079, %v1127
  %1129 = vmatmul.bf16.gmra.mxu0 %v480
  %v1130 = vpop.f32.mrf.mxu0
  %v1131 = vadd.f32 %v1082, %v1130
  %v1132 = vpop.f32.mrf.mxu0
  %v1133 = vadd.f32 %v1084, %v1132
  %1134 = vmatmul.bf16.gmra.mxu0 %v488
  %v1135 = vpop.f32.mrf.mxu0
  %v1136 = vadd.f32 %v1087, %v1135
  %v1137 = vpop.f32.mrf.mxu0
  %v1138 = vadd.f32 %v1089, %v1137
  %1139 = vmatmul.bf16.gmra.mxu0 %v496
  %v1140 = vpop.f32.mrf.mxu0
  %v1141 = vadd.f32 %v1092, %v1140
  %v1142 = vpop.f32.mrf.mxu0
  %v1143 = vadd.f32 %v1094, %v1142
  %1144 = vdwg.mxu0
  %1145 = vmatpush.bf16.msra.mxu0 %v860
  %1146 = vmatpush.bf16.msra.mxu0 %v859
  %1147 = vmatpush.bf16.msra.mxu0 %v858
  %1148 = vmatpush.bf16.msra.mxu0 %v857
  %1149 = vmatpush.bf16.msra.mxu0 %v856
  %1150 = vmatpush.bf16.msra.mxu0 %v855
  %1151 = vmatpush.bf16.msra.mxu0 %v854
  %1152 = vmatpush.bf16.msra.mxu0 %v853
  %1153 = vmatmul.bf16.gmra.mxu0 %v441
  %v1154 = vpop.f32.mrf.mxu0
  %v1155 = vadd.f32 %v1106, %v1154
  %v1156 = vpop.f32.mrf.mxu0
  %v1157 = vadd.f32 %v1108, %v1156
  %1158 = vmatmul.bf16.gmra.mxu0 %v449
  %v1159 = vpop.f32.mrf.mxu0
  %v1160 = vadd.f32 %v1111, %v1159
  %v1161 = vpop.f32.mrf.mxu0
  %v1162 = vadd.f32 %v1113, %v1161
  %1163 = vmatmul.bf16.gmra.mxu0 %v457
  %v1164 = vpop.f32.mrf.mxu0
  %v1165 = vadd.f32 %v1116, %v1164
  %v1166 = vpop.f32.mrf.mxu0
  %v1167 = vadd.f32 %v1118, %v1166
  %1168 = vmatmul.bf16.gmra.mxu0 %v465
  %v1169 = vpop.f32.mrf.mxu0
  %v1170 = vadd.f32 %v1121, %v1169
  %v1171 = vpop.f32.mrf.mxu0
  %v1172 = vadd.f32 %v1123, %v1171
  %1173 = vmatmul.bf16.gmra.mxu0 %v473
  %v1174 = vpop.f32.mrf.mxu0
  %v1175 = vadd.f32 %v1126, %v1174
  %v1176 = vpop.f32.mrf.mxu0
  %v1177 = vadd.f32 %v1128, %v1176
  %1178 = vmatmul.bf16.gmra.mxu0 %v481
  %v1179 = vpop.f32.mrf.mxu0
  %v1180 = vadd.f32 %v1131, %v1179
  %v1181 = vpop.f32.mrf.mxu0
  %v1182 = vadd.f32 %v1133, %v1181
  %1183 = vmatmul.bf16.gmra.mxu0 %v489
  %v1184 = vpop.f32.mrf.mxu0
  %v1185 = vadd.f32 %v1136, %v1184
  %v1186 = vpop.f32.mrf.mxu0
  %v1187 = vadd.f32 %v1138, %v1186
  %1188 = vmatmul.bf16.gmra.mxu0 %v497
  %v1189 = vpop.f32.mrf.mxu0
  %v1190 = vadd.f32 %v1141, %v1189
  %v1191 = vpop.f32.mrf.mxu0
  %v1192 = vadd.f32 %v1143, %v1191
  %1193 = vdwg.mxu0
  %1194 = vmatpush.bf16.msra.mxu0 %v868
  %1195 = vmatpush.bf16.msra.mxu0 %v867
  %1196 = vmatpush.bf16.msra.mxu0 %v866
  %1197 = vmatpush.bf16.msra.mxu0 %v865
  %1198 = vmatpush.bf16.msra.mxu0 %v864
  %1199 = vmatpush.bf16.msra.mxu0 %v863
  %1200 = vmatpush.bf16.msra.mxu0 %v862
  %1201 = vmatpush.bf16.msra.mxu0 %v861
  %1202 = vmatmul.bf16.gmra.mxu0 %v442
  %v1203 = vpop.f32.mrf.mxu0
  %v1204 = vadd.f32 %v1155, %v1203
  %v1205 = vpop.f32.mrf.mxu0
  %v1206 = vadd.f32 %v1157, %v1205
  %1207 = vmatmul.bf16.gmra.mxu0 %v450
  %v1208 = vpop.f32.mrf.mxu0
  %v1209 = vadd.f32 %v1160, %v1208
  %v1210 = vpop.f32.mrf.mxu0
  %v1211 = vadd.f32 %v1162, %v1210
  %1212 = vmatmul.bf16.gmra.mxu0 %v458
  %v1213 = vpop.f32.mrf.mxu0
  %v1214 = vadd.f32 %v1165, %v1213
  %v1215 = vpop.f32.mrf.mxu0
  %v1216 = vadd.f32 %v1167, %v1215
  %1217 = vmatmul.bf16.gmra.mxu0 %v466
  %v1218 = vpop.f32.mrf.mxu0
  %v1219 = vadd.f32 %v1170, %v1218
  %v1220 = vpop.f32.mrf.mxu0
  %v1221 = vadd.f32 %v1172, %v1220
  %1222 = vmatmul.bf16.gmra.mxu0 %v474
  %v1223 = vpop.f32.mrf.mxu0
  %v1224 = vadd.f32 %v1175, %v1223
  %v1225 = vpop.f32.mrf.mxu0
  %v1226 = vadd.f32 %v1177, %v1225
  %1227 = vmatmul.bf16.gmra.mxu0 %v482
  %v1228 = vpop.f32.mrf.mxu0
  %v1229 = vadd.f32 %v1180, %v1228
  %v1230 = vpop.f32.mrf.mxu0
  %v1231 = vadd.f32 %v1182, %v1230
  %1232 = vmatmul.bf16.gmra.mxu0 %v490
  %v1233 = vpop.f32.mrf.mxu0
  %v1234 = vadd.f32 %v1185, %v1233
  %v1235 = vpop.f32.mrf.mxu0
  %v1236 = vadd.f32 %v1187, %v1235
  %1237 = vmatmul.bf16.gmra.mxu0 %v498
  %v1238 = vpop.f32.mrf.mxu0
  %v1239 = vadd.f32 %v1190, %v1238
  %v1240 = vpop.f32.mrf.mxu0
  %v1241 = vadd.f32 %v1192, %v1240
  %1242 = vdwg.mxu0
  %1243 = vmatpush.bf16.msra.mxu0 %v876
  %1244 = vmatpush.bf16.msra.mxu0 %v875
  %1245 = vmatpush.bf16.msra.mxu0 %v874
  %1246 = vmatpush.bf16.msra.mxu0 %v873
  %1247 = vmatpush.bf16.msra.mxu0 %v872
  %1248 = vmatpush.bf16.msra.mxu0 %v871
  %1249 = vmatpush.bf16.msra.mxu0 %v870
  %1250 = vmatpush.bf16.msra.mxu0 %v869
  %1251 = vmatmul.bf16.gmra.mxu0 %v443
  %v1252 = vpop.f32.mrf.mxu0
  %v1253 = vadd.f32 %v1204, %v1252
  %v1254 = vpop.f32.mrf.mxu0
  %v1255 = vadd.f32 %v1206, %v1254
  %1256 = vmatmul.bf16.gmra.mxu0 %v451
  %v1257 = vpop.f32.mrf.mxu0
  %v1258 = vadd.f32 %v1209, %v1257
  %v1259 = vpop.f32.mrf.mxu0
  %v1260 = vadd.f32 %v1211, %v1259
  %1261 = vmatmul.bf16.gmra.mxu0 %v459
  %v1262 = vpop.f32.mrf.mxu0
  %v1263 = vadd.f32 %v1214, %v1262
  %v1264 = vpop.f32.mrf.mxu0
  %v1265 = vadd.f32 %v1216, %v1264
  %1266 = vmatmul.bf16.gmra.mxu0 %v467
  %v1267 = vpop.f32.mrf.mxu0
  %v1268 = vadd.f32 %v1219, %v1267
  %v1269 = vpop.f32.mrf.mxu0
  %v1270 = vadd.f32 %v1221, %v1269
  %1271 = vmatmul.bf16.gmra.mxu0 %v475
  %v1272 = vpop.f32.mrf.mxu0
  %v1273 = vadd.f32 %v1224, %v1272
  %v1274 = vpop.f32.mrf.mxu0
  %v1275 = vadd.f32 %v1226, %v1274
  %1276 = vmatmul.bf16.gmra.mxu0 %v483
  %v1277 = vpop.f32.mrf.mxu0
  %v1278 = vadd.f32 %v1229, %v1277
  %v1279 = vpop.f32.mrf.mxu0
  %v1280 = vadd.f32 %v1231, %v1279
  %1281 = vmatmul.bf16.gmra.mxu0 %v491
  %v1282 = vpop.f32.mrf.mxu0
  %v1283 = vadd.f32 %v1234, %v1282
  %v1284 = vpop.f32.mrf.mxu0
  %v1285 = vadd.f32 %v1236, %v1284
  %1286 = vmatmul.bf16.gmra.mxu0 %v499
  %v1287 = vpop.f32.mrf.mxu0
  %v1288 = vadd.f32 %v1239, %v1287
  %v1289 = vpop.f32.mrf.mxu0
  %v1290 = vadd.f32 %v1241, %v1289
  %1291 = vdwg.mxu0
  %1292 = vmatpush.bf16.msra.mxu0 %v884
  %1293 = vmatpush.bf16.msra.mxu0 %v883
  %1294 = vmatpush.bf16.msra.mxu0 %v882
  %1295 = vmatpush.bf16.msra.mxu0 %v881
  %1296 = vmatpush.bf16.msra.mxu0 %v880
  %1297 = vmatpush.bf16.msra.mxu0 %v879
  %1298 = vmatpush.bf16.msra.mxu0 %v878
  %1299 = vmatpush.bf16.msra.mxu0 %v877
  %1300 = vmatmul.bf16.gmra.mxu0 %v444
  %v1301 = vpop.f32.mrf.mxu0
  %v1302 = vadd.f32 %v1253, %v1301
  %v1303 = vpop.f32.mrf.mxu0
  %v1304 = vadd.f32 %v1255, %v1303
  %1305 = vmatmul.bf16.gmra.mxu0 %v452
  %v1306 = vpop.f32.mrf.mxu0
  %v1307 = vadd.f32 %v1258, %v1306
  %v1308 = vpop.f32.mrf.mxu0
  %v1309 = vadd.f32 %v1260, %v1308
  %1310 = vmatmul.bf16.gmra.mxu0 %v460
  %v1311 = vpop.f32.mrf.mxu0
  %v1312 = vadd.f32 %v1263, %v1311
  %v1313 = vpop.f32.mrf.mxu0
  %v1314 = vadd.f32 %v1265, %v1313
  %1315 = vmatmul.bf16.gmra.mxu0 %v468
  %v1316 = vpop.f32.mrf.mxu0
  %v1317 = vadd.f32 %v1268, %v1316
  %v1318 = vpop.f32.mrf.mxu0
  %v1319 = vadd.f32 %v1270, %v1318
  %1320 = vmatmul.bf16.gmra.mxu0 %v476
  %v1321 = vpop.f32.mrf.mxu0
  %v1322 = vadd.f32 %v1273, %v1321
  %v1323 = vpop.f32.mrf.mxu0
  %v1324 = vadd.f32 %v1275, %v1323
  %1325 = vmatmul.bf16.gmra.mxu0 %v484
  %v1326 = vpop.f32.mrf.mxu0
  %v1327 = vadd.f32 %v1278, %v1326
  %v1328 = vpop.f32.mrf.mxu0
  %v1329 = vadd.f32 %v1280, %v1328
  %1330 = vmatmul.bf16.gmra.mxu0 %v492
  %v1331 = vpop.f32.mrf.mxu0
  %v1332 = vadd.f32 %v1283, %v1331
  %v1333 = vpop.f32.mrf.mxu0
  %v1334 = vadd.f32 %v1285, %v1333
  %1335 = vmatmul.bf16.gmra.mxu0 %v500
  %v1336 = vpop.f32.mrf.mxu0
  %v1337 = vadd.f32 %v1288, %v1336
  %v1338 = vpop.f32.mrf.mxu0
  %v1339 = vadd.f32 %v1290, %v1338
  %1340 = vdwg.mxu0
  %v1341 = vadd.f32 %v37, %v1302
  %v1342 = vadd.f32 %v38, %v1304
  %v1343 = vadd.f32 %v39, %v1307
  %v1344 = vadd.f32 %v40, %v1309
  %v1345 = vadd.f32 %v41, %v1312
  %v1346 = vadd.f32 %v42, %v1314
  %v1347 = vadd.f32 %v43, %v1317
  %v1348 = vadd.f32 %v44, %v1319
  %v1349 = vadd.f32 %v45, %v1322
  %v1350 = vadd.f32 %v46, %v1324
  %v1351 = vadd.f32 %v47, %v1327
  %v1352 = vadd.f32 %v48, %v1329
  %v1353 = vadd.f32 %v49, %v1332
  %v1354 = vadd.f32 %v50, %v1334
  %v1355 = vadd.f32 %v51, %v1337
  %v1356 = vadd.f32 %v52, %v1339
  %1357 = vst [vmem:[#allocation2] sm:$0xff] %v1341
  %1358 = vst [vmem:[#allocation2 + $0x8] sm:$0xff] %v1342
  %1359 = vst [vmem:[#allocation2 + $0x10] sm:$0xff] %v1343
  %1360 = vst [vmem:[#allocation2 + $0x18] sm:$0xff] %v1344
  %1361 = vst [vmem:[#allocation2 + $0x20] sm:$0xff] %v1345
  %1362 = vst [vmem:[#allocation2 + $0x28] sm:$0xff] %v1346
  %1363 = vst [vmem:[#allocation2 + $0x30] sm:$0xff] %v1347
  %1364 = vst [vmem:[#allocation2 + $0x38] sm:$0xff] %v1348
  %1365 = vst [vmem:[#allocation2 + $0x40] sm:$0xff] %v1349
  %1366 = vst [vmem:[#allocation2 + $0x48] sm:$0xff] %v1350
  %1367 = vst [vmem:[#allocation2 + $0x50] sm:$0xff] %v1351
  %1368 = vst [vmem:[#allocation2 + $0x58] sm:$0xff] %v1352
  %1369 = vst [vmem:[#allocation2 + $0x60] sm:$0xff] %v1353
  %1370 = vst [vmem:[#allocation2 + $0x68] sm:$0xff] %v1354
  %1371 = vst [vmem:[#allocation2 + $0x70] sm:$0xff] %v1355
  %1372 = vst [vmem:[#allocation2 + $0x78] sm:$0xff] %v1356
  // Predicated region
  $region22: #{discriminator_forward.6} parent=0 // pred_check
    %p1373 = pneg %p17
  $region23: #{discriminator_forward.6} parent=0 // pred_check_branch
    %1375 = sbr.rel (%p1373) target = $region25
  $region24: #{discriminator_forward.6} parent=0 // pred_region
    %v1376 = vld [vmem:[#allocation2] sm:$0xff]
    %v1377 = vld [vmem:[#allocation2 + $0x8] sm:$0xff]
    %v1378 = vld [vmem:[#allocation2 + $0x10] sm:$0xff]
    %v1379 = vld [vmem:[#allocation2 + $0x18] sm:$0xff]
    %v1380 = vld [vmem:[#allocation2 + $0x20] sm:$0xff]
    %v1381 = vld [vmem:[#allocation2 + $0x28] sm:$0xff]
    %v1382 = vld [vmem:[#allocation2 + $0x30] sm:$0xff]
    %v1383 = vld [vmem:[#allocation2 + $0x38] sm:$0xff]
    %v1384 = vld [vmem:[#allocation2 + $0x40] sm:$0xff]
    %v1385 = vld [vmem:[#allocation2 + $0x48] sm:$0xff]
    %v1386 = vld [vmem:[#allocation2 + $0x50] sm:$0xff]
    %v1387 = vld [vmem:[#allocation2 + $0x58] sm:$0xff]
    %v1388 = vld [vmem:[#allocation2 + $0x60] sm:$0xff]
    %v1389 = vld [vmem:[#allocation2 + $0x68] sm:$0xff]
    %v1390 = vld [vmem:[#allocation2 + $0x70] sm:$0xff]
    %v1391 = vld [vmem:[#allocation2 + $0x78] sm:$0xff]
    %v1392 = vadd.f32 %v1376, %v1377
    %v1393 = vadd.f32 %v1392, %v1378
    %v1394 = vadd.f32 %v1393, %v1379
    %v1395 = vadd.f32 %v1394, %v1380
    %v1396 = vadd.f32 %v1395, %v1381
    %v1397 = vadd.f32 %v1396, %v1382
    %v1398 = vadd.f32 %v1397, %v1383
    %v1399 = vadd.f32 %v1398, %v1384
    %v1400 = vadd.f32 %v1399, %v1385
    %v1401 = vadd.f32 %v1400, %v1386
    %v1402 = vadd.f32 %v1401, %v1387
    %v1403 = vadd.f32 %v1402, %v1388
    %v1404 = vadd.f32 %v1403, %v1389
    %v1405 = vadd.f32 %v1404, %v1390
    %v1406 = vadd.f32 %v1405, %v1391
    %v1407 = vrot.slane %v1406, 4
    %v1408 = vadd.f32 %v1406, %v1407
    %v1409 = vrot.slane %v1408, 2
    %v1410 = vadd.f32 %v1408, %v1409
    %v1411 = vrot.slane %v1410, 1
    %v1412 = vadd.f32 %v1410, %v1411
    %v1413 = vmul.f32 %v1412, 0.0078125
    %v1414 = vlaneseq
    %v1415 = vshrl.u32 %v1414, 7
    %v1416 = vadd.s32 %v1415, 8
    %v1417 = vadd.s32 %v1415, 16
    %v1418 = vadd.s32 %v1415, 24
    %v1419 = vadd.s32 %v1415, 32
    %v1420 = vadd.s32 %v1415, 40
    %v1421 = vadd.s32 %v1415, 48
    %v1422 = vadd.s32 %v1415, 56
    %v1423 = vadd.s32 %v1415, 64
    %v1424 = vadd.s32 %v1415, 72
    %v1425 = vadd.s32 %v1415, 80
    %v1426 = vadd.s32 %v1415, 88
    %v1427 = vadd.s32 %v1415, 96
    %v1428 = vadd.s32 %v1415, 104
    %v1429 = vadd.s32 %v1415, 112
    %v1430 = vadd.s32 %v1415, 120
    %vm1431 = vcmp.lt.s32.totalorder %v1415, 128
    %vm1432 = vcmp.lt.s32.totalorder %v1416, 128
    %vm1433 = vcmp.lt.s32.totalorder %v1417, 128
    %vm1434 = vcmp.lt.s32.totalorder %v1418, 128
    %vm1435 = vcmp.lt.s32.totalorder %v1419, 128
    %vm1436 = vcmp.lt.s32.totalorder %v1420, 128
    %vm1437 = vcmp.lt.s32.totalorder %v1421, 128
    %vm1438 = vcmp.lt.s32.totalorder %v1422, 128
    %vm1439 = vcmp.lt.s32.totalorder %v1423, 128
    %vm1440 = vcmp.lt.s32.totalorder %v1424, 128
    %vm1441 = vcmp.lt.s32.totalorder %v1425, 128
    %vm1442 = vcmp.lt.s32.totalorder %v1426, 128
    %vm1443 = vcmp.lt.s32.totalorder %v1427, 128
    %vm1444 = vcmp.lt.s32.totalorder %v1428, 128
    %vm1445 = vcmp.lt.s32.totalorder %v1429, 128
    %vm1446 = vcmp.lt.s32.totalorder %v1430, 128
    %v1447 = vsub.f32 %v1376, %v1413
    %v1448 = vsub.f32 %v1377, %v1413
    %v1449 = vsub.f32 %v1378, %v1413
    %v1450 = vsub.f32 %v1379, %v1413
    %v1451 = vsub.f32 %v1380, %v1413
    %v1452 = vsub.f32 %v1381, %v1413
    %v1453 = vsub.f32 %v1382, %v1413
    %v1454 = vsub.f32 %v1383, %v1413
    %v1455 = vsub.f32 %v1384, %v1413
    %v1456 = vsub.f32 %v1385, %v1413
    %v1457 = vsub.f32 %v1386, %v1413
    %v1458 = vsub.f32 %v1387, %v1413
    %v1459 = vsub.f32 %v1388, %v1413
    %v1460 = vsub.f32 %v1389, %v1413
    %v1461 = vsub.f32 %v1390, %v1413
    %v1462 = vsub.f32 %v1391, %v1413
    %v1463 = vsel %vm1431, %v1447, 0.0
    %v1464 = vsel %vm1432, %v1448, 0.0
    %v1465 = vsel %vm1433, %v1449, 0.0
    %v1466 = vsel %vm1434, %v1450, 0.0
    %v1467 = vsel %vm1435, %v1451, 0.0
    %v1468 = vsel %vm1436, %v1452, 0.0
    %v1469 = vsel %vm1437, %v1453, 0.0
    %v1470 = vsel %vm1438, %v1454, 0.0
    %v1471 = vsel %vm1439, %v1455, 0.0
    %v1472 = vsel %vm1440, %v1456, 0.0
    %v1473 = vsel %vm1441, %v1457, 0.0
    %v1474 = vsel %vm1442, %v1458, 0.0
    %v1475 = vsel %vm1443, %v1459, 0.0
    %v1476 = vsel %vm1444, %v1460, 0.0
    %v1477 = vsel %vm1445, %v1461, 0.0
    %v1478 = vsel %vm1446, %v1462, 0.0
    %v1479 = vmul.f32 %v1463, %v1463
    %v1480 = vmul.f32 %v1464, %v1464
    %v1481 = vmul.f32 %v1465, %v1465
    %v1482 = vmul.f32 %v1466, %v1466
    %v1483 = vmul.f32 %v1467, %v1467
    %v1484 = vmul.f32 %v1468, %v1468
    %v1485 = vmul.f32 %v1469, %v1469
    %v1486 = vmul.f32 %v1470, %v1470
    %v1487 = vmul.f32 %v1471, %v1471
    %v1488 = vmul.f32 %v1472, %v1472
    %v1489 = vmul.f32 %v1473, %v1473
    %v1490 = vmul.f32 %v1474, %v1474
    %v1491 = vmul.f32 %v1475, %v1475
    %v1492 = vmul.f32 %v1476, %v1476
    %v1493 = vmul.f32 %v1477, %v1477
    %v1494 = vmul.f32 %v1478, %v1478
    %v1495 = vadd.f32 %v1479, %v1480
    %v1496 = vadd.f32 %v1495, %v1481
    %v1497 = vadd.f32 %v1496, %v1482
    %v1498 = vadd.f32 %v1497, %v1483
    %v1499 = vadd.f32 %v1498, %v1484
    %v1500 = vadd.f32 %v1499, %v1485
    %v1501 = vadd.f32 %v1500, %v1486
    %v1502 = vadd.f32 %v1501, %v1487
    %v1503 = vadd.f32 %v1502, %v1488
    %v1504 = vadd.f32 %v1503, %v1489
    %v1505 = vadd.f32 %v1504, %v1490
    %v1506 = vadd.f32 %v1505, %v1491
    %v1507 = vadd.f32 %v1506, %v1492
    %v1508 = vadd.f32 %v1507, %v1493
    %v1509 = vadd.f32 %v1508, %v1494
    %v1510 = vrot.slane %v1509, 4
    %v1511 = vadd.f32 %v1509, %v1510
    %v1512 = vrot.slane %v1511, 2
    %v1513 = vadd.f32 %v1511, %v1512
    %v1514 = vrot.slane %v1513, 1
    %v1515 = vadd.f32 %v1513, %v1514
    %v1516 = vmul.f32 %v1515, 0.0078125
    %v1517 = vadd.f32 %v1516, 1e-05
    %v1518 = vrsqrt.pop %v1517
    %v1519 = vmul.f32 %v1518, %v1517
    %v1520 = vmul.f32 %v1519, %v1518
    %v1521 = vmul.f32 0.5, %v1520
    %v1522 = vsub.f32 1.5, %v1521
    %v1523 = vmul.f32 %v1518, %v1522
    %vm1524 = vweird.f32 %v1517
    %vm1525 = vweird.f32 %v1518
    %vm1526 = vmor %vm1524, %vm1525
    %v1527 = vsel %vm1526, %v1518, %v1523
    %v1528 = vld [vmem:[%s2] sm:$0x1]
    %v1529 = vmul.f32 %v1527, %v1528
    %v1530 = vperm.slane %v1529, 0
    %v1531 = vmul.f32 %v1463, %v1530
    %v1532 = vmul.f32 %v1464, %v1530
    %v1533 = vmul.f32 %v1465, %v1530
    %v1534 = vmul.f32 %v1466, %v1530
    %v1535 = vmul.f32 %v1467, %v1530
    %v1536 = vmul.f32 %v1468, %v1530
    %v1537 = vmul.f32 %v1469, %v1530
    %v1538 = vmul.f32 %v1470, %v1530
    %v1539 = vmul.f32 %v1471, %v1530
    %v1540 = vmul.f32 %v1472, %v1530
    %v1541 = vmul.f32 %v1473, %v1530
    %v1542 = vmul.f32 %v1474, %v1530
    %v1543 = vmul.f32 %v1475, %v1530
    %v1544 = vmul.f32 %v1476, %v1530
    %v1545 = vmul.f32 %v1477, %v1530
    %v1546 = vmul.f32 %v1478, %v1530
    %v1547 = vld [vmem:[%s3] sm:$0x1]
    %v1549 = vperm.slane %v1547, 0
    %v1551 = vadd.f32 %v1531, %v1549
    %v1552 = vadd.f32 %v1532, %v1549
    %v1553 = vadd.f32 %v1533, %v1549
    %v1554 = vadd.f32 %v1534, %v1549
    %v1555 = vadd.f32 %v1535, %v1549
    %v1556 = vadd.f32 %v1536, %v1549
    %v1557 = vadd.f32 %v1537, %v1549
    %v1558 = vadd.f32 %v1538, %v1549
    %v1559 = vadd.f32 %v1539, %v1549
    %v1560 = vadd.f32 %v1540, %v1549
    %v1561 = vadd.f32 %v1541, %v1549
    %v1562 = vadd.f32 %v1542, %v1549
    %v1563 = vadd.f32 %v1543, %v1549
    %v1564 = vadd.f32 %v1544, %v1549
    %v1565 = vadd.f32 %v1545, %v1549
    %v1566 = vadd.f32 %v1546, %v1549
    %vm1567 = vcmp.ge.f32.partialorder %v1551, 0.0
    %vm1568 = vcmp.ge.f32.partialorder %v1552, 0.0
    %vm1569 = vcmp.ge.f32.partialorder %v1553, 0.0
    %vm1570 = vcmp.ge.f32.partialorder %v1554, 0.0
    %vm1571 = vcmp.ge.f32.partialorder %v1555, 0.0
    %vm1572 = vcmp.ge.f32.partialorder %v1556, 0.0
    %vm1573 = vcmp.ge.f32.partialorder %v1557, 0.0
    %vm1574 = vcmp.ge.f32.partialorder %v1558, 0.0
    %vm1575 = vcmp.ge.f32.partialorder %v1559, 0.0
    %vm1576 = vcmp.ge.f32.partialorder %v1560, 0.0
    %vm1577 = vcmp.ge.f32.partialorder %v1561, 0.0
    %vm1578 = vcmp.ge.f32.partialorder %v1562, 0.0
    %vm1579 = vcmp.ge.f32.partialorder %v1563, 0.0
    %vm1580 = vcmp.ge.f32.partialorder %v1564, 0.0
    %vm1581 = vcmp.ge.f32.partialorder %v1565, 0.0
    %vm1582 = vcmp.ge.f32.partialorder %v1566, 0.0
    %v1583 = vmul.f32 %v1551, 0.2
    %v1584 = vmul.f32 %v1552, 0.2
    %v1585 = vmul.f32 %v1553, 0.2
    %v1586 = vmul.f32 %v1554, 0.2
    %v1587 = vmul.f32 %v1555, 0.2
    %v1588 = vmul.f32 %v1556, 0.2
    %v1589 = vmul.f32 %v1557, 0.2
    %v1590 = vmul.f32 %v1558, 0.2
    %v1591 = vmul.f32 %v1559, 0.2
    %v1592 = vmul.f32 %v1560, 0.2
    %v1593 = vmul.f32 %v1561, 0.2
    %v1594 = vmul.f32 %v1562, 0.2
    %v1595 = vmul.f32 %v1563, 0.2
    %v1596 = vmul.f32 %v1564, 0.2
    %v1597 = vmul.f32 %v1565, 0.2
    %v1598 = vmul.f32 %v1566, 0.2
    %v1599 = vsel %vm1567, %v1551, %v1583
    %v1600 = vsel %vm1568, %v1552, %v1584
    %v1601 = vsel %vm1569, %v1553, %v1585
    %v1602 = vsel %vm1570, %v1554, %v1586
    %v1603 = vsel %vm1571, %v1555, %v1587
    %v1604 = vsel %vm1572, %v1556, %v1588
    %v1605 = vsel %vm1573, %v1557, %v1589
    %v1606 = vsel %vm1574, %v1558, %v1590
    %v1607 = vsel %vm1575, %v1559, %v1591
    %v1608 = vsel %vm1576, %v1560, %v1592
    %v1609 = vsel %vm1577, %v1561, %v1593
    %v1610 = vsel %vm1578, %v1562, %v1594
    %v1611 = vsel %vm1579, %v1563, %v1595
    %v1612 = vsel %vm1580, %v1564, %v1596
    %v1613 = vsel %vm1581, %v1565, %v1597
    %v1614 = vsel %vm1582, %v1566, %v1598
    %v1615 = vpack.c.bf16 %v1599, %v1599
    %v1616 = vpack.c.bf16 %v1600, %v1600
    %v1617 = vpack.c.bf16 %v1601, %v1601
    %v1618 = vpack.c.bf16 %v1602, %v1602
    %v1619 = vpack.c.bf16 %v1603, %v1603
    %v1620 = vpack.c.bf16 %v1604, %v1604
    %v1621 = vpack.c.bf16 %v1605, %v1605
    %v1622 = vpack.c.bf16 %v1606, %v1606
    %v1623 = vpack.c.bf16 %v1607, %v1607
    %v1624 = vpack.c.bf16 %v1608, %v1608
    %v1625 = vpack.c.bf16 %v1609, %v1609
    %v1626 = vpack.c.bf16 %v1610, %v1610
    %v1627 = vpack.c.bf16 %v1611, %v1611
    %v1628 = vpack.c.bf16 %v1612, %v1612
    %v1629 = vpack.c.bf16 %v1613, %v1613
    %v1630 = vpack.c.bf16 %v1614, %v1614
    %1631 = vst [vmem:[%s4] sm:$0xf] %v1615
    %1632 = vst [vmem:[%s4 + $0x4] sm:$0xf] %v1616
    %1633 = vst [vmem:[%s4 + $0x8] sm:$0xf] %v1617
    %1634 = vst [vmem:[%s4 + $0xc] sm:$0xf] %v1618
    %1635 = vst [vmem:[%s4 + $0x10] sm:$0xf] %v1619
    %1636 = vst [vmem:[%s4 + $0x14] sm:$0xf] %v1620
    %1637 = vst [vmem:[%s4 + $0x18] sm:$0xf] %v1621
    %1638 = vst [vmem:[%s4 + $0x1c] sm:$0xf] %v1622
    %1639 = vst [vmem:[%s4 + $0x20] sm:$0xf] %v1623
    %1640 = vst [vmem:[%s4 + $0x24] sm:$0xf] %v1624
    %1641 = vst [vmem:[%s4 + $0x28] sm:$0xf] %v1625
    %1642 = vst [vmem:[%s4 + $0x2c] sm:$0xf] %v1626
    %1643 = vst [vmem:[%s4 + $0x30] sm:$0xf] %v1627
    %1644 = vst [vmem:[%s4 + $0x34] sm:$0xf] %v1628
    %1645 = vst [vmem:[%s4 + $0x38] sm:$0xf] %v1629
    %1646 = vst [vmem:[%s4 + $0x3c] sm:$0xf] %v1630
  $region25: #{discriminator_forward.6} parent=0 // pred_fallthru
    _
  // Predicated region
  $region26: #{discriminator_forward.6} parent=0 // pred_check
    _
  $region27: #{discriminator_forward.6} parent=0 // pred_check_branch
    %1648 = sbr.rel (0) target = $region29
  $region28: #{discriminator_forward.6} parent=0 // pred_region
    _
  $region29: #{discriminator_forward.6} parent=0 // pred_fallthru
    _
  // Predicated region
  $region30: #{discriminator_forward.6} parent=0 // pred_check
    _
  $region31: #{discriminator_forward.6} parent=0 // pred_check_branch
    %1650 = sbr.rel (0) target = $region33
  $region32: #{discriminator_forward.6} parent=0 // pred_region
    _
  $region33: #{discriminator_forward.6} parent=0 // pred_fallthru
    _

// kernel: discriminator_forward.7
$region0: #{discriminator_forward.7}
  #allocation0 [shape = 'u32[]', space=smem, size = 0x4, offset = 0x4, fixed_abs, tag = 'smem constant byte address 0x4 - core index']
  #allocation1 [shape = 'u32[72,128]{1,0:T(1,128)}', space=vmem, size = 0x9000, scoped, tag = 'internal scratch']
  #allocation2 [shape = 'f32[32,256]{1,0:T(8,128)}', space=vmem, size = 0x8000, scoped, tag = 'scratch operand']
  %s0 = inlined_call_operand.vmem [shape: bf16[32,2048], index: 0, kind: input, shape index: {}]
  %s1 = inlined_call_operand.vmem [shape: bf16[2048,256], index: 1, kind: input, shape index: {}]
  %s2 = inlined_call_operand.vmem [shape: f32[1,256], index: 2, kind: input, shape index: {}]
  %s3 = inlined_call_operand.vmem [shape: f32[1,256], index: 3, kind: input, shape index: {}]
  %s4 = inlined_call_operand.vmem [shape: bf16[32,256], index: 4, kind: output, shape index: {}]
  %s5 = sld [smem:[#allocation0]]
  $region34: #{discriminator_forward.7} parent=0
    _
  %s7 = ssub.s32 1, %s5
  %s8 = scalar_select 0, %s7, %s5
  // Predicated region
  $region2: #{discriminator_forward.7} parent=0 // pred_check
    _
  $region3: #{discriminator_forward.7} parent=0 // pred_check_branch
    %10 = sbr.rel (0) target = $region5
  $region4: #{discriminator_forward.7} parent=0 // pred_region
    _
  $region5: #{discriminator_forward.7} parent=0 // pred_fallthru
    _
  // Predicated region
  $region6: #{discriminator_forward.7} parent=0 // pred_check
    _
  $region7: #{discriminator_forward.7} parent=0 // pred_check_branch
    %12 = sbr.rel (0) target = $region9
  $region8: #{discriminator_forward.7} parent=0 // pred_region
    _
  $region9: #{discriminator_forward.7} parent=0 // pred_fallthru
    _
  // Predicated region
  $region10: #{discriminator_forward.7} parent=0 // pred_check
    _
  $region11: #{discriminator_forward.7} parent=0 // pred_check_branch
    %14 = sbr.rel (0) target = $region13
  $region12: #{discriminator_forward.7} parent=0 // pred_region
    _
  $region13: #{discriminator_forward.7} parent=0 // pred_fallthru
    _
  // Predicated region
  $region14: #{discriminator_forward.7} parent=0 // pred_check
    _
  $region15: #{discriminator_forward.7} parent=0 // pred_check_branch
    %16 = sbr.rel (0) target = $region17
  $region16: #{discriminator_forward.7} parent=0 // pred_region
    _
  $region17: #{discriminator_forward.7} parent=0 // pred_fallthru
    _
  %p17 = scmp.eq.s32.totalorder 0, 0
  // Predicated region
  $region18: #{discriminator_forward.7} parent=0 // pred_check
    %p18 = pneg %p17
  $region19: #{discriminator_forward.7} parent=0 // pred_check_branch
    %20 = sbr.rel (%p18) target = $region21
  $region20: #{discriminator_forward.7} parent=0 // pred_region
    %21 = vst [vmem:[#allocation2] sm:$0xff] 0.0
    %22 = vst [vmem:[#allocation2 + $0x8] sm:$0xff] 0.0
    %23 = vst [vmem:[#allocation2 + $0x10] sm:$0xff] 0.0
    %24 = vst [vmem:[#allocation2 + $0x18] sm:$0xff] 0.0
    %25 = vst [vmem:[#allocation2 + $0x20] sm:$0xff] 0.0
    %26 = vst [vmem:[#allocation2 + $0x28] sm:$0xff] 0.0
    %27 = vst [vmem:[#allocation2 + $0x30] sm:$0xff] 0.0
    %28 = vst [vmem:[#allocation2 + $0x38] sm:$0xff] 0.0
  $region21: #{discriminator_forward.7} parent=0 // pred_fallthru
    _
  %v29 = vld [vmem:[#allocation2] sm:$0xff]
  %v30 = vld [vmem:[#allocation2 + $0x8] sm:$0xff]
  %v31 = vld [vmem:[#allocation2 + $0x10] sm:$0xff]
  %v32 = vld [vmem:[#allocation2 + $0x18] sm:$0xff]
  %v33 = vld [vmem:[#allocation2 + $0x20] sm:$0xff]
  %v34 = vld [vmem:[#allocation2 + $0x28] sm:$0xff]
  %v35 = vld [vmem:[#allocation2 + $0x30] sm:$0xff]
  %v36 = vld [vmem:[#allocation2 + $0x38] sm:$0xff]
  %v37 = vld [vmem:[%s0] sm:$0xff]
  %v38 = vld [vmem:[%s0 + $0x8] sm:$0xff]
  %v39 = vld [vmem:[%s0 + $0x10] sm:$0xff]
  %v40 = vld [vmem:[%s0 + $0x18] sm:$0xff]
  %v41 = vld [vmem:[%s0 + $0x20] sm:$0xff]
  %v42 = vld [vmem:[%s0 + $0x28] sm:$0xff]
  %v43 = vld [vmem:[%s0 + $0x30] sm:$0xff]
  %v44 = vld [vmem:[%s0 + $0x38] sm:$0xff]
  %v45 = vld [vmem:[%s0 + $0x40] sm:$0xff]
  %v46 = vld [vmem:[%s0 + $0x48] sm:$0xff]
  %v47 = vld [vmem:[%s0 + $0x50] sm:$0xff]
  %v48 = vld [vmem:[%s0 + $0x58] sm:$0xff]
  %v49 = vld [vmem:[%s0 + $0x60] sm:$0xff]
  %v50 = vld [vmem:[%s0 + $0x68] sm:$0xff]
  %v51 = vld [vmem:[%s0 + $0x70] sm:$0xff]
  %v52 = vld [vmem:[%s0 + $0x78] sm:$0xff]
  %v53 = vld [vmem:[%s0 + $0x80] sm:$0xff]
  %v54 = vld [vmem:[%s0 + $0x88] sm:$0xff]
  %v55 = vld [vmem:[%s0 + $0x90] sm:$0xff]
  %v56 = vld [vmem:[%s0 + $0x98] sm:$0xff]
  %v57 = vld [vmem:[%s0 + $0xa0] sm:$0xff]
  %v58 = vld [vmem:[%s0 + $0xa8] sm:$0xff]
  %v59 = vld [vmem:[%s0 + $0xb0] sm:$0xff]
  %v60 = vld [vmem:[%s0 + $0xb8] sm:$0xff]
  %v61 = vld [vmem:[%s0 + $0xc0] sm:$0xff]
  %v62 = vld [vmem:[%s0 + $0xc8] sm:$0xff]
  %v63 = vld [vmem:[%s0 + $0xd0] sm:$0xff]
  %v64 = vld [vmem:[%s0 + $0xd8] sm:$0xff]
  %v65 = vld [vmem:[%s0 + $0xe0] sm:$0xff]
  %v66 = vld [vmem:[%s0 + $0xe8] sm:$0xff]
  %v67 = vld [vmem:[%s0 + $0xf0] sm:$0xff]
  %v68 = vld [vmem:[%s0 + $0xf8] sm:$0xff]
  %v69 = vld [vmem:[%s1] sm:$0xff]
  %v70 = vld [vmem:[%s1 + $0x8] sm:$0xff]
  %v71 = vld [vmem:[%s1 + $0x10] sm:$0xff]
  %v72 = vld [vmem:[%s1 + $0x18] sm:$0xff]
  %v73 = vld [vmem:[%s1 + $0x20] sm:$0xff]
  %v74 = vld [vmem:[%s1 + $0x28] sm:$0xff]
  %v75 = vld [vmem:[%s1 + $0x30] sm:$0xff]
  %v76 = vld [vmem:[%s1 + $0x38] sm:$0xff]
  %v77 = vld [vmem:[%s1 + $0x40] sm:$0xff]
  %v78 = vld [vmem:[%s1 + $0x48] sm:$0xff]
  %v79 = vld [vmem:[%s1 + $0x50] sm:$0xff]
  %v80 = vld [vmem:[%s1 + $0x58] sm:$0xff]
  %v81 = vld [vmem:[%s1 + $0x60] sm:$0xff]
  %v82 = vld [vmem:[%s1 + $0x68] sm:$0xff]
  %v83 = vld [vmem:[%s1 + $0x70] sm:$0xff]
  %v84 = vld [vmem:[%s1 + $0x78] sm:$0xff]
  %v85 = vld [vmem:[%s1 + $0x80] sm:$0xff]
  %v86 = vld [vmem:[%s1 + $0x88] sm:$0xff]
  %v87 = vld [vmem:[%s1 + $0x90] sm:$0xff]
  %v88 = vld [vmem:[%s1 + $0x98] sm:$0xff]
  %v89 = vld [vmem:[%s1 + $0xa0] sm:$0xff]
  %v90 = vld [vmem:[%s1 + $0xa8] sm:$0xff]
  %v91 = vld [vmem:[%s1 + $0xb0] sm:$0xff]
  %v92 = vld [vmem:[%s1 + $0xb8] sm:$0xff]
  %v93 = vld [vmem:[%s1 + $0xc0] sm:$0xff]
  %v94 = vld [vmem:[%s1 + $0xc8] sm:$0xff]
  %v95 = vld [vmem:[%s1 + $0xd0] sm:$0xff]
  %v96 = vld [vmem:[%s1 + $0xd8] sm:$0xff]
  %v97 = vld [vmem:[%s1 + $0xe0] sm:$0xff]
  %v98 = vld [vmem:[%s1 + $0xe8] sm:$0xff]
  %v99 = vld [vmem:[%s1 + $0xf0] sm:$0xff]
  %v100 = vld [vmem:[%s1 + $0xf8] sm:$0xff]
  %v101 = vld [vmem:[%s1 + $0x100] sm:$0xff]
  %v102 = vld [vmem:[%s1 + $0x108] sm:$0xff]
  %v103 = vld [vmem:[%s1 + $0x110] sm:$0xff]
  %v104 = vld [vmem:[%s1 + $0x118] sm:$0xff]
  %v105 = vld [vmem:[%s1 + $0x120] sm:$0xff]
  %v106 = vld [vmem:[%s1 + $0x128] sm:$0xff]
  %v107 = vld [vmem:[%s1 + $0x130] sm:$0xff]
  %v108 = vld [vmem:[%s1 + $0x138] sm:$0xff]
  %v109 = vld [vmem:[%s1 + $0x140] sm:$0xff]
  %v110 = vld [vmem:[%s1 + $0x148] sm:$0xff]
  %v111 = vld [vmem:[%s1 + $0x150] sm:$0xff]
  %v112 = vld [vmem:[%s1 + $0x158] sm:$0xff]
  %v113 = vld [vmem:[%s1 + $0x160] sm:$0xff]
  %v114 = vld [vmem:[%s1 + $0x168] sm:$0xff]
  %v115 = vld [vmem:[%s1 + $0x170] sm:$0xff]
  %v116 = vld [vmem:[%s1 + $0x178] sm:$0xff]
  %v117 = vld [vmem:[%s1 + $0x180] sm:$0xff]
  %v118 = vld [vmem:[%s1 + $0x188] sm:$0xff]
  %v119 = vld [vmem:[%s1 + $0x190] sm:$0xff]
  %v120 = vld [vmem:[%s1 + $0x198] sm:$0xff]
  %v121 = vld [vmem:[%s1 + $0x1a0] sm:$0xff]
  %v122 = vld [vmem:[%s1 + $0x1a8] sm:$0xff]
  %v123 = vld [vmem:[%s1 + $0x1b0] sm:$0xff]
  %v124 = vld [vmem:[%s1 + $0x1b8] sm:$0xff]
  %v125 = vld [vmem:[%s1 + $0x1c0] sm:$0xff]
  %v126 = vld [vmem:[%s1 + $0x1c8] sm:$0xff]
  %v127 = vld [vmem:[%s1 + $0x1d0] sm:$0xff]
  %v128 = vld [vmem:[%s1 + $0x1d8] sm:$0xff]
  %v129 = vld [vmem:[%s1 + $0x1e0] sm:$0xff]
  %v130 = vld [vmem:[%s1 + $0x1e8] sm:$0xff]
  %v131 = vld [vmem:[%s1 + $0x1f0] sm:$0xff]
  %v132 = vld [vmem:[%s1 + $0x1f8] sm:$0xff]
  %v133 = vld [vmem:[%s1 + $0x200] sm:$0xff]
  %v134 = vld [vmem:[%s1 + $0x208] sm:$0xff]
  %v135 = vld [vmem:[%s1 + $0x210] sm:$0xff]
  %v136 = vld [vmem:[%s1 + $0x218] sm:$0xff]
  %v137 = vld [vmem:[%s1 + $0x220] sm:$0xff]
  %v138 = vld [vmem:[%s1 + $0x228] sm:$0xff]
  %v139 = vld [vmem:[%s1 + $0x230] sm:$0xff]
  %v140 = vld [vmem:[%s1 + $0x238] sm:$0xff]
  %v141 = vld [vmem:[%s1 + $0x240] sm:$0xff]
  %v142 = vld [vmem:[%s1 + $0x248] sm:$0xff]
  %v143 = vld [vmem:[%s1 + $0x250] sm:$0xff]
  %v144 = vld [vmem:[%s1 + $0x258] sm:$0xff]
  %v145 = vld [vmem:[%s1 + $0x260] sm:$0xff]
  %v146 = vld [vmem:[%s1 + $0x268] sm:$0xff]
  %v147 = vld [vmem:[%s1 + $0x270] sm:$0xff]
  %v148 = vld [vmem:[%s1 + $0x278] sm:$0xff]
  %v149 = vld [vmem:[%s1 + $0x280] sm:$0xff]
  %v150 = vld [vmem:[%s1 + $0x288] sm:$0xff]
  %v151 = vld [vmem:[%s1 + $0x290] sm:$0xff]
  %v152 = vld [vmem:[%s1 + $0x298] sm:$0xff]
  %v153 = vld [vmem:[%s1 + $0x2a0] sm:$0xff]
  %v154 = vld [vmem:[%s1 + $0x2a8] sm:$0xff]
  %v155 = vld [vmem:[%s1 + $0x2b0] sm:$0xff]
  %v156 = vld [vmem:[%s1 + $0x2b8] sm:$0xff]
  %v157 = vld [vmem:[%s1 + $0x2c0] sm:$0xff]
  %v158 = vld [vmem:[%s1 + $0x2c8] sm:$0xff]
  %v159 = vld [vmem:[%s1 + $0x2d0] sm:$0xff]
  %v160 = vld [vmem:[%s1 + $0x2d8] sm:$0xff]
  %v161 = vld [vmem:[%s1 + $0x2e0] sm:$0xff]
  %v162 = vld [vmem:[%s1 + $0x2e8] sm:$0xff]
  %v163 = vld [vmem:[%s1 + $0x2f0] sm:$0xff]
  %v164 = vld [vmem:[%s1 + $0x2f8] sm:$0xff]
  %v165 = vld [vmem:[%s1 + $0x300] sm:$0xff]
  %v166 = vld [vmem:[%s1 + $0x308] sm:$0xff]
  %v167 = vld [vmem:[%s1 + $0x310] sm:$0xff]
  %v168 = vld [vmem:[%s1 + $0x318] sm:$0xff]
  %v169 = vld [vmem:[%s1 + $0x320] sm:$0xff]
  %v170 = vld [vmem:[%s1 + $0x328] sm:$0xff]
  %v171 = vld [vmem:[%s1 + $0x330] sm:$0xff]
  %v172 = vld [vmem:[%s1 + $0x338] sm:$0xff]
  %v173 = vld [vmem:[%s1 + $0x340] sm:$0xff]
  %v174 = vld [vmem:[%s1 + $0x348] sm:$0xff]
  %v175 = vld [vmem:[%s1 + $0x350] sm:$0xff]
  %v176 = vld [vmem:[%s1 + $0x358] sm:$0xff]
  %v177 = vld [vmem:[%s1 + $0x360] sm:$0xff]
  %v178 = vld [vmem:[%s1 + $0x368] sm:$0xff]
  %v179 = vld [vmem:[%s1 + $0x370] sm:$0xff]
  %v180 = vld [vmem:[%s1 + $0x378] sm:$0xff]
  %v181 = vld [vmem:[%s1 + $0x380] sm:$0xff]
  %v182 = vld [vmem:[%s1 + $0x388] sm:$0xff]
  %v183 = vld [vmem:[%s1 + $0x390] sm:$0xff]
  %v184 = vld [vmem:[%s1 + $0x398] sm:$0xff]
  %v185 = vld [vmem:[%s1 + $0x3a0] sm:$0xff]
  %v186 = vld [vmem:[%s1 + $0x3a8] sm:$0xff]
  %v187 = vld [vmem:[%s1 + $0x3b0] sm:$0xff]
  %v188 = vld [vmem:[%s1 + $0x3b8] sm:$0xff]
  %v189 = vld [vmem:[%s1 + $0x3c0] sm:$0xff]
  %v190 = vld [vmem:[%s1 + $0x3c8] sm:$0xff]
  %v191 = vld [vmem:[%s1 + $0x3d0] sm:$0xff]
  %v192 = vld [vmem:[%s1 + $0x3d8] sm:$0xff]
  %v193 = vld [vmem:[%s1 + $0x3e0] sm:$0xff]
  %v194 = vld [vmem:[%s1 + $0x3e8] sm:$0xff]
  %v195 = vld [vmem:[%s1 + $0x3f0] sm:$0xff]
  %v196 = vld [vmem:[%s1 + $0x3f8] sm:$0xff]
  %v197 = vld [vmem:[%s1 + $0x400] sm:$0xff]
  %v198 = vld [vmem:[%s1 + $0x408] sm:$0xff]
  %v199 = vld [vmem:[%s1 + $0x410] sm:$0xff]
  %v200 = vld [vmem:[%s1 + $0x418] sm:$0xff]
  %v201 = vld [vmem:[%s1 + $0x420] sm:$0xff]
  %v202 = vld [vmem:[%s1 + $0x428] sm:$0xff]
  %v203 = vld [vmem:[%s1 + $0x430] sm:$0xff]
  %v204 = vld [vmem:[%s1 + $0x438] sm:$0xff]
  %v205 = vld [vmem:[%s1 + $0x440] sm:$0xff]
  %v206 = vld [vmem:[%s1 + $0x448] sm:$0xff]
  %v207 = vld [vmem:[%s1 + $0x450] sm:$0xff]
  %v208 = vld [vmem:[%s1 + $0x458] sm:$0xff]
  %v209 = vld [vmem:[%s1 + $0x460] sm:$0xff]
  %v210 = vld [vmem:[%s1 + $0x468] sm:$0xff]
  %v211 = vld [vmem:[%s1 + $0x470] sm:$0xff]
  %v212 = vld [vmem:[%s1 + $0x478] sm:$0xff]
  %v213 = vld [vmem:[%s1 + $0x480] sm:$0xff]
  %v214 = vld [vmem:[%s1 + $0x488] sm:$0xff]
  %v215 = vld [vmem:[%s1 + $0x490] sm:$0xff]
  %v216 = vld [vmem:[%s1 + $0x498] sm:$0xff]
  %v217 = vld [vmem:[%s1 + $0x4a0] sm:$0xff]
  %v218 = vld [vmem:[%s1 + $0x4a8] sm:$0xff]
  %v219 = vld [vmem:[%s1 + $0x4b0] sm:$0xff]
  %v220 = vld [vmem:[%s1 + $0x4b8] sm:$0xff]
  %v221 = vld [vmem:[%s1 + $0x4c0] sm:$0xff]
  %v222 = vld [vmem:[%s1 + $0x4c8] sm:$0xff]
  %v223 = vld [vmem:[%s1 + $0x4d0] sm:$0xff]
  %v224 = vld [vmem:[%s1 + $0x4d8] sm:$0xff]
  %v225 = vld [vmem:[%s1 + $0x4e0] sm:$0xff]
  %v226 = vld [vmem:[%s1 + $0x4e8] sm:$0xff]
  %v227 = vld [vmem:[%s1 + $0x4f0] sm:$0xff]
  %v228 = vld [vmem:[%s1 + $0x4f8] sm:$0xff]
  %v229 = vld [vmem:[%s1 + $0x500] sm:$0xff]
  %v230 = vld [vmem:[%s1 + $0x508] sm:$0xff]
  %v231 = vld [vmem:[%s1 + $0x510] sm:$0xff]
  %v232 = vld [vmem:[%s1 + $0x518] sm:$0xff]
  %v233 = vld [vmem:[%s1 + $0x520] sm:$0xff]
  %v234 = vld [vmem:[%s1 + $0x528] sm:$0xff]
  %v235 = vld [vmem:[%s1 + $0x530] sm:$0xff]
  %v236 = vld [vmem:[%s1 + $0x538] sm:$0xff]
  %v237 = vld [vmem:[%s1 + $0x540] sm:$0xff]
  %v238 = vld [vmem:[%s1 + $0x548] sm:$0xff]
  %v239 = vld [vmem:[%s1 + $0x550] sm:$0xff]
  %v240 = vld [vmem:[%s1 + $0x558] sm:$0xff]
  %v241 = vld [vmem:[%s1 + $0x560] sm:$0xff]
  %v242 = vld [vmem:[%s1 + $0x568] sm:$0xff]
  %v243 = vld [vmem:[%s1 + $0x570] sm:$0xff]
  %v244 = vld [vmem:[%s1 + $0x578] sm:$0xff]
  %v245 = vld [vmem:[%s1 + $0x580] sm:$0xff]
  %v246 = vld [vmem:[%s1 + $0x588] sm:$0xff]
  %v247 = vld [vmem:[%s1 + $0x590] sm:$0xff]
  %v248 = vld [vmem:[%s1 + $0x598] sm:$0xff]
  %v249 = vld [vmem:[%s1 + $0x5a0] sm:$0xff]
  %v250 = vld [vmem:[%s1 + $0x5a8] sm:$0xff]
  %v251 = vld [vmem:[%s1 + $0x5b0] sm:$0xff]
  %v252 = vld [vmem:[%s1 + $0x5b8] sm:$0xff]
  %v253 = vld [vmem:[%s1 + $0x5c0] sm:$0xff]
  %v254 = vld [vmem:[%s1 + $0x5c8] sm:$0xff]
  %v255 = vld [vmem:[%s1 + $0x5d0] sm:$0xff]
  %v256 = vld [vmem:[%s1 + $0x5d8] sm:$0xff]
  %v257 = vld [vmem:[%s1 + $0x5e0] sm:$0xff]
  %v258 = vld [vmem:[%s1 + $0x5e8] sm:$0xff]
  %v259 = vld [vmem:[%s1 + $0x5f0] sm:$0xff]
  %v260 = vld [vmem:[%s1 + $0x5f8] sm:$0xff]
  %v261 = vld [vmem:[%s1 + $0x600] sm:$0xff]
  %v262 = vld [vmem:[%s1 + $0x608] sm:$0xff]
  %v263 = vld [vmem:[%s1 + $0x610] sm:$0xff]
  %v264 = vld [vmem:[%s1 + $0x618] sm:$0xff]
  %v265 = vld [vmem:[%s1 + $0x620] sm:$0xff]
  %v266 = vld [vmem:[%s1 + $0x628] sm:$0xff]
  %v267 = vld [vmem:[%s1 + $0x630] sm:$0xff]
  %v268 = vld [vmem:[%s1 + $0x638] sm:$0xff]
  %v269 = vld [vmem:[%s1 + $0x640] sm:$0xff]
  %v270 = vld [vmem:[%s1 + $0x648] sm:$0xff]
  %v271 = vld [vmem:[%s1 + $0x650] sm:$0xff]
  %v272 = vld [vmem:[%s1 + $0x658] sm:$0xff]
  %v273 = vld [vmem:[%s1 + $0x660] sm:$0xff]
  %v274 = vld [vmem:[%s1 + $0x668] sm:$0xff]
  %v275 = vld [vmem:[%s1 + $0x670] sm:$0xff]
  %v276 = vld [vmem:[%s1 + $0x678] sm:$0xff]
  %v277 = vld [vmem:[%s1 + $0x680] sm:$0xff]
  %v278 = vld [vmem:[%s1 + $0x688] sm:$0xff]
  %v279 = vld [vmem:[%s1 + $0x690] sm:$0xff]
  %v280 = vld [vmem:[%s1 + $0x698] sm:$0xff]
  %v281 = vld [vmem:[%s1 + $0x6a0] sm:$0xff]
  %v282 = vld [vmem:[%s1 + $0x6a8] sm:$0xff]
  %v283 = vld [vmem:[%s1 + $0x6b0] sm:$0xff]
  %v284 = vld [vmem:[%s1 + $0x6b8] sm:$0xff]
  %v285 = vld [vmem:[%s1 + $0x6c0] sm:$0xff]
  %v286 = vld [vmem:[%s1 + $0x6c8] sm:$0xff]
  %v287 = vld [vmem:[%s1 + $0x6d0] sm:$0xff]
  %v288 = vld [vmem:[%s1 + $0x6d8] sm:$0xff]
  %v289 = vld [vmem:[%s1 + $0x6e0] sm:$0xff]
  %v290 = vld [vmem:[%s1 + $0x6e8] sm:$0xff]
  %v291 = vld [vmem:[%s1 + $0x6f0] sm:$0xff]
  %v292 = vld [vmem:[%s1 + $0x6f8] sm:$0xff]
  %v293 = vld [vmem:[%s1 + $0x700] sm:$0xff]
  %v294 = vld [vmem:[%s1 + $0x708] sm:$0xff]
  %v295 = vld [vmem:[%s1 + $0x710] sm:$0xff]
  %v296 = vld [vmem:[%s1 + $0x718] sm:$0xff]
  %v297 = vld [vmem:[%s1 + $0x720] sm:$0xff]
  %v298 = vld [vmem:[%s1 + $0x728] sm:$0xff]
  %v299 = vld [vmem:[%s1 + $0x730] sm:$0xff]
  %v300 = vld [vmem:[%s1 + $0x738] sm:$0xff]
  %v301 = vld [vmem:[%s1 + $0x740] sm:$0xff]
  %v302 = vld [vmem:[%s1 + $0x748] sm:$0xff]
  %v303 = vld [vmem:[%s1 + $0x750] sm:$0xff]
  %v304 = vld [vmem:[%s1 + $0x758] sm:$0xff]
  %v305 = vld [vmem:[%s1 + $0x760] sm:$0xff]
  %v306 = vld [vmem:[%s1 + $0x768] sm:$0xff]
  %v307 = vld [vmem:[%s1 + $0x770] sm:$0xff]
  %v308 = vld [vmem:[%s1 + $0x778] sm:$0xff]
  %v309 = vld [vmem:[%s1 + $0x780] sm:$0xff]
  %v310 = vld [vmem:[%s1 + $0x788] sm:$0xff]
  %v311 = vld [vmem:[%s1 + $0x790] sm:$0xff]
  %v312 = vld [vmem:[%s1 + $0x798] sm:$0xff]
  %v313 = vld [vmem:[%s1 + $0x7a0] sm:$0xff]
  %v314 = vld [vmem:[%s1 + $0x7a8] sm:$0xff]
  %v315 = vld [vmem:[%s1 + $0x7b0] sm:$0xff]
  %v316 = vld [vmem:[%s1 + $0x7b8] sm:$0xff]
  %v317 = vld [vmem:[%s1 + $0x7c0] sm:$0xff]
  %v318 = vld [vmem:[%s1 + $0x7c8] sm:$0xff]
  %v319 = vld [vmem:[%s1 + $0x7d0] sm:$0xff]
  %v320 = vld [vmem:[%s1 + $0x7d8] sm:$0xff]
  %v321 = vld [vmem:[%s1 + $0x7e0] sm:$0xff]
  %v322 = vld [vmem:[%s1 + $0x7e8] sm:$0xff]
  %v323 = vld [vmem:[%s1 + $0x7f0] sm:$0xff]
  %v324 = vld [vmem:[%s1 + $0x7f8] sm:$0xff]
  %v357 = vunpack.c.l.b16 %v37
  %v358 = vunpack.c.h.b16 %v37
  %v359 = vunpack.c.l.b16 %v38
  %v360 = vunpack.c.h.b16 %v38
  %v361 = vunpack.c.l.b16 %v39
  %v362 = vunpack.c.h.b16 %v39
  %v363 = vunpack.c.l.b16 %v40
  %v364 = vunpack.c.h.b16 %v40
  %v365 = vunpack.c.l.b16 %v41
  %v366 = vunpack.c.h.b16 %v41
  %v367 = vunpack.c.l.b16 %v42
  %v368 = vunpack.c.h.b16 %v42
  %v369 = vunpack.c.l.b16 %v43
  %v370 = vunpack.c.h.b16 %v43
  %v371 = vunpack.c.l.b16 %v44
  %v372 = vunpack.c.h.b16 %v44
  %v373 = vunpack.c.l.b16 %v45
  %v374 = vunpack.c.h.b16 %v45
  %v375 = vunpack.c.l.b16 %v46
  %v376 = vunpack.c.h.b16 %v46
  %v377 = vunpack.c.l.b16 %v47
  %v378 = vunpack.c.h.b16 %v47
  %v379 = vunpack.c.l.b16 %v48
  %v380 = vunpack.c.h.b16 %v48
  %v381 = vunpack.c.l.b16 %v49
  %v382 = vunpack.c.h.b16 %v49
  %v383 = vunpack.c.l.b16 %v50
  %v384 = vunpack.c.h.b16 %v50
  %v385 = vunpack.c.l.b16 %v51
  %v386 = vunpack.c.h.b16 %v51
  %v387 = vunpack.c.l.b16 %v52
  %v388 = vunpack.c.h.b16 %v52
  %v389 = vunpack.c.l.b16 %v53
  %v390 = vunpack.c.h.b16 %v53
  %v391 = vunpack.c.l.b16 %v54
  %v392 = vunpack.c.h.b16 %v54
  %v393 = vunpack.c.l.b16 %v55
  %v394 = vunpack.c.h.b16 %v55
  %v395 = vunpack.c.l.b16 %v56
  %v396 = vunpack.c.h.b16 %v56
  %v397 = vunpack.c.l.b16 %v57
  %v398 = vunpack.c.h.b16 %v57
  %v399 = vunpack.c.l.b16 %v58
  %v400 = vunpack.c.h.b16 %v58
  %v401 = vunpack.c.l.b16 %v59
  %v402 = vunpack.c.h.b16 %v59
  %v403 = vunpack.c.l.b16 %v60
  %v404 = vunpack.c.h.b16 %v60
  %v405 = vunpack.c.l.b16 %v61
  %v406 = vunpack.c.h.b16 %v61
  %v407 = vunpack.c.l.b16 %v62
  %v408 = vunpack.c.h.b16 %v62
  %v409 = vunpack.c.l.b16 %v63
  %v410 = vunpack.c.h.b16 %v63
  %v411 = vunpack.c.l.b16 %v64
  %v412 = vunpack.c.h.b16 %v64
  %v413 = vunpack.c.l.b16 %v65
  %v414 = vunpack.c.h.b16 %v65
  %v415 = vunpack.c.l.b16 %v66
  %v416 = vunpack.c.h.b16 %v66
  %v417 = vunpack.c.l.b16 %v67
  %v418 = vunpack.c.h.b16 %v67
  %v419 = vunpack.c.l.b16 %v68
  %v420 = vunpack.c.h.b16 %v68
  %v421 = vpack.c.b16 %v373, %v357
  %v422 = vpack.c.b16 %v374, %v358
  %v423 = vpack.c.b16 %v375, %v359
  %v424 = vpack.c.b16 %v376, %v360
  %v425 = vpack.c.b16 %v377, %v361
  %v426 = vpack.c.b16 %v378, %v362
  %v427 = vpack.c.b16 %v379, %v363
  %v428 = vpack.c.b16 %v380, %v364
  %v429 = vpack.c.b16 %v381, %v365
  %v430 = vpack.c.b16 %v382, %v366
  %v431 = vpack.c.b16 %v383, %v367
  %v432 = vpack.c.b16 %v384, %v368
  %v433 = vpack.c.b16 %v385, %v369
  %v434 = vpack.c.b16 %v386, %v370
  %v435 = vpack.c.b16 %v387, %v371
  %v436 = vpack.c.b16 %v388, %v372
  %v437 = vpack.c.b16 %v405, %v389
  %v438 = vpack.c.b16 %v406, %v390
  %v439 = vpack.c.b16 %v407, %v391
  %v440 = vpack.c.b16 %v408, %v392
  %v441 = vpack.c.b16 %v409, %v393
  %v442 = vpack.c.b16 %v410, %v394
  %v443 = vpack.c.b16 %v411, %v395
  %v444 = vpack.c.b16 %v412, %v396
  %v445 = vpack.c.b16 %v413, %v397
  %v446 = vpack.c.b16 %v414, %v398
  %v447 = vpack.c.b16 %v415, %v399
  %v448 = vpack.c.b16 %v416, %v400
  %v449 = vpack.c.b16 %v417, %v401
  %v450 = vpack.c.b16 %v418, %v402
  %v451 = vpack.c.b16 %v419, %v403
  %v452 = vpack.c.b16 %v420, %v404
  %v741 = vunpack.c.l.b16 %v69
  %v742 = vunpack.c.h.b16 %v69
  %v743 = vunpack.c.l.b16 %v70
  %v744 = vunpack.c.h.b16 %v70
  %v745 = vunpack.c.l.b16 %v71
  %v746 = vunpack.c.h.b16 %v71
  %v747 = vunpack.c.l.b16 %v72
  %v748 = vunpack.c.h.b16 %v72
  %v749 = vunpack.c.l.b16 %v73
  %v750 = vunpack.c.h.b16 %v73
  %v751 = vunpack.c.l.b16 %v74
  %v752 = vunpack.c.h.b16 %v74
  %v753 = vunpack.c.l.b16 %v75
  %v754 = vunpack.c.h.b16 %v75
  %v755 = vunpack.c.l.b16 %v76
  %v756 = vunpack.c.h.b16 %v76
  %v757 = vunpack.c.l.b16 %v77
  %v758 = vunpack.c.h.b16 %v77
  %v759 = vunpack.c.l.b16 %v78
  %v760 = vunpack.c.h.b16 %v78
  %v761 = vunpack.c.l.b16 %v79
  %v762 = vunpack.c.h.b16 %v79
  %v763 = vunpack.c.l.b16 %v80
  %v764 = vunpack.c.h.b16 %v80
  %v765 = vunpack.c.l.b16 %v81
  %v766 = vunpack.c.h.b16 %v81
  %v767 = vunpack.c.l.b16 %v82
  %v768 = vunpack.c.h.b16 %v82
  %v769 = vunpack.c.l.b16 %v83
  %v770 = vunpack.c.h.b16 %v83
  %v771 = vunpack.c.l.b16 %v84
  %v772 = vunpack.c.h.b16 %v84
  %v773 = vunpack.c.l.b16 %v85
  %v774 = vunpack.c.h.b16 %v85
  %v775 = vunpack.c.l.b16 %v86
  %v776 = vunpack.c.h.b16 %v86
  %v777 = vunpack.c.l.b16 %v87
  %v778 = vunpack.c.h.b16 %v87
  %v779 = vunpack.c.l.b16 %v88
  %v780 = vunpack.c.h.b16 %v88
  %v781 = vunpack.c.l.b16 %v89
  %v782 = vunpack.c.h.b16 %v89
  %v783 = vunpack.c.l.b16 %v90
  %v784 = vunpack.c.h.b16 %v90
  %v785 = vunpack.c.l.b16 %v91
  %v786 = vunpack.c.h.b16 %v91
  %v787 = vunpack.c.l.b16 %v92
  %v788 = vunpack.c.h.b16 %v92
  %v789 = vunpack.c.l.b16 %v93
  %v790 = vunpack.c.h.b16 %v93
  %v791 = vunpack.c.l.b16 %v94
  %v792 = vunpack.c.h.b16 %v94
  %v793 = vunpack.c.l.b16 %v95
  %v794 = vunpack.c.h.b16 %v95
  %v795 = vunpack.c.l.b16 %v96
  %v796 = vunpack.c.h.b16 %v96
  %v797 = vunpack.c.l.b16 %v97
  %v798 = vunpack.c.h.b16 %v97
  %v799 = vunpack.c.l.b16 %v98
  %v800 = vunpack.c.h.b16 %v98
  %v801 = vunpack.c.l.b16 %v99
  %v802 = vunpack.c.h.b16 %v99
  %v803 = vunpack.c.l.b16 %v100
  %v804 = vunpack.c.h.b16 %v100
  %v805 = vunpack.c.l.b16 %v101
  %v806 = vunpack.c.h.b16 %v101
  %v807 = vunpack.c.l.b16 %v102
  %v808 = vunpack.c.h.b16 %v102
  %v809 = vunpack.c.l.b16 %v103
  %v810 = vunpack.c.h.b16 %v103
  %v811 = vunpack.c.l.b16 %v104
  %v812 = vunpack.c.h.b16 %v104
  %v813 = vunpack.c.l.b16 %v105
  %v814 = vunpack.c.h.b16 %v105
  %v815 = vunpack.c.l.b16 %v106
  %v816 = vunpack.c.h.b16 %v106
  %v817 = vunpack.c.l.b16 %v107
  %v818 = vunpack.c.h.b16 %v107
  %v819 = vunpack.c.l.b16 %v108
  %v820 = vunpack.c.h.b16 %v108
  %v821 = vunpack.c.l.b16 %v109
  %v822 = vunpack.c.h.b16 %v109
  %v823 = vunpack.c.l.b16 %v110
  %v824 = vunpack.c.h.b16 %v110
  %v825 = vunpack.c.l.b16 %v111
  %v826 = vunpack.c.h.b16 %v111
  %v827 = vunpack.c.l.b16 %v112
  %v828 = vunpack.c.h.b16 %v112
  %v829 = vunpack.c.l.b16 %v113
  %v830 = vunpack.c.h.b16 %v113
  %v831 = vunpack.c.l.b16 %v114
  %v832 = vunpack.c.h.b16 %v114
  %v833 = vunpack.c.l.b16 %v115
  %v834 = vunpack.c.h.b16 %v115
  %v835 = vunpack.c.l.b16 %v116
  %v836 = vunpack.c.h.b16 %v116
  %v837 = vunpack.c.l.b16 %v117
  %v838 = vunpack.c.h.b16 %v117
  %v839 = vunpack.c.l.b16 %v118
  %v840 = vunpack.c.h.b16 %v118
  %v841 = vunpack.c.l.b16 %v119
  %v842 = vunpack.c.h.b16 %v119
  %v843 = vunpack.c.l.b16 %v120
  %v844 = vunpack.c.h.b16 %v120
  %v845 = vunpack.c.l.b16 %v121
  %v846 = vunpack.c.h.b16 %v121
  %v847 = vunpack.c.l.b16 %v122
  %v848 = vunpack.c.h.b16 %v122
  %v849 = vunpack.c.l.b16 %v123
  %v850 = vunpack.c.h.b16 %v123
  %v851 = vunpack.c.l.b16 %v124
  %v852 = vunpack.c.h.b16 %v124
  %v853 = vunpack.c.l.b16 %v125
  %v854 = vunpack.c.h.b16 %v125
  %v855 = vunpack.c.l.b16 %v126
  %v856 = vunpack.c.h.b16 %v126
  %v857 = vunpack.c.l.b16 %v127
  %v858 = vunpack.c.h.b16 %v127
  %v859 = vunpack.c.l.b16 %v128
  %v860 = vunpack.c.h.b16 %v128
  %v861 = vunpack.c.l.b16 %v129
  %v862 = vunpack.c.h.b16 %v129
  %v863 = vunpack.c.l.b16 %v130
  %v864 = vunpack.c.h.b16 %v130
  %v865 = vunpack.c.l.b16 %v131
  %v866 = vunpack.c.h.b16 %v131
  %v867 = vunpack.c.l.b16 %v132
  %v868 = vunpack.c.h.b16 %v132
  %v869 = vunpack.c.l.b16 %v133
  %v870 = vunpack.c.h.b16 %v133
  %v871 = vunpack.c.l.b16 %v134
  %v872 = vunpack.c.h.b16 %v134
  %v873 = vunpack.c.l.b16 %v135
  %v874 = vunpack.c.h.b16 %v135
  %v875 = vunpack.c.l.b16 %v136
  %v876 = vunpack.c.h.b16 %v136
  %v877 = vunpack.c.l.b16 %v137
  %v878 = vunpack.c.h.b16 %v137
  %v879 = vunpack.c.l.b16 %v138
  %v880 = vunpack.c.h.b16 %v138
  %v881 = vunpack.c.l.b16 %v139
  %v882 = vunpack.c.h.b16 %v139
  %v883 = vunpack.c.l.b16 %v140
  %v884 = vunpack.c.h.b16 %v140
  %v885 = vunpack.c.l.b16 %v141
  %v886 = vunpack.c.h.b16 %v141
  %v887 = vunpack.c.l.b16 %v142
  %v888 = vunpack.c.h.b16 %v142
  %v889 = vunpack.c.l.b16 %v143
  %v890 = vunpack.c.h.b16 %v143
  %v891 = vunpack.c.l.b16 %v144
  %v892 = vunpack.c.h.b16 %v144
  %v893 = vunpack.c.l.b16 %v145
  %v894 = vunpack.c.h.b16 %v145
  %v895 = vunpack.c.l.b16 %v146
  %v896 = vunpack.c.h.b16 %v146
  %v897 = vunpack.c.l.b16 %v147
  %v898 = vunpack.c.h.b16 %v147
  %v899 = vunpack.c.l.b16 %v148
  %v900 = vunpack.c.h.b16 %v148
  %v901 = vunpack.c.l.b16 %v149
  %v902 = vunpack.c.h.b16 %v149
  %v903 = vunpack.c.l.b16 %v150
  %v904 = vunpack.c.h.b16 %v150
  %v905 = vunpack.c.l.b16 %v151
  %v906 = vunpack.c.h.b16 %v151
  %v907 = vunpack.c.l.b16 %v152
  %v908 = vunpack.c.h.b16 %v152
  %v909 = vunpack.c.l.b16 %v153
  %v910 = vunpack.c.h.b16 %v153
  %v911 = vunpack.c.l.b16 %v154
  %v912 = vunpack.c.h.b16 %v154
  %v913 = vunpack.c.l.b16 %v155
  %v914 = vunpack.c.h.b16 %v155
  %v915 = vunpack.c.l.b16 %v156
  %v916 = vunpack.c.h.b16 %v156
  %v917 = vunpack.c.l.b16 %v157
  %v918 = vunpack.c.h.b16 %v157
  %v919 = vunpack.c.l.b16 %v158
  %v920 = vunpack.c.h.b16 %v158
  %v921 = vunpack.c.l.b16 %v159
  %v922 = vunpack.c.h.b16 %v159
  %v923 = vunpack.c.l.b16 %v160
  %v924 = vunpack.c.h.b16 %v160
  %v925 = vunpack.c.l.b16 %v161
  %v926 = vunpack.c.h.b16 %v161
  %v927 = vunpack.c.l.b16 %v162
  %v928 = vunpack.c.h.b16 %v162
  %v929 = vunpack.c.l.b16 %v163
  %v930 = vunpack.c.h.b16 %v163
  %v931 = vunpack.c.l.b16 %v164
  %v932 = vunpack.c.h.b16 %v164
  %v933 = vunpack.c.l.b16 %v165
  %v934 = vunpack.c.h.b16 %v165
  %v935 = vunpack.c.l.b16 %v166
  %v936 = vunpack.c.h.b16 %v166
  %v937 = vunpack.c.l.b16 %v167
  %v938 = vunpack.c.h.b16 %v167
  %v939 = vunpack.c.l.b16 %v168
  %v940 = vunpack.c.h.b16 %v168
  %v941 = vunpack.c.l.b16 %v169
  %v942 = vunpack.c.h.b16 %v169
  %v943 = vunpack.c.l.b16 %v170
  %v944 = vunpack.c.h.b16 %v170
  %v945 = vunpack.c.l.b16 %v171
  %v946 = vunpack.c.h.b16 %v171
  %v947 = vunpack.c.l.b16 %v172
  %v948 = vunpack.c.h.b16 %v172
  %v949 = vunpack.c.l.b16 %v173
  %v950 = vunpack.c.h.b16 %v173
  %v951 = vunpack.c.l.b16 %v174
  %v952 = vunpack.c.h.b16 %v174
  %v953 = vunpack.c.l.b16 %v175
  %v954 = vunpack.c.h.b16 %v175
  %v955 = vunpack.c.l.b16 %v176
  %v956 = vunpack.c.h.b16 %v176
  %v957 = vunpack.c.l.b16 %v177
  %v958 = vunpack.c.h.b16 %v177
  %v959 = vunpack.c.l.b16 %v178
  %v960 = vunpack.c.h.b16 %v178
  %v961 = vunpack.c.l.b16 %v179
  %v962 = vunpack.c.h.b16 %v179
  %v963 = vunpack.c.l.b16 %v180
  %v964 = vunpack.c.h.b16 %v180
  %v965 = vunpack.c.l.b16 %v181
  %v966 = vunpack.c.h.b16 %v181
  %v967 = vunpack.c.l.b16 %v182
  %v968 = vunpack.c.h.b16 %v182
  %v969 = vunpack.c.l.b16 %v183
  %v970 = vunpack.c.h.b16 %v183
  %v971 = vunpack.c.l.b16 %v184
  %v972 = vunpack.c.h.b16 %v184
  %v973 = vunpack.c.l.b16 %v185
  %v974 = vunpack.c.h.b16 %v185
  %v975 = vunpack.c.l.b16 %v186
  %v976 = vunpack.c.h.b16 %v186
  %v977 = vunpack.c.l.b16 %v187
  %v978 = vunpack.c.h.b16 %v187
  %v979 = vunpack.c.l.b16 %v188
  %v980 = vunpack.c.h.b16 %v188
  %v981 = vunpack.c.l.b16 %v189
  %v982 = vunpack.c.h.b16 %v189
  %v983 = vunpack.c.l.b16 %v190
  %v984 = vunpack.c.h.b16 %v190
  %v985 = vunpack.c.l.b16 %v191
  %v986 = vunpack.c.h.b16 %v191
  %v987 = vunpack.c.l.b16 %v192
  %v988 = vunpack.c.h.b16 %v192
  %v989 = vunpack.c.l.b16 %v193
  %v990 = vunpack.c.h.b16 %v193
  %v991 = vunpack.c.l.b16 %v194
  %v992 = vunpack.c.h.b16 %v194
  %v993 = vunpack.c.l.b16 %v195
  %v994 = vunpack.c.h.b16 %v195
  %v995 = vunpack.c.l.b16 %v196
  %v996 = vunpack.c.h.b16 %v196
  %v997 = vunpack.c.l.b16 %v197
  %v998 = vunpack.c.h.b16 %v197
  %v999 = vunpack.c.l.b16 %v198
  %v1000 = vunpack.c.h.b16 %v198
  %v1001 = vunpack.c.l.b16 %v199
  %v1002 = vunpack.c.h.b16 %v199
  %v1003 = vunpack.c.l.b16 %v200
  %v1004 = vunpack.c.h.b16 %v200
  %v1005 = vunpack.c.l.b16 %v201
  %v1006 = vunpack.c.h.b16 %v201
  %v1007 = vunpack.c.l.b16 %v202
  %v1008 = vunpack.c.h.b16 %v202
  %v1009 = vunpack.c.l.b16 %v203
  %v1010 = vunpack.c.h.b16 %v203
  %v1011 = vunpack.c.l.b16 %v204
  %v1012 = vunpack.c.h.b16 %v204
  %v1013 = vunpack.c.l.b16 %v205
  %v1014 = vunpack.c.h.b16 %v205
  %v1015 = vunpack.c.l.b16 %v206
  %v1016 = vunpack.c.h.b16 %v206
  %v1017 = vunpack.c.l.b16 %v207
  %v1018 = vunpack.c.h.b16 %v207
  %v1019 = vunpack.c.l.b16 %v208
  %v1020 = vunpack.c.h.b16 %v208
  %v1021 = vunpack.c.l.b16 %v209
  %v1022 = vunpack.c.h.b16 %v209
  %v1023 = vunpack.c.l.b16 %v210
  %v1024 = vunpack.c.h.b16 %v210
  %v1025 = vunpack.c.l.b16 %v211
  %v1026 = vunpack.c.h.b16 %v211
  %v1027 = vunpack.c.l.b16 %v212
  %v1028 = vunpack.c.h.b16 %v212
  %v1029 = vunpack.c.l.b16 %v213
  %v1030 = vunpack.c.h.b16 %v213
  %v1031 = vunpack.c.l.b16 %v214
  %v1032 = vunpack.c.h.b16 %v214
  %v1033 = vunpack.c.l.b16 %v215
  %v1034 = vunpack.c.h.b16 %v215
  %v1035 = vunpack.c.l.b16 %v216
  %v1036 = vunpack.c.h.b16 %v216
  %v1037 = vunpack.c.l.b16 %v217
  %v1038 = vunpack.c.h.b16 %v217
  %v1039 = vunpack.c.l.b16 %v218
  %v1040 = vunpack.c.h.b16 %v218
  %v1041 = vunpack.c.l.b16 %v219
  %v1042 = vunpack.c.h.b16 %v219
  %v1043 = vunpack.c.l.b16 %v220
  %v1044 = vunpack.c.h.b16 %v220
  %v1045 = vunpack.c.l.b16 %v221
  %v1046 = vunpack.c.h.b16 %v221
  %v1047 = vunpack.c.l.b16 %v222
  %v1048 = vunpack.c.h.b16 %v222
  %v1049 = vunpack.c.l.b16 %v223
  %v1050 = vunpack.c.h.b16 %v223
  %v1051 = vunpack.c.l.b16 %v224
  %v1052 = vunpack.c.h.b16 %v224
  %v1053 = vunpack.c.l.b16 %v225
  %v1054 = vunpack.c.h.b16 %v225
  %v1055 = vunpack.c.l.b16 %v226
  %v1056 = vunpack.c.h.b16 %v226
  %v1057 = vunpack.c.l.b16 %v227
  %v1058 = vunpack.c.h.b16 %v227
  %v1059 = vunpack.c.l.b16 %v228
  %v1060 = vunpack.c.h.b16 %v228
  %v1061 = vunpack.c.l.b16 %v229
  %v1062 = vunpack.c.h.b16 %v229
  %v1063 = vunpack.c.l.b16 %v230
  %v1064 = vunpack.c.h.b16 %v230
  %v1065 = vunpack.c.l.b16 %v231
  %v1066 = vunpack.c.h.b16 %v231
  %v1067 = vunpack.c.l.b16 %v232
  %v1068 = vunpack.c.h.b16 %v232
  %v1069 = vunpack.c.l.b16 %v233
  %v1070 = vunpack.c.h.b16 %v233
  %v1071 = vunpack.c.l.b16 %v234
  %v1072 = vunpack.c.h.b16 %v234
  %v1073 = vunpack.c.l.b16 %v235
  %v1074 = vunpack.c.h.b16 %v235
  %v1075 = vunpack.c.l.b16 %v236
  %v1076 = vunpack.c.h.b16 %v236
  %v1077 = vunpack.c.l.b16 %v237
  %v1078 = vunpack.c.h.b16 %v237
  %v1079 = vunpack.c.l.b16 %v238
  %v1080 = vunpack.c.h.b16 %v238
  %v1081 = vunpack.c.l.b16 %v239
  %v1082 = vunpack.c.h.b16 %v239
  %v1083 = vunpack.c.l.b16 %v240
  %v1084 = vunpack.c.h.b16 %v240
  %v1085 = vunpack.c.l.b16 %v241
  %v1086 = vunpack.c.h.b16 %v241
  %v1087 = vunpack.c.l.b16 %v242
  %v1088 = vunpack.c.h.b16 %v242
  %v1089 = vunpack.c.l.b16 %v243
  %v1090 = vunpack.c.h.b16 %v243
  %v1091 = vunpack.c.l.b16 %v244
  %v1092 = vunpack.c.h.b16 %v244
  %v1093 = vunpack.c.l.b16 %v245
  %v1094 = vunpack.c.h.b16 %v245
  %v1095 = vunpack.c.l.b16 %v246
  %v1096 = vunpack.c.h.b16 %v246
  %v1097 = vunpack.c.l.b16 %v247
  %v1098 = vunpack.c.h.b16 %v247
  %v1099 = vunpack.c.l.b16 %v248
  %v1100 = vunpack.c.h.b16 %v248
  %v1101 = vunpack.c.l.b16 %v249
  %v1102 = vunpack.c.h.b16 %v249
  %v1103 = vunpack.c.l.b16 %v250
  %v1104 = vunpack.c.h.b16 %v250
  %v1105 = vunpack.c.l.b16 %v251
  %v1106 = vunpack.c.h.b16 %v251
  %v1107 = vunpack.c.l.b16 %v252
  %v1108 = vunpack.c.h.b16 %v252
  %v1109 = vunpack.c.l.b16 %v253
  %v1110 = vunpack.c.h.b16 %v253
  %v1111 = vunpack.c.l.b16 %v254
  %v1112 = vunpack.c.h.b16 %v254
  %v1113 = vunpack.c.l.b16 %v255
  %v1114 = vunpack.c.h.b16 %v255
  %v1115 = vunpack.c.l.b16 %v256
  %v1116 = vunpack.c.h.b16 %v256
  %v1117 = vunpack.c.l.b16 %v257
  %v1118 = vunpack.c.h.b16 %v257
  %v1119 = vunpack.c.l.b16 %v258
  %v1120 = vunpack.c.h.b16 %v258
  %v1121 = vunpack.c.l.b16 %v259
  %v1122 = vunpack.c.h.b16 %v259
  %v1123 = vunpack.c.l.b16 %v260
  %v1124 = vunpack.c.h.b16 %v260
  %v1125 = vunpack.c.l.b16 %v261
  %v1126 = vunpack.c.h.b16 %v261
  %v1127 = vunpack.c.l.b16 %v262
  %v1128 = vunpack.c.h.b16 %v262
  %v1129 = vunpack.c.l.b16 %v263
  %v1130 = vunpack.c.h.b16 %v263
  %v1131 = vunpack.c.l.b16 %v264
  %v1132 = vunpack.c.h.b16 %v264
  %v1133 = vunpack.c.l.b16 %v265
  %v1134 = vunpack.c.h.b16 %v265
  %v1135 = vunpack.c.l.b16 %v266
  %v1136 = vunpack.c.h.b16 %v266
  %v1137 = vunpack.c.l.b16 %v267
  %v1138 = vunpack.c.h.b16 %v267
  %v1139 = vunpack.c.l.b16 %v268
  %v1140 = vunpack.c.h.b16 %v268
  %v1141 = vunpack.c.l.b16 %v269
  %v1142 = vunpack.c.h.b16 %v269
  %v1143 = vunpack.c.l.b16 %v270
  %v1144 = vunpack.c.h.b16 %v270
  %v1145 = vunpack.c.l.b16 %v271
  %v1146 = vunpack.c.h.b16 %v271
  %v1147 = vunpack.c.l.b16 %v272
  %v1148 = vunpack.c.h.b16 %v272
  %v1149 = vunpack.c.l.b16 %v273
  %v1150 = vunpack.c.h.b16 %v273
  %v1151 = vunpack.c.l.b16 %v274
  %v1152 = vunpack.c.h.b16 %v274
  %v1153 = vunpack.c.l.b16 %v275
  %v1154 = vunpack.c.h.b16 %v275
  %v1155 = vunpack.c.l.b16 %v276
  %v1156 = vunpack.c.h.b16 %v276
  %v1157 = vunpack.c.l.b16 %v277
  %v1158 = vunpack.c.h.b16 %v277
  %v1159 = vunpack.c.l.b16 %v278
  %v1160 = vunpack.c.h.b16 %v278
  %v1161 = vunpack.c.l.b16 %v279
  %v1162 = vunpack.c.h.b16 %v279
  %v1163 = vunpack.c.l.b16 %v280
  %v1164 = vunpack.c.h.b16 %v280
  %v1165 = vunpack.c.l.b16 %v281
  %v1166 = vunpack.c.h.b16 %v281
  %v1167 = vunpack.c.l.b16 %v282
  %v1168 = vunpack.c.h.b16 %v282
  %v1169 = vunpack.c.l.b16 %v283
  %v1170 = vunpack.c.h.b16 %v283
  %v1171 = vunpack.c.l.b16 %v284
  %v1172 = vunpack.c.h.b16 %v284
  %v1173 = vunpack.c.l.b16 %v285
  %v1174 = vunpack.c.h.b16 %v285
  %v1175 = vunpack.c.l.b16 %v286
  %v1176 = vunpack.c.h.b16 %v286
  %v1177 = vunpack.c.l.b16 %v287
  %v1178 = vunpack.c.h.b16 %v287
  %v1179 = vunpack.c.l.b16 %v288
  %v1180 = vunpack.c.h.b16 %v288
  %v1181 = vunpack.c.l.b16 %v289
  %v1182 = vunpack.c.h.b16 %v289
  %v1183 = vunpack.c.l.b16 %v290
  %v1184 = vunpack.c.h.b16 %v290
  %v1185 = vunpack.c.l.b16 %v291
  %v1186 = vunpack.c.h.b16 %v291
  %v1187 = vunpack.c.l.b16 %v292
  %v1188 = vunpack.c.h.b16 %v292
  %v1189 = vunpack.c.l.b16 %v293
  %v1190 = vunpack.c.h.b16 %v293
  %v1191 = vunpack.c.l.b16 %v294
  %v1192 = vunpack.c.h.b16 %v294
  %v1193 = vunpack.c.l.b16 %v295
  %v1194 = vunpack.c.h.b16 %v295
  %v1195 = vunpack.c.l.b16 %v296
  %v1196 = vunpack.c.h.b16 %v296
  %v1197 = vunpack.c.l.b16 %v297
  %v1198 = vunpack.c.h.b16 %v297
  %v1199 = vunpack.c.l.b16 %v298
  %v1200 = vunpack.c.h.b16 %v298
  %v1201 = vunpack.c.l.b16 %v299
  %v1202 = vunpack.c.h.b16 %v299
  %v1203 = vunpack.c.l.b16 %v300
  %v1204 = vunpack.c.h.b16 %v300
  %v1205 = vunpack.c.l.b16 %v301
  %v1206 = vunpack.c.h.b16 %v301
  %v1207 = vunpack.c.l.b16 %v302
  %v1208 = vunpack.c.h.b16 %v302
  %v1209 = vunpack.c.l.b16 %v303
  %v1210 = vunpack.c.h.b16 %v303
  %v1211 = vunpack.c.l.b16 %v304
  %v1212 = vunpack.c.h.b16 %v304
  %v1213 = vunpack.c.l.b16 %v305
  %v1214 = vunpack.c.h.b16 %v305
  %v1215 = vunpack.c.l.b16 %v306
  %v1216 = vunpack.c.h.b16 %v306
  %v1217 = vunpack.c.l.b16 %v307
  %v1218 = vunpack.c.h.b16 %v307
  %v1219 = vunpack.c.l.b16 %v308
  %v1220 = vunpack.c.h.b16 %v308
  %v1221 = vunpack.c.l.b16 %v309
  %v1222 = vunpack.c.h.b16 %v309
  %v1223 = vunpack.c.l.b16 %v310
  %v1224 = vunpack.c.h.b16 %v310
  %v1225 = vunpack.c.l.b16 %v311
  %v1226 = vunpack.c.h.b16 %v311
  %v1227 = vunpack.c.l.b16 %v312
  %v1228 = vunpack.c.h.b16 %v312
  %v1229 = vunpack.c.l.b16 %v313
  %v1230 = vunpack.c.h.b16 %v313
  %v1231 = vunpack.c.l.b16 %v314
  %v1232 = vunpack.c.h.b16 %v314
  %v1233 = vunpack.c.l.b16 %v315
  %v1234 = vunpack.c.h.b16 %v315
  %v1235 = vunpack.c.l.b16 %v316
  %v1236 = vunpack.c.h.b16 %v316
  %v1237 = vunpack.c.l.b16 %v317
  %v1238 = vunpack.c.h.b16 %v317
  %v1239 = vunpack.c.l.b16 %v318
  %v1240 = vunpack.c.h.b16 %v318
  %v1241 = vunpack.c.l.b16 %v319
  %v1242 = vunpack.c.h.b16 %v319
  %v1243 = vunpack.c.l.b16 %v320
  %v1244 = vunpack.c.h.b16 %v320
  %v1245 = vunpack.c.l.b16 %v321
  %v1246 = vunpack.c.h.b16 %v321
  %v1247 = vunpack.c.l.b16 %v322
  %v1248 = vunpack.c.h.b16 %v322
  %v1249 = vunpack.c.l.b16 %v323
  %v1250 = vunpack.c.h.b16 %v323
  %v1251 = vunpack.c.l.b16 %v324
  %v1252 = vunpack.c.h.b16 %v324
  %v1253 = vpack.c.b16 %v743, %v741
  %v1254 = vpack.c.b16 %v744, %v742
  %v1255 = vpack.c.b16 %v747, %v745
  %v1256 = vpack.c.b16 %v748, %v746
  %v1257 = vpack.c.b16 %v751, %v749
  %v1258 = vpack.c.b16 %v752, %v750
  %v1259 = vpack.c.b16 %v755, %v753
  %v1260 = vpack.c.b16 %v756, %v754
  %v1261 = vpack.c.b16 %v759, %v757
  %v1262 = vpack.c.b16 %v760, %v758
  %v1263 = vpack.c.b16 %v763, %v761
  %v1264 = vpack.c.b16 %v764, %v762
  %v1265 = vpack.c.b16 %v767, %v765
  %v1266 = vpack.c.b16 %v768, %v766
  %v1267 = vpack.c.b16 %v771, %v769
  %v1268 = vpack.c.b16 %v772, %v770
  %v1269 = vpack.c.b16 %v775, %v773
  %v1270 = vpack.c.b16 %v776, %v774
  %v1271 = vpack.c.b16 %v779, %v777
  %v1272 = vpack.c.b16 %v780, %v778
  %v1273 = vpack.c.b16 %v783, %v781
  %v1274 = vpack.c.b16 %v784, %v782
  %v1275 = vpack.c.b16 %v787, %v785
  %v1276 = vpack.c.b16 %v788, %v786
  %v1277 = vpack.c.b16 %v791, %v789
  %v1278 = vpack.c.b16 %v792, %v790
  %v1279 = vpack.c.b16 %v795, %v793
  %v1280 = vpack.c.b16 %v796, %v794
  %v1281 = vpack.c.b16 %v799, %v797
  %v1282 = vpack.c.b16 %v800, %v798
  %v1283 = vpack.c.b16 %v803, %v801
  %v1284 = vpack.c.b16 %v804, %v802
  %v1285 = vpack.c.b16 %v807, %v805
  %v1286 = vpack.c.b16 %v808, %v806
  %v1287 = vpack.c.b16 %v811, %v809
  %v1288 = vpack.c.b16 %v812, %v810
  %v1289 = vpack.c.b16 %v815, %v813
  %v1290 = vpack.c.b16 %v816, %v814
  %v1291 = vpack.c.b16 %v819, %v817
  %v1292 = vpack.c.b16 %v820, %v818
  %v1293 = vpack.c.b16 %v823, %v821
  %v1294 = vpack.c.b16 %v824, %v822
  %v1295 = vpack.c.b16 %v827, %v825
  %v1296 = vpack.c.b16 %v828, %v826
  %v1297 = vpack.c.b16 %v831, %v829
  %v1298 = vpack.c.b16 %v832, %v830
  %v1299 = vpack.c.b16 %v835, %v833
  %v1300 = vpack.c.b16 %v836, %v834
  %v1301 = vpack.c.b16 %v839, %v837
  %v1302 = vpack.c.b16 %v840, %v838
  %v1303 = vpack.c.b16 %v843, %v841
  %v1304 = vpack.c.b16 %v844, %v842
  %v1305 = vpack.c.b16 %v847, %v845
  %v1306 = vpack.c.b16 %v848, %v846
  %v1307 = vpack.c.b16 %v851, %v849
  %v1308 = vpack.c.b16 %v852, %v850
  %v1309 = vpack.c.b16 %v855, %v853
  %v1310 = vpack.c.b16 %v856, %v854
  %v1311 = vpack.c.b16 %v859, %v857
  %v1312 = vpack.c.b16 %v860, %v858
  %v1313 = vpack.c.b16 %v863, %v861
  %v1314 = vpack.c.b16 %v864, %v862
  %v1315 = vpack.c.b16 %v867, %v865
  %v1316 = vpack.c.b16 %v868, %v866
  %v1317 = vpack.c.b16 %v871, %v869
  %v1318 = vpack.c.b16 %v872, %v870
  %v1319 = vpack.c.b16 %v875, %v873
  %v1320 = vpack.c.b16 %v876, %v874
  %v1321 = vpack.c.b16 %v879, %v877
  %v1322 = vpack.c.b16 %v880, %v878
  %v1323 = vpack.c.b16 %v883, %v881
  %v1324 = vpack.c.b16 %v884, %v882
  %v1325 = vpack.c.b16 %v887, %v885
  %v1326 = vpack.c.b16 %v888, %v886
  %v1327 = vpack.c.b16 %v891, %v889
  %v1328 = vpack.c.b16 %v892, %v890
  %v1329 = vpack.c.b16 %v895, %v893
  %v1330 = vpack.c.b16 %v896, %v894
  %v1331 = vpack.c.b16 %v899, %v897
  %v1332 = vpack.c.b16 %v900, %v898
  %v1333 = vpack.c.b16 %v903, %v901
  %v1334 = vpack.c.b16 %v904, %v902
  %v1335 = vpack.c.b16 %v907, %v905
  %v1336 = vpack.c.b16 %v908, %v906
  %v1337 = vpack.c.b16 %v911, %v909
  %v1338 = vpack.c.b16 %v912, %v910
  %v1339 = vpack.c.b16 %v915, %v913
  %v1340 = vpack.c.b16 %v916, %v914
  %v1341 = vpack.c.b16 %v919, %v917
  %v1342 = vpack.c.b16 %v920, %v918
  %v1343 = vpack.c.b16 %v923, %v921
  %v1344 = vpack.c.b16 %v924, %v922
  %v1345 = vpack.c.b16 %v927, %v925
  %v1346 = vpack.c.b16 %v928, %v926
  %v1347 = vpack.c.b16 %v931, %v929
  %v1348 = vpack.c.b16 %v932, %v930
  %v1349 = vpack.c.b16 %v935, %v933
  %v1350 = vpack.c.b16 %v936, %v934
  %v1351 = vpack.c.b16 %v939, %v937
  %v1352 = vpack.c.b16 %v940, %v938
  %v1353 = vpack.c.b16 %v943, %v941
  %v1354 = vpack.c.b16 %v944, %v942
  %v1355 = vpack.c.b16 %v947, %v945
  %v1356 = vpack.c.b16 %v948, %v946
  %v1357 = vpack.c.b16 %v951, %v949
  %v1358 = vpack.c.b16 %v952, %v950
  %v1359 = vpack.c.b16 %v955, %v953
  %v1360 = vpack.c.b16 %v956, %v954
  %v1361 = vpack.c.b16 %v959, %v957
  %v1362 = vpack.c.b16 %v960, %v958
  %v1363 = vpack.c.b16 %v963, %v961
  %v1364 = vpack.c.b16 %v964, %v962
  %v1365 = vpack.c.b16 %v967, %v965
  %v1366 = vpack.c.b16 %v968, %v966
  %v1367 = vpack.c.b16 %v971, %v969
  %v1368 = vpack.c.b16 %v972, %v970
  %v1369 = vpack.c.b16 %v975, %v973
  %v1370 = vpack.c.b16 %v976, %v974
  %v1371 = vpack.c.b16 %v979, %v977
  %v1372 = vpack.c.b16 %v980, %v978
  %v1373 = vpack.c.b16 %v983, %v981
  %v1374 = vpack.c.b16 %v984, %v982
  %v1375 = vpack.c.b16 %v987, %v985
  %v1376 = vpack.c.b16 %v988, %v986
  %v1377 = vpack.c.b16 %v991, %v989
  %v1378 = vpack.c.b16 %v992, %v990
  %v1379 = vpack.c.b16 %v995, %v993
  %v1380 = vpack.c.b16 %v996, %v994
  %v1381 = vpack.c.b16 %v999, %v997
  %v1382 = vpack.c.b16 %v1000, %v998
  %v1383 = vpack.c.b16 %v1003, %v1001
  %v1384 = vpack.c.b16 %v1004, %v1002
  %v1385 = vpack.c.b16 %v1007, %v1005
  %v1386 = vpack.c.b16 %v1008, %v1006
  %v1387 = vpack.c.b16 %v1011, %v1009
  %v1388 = vpack.c.b16 %v1012, %v1010
  %v1389 = vpack.c.b16 %v1015, %v1013
  %v1390 = vpack.c.b16 %v1016, %v1014
  %v1391 = vpack.c.b16 %v1019, %v1017
  %v1392 = vpack.c.b16 %v1020, %v1018
  %v1393 = vpack.c.b16 %v1023, %v1021
  %v1394 = vpack.c.b16 %v1024, %v1022
  %v1395 = vpack.c.b16 %v1027, %v1025
  %v1396 = vpack.c.b16 %v1028, %v1026
  %v1397 = vpack.c.b16 %v1031, %v1029
  %v1398 = vpack.c.b16 %v1032, %v1030
  %v1399 = vpack.c.b16 %v1035, %v1033
  %v1400 = vpack.c.b16 %v1036, %v1034
  %v1401 = vpack.c.b16 %v1039, %v1037
  %v1402 = vpack.c.b16 %v1040, %v1038
  %v1403 = vpack.c.b16 %v1043, %v1041
  %v1404 = vpack.c.b16 %v1044, %v1042
  %v1405 = vpack.c.b16 %v1047, %v1045
  %v1406 = vpack.c.b16 %v1048, %v1046
  %v1407 = vpack.c.b16 %v1051, %v1049
  %v1408 = vpack.c.b16 %v1052, %v1050
  %v1409 = vpack.c.b16 %v1055, %v1053
  %v1410 = vpack.c.b16 %v1056, %v1054
  %v1411 = vpack.c.b16 %v1059, %v1057
  %v1412 = vpack.c.b16 %v1060, %v1058
  %v1413 = vpack.c.b16 %v1063, %v1061
  %v1414 = vpack.c.b16 %v1064, %v1062
  %v1415 = vpack.c.b16 %v1067, %v1065
  %v1416 = vpack.c.b16 %v1068, %v1066
  %v1417 = vpack.c.b16 %v1071, %v1069
  %v1418 = vpack.c.b16 %v1072, %v1070
  %v1419 = vpack.c.b16 %v1075, %v1073
  %v1420 = vpack.c.b16 %v1076, %v1074
  %v1421 = vpack.c.b16 %v1079, %v1077
  %v1422 = vpack.c.b16 %v1080, %v1078
  %v1423 = vpack.c.b16 %v1083, %v1081
  %v1424 = vpack.c.b16 %v1084, %v1082
  %v1425 = vpack.c.b16 %v1087, %v1085
  %v1426 = vpack.c.b16 %v1088, %v1086
  %v1427 = vpack.c.b16 %v1091, %v1089
  %v1428 = vpack.c.b16 %v1092, %v1090
  %v1429 = vpack.c.b16 %v1095, %v1093
  %v1430 = vpack.c.b16 %v1096, %v1094
  %v1431 = vpack.c.b16 %v1099, %v1097
  %v1432 = vpack.c.b16 %v1100, %v1098
  %v1433 = vpack.c.b16 %v1103, %v1101
  %v1434 = vpack.c.b16 %v1104, %v1102
  %v1435 = vpack.c.b16 %v1107, %v1105
  %v1436 = vpack.c.b16 %v1108, %v1106
  %v1437 = vpack.c.b16 %v1111, %v1109
  %v1438 = vpack.c.b16 %v1112, %v1110
  %v1439 = vpack.c.b16 %v1115, %v1113
  %v1440 = vpack.c.b16 %v1116, %v1114
  %v1441 = vpack.c.b16 %v1119, %v1117
  %v1442 = vpack.c.b16 %v1120, %v1118
  %v1443 = vpack.c.b16 %v1123, %v1121
  %v1444 = vpack.c.b16 %v1124, %v1122
  %v1445 = vpack.c.b16 %v1127, %v1125
  %v1446 = vpack.c.b16 %v1128, %v1126
  %v1447 = vpack.c.b16 %v1131, %v1129
  %v1448 = vpack.c.b16 %v1132, %v1130
  %v1449 = vpack.c.b16 %v1135, %v1133
  %v1450 = vpack.c.b16 %v1136, %v1134
  %v1451 = vpack.c.b16 %v1139, %v1137
  %v1452 = vpack.c.b16 %v1140, %v1138
  %v1453 = vpack.c.b16 %v1143, %v1141
  %v1454 = vpack.c.b16 %v1144, %v1142
  %v1455 = vpack.c.b16 %v1147, %v1145
  %v1456 = vpack.c.b16 %v1148, %v1146
  %v1457 = vpack.c.b16 %v1151, %v1149
  %v1458 = vpack.c.b16 %v1152, %v1150
  %v1459 = vpack.c.b16 %v1155, %v1153
  %v1460 = vpack.c.b16 %v1156, %v1154
  %v1461 = vpack.c.b16 %v1159, %v1157
  %v1462 = vpack.c.b16 %v1160, %v1158
  %v1463 = vpack.c.b16 %v1163, %v1161
  %v1464 = vpack.c.b16 %v1164, %v1162
  %v1465 = vpack.c.b16 %v1167, %v1165
  %v1466 = vpack.c.b16 %v1168, %v1166
  %v1467 = vpack.c.b16 %v1171, %v1169
  %v1468 = vpack.c.b16 %v1172, %v1170
  %v1469 = vpack.c.b16 %v1175, %v1173
  %v1470 = vpack.c.b16 %v1176, %v1174
  %v1471 = vpack.c.b16 %v1179, %v1177
  %v1472 = vpack.c.b16 %v1180, %v1178
  %v1473 = vpack.c.b16 %v1183, %v1181
  %v1474 = vpack.c.b16 %v1184, %v1182
  %v1475 = vpack.c.b16 %v1187, %v1185
  %v1476 = vpack.c.b16 %v1188, %v1186
  %v1477 = vpack.c.b16 %v1191, %v1189
  %v1478 = vpack.c.b16 %v1192, %v1190
  %v1479 = vpack.c.b16 %v1195, %v1193
  %v1480 = vpack.c.b16 %v1196, %v1194
  %v1481 = vpack.c.b16 %v1199, %v1197
  %v1482 = vpack.c.b16 %v1200, %v1198
  %v1483 = vpack.c.b16 %v1203, %v1201
  %v1484 = vpack.c.b16 %v1204, %v1202
  %v1485 = vpack.c.b16 %v1207, %v1205
  %v1486 = vpack.c.b16 %v1208, %v1206
  %v1487 = vpack.c.b16 %v1211, %v1209
  %v1488 = vpack.c.b16 %v1212, %v1210
  %v1489 = vpack.c.b16 %v1215, %v1213
  %v1490 = vpack.c.b16 %v1216, %v1214
  %v1491 = vpack.c.b16 %v1219, %v1217
  %v1492 = vpack.c.b16 %v1220, %v1218
  %v1493 = vpack.c.b16 %v1223, %v1221
  %v1494 = vpack.c.b16 %v1224, %v1222
  %v1495 = vpack.c.b16 %v1227, %v1225
  %v1496 = vpack.c.b16 %v1228, %v1226
  %v1497 = vpack.c.b16 %v1231, %v1229
  %v1498 = vpack.c.b16 %v1232, %v1230
  %v1499 = vpack.c.b16 %v1235, %v1233
  %v1500 = vpack.c.b16 %v1236, %v1234
  %v1501 = vpack.c.b16 %v1239, %v1237
  %v1502 = vpack.c.b16 %v1240, %v1238
  %v1503 = vpack.c.b16 %v1243, %v1241
  %v1504 = vpack.c.b16 %v1244, %v1242
  %v1505 = vpack.c.b16 %v1247, %v1245
  %v1506 = vpack.c.b16 %v1248, %v1246
  %v1507 = vpack.c.b16 %v1251, %v1249
  %v1508 = vpack.c.b16 %v1252, %v1250
  %1765 = vmatpush.bf16.msra.mxu0 %v1267
  %1766 = vmatpush.bf16.msra.mxu0 %v1265
  %1767 = vmatpush.bf16.msra.mxu0 %v1263
  %1768 = vmatpush.bf16.msra.mxu0 %v1261
  %1769 = vmatpush.bf16.msra.mxu0 %v1259
  %1770 = vmatpush.bf16.msra.mxu0 %v1257
  %1771 = vmatpush.bf16.msra.mxu0 %v1255
  %1772 = vmatpush.bf16.msra.mxu0 %v1253
  %1773 = vmatmul.bf16.gmra.mxu0 %v421
  %v1774 = vpop.f32.mrf.mxu0
  %v1775 = vadd.f32 0.0, %v1774
  %v1776 = vpop.f32.mrf.mxu0
  %v1777 = vadd.f32 0.0, %v1776
  %1778 = vmatmul.bf16.gmra.mxu0 %v437
  %v1779 = vpop.f32.mrf.mxu0
  %v1780 = vadd.f32 0.0, %v1779
  %v1781 = vpop.f32.mrf.mxu0
  %v1782 = vadd.f32 0.0, %v1781
  %1783 = vdwg.mxu0
  %1784 = vmatpush.bf16.msra.mxu0 %v1283
  %1785 = vmatpush.bf16.msra.mxu0 %v1281
  %1786 = vmatpush.bf16.msra.mxu0 %v1279
  %1787 = vmatpush.bf16.msra.mxu0 %v1277
  %1788 = vmatpush.bf16.msra.mxu0 %v1275
  %1789 = vmatpush.bf16.msra.mxu0 %v1273
  %1790 = vmatpush.bf16.msra.mxu0 %v1271
  %1791 = vmatpush.bf16.msra.mxu0 %v1269
  %1792 = vmatmul.bf16.gmra.mxu0 %v422
  %v1793 = vpop.f32.mrf.mxu0
  %v1794 = vadd.f32 %v1775, %v1793
  %v1795 = vpop.f32.mrf.mxu0
  %v1796 = vadd.f32 %v1777, %v1795
  %1797 = vmatmul.bf16.gmra.mxu0 %v438
  %v1798 = vpop.f32.mrf.mxu0
  %v1799 = vadd.f32 %v1780, %v1798
  %v1800 = vpop.f32.mrf.mxu0
  %v1801 = vadd.f32 %v1782, %v1800
  %1802 = vdwg.mxu0
  %1803 = vmatpush.bf16.msra.mxu0 %v1299
  %1804 = vmatpush.bf16.msra.mxu0 %v1297
  %1805 = vmatpush.bf16.msra.mxu0 %v1295
  %1806 = vmatpush.bf16.msra.mxu0 %v1293
  %1807 = vmatpush.bf16.msra.mxu0 %v1291
  %1808 = vmatpush.bf16.msra.mxu0 %v1289
  %1809 = vmatpush.bf16.msra.mxu0 %v1287
  %1810 = vmatpush.bf16.msra.mxu0 %v1285
  %1811 = vmatmul.bf16.gmra.mxu0 %v423
  %v1812 = vpop.f32.mrf.mxu0
  %v1813 = vadd.f32 %v1794, %v1812
  %v1814 = vpop.f32.mrf.mxu0
  %v1815 = vadd.f32 %v1796, %v1814
  %1816 = vmatmul.bf16.gmra.mxu0 %v439
  %v1817 = vpop.f32.mrf.mxu0
  %v1818 = vadd.f32 %v1799, %v1817
  %v1819 = vpop.f32.mrf.mxu0
  %v1820 = vadd.f32 %v1801, %v1819
  %1821 = vdwg.mxu0
  %1822 = vmatpush.bf16.msra.mxu0 %v1315
  %1823 = vmatpush.bf16.msra.mxu0 %v1313
  %1824 = vmatpush.bf16.msra.mxu0 %v1311
  %1825 = vmatpush.bf16.msra.mxu0 %v1309
  %1826 = vmatpush.bf16.msra.mxu0 %v1307
  %1827 = vmatpush.bf16.msra.mxu0 %v1305
  %1828 = vmatpush.bf16.msra.mxu0 %v1303
  %1829 = vmatpush.bf16.msra.mxu0 %v1301
  %1830 = vmatmul.bf16.gmra.mxu0 %v424
  %v1831 = vpop.f32.mrf.mxu0
  %v1832 = vadd.f32 %v1813, %v1831
  %v1833 = vpop.f32.mrf.mxu0
  %v1834 = vadd.f32 %v1815, %v1833
  %1835 = vmatmul.bf16.gmra.mxu0 %v440
  %v1836 = vpop.f32.mrf.mxu0
  %v1837 = vadd.f32 %v1818, %v1836
  %v1838 = vpop.f32.mrf.mxu0
  %v1839 = vadd.f32 %v1820, %v1838
  %1840 = vdwg.mxu0
  %1841 = vmatpush.bf16.msra.mxu0 %v1331
  %1842 = vmatpush.bf16.msra.mxu0 %v1329
  %1843 = vmatpush.bf16.msra.mxu0 %v1327
  %1844 = vmatpush.bf16.msra.mxu0 %v1325
  %1845 = vmatpush.bf16.msra.mxu0 %v1323
  %1846 = vmatpush.bf16.msra.mxu0 %v1321
  %1847 = vmatpush.bf16.msra.mxu0 %v1319
  %1848 = vmatpush.bf16.msra.mxu0 %v1317
  %1849 = vmatmul.bf16.gmra.mxu0 %v425
  %v1850 = vpop.f32.mrf.mxu0
  %v1851 = vadd.f32 %v1832, %v1850
  %v1852 = vpop.f32.mrf.mxu0
  %v1853 = vadd.f32 %v1834, %v1852
  %1854 = vmatmul.bf16.gmra.mxu0 %v441
  %v1855 = vpop.f32.mrf.mxu0
  %v1856 = vadd.f32 %v1837, %v1855
  %v1857 = vpop.f32.mrf.mxu0
  %v1858 = vadd.f32 %v1839, %v1857
  %1859 = vdwg.mxu0
  %1860 = vmatpush.bf16.msra.mxu0 %v1347
  %1861 = vmatpush.bf16.msra.mxu0 %v1345
  %1862 = vmatpush.bf16.msra.mxu0 %v1343
  %1863 = vmatpush.bf16.msra.mxu0 %v1341
  %1864 = vmatpush.bf16.msra.mxu0 %v1339
  %1865 = vmatpush.bf16.msra.mxu0 %v1337
  %1866 = vmatpush.bf16.msra.mxu0 %v1335
  %1867 = vmatpush.bf16.msra.mxu0 %v1333
  %1868 = vmatmul.bf16.gmra.mxu0 %v426
  %v1869 = vpop.f32.mrf.mxu0
  %v1870 = vadd.f32 %v1851, %v1869
  %v1871 = vpop.f32.mrf.mxu0
  %v1872 = vadd.f32 %v1853, %v1871
  %1873 = vmatmul.bf16.gmra.mxu0 %v442
  %v1874 = vpop.f32.mrf.mxu0
  %v1875 = vadd.f32 %v1856, %v1874
  %v1876 = vpop.f32.mrf.mxu0
  %v1877 = vadd.f32 %v1858, %v1876
  %1878 = vdwg.mxu0
  %1879 = vmatpush.bf16.msra.mxu0 %v1363
  %1880 = vmatpush.bf16.msra.mxu0 %v1361
  %1881 = vmatpush.bf16.msra.mxu0 %v1359
  %1882 = vmatpush.bf16.msra.mxu0 %v1357
  %1883 = vmatpush.bf16.msra.mxu0 %v1355
  %1884 = vmatpush.bf16.msra.mxu0 %v1353
  %1885 = vmatpush.bf16.msra.mxu0 %v1351
  %1886 = vmatpush.bf16.msra.mxu0 %v1349
  %1887 = vmatmul.bf16.gmra.mxu0 %v427
  %v1888 = vpop.f32.mrf.mxu0
  %v1889 = vadd.f32 %v1870, %v1888
  %v1890 = vpop.f32.mrf.mxu0
  %v1891 = vadd.f32 %v1872, %v1890
  %1892 = vmatmul.bf16.gmra.mxu0 %v443
  %v1893 = vpop.f32.mrf.mxu0
  %v1894 = vadd.f32 %v1875, %v1893
  %v1895 = vpop.f32.mrf.mxu0
  %v1896 = vadd.f32 %v1877, %v1895
  %1897 = vdwg.mxu0
  %1898 = vmatpush.bf16.msra.mxu0 %v1379
  %1899 = vmatpush.bf16.msra.mxu0 %v1377
  %1900 = vmatpush.bf16.msra.mxu0 %v1375
  %1901 = vmatpush.bf16.msra.mxu0 %v1373
  %1902 = vmatpush.bf16.msra.mxu0 %v1371
  %1903 = vmatpush.bf16.msra.mxu0 %v1369
  %1904 = vmatpush.bf16.msra.mxu0 %v1367
  %1905 = vmatpush.bf16.msra.mxu0 %v1365
  %1906 = vmatmul.bf16.gmra.mxu0 %v428
  %v1907 = vpop.f32.mrf.mxu0
  %v1908 = vadd.f32 %v1889, %v1907
  %v1909 = vpop.f32.mrf.mxu0
  %v1910 = vadd.f32 %v1891, %v1909
  %1911 = vmatmul.bf16.gmra.mxu0 %v444
  %v1912 = vpop.f32.mrf.mxu0
  %v1913 = vadd.f32 %v1894, %v1912
  %v1914 = vpop.f32.mrf.mxu0
  %v1915 = vadd.f32 %v1896, %v1914
  %1916 = vdwg.mxu0
  %1917 = vmatpush.bf16.msra.mxu0 %v1395
  %1918 = vmatpush.bf16.msra.mxu0 %v1393
  %1919 = vmatpush.bf16.msra.mxu0 %v1391
  %1920 = vmatpush.bf16.msra.mxu0 %v1389
  %1921 = vmatpush.bf16.msra.mxu0 %v1387
  %1922 = vmatpush.bf16.msra.mxu0 %v1385
  %1923 = vmatpush.bf16.msra.mxu0 %v1383
  %1924 = vmatpush.bf16.msra.mxu0 %v1381
  %1925 = vmatmul.bf16.gmra.mxu0 %v429
  %v1926 = vpop.f32.mrf.mxu0
  %v1927 = vadd.f32 %v1908, %v1926
  %v1928 = vpop.f32.mrf.mxu0
  %v1929 = vadd.f32 %v1910, %v1928
  %1930 = vmatmul.bf16.gmra.mxu0 %v445
  %v1931 = vpop.f32.mrf.mxu0
  %v1932 = vadd.f32 %v1913, %v1931
  %v1933 = vpop.f32.mrf.mxu0
  %v1934 = vadd.f32 %v1915, %v1933
  %1935 = vdwg.mxu0
  %1936 = vmatpush.bf16.msra.mxu0 %v1411
  %1937 = vmatpush.bf16.msra.mxu0 %v1409
  %1938 = vmatpush.bf16.msra.mxu0 %v1407
  %1939 = vmatpush.bf16.msra.mxu0 %v1405
  %1940 = vmatpush.bf16.msra.mxu0 %v1403
  %1941 = vmatpush.bf16.msra.mxu0 %v1401
  %1942 = vmatpush.bf16.msra.mxu0 %v1399
  %1943 = vmatpush.bf16.msra.mxu0 %v1397
  %1944 = vmatmul.bf16.gmra.mxu0 %v430
  %v1945 = vpop.f32.mrf.mxu0
  %v1946 = vadd.f32 %v1927, %v1945
  %v1947 = vpop.f32.mrf.mxu0
  %v1948 = vadd.f32 %v1929, %v1947
  %1949 = vmatmul.bf16.gmra.mxu0 %v446
  %v1950 = vpop.f32.mrf.mxu0
  %v1951 = vadd.f32 %v1932, %v1950
  %v1952 = vpop.f32.mrf.mxu0
  %v1953 = vadd.f32 %v1934, %v1952
  %1954 = vdwg.mxu0
  %1955 = vmatpush.bf16.msra.mxu0 %v1427
  %1956 = vmatpush.bf16.msra.mxu0 %v1425
  %1957 = vmatpush.bf16.msra.mxu0 %v1423
  %1958 = vmatpush.bf16.msra.mxu0 %v1421
  %1959 = vmatpush.bf16.msra.mxu0 %v1419
  %1960 = vmatpush.bf16.msra.mxu0 %v1417
  %1961 = vmatpush.bf16.msra.mxu0 %v1415
  %1962 = vmatpush.bf16.msra.mxu0 %v1413
  %1963 = vmatmul.bf16.gmra.mxu0 %v431
  %v1964 = vpop.f32.mrf.mxu0
  %v1965 = vadd.f32 %v1946, %v1964
  %v1966 = vpop.f32.mrf.mxu0
  %v1967 = vadd.f32 %v1948, %v1966
  %1968 = vmatmul.bf16.gmra.mxu0 %v447
  %v1969 = vpop.f32.mrf.mxu0
  %v1970 = vadd.f32 %v1951, %v1969
  %v1971 = vpop.f32.mrf.mxu0
  %v1972 = vadd.f32 %v1953, %v1971
  %1973 = vdwg.mxu0
  %1974 = vmatpush.bf16.msra.mxu0 %v1443
  %1975 = vmatpush.bf16.msra.mxu0 %v1441
  %1976 = vmatpush.bf16.msra.mxu0 %v1439
  %1977 = vmatpush.bf16.msra.mxu0 %v1437
  %1978 = vmatpush.bf16.msra.mxu0 %v1435
  %1979 = vmatpush.bf16.msra.mxu0 %v1433
  %1980 = vmatpush.bf16.msra.mxu0 %v1431
  %1981 = vmatpush.bf16.msra.mxu0 %v1429
  %1982 = vmatmul.bf16.gmra.mxu0 %v432
  %v1983 = vpop.f32.mrf.mxu0
  %v1984 = vadd.f32 %v1965, %v1983
  %v1985 = vpop.f32.mrf.mxu0
  %v1986 = vadd.f32 %v1967, %v1985
  %1987 = vmatmul.bf16.gmra.mxu0 %v448
  %v1988 = vpop.f32.mrf.mxu0
  %v1989 = vadd.f32 %v1970, %v1988
  %v1990 = vpop.f32.mrf.mxu0
  %v1991 = vadd.f32 %v1972, %v1990
  %1992 = vdwg.mxu0
  %1993 = vmatpush.bf16.msra.mxu0 %v1459
  %1994 = vmatpush.bf16.msra.mxu0 %v1457
  %1995 = vmatpush.bf16.msra.mxu0 %v1455
  %1996 = vmatpush.bf16.msra.mxu0 %v1453
  %1997 = vmatpush.bf16.msra.mxu0 %v1451
  %1998 = vmatpush.bf16.msra.mxu0 %v1449
  %1999 = vmatpush.bf16.msra.mxu0 %v1447
  %2000 = vmatpush.bf16.msra.mxu0 %v1445
  %2001 = vmatmul.bf16.gmra.mxu0 %v433
  %v2002 = vpop.f32.mrf.mxu0
  %v2003 = vadd.f32 %v1984, %v2002
  %v2004 = vpop.f32.mrf.mxu0
  %v2005 = vadd.f32 %v1986, %v2004
  %2006 = vmatmul.bf16.gmra.mxu0 %v449
  %v2007 = vpop.f32.mrf.mxu0
  %v2008 = vadd.f32 %v1989, %v2007
  %v2009 = vpop.f32.mrf.mxu0
  %v2010 = vadd.f32 %v1991, %v2009
  %2011 = vdwg.mxu0
  %2012 = vmatpush.bf16.msra.mxu0 %v1475
  %2013 = vmatpush.bf16.msra.mxu0 %v1473
  %2014 = vmatpush.bf16.msra.mxu0 %v1471
  %2015 = vmatpush.bf16.msra.mxu0 %v1469
  %2016 = vmatpush.bf16.msra.mxu0 %v1467
  %2017 = vmatpush.bf16.msra.mxu0 %v1465
  %2018 = vmatpush.bf16.msra.mxu0 %v1463
  %2019 = vmatpush.bf16.msra.mxu0 %v1461
  %2020 = vmatmul.bf16.gmra.mxu0 %v434
  %v2021 = vpop.f32.mrf.mxu0
  %v2022 = vadd.f32 %v2003, %v2021
  %v2023 = vpop.f32.mrf.mxu0
  %v2024 = vadd.f32 %v2005, %v2023
  %2025 = vmatmul.bf16.gmra.mxu0 %v450
  %v2026 = vpop.f32.mrf.mxu0
  %v2027 = vadd.f32 %v2008, %v2026
  %v2028 = vpop.f32.mrf.mxu0
  %v2029 = vadd.f32 %v2010, %v2028
  %2030 = vdwg.mxu0
  %2031 = vmatpush.bf16.msra.mxu0 %v1491
  %2032 = vmatpush.bf16.msra.mxu0 %v1489
  %2033 = vmatpush.bf16.msra.mxu0 %v1487
  %2034 = vmatpush.bf16.msra.mxu0 %v1485
  %2035 = vmatpush.bf16.msra.mxu0 %v1483
  %2036 = vmatpush.bf16.msra.mxu0 %v1481
  %2037 = vmatpush.bf16.msra.mxu0 %v1479
  %2038 = vmatpush.bf16.msra.mxu0 %v1477
  %2039 = vmatmul.bf16.gmra.mxu0 %v435
  %v2040 = vpop.f32.mrf.mxu0
  %v2041 = vadd.f32 %v2022, %v2040
  %v2042 = vpop.f32.mrf.mxu0
  %v2043 = vadd.f32 %v2024, %v2042
  %2044 = vmatmul.bf16.gmra.mxu0 %v451
  %v2045 = vpop.f32.mrf.mxu0
  %v2046 = vadd.f32 %v2027, %v2045
  %v2047 = vpop.f32.mrf.mxu0
  %v2048 = vadd.f32 %v2029, %v2047
  %2049 = vdwg.mxu0
  %2050 = vmatpush.bf16.msra.mxu0 %v1507
  %2051 = vmatpush.bf16.msra.mxu0 %v1505
  %2052 = vmatpush.bf16.msra.mxu0 %v1503
  %2053 = vmatpush.bf16.msra.mxu0 %v1501
  %2054 = vmatpush.bf16.msra.mxu0 %v1499
  %2055 = vmatpush.bf16.msra.mxu0 %v1497
  %2056 = vmatpush.bf16.msra.mxu0 %v1495
  %2057 = vmatpush.bf16.msra.mxu0 %v1493
  %2058 = vmatmul.bf16.gmra.mxu0 %v436
  %v2059 = vpop.f32.mrf.mxu0
  %v2060 = vadd.f32 %v2041, %v2059
  %v2061 = vpop.f32.mrf.mxu0
  %v2062 = vadd.f32 %v2043, %v2061
  %2063 = vmatmul.bf16.gmra.mxu0 %v452
  %v2064 = vpop.f32.mrf.mxu0
  %v2065 = vadd.f32 %v2046, %v2064
  %v2066 = vpop.f32.mrf.mxu0
  %v2067 = vadd.f32 %v2048, %v2066
  %2068 = vdwg.mxu0
  %2069 = vmatpush.bf16.msra.mxu0 %v1268
  %2070 = vmatpush.bf16.msra.mxu0 %v1266
  %2071 = vmatpush.bf16.msra.mxu0 %v1264
  %2072 = vmatpush.bf16.msra.mxu0 %v1262
  %2073 = vmatpush.bf16.msra.mxu0 %v1260
  %2074 = vmatpush.bf16.msra.mxu0 %v1258
  %2075 = vmatpush.bf16.msra.mxu0 %v1256
  %2076 = vmatpush.bf16.msra.mxu0 %v1254
  %2077 = vmatmul.bf16.gmra.mxu0 %v421
  %v2078 = vpop.f32.mrf.mxu0
  %v2079 = vadd.f32 0.0, %v2078
  %v2080 = vpop.f32.mrf.mxu0
  %v2081 = vadd.f32 0.0, %v2080
  %2082 = vmatmul.bf16.gmra.mxu0 %v437
  %v2083 = vpop.f32.mrf.mxu0
  %v2084 = vadd.f32 0.0, %v2083
  %v2085 = vpop.f32.mrf.mxu0
  %v2086 = vadd.f32 0.0, %v2085
  %2087 = vdwg.mxu0
  %2088 = vmatpush.bf16.msra.mxu0 %v1284
  %2089 = vmatpush.bf16.msra.mxu0 %v1282
  %2090 = vmatpush.bf16.msra.mxu0 %v1280
  %2091 = vmatpush.bf16.msra.mxu0 %v1278
  %2092 = vmatpush.bf16.msra.mxu0 %v1276
  %2093 = vmatpush.bf16.msra.mxu0 %v1274
  %2094 = vmatpush.bf16.msra.mxu0 %v1272
  %2095 = vmatpush.bf16.msra.mxu0 %v1270
  %2096 = vmatmul.bf16.gmra.mxu0 %v422
  %v2097 = vpop.f32.mrf.mxu0
  %v2098 = vadd.f32 %v2079, %v2097
  %v2099 = vpop.f32.mrf.mxu0
  %v2100 = vadd.f32 %v2081, %v2099
  %2101 = vmatmul.bf16.gmra.mxu0 %v438
  %v2102 = vpop.f32.mrf.mxu0
  %v2103 = vadd.f32 %v2084, %v2102
  %v2104 = vpop.f32.mrf.mxu0
  %v2105 = vadd.f32 %v2086, %v2104
  %2106 = vdwg.mxu0
  %2107 = vmatpush.bf16.msra.mxu0 %v1300
  %2108 = vmatpush.bf16.msra.mxu0 %v1298
  %2109 = vmatpush.bf16.msra.mxu0 %v1296
  %2110 = vmatpush.bf16.msra.mxu0 %v1294
  %2111 = vmatpush.bf16.msra.mxu0 %v1292
  %2112 = vmatpush.bf16.msra.mxu0 %v1290
  %2113 = vmatpush.bf16.msra.mxu0 %v1288
  %2114 = vmatpush.bf16.msra.mxu0 %v1286
  %2115 = vmatmul.bf16.gmra.mxu0 %v423
  %v2116 = vpop.f32.mrf.mxu0
  %v2117 = vadd.f32 %v2098, %v2116
  %v2118 = vpop.f32.mrf.mxu0
  %v2119 = vadd.f32 %v2100, %v2118
  %2120 = vmatmul.bf16.gmra.mxu0 %v439
  %v2121 = vpop.f32.mrf.mxu0
  %v2122 = vadd.f32 %v2103, %v2121
  %v2123 = vpop.f32.mrf.mxu0
  %v2124 = vadd.f32 %v2105, %v2123
  %2125 = vdwg.mxu0
  %2126 = vmatpush.bf16.msra.mxu0 %v1316
  %2127 = vmatpush.bf16.msra.mxu0 %v1314
  %2128 = vmatpush.bf16.msra.mxu0 %v1312
  %2129 = vmatpush.bf16.msra.mxu0 %v1310
  %2130 = vmatpush.bf16.msra.mxu0 %v1308
  %2131 = vmatpush.bf16.msra.mxu0 %v1306
  %2132 = vmatpush.bf16.msra.mxu0 %v1304
  %2133 = vmatpush.bf16.msra.mxu0 %v1302
  %2134 = vmatmul.bf16.gmra.mxu0 %v424
  %v2135 = vpop.f32.mrf.mxu0
  %v2136 = vadd.f32 %v2117, %v2135
  %v2137 = vpop.f32.mrf.mxu0
  %v2138 = vadd.f32 %v2119, %v2137
  %2139 = vmatmul.bf16.gmra.mxu0 %v440
  %v2140 = vpop.f32.mrf.mxu0
  %v2141 = vadd.f32 %v2122, %v2140
  %v2142 = vpop.f32.mrf.mxu0
  %v2143 = vadd.f32 %v2124, %v2142
  %2144 = vdwg.mxu0
  %2145 = vmatpush.bf16.msra.mxu0 %v1332
  %2146 = vmatpush.bf16.msra.mxu0 %v1330
  %2147 = vmatpush.bf16.msra.mxu0 %v1328
  %2148 = vmatpush.bf16.msra.mxu0 %v1326
  %2149 = vmatpush.bf16.msra.mxu0 %v1324
  %2150 = vmatpush.bf16.msra.mxu0 %v1322
  %2151 = vmatpush.bf16.msra.mxu0 %v1320
  %2152 = vmatpush.bf16.msra.mxu0 %v1318
  %2153 = vmatmul.bf16.gmra.mxu0 %v425
  %v2154 = vpop.f32.mrf.mxu0
  %v2155 = vadd.f32 %v2136, %v2154
  %v2156 = vpop.f32.mrf.mxu0
  %v2157 = vadd.f32 %v2138, %v2156
  %2158 = vmatmul.bf16.gmra.mxu0 %v441
  %v2159 = vpop.f32.mrf.mxu0
  %v2160 = vadd.f32 %v2141, %v2159
  %v2161 = vpop.f32.mrf.mxu0
  %v2162 = vadd.f32 %v2143, %v2161
  %2163 = vdwg.mxu0
  %2164 = vmatpush.bf16.msra.mxu0 %v1348
  %2165 = vmatpush.bf16.msra.mxu0 %v1346
  %2166 = vmatpush.bf16.msra.mxu0 %v1344
  %2167 = vmatpush.bf16.msra.mxu0 %v1342
  %2168 = vmatpush.bf16.msra.mxu0 %v1340
  %2169 = vmatpush.bf16.msra.mxu0 %v1338
  %2170 = vmatpush.bf16.msra.mxu0 %v1336
  %2171 = vmatpush.bf16.msra.mxu0 %v1334
  %2172 = vmatmul.bf16.gmra.mxu0 %v426
  %v2173 = vpop.f32.mrf.mxu0
  %v2174 = vadd.f32 %v2155, %v2173
  %v2175 = vpop.f32.mrf.mxu0
  %v2176 = vadd.f32 %v2157, %v2175
  %2177 = vmatmul.bf16.gmra.mxu0 %v442
  %v2178 = vpop.f32.mrf.mxu0
  %v2179 = vadd.f32 %v2160, %v2178
  %v2180 = vpop.f32.mrf.mxu0
  %v2181 = vadd.f32 %v2162, %v2180
  %2182 = vdwg.mxu0
  %2183 = vmatpush.bf16.msra.mxu0 %v1364
  %2184 = vmatpush.bf16.msra.mxu0 %v1362
  %2185 = vmatpush.bf16.msra.mxu0 %v1360
  %2186 = vmatpush.bf16.msra.mxu0 %v1358
  %2187 = vmatpush.bf16.msra.mxu0 %v1356
  %2188 = vmatpush.bf16.msra.mxu0 %v1354
  %2189 = vmatpush.bf16.msra.mxu0 %v1352
  %2190 = vmatpush.bf16.msra.mxu0 %v1350
  %2191 = vmatmul.bf16.gmra.mxu0 %v427
  %v2192 = vpop.f32.mrf.mxu0
  %v2193 = vadd.f32 %v2174, %v2192
  %v2194 = vpop.f32.mrf.mxu0
  %v2195 = vadd.f32 %v2176, %v2194
  %2196 = vmatmul.bf16.gmra.mxu0 %v443
  %v2197 = vpop.f32.mrf.mxu0
  %v2198 = vadd.f32 %v2179, %v2197
  %v2199 = vpop.f32.mrf.mxu0
  %v2200 = vadd.f32 %v2181, %v2199
  %2201 = vdwg.mxu0
  %2202 = vmatpush.bf16.msra.mxu0 %v1380
  %2203 = vmatpush.bf16.msra.mxu0 %v1378
  %2204 = vmatpush.bf16.msra.mxu0 %v1376
  %2205 = vmatpush.bf16.msra.mxu0 %v1374
  %2206 = vmatpush.bf16.msra.mxu0 %v1372
  %2207 = vmatpush.bf16.msra.mxu0 %v1370
  %2208 = vmatpush.bf16.msra.mxu0 %v1368
  %2209 = vmatpush.bf16.msra.mxu0 %v1366
  %2210 = vmatmul.bf16.gmra.mxu0 %v428
  %v2211 = vpop.f32.mrf.mxu0
  %v2212 = vadd.f32 %v2193, %v2211
  %v2213 = vpop.f32.mrf.mxu0
  %v2214 = vadd.f32 %v2195, %v2213
  %2215 = vmatmul.bf16.gmra.mxu0 %v444
  %v2216 = vpop.f32.mrf.mxu0
  %v2217 = vadd.f32 %v2198, %v2216
  %v2218 = vpop.f32.mrf.mxu0
  %v2219 = vadd.f32 %v2200, %v2218
  %2220 = vdwg.mxu0
  %2221 = vmatpush.bf16.msra.mxu0 %v1396
  %2222 = vmatpush.bf16.msra.mxu0 %v1394
  %2223 = vmatpush.bf16.msra.mxu0 %v1392
  %2224 = vmatpush.bf16.msra.mxu0 %v1390
  %2225 = vmatpush.bf16.msra.mxu0 %v1388
  %2226 = vmatpush.bf16.msra.mxu0 %v1386
  %2227 = vmatpush.bf16.msra.mxu0 %v1384
  %2228 = vmatpush.bf16.msra.mxu0 %v1382
  %2229 = vmatmul.bf16.gmra.mxu0 %v429
  %v2230 = vpop.f32.mrf.mxu0
  %v2231 = vadd.f32 %v2212, %v2230
  %v2232 = vpop.f32.mrf.mxu0
  %v2233 = vadd.f32 %v2214, %v2232
  %2234 = vmatmul.bf16.gmra.mxu0 %v445
  %v2235 = vpop.f32.mrf.mxu0
  %v2236 = vadd.f32 %v2217, %v2235
  %v2237 = vpop.f32.mrf.mxu0
  %v2238 = vadd.f32 %v2219, %v2237
  %2239 = vdwg.mxu0
  %2240 = vmatpush.bf16.msra.mxu0 %v1412
  %2241 = vmatpush.bf16.msra.mxu0 %v1410
  %2242 = vmatpush.bf16.msra.mxu0 %v1408
  %2243 = vmatpush.bf16.msra.mxu0 %v1406
  %2244 = vmatpush.bf16.msra.mxu0 %v1404
  %2245 = vmatpush.bf16.msra.mxu0 %v1402
  %2246 = vmatpush.bf16.msra.mxu0 %v1400
  %2247 = vmatpush.bf16.msra.mxu0 %v1398
  %2248 = vmatmul.bf16.gmra.mxu0 %v430
  %v2249 = vpop.f32.mrf.mxu0
  %v2250 = vadd.f32 %v2231, %v2249
  %v2251 = vpop.f32.mrf.mxu0
  %v2252 = vadd.f32 %v2233, %v2251
  %2253 = vmatmul.bf16.gmra.mxu0 %v446
  %v2254 = vpop.f32.mrf.mxu0
  %v2255 = vadd.f32 %v2236, %v2254
  %v2256 = vpop.f32.mrf.mxu0
  %v2257 = vadd.f32 %v2238, %v2256
  %2258 = vdwg.mxu0
  %2259 = vmatpush.bf16.msra.mxu0 %v1428
  %2260 = vmatpush.bf16.msra.mxu0 %v1426
  %2261 = vmatpush.bf16.msra.mxu0 %v1424
  %2262 = vmatpush.bf16.msra.mxu0 %v1422
  %2263 = vmatpush.bf16.msra.mxu0 %v1420
  %2264 = vmatpush.bf16.msra.mxu0 %v1418
  %2265 = vmatpush.bf16.msra.mxu0 %v1416
  %2266 = vmatpush.bf16.msra.mxu0 %v1414
  %2267 = vmatmul.bf16.gmra.mxu0 %v431
  %v2268 = vpop.f32.mrf.mxu0
  %v2269 = vadd.f32 %v2250, %v2268
  %v2270 = vpop.f32.mrf.mxu0
  %v2271 = vadd.f32 %v2252, %v2270
  %2272 = vmatmul.bf16.gmra.mxu0 %v447
  %v2273 = vpop.f32.mrf.mxu0
  %v2274 = vadd.f32 %v2255, %v2273
  %v2275 = vpop.f32.mrf.mxu0
  %v2276 = vadd.f32 %v2257, %v2275
  %2277 = vdwg.mxu0
  %2278 = vmatpush.bf16.msra.mxu0 %v1444
  %2279 = vmatpush.bf16.msra.mxu0 %v1442
  %2280 = vmatpush.bf16.msra.mxu0 %v1440
  %2281 = vmatpush.bf16.msra.mxu0 %v1438
  %2282 = vmatpush.bf16.msra.mxu0 %v1436
  %2283 = vmatpush.bf16.msra.mxu0 %v1434
  %2284 = vmatpush.bf16.msra.mxu0 %v1432
  %2285 = vmatpush.bf16.msra.mxu0 %v1430
  %2286 = vmatmul.bf16.gmra.mxu0 %v432
  %v2287 = vpop.f32.mrf.mxu0
  %v2288 = vadd.f32 %v2269, %v2287
  %v2289 = vpop.f32.mrf.mxu0
  %v2290 = vadd.f32 %v2271, %v2289
  %2291 = vmatmul.bf16.gmra.mxu0 %v448
  %v2292 = vpop.f32.mrf.mxu0
  %v2293 = vadd.f32 %v2274, %v2292
  %v2294 = vpop.f32.mrf.mxu0
  %v2295 = vadd.f32 %v2276, %v2294
  %2296 = vdwg.mxu0
  %2297 = vmatpush.bf16.msra.mxu0 %v1460
  %2298 = vmatpush.bf16.msra.mxu0 %v1458
  %2299 = vmatpush.bf16.msra.mxu0 %v1456
  %2300 = vmatpush.bf16.msra.mxu0 %v1454
  %2301 = vmatpush.bf16.msra.mxu0 %v1452
  %2302 = vmatpush.bf16.msra.mxu0 %v1450
  %2303 = vmatpush.bf16.msra.mxu0 %v1448
  %2304 = vmatpush.bf16.msra.mxu0 %v1446
  %2305 = vmatmul.bf16.gmra.mxu0 %v433
  %v2306 = vpop.f32.mrf.mxu0
  %v2307 = vadd.f32 %v2288, %v2306
  %v2308 = vpop.f32.mrf.mxu0
  %v2309 = vadd.f32 %v2290, %v2308
  %2310 = vmatmul.bf16.gmra.mxu0 %v449
  %v2311 = vpop.f32.mrf.mxu0
  %v2312 = vadd.f32 %v2293, %v2311
  %v2313 = vpop.f32.mrf.mxu0
  %v2314 = vadd.f32 %v2295, %v2313
  %2315 = vdwg.mxu0
  %2316 = vmatpush.bf16.msra.mxu0 %v1476
  %2317 = vmatpush.bf16.msra.mxu0 %v1474
  %2318 = vmatpush.bf16.msra.mxu0 %v1472
  %2319 = vmatpush.bf16.msra.mxu0 %v1470
  %2320 = vmatpush.bf16.msra.mxu0 %v1468
  %2321 = vmatpush.bf16.msra.mxu0 %v1466
  %2322 = vmatpush.bf16.msra.mxu0 %v1464
  %2323 = vmatpush.bf16.msra.mxu0 %v1462
  %2324 = vmatmul.bf16.gmra.mxu0 %v434
  %v2325 = vpop.f32.mrf.mxu0
  %v2326 = vadd.f32 %v2307, %v2325
  %v2327 = vpop.f32.mrf.mxu0
  %v2328 = vadd.f32 %v2309, %v2327
  %2329 = vmatmul.bf16.gmra.mxu0 %v450
  %v2330 = vpop.f32.mrf.mxu0
  %v2331 = vadd.f32 %v2312, %v2330
  %v2332 = vpop.f32.mrf.mxu0
  %v2333 = vadd.f32 %v2314, %v2332
  %2334 = vdwg.mxu0
  %2335 = vmatpush.bf16.msra.mxu0 %v1492
  %2336 = vmatpush.bf16.msra.mxu0 %v1490
  %2337 = vmatpush.bf16.msra.mxu0 %v1488
  %2338 = vmatpush.bf16.msra.mxu0 %v1486
  %2339 = vmatpush.bf16.msra.mxu0 %v1484
  %2340 = vmatpush.bf16.msra.mxu0 %v1482
  %2341 = vmatpush.bf16.msra.mxu0 %v1480
  %2342 = vmatpush.bf16.msra.mxu0 %v1478
  %2343 = vmatmul.bf16.gmra.mxu0 %v435
  %v2344 = vpop.f32.mrf.mxu0
  %v2345 = vadd.f32 %v2326, %v2344
  %v2346 = vpop.f32.mrf.mxu0
  %v2347 = vadd.f32 %v2328, %v2346
  %2348 = vmatmul.bf16.gmra.mxu0 %v451
  %v2349 = vpop.f32.mrf.mxu0
  %v2350 = vadd.f32 %v2331, %v2349
  %v2351 = vpop.f32.mrf.mxu0
  %v2352 = vadd.f32 %v2333, %v2351
  %2353 = vdwg.mxu0
  %2354 = vmatpush.bf16.msra.mxu0 %v1508
  %2355 = vmatpush.bf16.msra.mxu0 %v1506
  %2356 = vmatpush.bf16.msra.mxu0 %v1504
  %2357 = vmatpush.bf16.msra.mxu0 %v1502
  %2358 = vmatpush.bf16.msra.mxu0 %v1500
  %2359 = vmatpush.bf16.msra.mxu0 %v1498
  %2360 = vmatpush.bf16.msra.mxu0 %v1496
  %2361 = vmatpush.bf16.msra.mxu0 %v1494
  %2362 = vmatmul.bf16.gmra.mxu0 %v436
  %v2363 = vpop.f32.mrf.mxu0
  %v2364 = vadd.f32 %v2345, %v2363
  %v2365 = vpop.f32.mrf.mxu0
  %v2366 = vadd.f32 %v2347, %v2365
  %2367 = vmatmul.bf16.gmra.mxu0 %v452
  %v2368 = vpop.f32.mrf.mxu0
  %v2369 = vadd.f32 %v2350, %v2368
  %v2370 = vpop.f32.mrf.mxu0
  %v2371 = vadd.f32 %v2352, %v2370
  %2372 = vdwg.mxu0
  %v2373 = vadd.f32 %v29, %v2060
  %v2374 = vadd.f32 %v30, %v2364
  %v2375 = vadd.f32 %v31, %v2062
  %v2376 = vadd.f32 %v32, %v2366
  %v2377 = vadd.f32 %v33, %v2065
  %v2378 = vadd.f32 %v34, %v2369
  %v2379 = vadd.f32 %v35, %v2067
  %v2380 = vadd.f32 %v36, %v2371
  %2381 = vst [vmem:[#allocation2] sm:$0xff] %v2373
  %2382 = vst [vmem:[#allocation2 + $0x8] sm:$0xff] %v2374
  %2383 = vst [vmem:[#allocation2 + $0x10] sm:$0xff] %v2375
  %2384 = vst [vmem:[#allocation2 + $0x18] sm:$0xff] %v2376
  %2385 = vst [vmem:[#allocation2 + $0x20] sm:$0xff] %v2377
  %2386 = vst [vmem:[#allocation2 + $0x28] sm:$0xff] %v2378
  %2387 = vst [vmem:[#allocation2 + $0x30] sm:$0xff] %v2379
  %2388 = vst [vmem:[#allocation2 + $0x38] sm:$0xff] %v2380
  // Predicated region
  $region22: #{discriminator_forward.7} parent=0 // pred_check
    %p2389 = pneg %p17
  $region23: #{discriminator_forward.7} parent=0 // pred_check_branch
    %2391 = sbr.rel (%p2389) target = $region25
  $region24: #{discriminator_forward.7} parent=0 // pred_region
    %v2392 = vld [vmem:[#allocation2] sm:$0xff]
    %v2393 = vld [vmem:[#allocation2 + $0x8] sm:$0xff]
    %v2394 = vld [vmem:[#allocation2 + $0x10] sm:$0xff]
    %v2395 = vld [vmem:[#allocation2 + $0x18] sm:$0xff]
    %v2396 = vld [vmem:[#allocation2 + $0x20] sm:$0xff]
    %v2397 = vld [vmem:[#allocation2 + $0x28] sm:$0xff]
    %v2398 = vld [vmem:[#allocation2 + $0x30] sm:$0xff]
    %v2399 = vld [vmem:[#allocation2 + $0x38] sm:$0xff]
    %v2400 = vadd.f32 %v2392, %v2394
    %v2401 = vadd.f32 %v2400, %v2396
    %v2402 = vadd.f32 %v2401, %v2398
    %v2403 = vrot.slane %v2402, 4
    %v2404 = vadd.f32 %v2402, %v2403
    %v2405 = vrot.slane %v2404, 2
    %v2406 = vadd.f32 %v2404, %v2405
    %v2407 = vrot.slane %v2406, 1
    %v2408 = vadd.f32 %v2406, %v2407
    %v2409 = vadd.f32 %v2393, %v2395
    %v2410 = vadd.f32 %v2409, %v2397
    %v2411 = vadd.f32 %v2410, %v2399
    %v2412 = vrot.slane %v2411, 4
    %v2413 = vadd.f32 %v2411, %v2412
    %v2414 = vrot.slane %v2413, 2
    %v2415 = vadd.f32 %v2413, %v2414
    %v2416 = vrot.slane %v2415, 1
    %v2417 = vadd.f32 %v2415, %v2416
    %v2418 = vmul.f32 %v2408, 0.03125
    %v2419 = vmul.f32 %v2417, 0.03125
    %v2420 = vlaneseq
    %v2421 = vshrl.u32 %v2420, 7
    %v2422 = vadd.s32 %v2421, 8
    %v2423 = vadd.s32 %v2421, 16
    %v2424 = vadd.s32 %v2421, 24
    %vm2425 = vcmp.lt.s32.totalorder %v2421, 32
    %vm2426 = vcmp.lt.s32.totalorder %v2422, 32
    %vm2427 = vcmp.lt.s32.totalorder %v2423, 32
    %vm2428 = vcmp.lt.s32.totalorder %v2424, 32
    %v2429 = vsub.f32 %v2392, %v2418
    %v2430 = vsub.f32 %v2393, %v2419
    %v2431 = vsub.f32 %v2394, %v2418
    %v2432 = vsub.f32 %v2395, %v2419
    %v2433 = vsub.f32 %v2396, %v2418
    %v2434 = vsub.f32 %v2397, %v2419
    %v2435 = vsub.f32 %v2398, %v2418
    %v2436 = vsub.f32 %v2399, %v2419
    %v2437 = vsel %vm2425, %v2429, 0.0
    %v2438 = vsel %vm2425, %v2430, 0.0
    %v2439 = vsel %vm2426, %v2431, 0.0
    %v2440 = vsel %vm2426, %v2432, 0.0
    %v2441 = vsel %vm2427, %v2433, 0.0
    %v2442 = vsel %vm2427, %v2434, 0.0
    %v2443 = vsel %vm2428, %v2435, 0.0
    %v2444 = vsel %vm2428, %v2436, 0.0
    %v2445 = vmul.f32 %v2437, %v2437
    %v2446 = vmul.f32 %v2438, %v2438
    %v2447 = vmul.f32 %v2439, %v2439
    %v2448 = vmul.f32 %v2440, %v2440
    %v2449 = vmul.f32 %v2441, %v2441
    %v2450 = vmul.f32 %v2442, %v2442
    %v2451 = vmul.f32 %v2443, %v2443
    %v2452 = vmul.f32 %v2444, %v2444
    %v2453 = vadd.f32 %v2445, %v2447
    %v2454 = vadd.f32 %v2453, %v2449
    %v2455 = vadd.f32 %v2454, %v2451
    %v2456 = vrot.slane %v2455, 4
    %v2457 = vadd.f32 %v2455, %v2456
    %v2458 = vrot.slane %v2457, 2
    %v2459 = vadd.f32 %v2457, %v2458
    %v2460 = vrot.slane %v2459, 1
    %v2461 = vadd.f32 %v2459, %v2460
    %v2462 = vadd.f32 %v2446, %v2448
    %v2463 = vadd.f32 %v2462, %v2450
    %v2464 = vadd.f32 %v2463, %v2452
    %v2465 = vrot.slane %v2464, 4
    %v2466 = vadd.f32 %v2464, %v2465
    %v2467 = vrot.slane %v2466, 2
    %v2468 = vadd.f32 %v2466, %v2467
    %v2469 = vrot.slane %v2468, 1
    %v2470 = vadd.f32 %v2468, %v2469
    %v2471 = vmul.f32 %v2461, 0.03125
    %v2472 = vmul.f32 %v2470, 0.03125
    %v2473 = vadd.f32 %v2471, 1e-05
    %v2474 = vadd.f32 %v2472, 1e-05
    %v2475 = vrsqrt.pop %v2473
    %v2476 = vmul.f32 %v2475, %v2473
    %v2477 = vmul.f32 %v2476, %v2475
    %v2478 = vmul.f32 0.5, %v2477
    %v2479 = vsub.f32 1.5, %v2478
    %v2480 = vmul.f32 %v2475, %v2479
    %vm2481 = vweird.f32 %v2473
    %vm2482 = vweird.f32 %v2475
    %vm2483 = vmor %vm2481, %vm2482
    %v2484 = vsel %vm2483, %v2475, %v2480
    %v2485 = vrsqrt.pop %v2474
    %v2486 = vmul.f32 %v2485, %v2474
    %v2487 = vmul.f32 %v2486, %v2485
    %v2488 = vmul.f32 0.5, %v2487
    %v2489 = vsub.f32 1.5, %v2488
    %v2490 = vmul.f32 %v2485, %v2489
    %vm2491 = vweird.f32 %v2474
    %vm2492 = vweird.f32 %v2485
    %vm2493 = vmor %vm2491, %vm2492
    %v2494 = vsel %vm2493, %v2485, %v2490
    %v2495 = vld [vmem:[%s2] sm:$0x3]
    %v2497 = vperm.slane %v2495, 0
    %v2498 = vperm.slane %v2495, 1
    %v2501 = vmul.f32 %v2484, %v2497
    %v2502 = vmul.f32 %v2494, %v2498
    %v2503 = vperm.slane %v2501, 0
    %v2504 = vperm.slane %v2502, 0
    %v2505 = vmul.f32 %v2437, %v2503
    %v2506 = vmul.f32 %v2438, %v2504
    %v2507 = vmul.f32 %v2439, %v2503
    %v2508 = vmul.f32 %v2440, %v2504
    %v2509 = vmul.f32 %v2441, %v2503
    %v2510 = vmul.f32 %v2442, %v2504
    %v2511 = vmul.f32 %v2443, %v2503
    %v2512 = vmul.f32 %v2444, %v2504
    %v2513 = vld [vmem:[%s3] sm:$0x3]
    %v2515 = vperm.slane %v2513, 0
    %v2516 = vperm.slane %v2513, 1
    %v2519 = vadd.f32 %v2505, %v2515
    %v2520 = vadd.f32 %v2506, %v2516
    %v2521 = vadd.f32 %v2507, %v2515
    %v2522 = vadd.f32 %v2508, %v2516
    %v2523 = vadd.f32 %v2509, %v2515
    %v2524 = vadd.f32 %v2510, %v2516
    %v2525 = vadd.f32 %v2511, %v2515
    %v2526 = vadd.f32 %v2512, %v2516
    %vm2527 = vcmp.ge.f32.partialorder %v2519, 0.0
    %vm2528 = vcmp.ge.f32.partialorder %v2520, 0.0
    %vm2529 = vcmp.ge.f32.partialorder %v2521, 0.0
    %vm2530 = vcmp.ge.f32.partialorder %v2522, 0.0
    %vm2531 = vcmp.ge.f32.partialorder %v2523, 0.0
    %vm2532 = vcmp.ge.f32.partialorder %v2524, 0.0
    %vm2533 = vcmp.ge.f32.partialorder %v2525, 0.0
    %vm2534 = vcmp.ge.f32.partialorder %v2526, 0.0
    %v2535 = vmul.f32 %v2519, 0.2
    %v2536 = vmul.f32 %v2520, 0.2
    %v2537 = vmul.f32 %v2521, 0.2
    %v2538 = vmul.f32 %v2522, 0.2
    %v2539 = vmul.f32 %v2523, 0.2
    %v2540 = vmul.f32 %v2524, 0.2
    %v2541 = vmul.f32 %v2525, 0.2
    %v2542 = vmul.f32 %v2526, 0.2
    %v2543 = vsel %vm2527, %v2519, %v2535
    %v2544 = vsel %vm2528, %v2520, %v2536
    %v2545 = vsel %vm2529, %v2521, %v2537
    %v2546 = vsel %vm2530, %v2522, %v2538
    %v2547 = vsel %vm2531, %v2523, %v2539
    %v2548 = vsel %vm2532, %v2524, %v2540
    %v2549 = vsel %vm2533, %v2525, %v2541
    %v2550 = vsel %vm2534, %v2526, %v2542
    %v2551 = vpack.c.bf16 %v2544, %v2543
    %v2552 = vpack.c.bf16 %v2546, %v2545
    %v2553 = vpack.c.bf16 %v2548, %v2547
    %v2554 = vpack.c.bf16 %v2550, %v2549
    %2555 = vst [vmem:[%s4] sm:$0xff] %v2551
    %2556 = vst [vmem:[%s4 + $0x8] sm:$0xff] %v2552
    %2557 = vst [vmem:[%s4 + $0x10] sm:$0xff] %v2553
    %2558 = vst [vmem:[%s4 + $0x18] sm:$0xff] %v2554
  $region25: #{discriminator_forward.7} parent=0 // pred_fallthru
    _
  // Predicated region
  $region26: #{discriminator_forward.7} parent=0 // pred_check
    _
  $region27: #{discriminator_forward.7} parent=0 // pred_check_branch
    %2560 = sbr.rel (0) target = $region29
  $region28: #{discriminator_forward.7} parent=0 // pred_region
    _
  $region29: #{discriminator_forward.7} parent=0 // pred_fallthru
    _
  // Predicated region
  $region30: #{discriminator_forward.7} parent=0 // pred_check
    _
  $region31: #{discriminator_forward.7} parent=0 // pred_check_branch
    %2562 = sbr.rel (0) target = $region33
  $region32: #{discriminator_forward.7} parent=0 // pred_region
    _
  $region33: #{discriminator_forward.7} parent=0 // pred_fallthru
    _

// kernel: discriminator_forward.9
$region0: #{discriminator_forward.9}
  #allocation0 [shape = 'u32[]', space=smem, size = 0x4, offset = 0x4, fixed_abs, tag = 'smem constant byte address 0x4 - core index']
  #allocation1 [shape = 'u32[72,128]{1,0:T(1,128)}', space=vmem, size = 0x9000, scoped, tag = 'internal scratch']
  #allocation2 [shape = 'f32[8,128]{1,0:T(8,128)}', space=vmem, size = 0x1000, scoped, tag = 'scratch operand']
  %s0 = inlined_call_operand.vmem [shape: bf16[8,8192], index: 0, kind: input, shape index: {}]
  %s1 = inlined_call_operand.vmem [shape: bf16[8192,128], index: 1, kind: input, shape index: {}]
  %s2 = inlined_call_operand.vmem [shape: f32[1,128], index: 2, kind: input, shape index: {}]
  %s3 = inlined_call_operand.vmem [shape: f32[8,128], index: 3, kind: output, shape index: {}]
  %s4 = sld [smem:[#allocation0]]
  $region53: #{discriminator_forward.9} parent=0
    _
  %s6 = ssub.s32 1, %s4
  %s7 = scalar_select 0, %s6, %s4
  loop: start=0, step=1, limit=6
  $region2: #{discriminator_forward.9} parent=0 // loop_pre_header
    _
  $region3: #{discriminator_forward.9} parent=0 // loop_header
    %s9 = sphi 0, %s13
    %p10 = scmp.ge.s32.totalorder %s9, 6
    %s16 = sphi 0, %s35
    %s17 = sphi 0, %s31
    %s18 = sphi 0, %s27
    %s19 = sphi 0, %s16
    %s20 = sphi 0, %s17
    %s21 = sphi 0, %s18
    %s22 = sphi 0, %s19
    %s23 = sphi 0, %s20
    %s24 = sphi 0, %s21
    %s40 = sphi 0, %s42
    %s43 = sphi 0, %s40
    %s44 = sphi 0, %s43
    %s60 = sphi 0, %s44
    %s68 = sphi 0, %s70
    %s71 = sphi 0, %s68
    %s72 = sphi 0, %s71
    %s88 = sphi 0, %s72
    %s94 = sphi 0, %s96
    %s97 = sphi 0, %s94
    %s98 = sphi 0, %s97
    %s114 = sphi 0, %s98
    %s122 = sphi 0, %s124
    %s125 = sphi 0, %s122
    %s126 = sphi 0, %s125
    %s142 = sphi 0, %s126
  $region4: #{discriminator_forward.9} parent=0 // loop_header_branch
    %12 = sbr.rel (%p10) target = $region8
  $region5: #{discriminator_forward.9} parent=0 // loop_body
    %s14 = ssub.s32 %s9, 1
    %s15 = ssub.s32 %s9, 2
    %s25 = sadd.s32 1, %s18
    %p26 = scmp.ge.s32.totalorder %s25, 4
    %s27 = scalar_select %p26, 0, %s25
    %s28 = sadd.s32 1, %s17
    %s29 = scalar_select %p26, %s28, %s17
    %p30 = scmp.ge.s32.totalorder %s29, 1
    %s31 = scalar_select %p30, 0, %s29
    %s32 = sadd.s32 1, %s16
    %s33 = scalar_select %p30, %s32, %s16
    %p34 = scmp.ge.s32.totalorder %s33, 1
    %s35 = scalar_select %p34, 0, %s33
    %s36 = ssub.s32 %s16, %s35
    %s37 = ssub.s32 %s18, %s27
    %s38 = sor.u32 %s36, %s37
    %p39 = scmp.eq.s32.totalorder %s38, 0
    %s41 = sadd.s32 %s40, 1
    %s42 = scalar_select %p39, %s40, %s41
    %p45 = pneg %p39
    %p46 = scmp.eq.s32.totalorder %s9, 3
    %p47 = por %p45, %p46
    %p48 = scmp.ne.s32.totalorder %s40, %s43
    %p49 = scmp.eq.s32.totalorder %s9, 0
    %p50 = por %p48, %p49
    %p51 = scmp.ne.s32.totalorder %s40, %s43
    %p52 = scmp.eq.s32.totalorder %s14, 3
    %p53 = por %p51, %p52
    %p54 = scmp.ne.s32.totalorder %s43, %s44
    %p55 = scmp.eq.s32.totalorder %s14, 0
    %p56 = por %p54, %p55
    %p57 = scmp.ne.s32.totalorder %s43, %s44
    %p58 = scmp.eq.s32.totalorder %s15, 3
    %p59 = por %p57, %p58
    %p61 = scmp.ne.s32.totalorder %s44, %s60
    %p62 = scmp.eq.s32.totalorder %s15, 0
    %p63 = por %p61, %p62
    %s64 = ssub.s32 %s18, %s27
    %s65 = ssub.s32 %s17, %s31
    %s66 = sor.u32 %s64, %s65
    %p67 = scmp.eq.s32.totalorder %s66, 0
    %s69 = sadd.s32 %s68, 1
    %s70 = scalar_select %p67, %s68, %s69
    %p73 = pneg %p67
    %p74 = scmp.eq.s32.totalorder %s9, 3
    %p75 = por %p73, %p74
    %p76 = scmp.ne.s32.totalorder %s68, %s71
    %p77 = scmp.eq.s32.totalorder %s9, 0
    %p78 = por %p76, %p77
    %p79 = scmp.ne.s32.totalorder %s68, %s71
    %p80 = scmp.eq.s32.totalorder %s14, 3
    %p81 = por %p79, %p80
    %p82 = scmp.ne.s32.totalorder %s71, %s72
    %p83 = scmp.eq.s32.totalorder %s14, 0
    %p84 = por %p82, %p83
    %p85 = scmp.ne.s32.totalorder %s71, %s72
    %p86 = scmp.eq.s32.totalorder %s15, 3
    %p87 = por %p85, %p86
    %p89 = scmp.ne.s32.totalorder %s72, %s88
    %p90 = scmp.eq.s32.totalorder %s15, 0
    %p91 = por %p89, %p90
    %s92 = ssub.s32 %s17, %s31
    %p93 = scmp.eq.s32.totalorder %s92, 0
    %s95 = sadd.s32 %s94, 1
    %s96 = scalar_select %p93, %s94, %s95
    %p99 = pneg %p93
    %p100 = scmp.eq.s32.totalorder %s9, 3
    %p101 = por %p99, %p100
    %p102 = scmp.ne.s32.totalorder %s94, %s97
    %p103 = scmp.eq.s32.totalorder %s9, 0
    %p104 = por %p102, %p103
    %p105 = scmp.ne.s32.totalorder %s94, %s97
    %p106 = scmp.eq.s32.totalorder %s14, 3
    %p107 = por %p105, %p106
    %p108 = scmp.ne.s32.totalorder %s97, %s98
    %p109 = scmp.eq.s32.totalorder %s14, 0
    %p110 = por %p108, %p109
    %p111 = scmp.ne.s32.totalorder %s97, %s98
    %p112 = scmp.eq.s32.totalorder %s15, 3
    %p113 = por %p111, %p112
    %p115 = scmp.ne.s32.totalorder %s98, %s114
    %p116 = scmp.eq.s32.totalorder %s15, 0
    %p117 = por %p115, %p116
    %s118 = ssub.s32 %s16, %s35
    %s119 = ssub.s32 %s17, %s31
    %s120 = sor.u32 %s118, %s119
    %p121 = scmp.eq.s32.totalorder %s120, 0
    %s123 = sadd.s32 %s122, 1
    %s124 = scalar_select %p121, %s122, %s123
    %p127 = pneg %p121
    %p128 = scmp.eq.s32.totalorder %s9, 3
    %p129 = por %p127, %p128
    %p130 = scmp.ne.s32.totalorder %s122, %s125
    %p131 = scmp.eq.s32.totalorder %s9, 0
    %p132 = por %p130, %p131
    %p133 = scmp.ne.s32.totalorder %s122, %s125
    %p134 = scmp.eq.s32.totalorder %s14, 3
    %p135 = por %p133, %p134
    %p136 = scmp.ne.s32.totalorder %s125, %s126
    %p137 = scmp.eq.s32.totalorder %s14, 0
    %p138 = por %p136, %p137
    %p139 = scmp.ne.s32.totalorder %s125, %s126
    %p140 = scmp.eq.s32.totalorder %s15, 3
    %p141 = por %p139, %p140
    %p143 = scmp.ne.s32.totalorder %s126, %s142
    %p144 = scmp.eq.s32.totalorder %s15, 0
    %p145 = por %p143, %p144
    %p146 = scmp.le.s32.totalorder 1, %s9
    %p147 = scmp.lt.s32.totalorder %s9, 5
    %p148 = pnand %p146, %p147
    %p149 = pneg %p148
    // Predicated region
    $region9: #{discriminator_forward.9} parent=5 // pred_check
      _
    $region10: #{discriminator_forward.9} parent=5 // pred_check_branch
      %151 = sbr.rel (%p148) target = $region12
    $region11: #{discriminator_forward.9} parent=5 // pred_region
      %s152 = ssub.s32 %s9, 1
      // Predicated region
      $region13: #{discriminator_forward.9} parent=11 // pred_check
        %p153 = pneg %p110
      $region14: #{discriminator_forward.9} parent=11 // pred_check_branch
        %155 = sbr.rel (%p153) target = $region16
      $region15: #{discriminator_forward.9} parent=11 // pred_region
        %p156 = scmp.lt.s32.totalorder %s20, 0
        %s157 = scalar_select %p156, %s20, 0
        %s158 = scalar_lea.vmem %s2, %s157
      $region16: #{discriminator_forward.9} parent=11 // pred_fallthru
        _
    $region12: #{discriminator_forward.9} parent=5 // pred_fallthru
      _
    %p159 = scmp.lt.s32.totalorder %s9, 4
    // Predicated region
    $region17: #{discriminator_forward.9} parent=5 // pred_check
      %p160 = pneg %p159
    $region18: #{discriminator_forward.9} parent=5 // pred_check_branch
      %162 = sbr.rel (%p160) target = $region20
    $region19: #{discriminator_forward.9} parent=5 // pred_region
      // Predicated region
      $region21: #{discriminator_forward.9} parent=19 // pred_check
        %p163 = pneg %p50
      $region22: #{discriminator_forward.9} parent=19 // pred_check_branch
        %165 = sbr.rel (%p163) target = $region24
      $region23: #{discriminator_forward.9} parent=19 // pred_region
        %s166 = smul.u32 16, %s18
        %p167 = scmp.lt.s32.totalorder %s16, 0
        %s168 = scalar_select %p167, %s16, 0
        %p169 = scmp.lt.s32.totalorder %s166, 63
        %s170 = scalar_select %p169, %s166, 63
        %s171 = smul.addr %s168, 64
        %s172 = sadd.s32 %s170, %s171
        %s173 = smul.addr %s172, 4
        %s174 = scalar_lea.vmem %s0, %s173
        %s175 = smul.u32 16, %s18
      $region24: #{discriminator_forward.9} parent=19 // pred_fallthru
        _
      // Predicated region
      $region25: #{discriminator_forward.9} parent=19 // pred_check
        %p176 = pneg %p78
      $region26: #{discriminator_forward.9} parent=19 // pred_check_branch
        %178 = sbr.rel (%p176) target = $region28
      $region27: #{discriminator_forward.9} parent=19 // pred_region
        %s179 = smul.u32 256, %s18
        %p180 = scmp.lt.s32.totalorder %s179, 1023
        %s181 = scalar_select %p180, %s179, 1023
        %p182 = scmp.lt.s32.totalorder %s17, 0
        %s183 = scalar_select %p182, %s17, 0
        %s184 = sadd.s32 %s183, %s181
        %s185 = smul.addr %s184, 4
        %s186 = scalar_lea.vmem %s1, %s185
        %s187 = smul.u32 256, %s18
      $region28: #{discriminator_forward.9} parent=19 // pred_fallthru
        _
    $region20: #{discriminator_forward.9} parent=5 // pred_fallthru
      _
    %p188 = scmp.le.s32.totalorder 1, %s9
    %p189 = scmp.lt.s32.totalorder %s9, 5
    %p190 = pnand %p188, %p189
    %p191 = pneg %p190
    // Predicated region
    $region29: #{discriminator_forward.9} parent=5 // pred_check
      _
    $region30: #{discriminator_forward.9} parent=5 // pred_check_branch
      %193 = sbr.rel (%p190) target = $region32
    $region31: #{discriminator_forward.9} parent=5 // pred_region
      %s194 = ssub.s32 %s9, 1
      %s195 = smul.u32 16, %s21
      %p196 = scmp.lt.s32.totalorder %s19, 0
      %s197 = scalar_select %p196, %s19, 0
      %p198 = scmp.lt.s32.totalorder %s195, 63
      %s199 = scalar_select %p198, %s195, 63
      %s200 = smul.addr %s197, 64
      %s201 = sadd.s32 %s199, %s200
      %s202 = smul.addr %s201, 4
      %s203 = scalar_lea.vmem %s0, %s202
      %p204 = pneg %p56
      %p205 = pneg %p53
      %s206 = smul.u32 256, %s21
      %p207 = scmp.lt.s32.totalorder %s206, 1023
      %s208 = scalar_select %p207, %s206, 1023
      %p209 = scmp.lt.s32.totalorder %s20, 0
      %s210 = scalar_select %p209, %s20, 0
      %s211 = sadd.s32 %s210, %s208
      %s212 = smul.addr %s211, 4
      %s213 = scalar_lea.vmem %s1, %s212
      %p214 = pneg %p84
      %p215 = pneg %p81
      %p216 = scmp.lt.s32.totalorder %s20, 0
      %s217 = scalar_select %p216, %s20, 0
      %s218 = scalar_lea.vmem %s2, %s217
      %p219 = pneg %p110
      %p220 = pneg %p107
      %p221 = pneg %p138
      %p222 = pneg %p135
      %p223 = scmp.lt.s32.totalorder %s19, 0
      %s224 = scalar_select %p223, %s19, 0
      %p225 = scmp.lt.s32.totalorder %s20, 0
      %s226 = scalar_select %p225, %s20, 0
      %s227 = sadd.s32 %s226, %s224
      %s228 = smul.addr %s227, 8
      %s229 = scalar_lea.vmem %s3, %s228
      %s230 = smul.u32 16, %s21
      %p231 = scmp.lt.s32.totalorder %s19, 0
      %s232 = scalar_select %p231, %s19, 0
      %p233 = scmp.lt.s32.totalorder %s230, 63
      %s234 = scalar_select %p233, %s230, 63
      %s235 = smul.addr %s232, 64
      %s236 = sadd.s32 %s234, %s235
      %s237 = smul.addr %s236, 4
      %s238 = scalar_lea.vmem %s0, %s237
      %s239 = smul.u32 16, %s21
      %s240 = smul.u32 256, %s21
      %p241 = scmp.lt.s32.totalorder %s240, 1023
      %s242 = scalar_select %p241, %s240, 1023
      %p243 = scmp.lt.s32.totalorder %s20, 0
      %s244 = scalar_select %p243, %s20, 0
      %s245 = sadd.s32 %s244, %s242
      %s246 = smul.addr %s245, 4
      %s247 = scalar_lea.vmem %s1, %s246
      %s248 = smul.u32 256, %s21
      %p249 = scmp.lt.s32.totalorder %s20, 0
      %s250 = scalar_select %p249, %s20, 0
      %s251 = scalar_lea.vmem %s2, %s250
      %p252 = scmp.lt.s32.totalorder %s19, 0
      %s253 = scalar_select %p252, %s19, 0
      %p254 = scmp.lt.s32.totalorder %s20, 0
      %s255 = scalar_select %p254, %s20, 0
      %s256 = sadd.s32 %s255, %s253
      %s257 = smul.addr %s256, 8
      %s258 = scalar_lea.vmem %s3, %s257
      %p259 = scmp.eq.s32.totalorder %s21, 0
      // Predicated region
      $region33: #{discriminator_forward.9} parent=31 // pred_check
        %p260 = pneg %p259
      $region34: #{discriminator_forward.9} parent=31 // pred_check_branch
        %262 = sbr.rel (%p260) target = $region36
      $region35: #{discriminator_forward.9} parent=31 // pred_region
        %263 = vst [vmem:[#allocation2] sm:$0xff] 0.0
      $region36: #{discriminator_forward.9} parent=31 // pred_fallthru
        _
      %v264 = vld [vmem:[#allocation2] sm:$0xff]
      %v265 = vld [vmem:[%s238] sm:$0xff]
      %v266 = vld [vmem:[%s238 + $0x8] sm:$0xff]
      %v267 = vld [vmem:[%s238 + $0x10] sm:$0xff]
      %v268 = vld [vmem:[%s238 + $0x18] sm:$0xff]
      %v269 = vld [vmem:[%s238 + $0x20] sm:$0xff]
      %v270 = vld [vmem:[%s238 + $0x28] sm:$0xff]
      %v271 = vld [vmem:[%s238 + $0x30] sm:$0xff]
      %v272 = vld [vmem:[%s238 + $0x38] sm:$0xff]
      %v273 = vld [vmem:[%s247] sm:$0xf]
      %v274 = vld [vmem:[%s247 + $0x4] sm:$0xf]
      %v275 = vld [vmem:[%s247 + $0x8] sm:$0xf]
      %v276 = vld [vmem:[%s247 + $0xc] sm:$0xf]
      %v277 = vld [vmem:[%s247 + $0x10] sm:$0xf]
      %v278 = vld [vmem:[%s247 + $0x14] sm:$0xf]
      %v279 = vld [vmem:[%s247 + $0x18] sm:$0xf]
      %v280 = vld [vmem:[%s247 + $0x1c] sm:$0xf]
      %v281 = vld [vmem:[%s247 + $0x20] sm:$0xf]
      %v282 = vld [vmem:[%s247 + $0x24] sm:$0xf]
      %v283 = vld [vmem:[%s247 + $0x28] sm:$0xf]
      %v284 = vld [vmem:[%s247 + $0x2c] sm:$0xf]
      %v285 = vld [vmem:[%s247 + $0x30] sm:$0xf]
      %v286 = vld [vmem:[%s247 + $0x34] sm:$0xf]
      %v287 = vld [vmem:[%s247 + $0x38] sm:$0xf]
      %v288 = vld [vmem:[%s247 + $0x3c] sm:$0xf]
      %v289 = vld [vmem:[%s247 + $0x40] sm:$0xf]
      %v290 = vld [vmem:[%s247 + $0x44] sm:$0xf]
      %v291 = vld [vmem:[%s247 + $0x48] sm:$0xf]
      %v292 = vld [vmem:[%s247 + $0x4c] sm:$0xf]
      %v293 = vld [vmem:[%s247 + $0x50] sm:$0xf]
      %v294 = vld [vmem:[%s247 + $0x54] sm:$0xf]
      %v295 = vld [vmem:[%s247 + $0x58] sm:$0xf]
      %v296 = vld [vmem:[%s247 + $0x5c] sm:$0xf]
      %v297 = vld [vmem:[%s247 + $0x60] sm:$0xf]
      %v298 = vld [vmem:[%s247 + $0x64] sm:$0xf]
      %v299 = vld [vmem:[%s247 + $0x68] sm:$0xf]
      %v300 = vld [vmem:[%s247 + $0x6c] sm:$0xf]
      %v301 = vld [vmem:[%s247 + $0x70] sm:$0xf]
      %v302 = vld [vmem:[%s247 + $0x74] sm:$0xf]
      %v303 = vld [vmem:[%s247 + $0x78] sm:$0xf]
      %v304 = vld [vmem:[%s247 + $0x7c] sm:$0xf]
      %v305 = vld [vmem:[%s247 + $0x80] sm:$0xf]
      %v306 = vld [vmem:[%s247 + $0x84] sm:$0xf]
      %v307 = vld [vmem:[%s247 + $0x88] sm:$0xf]
      %v308 = vld [vmem:[%s247 + $0x8c] sm:$0xf]
      %v309 = vld [vmem:[%s247 + $0x90] sm:$0xf]
      %v310 = vld [vmem:[%s247 + $0x94] sm:$0xf]
      %v311 = vld [vmem:[%s247 + $0x98] sm:$0xf]
      %v312 = vld [vmem:[%s247 + $0x9c] sm:$0xf]
      %v313 = vld [vmem:[%s247 + $0xa0] sm:$0xf]
      %v314 = vld [vmem:[%s247 + $0xa4] sm:$0xf]
      %v315 = vld [vmem:[%s247 + $0xa8] sm:$0xf]
      %v316 = vld [vmem:[%s247 + $0xac] sm:$0xf]
      %v317 = vld [vmem:[%s247 + $0xb0] sm:$0xf]
      %v318 = vld [vmem:[%s247 + $0xb4] sm:$0xf]
      %v319 = vld [vmem:[%s247 + $0xb8] sm:$0xf]
      %v320 = vld [vmem:[%s247 + $0xbc] sm:$0xf]
      %v321 = vld [vmem:[%s247 + $0xc0] sm:$0xf]
      %v322 = vld [vmem:[%s247 + $0xc4] sm:$0xf]
      %v323 = vld [vmem:[%s247 + $0xc8] sm:$0xf]
      %v324 = vld [vmem:[%s247 + $0xcc] sm:$0xf]
      %v325 = vld [vmem:[%s247 + $0xd0] sm:$0xf]
      %v326 = vld [vmem:[%s247 + $0xd4] sm:$0xf]
      %v327 = vld [vmem:[%s247 + $0xd8] sm:$0xf]
      %v328 = vld [vmem:[%s247 + $0xdc] sm:$0xf]
      %v329 = vld [vmem:[%s247 + $0xe0] sm:$0xf]
      %v330 = vld [vmem:[%s247 + $0xe4] sm:$0xf]
      %v331 = vld [vmem:[%s247 + $0xe8] sm:$0xf]
      %v332 = vld [vmem:[%s247 + $0xec] sm:$0xf]
      %v333 = vld [vmem:[%s247 + $0xf0] sm:$0xf]
      %v334 = vld [vmem:[%s247 + $0xf4] sm:$0xf]
      %v335 = vld [vmem:[%s247 + $0xf8] sm:$0xf]
      %v336 = vld [vmem:[%s247 + $0xfc] sm:$0xf]
      %v337 = vld [vmem:[%s247 + $0x100] sm:$0xf]
      %v338 = vld [vmem:[%s247 + $0x104] sm:$0xf]
      %v339 = vld [vmem:[%s247 + $0x108] sm:$0xf]
      %v340 = vld [vmem:[%s247 + $0x10c] sm:$0xf]
      %v341 = vld [vmem:[%s247 + $0x110] sm:$0xf]
      %v342 = vld [vmem:[%s247 + $0x114] sm:$0xf]
      %v343 = vld [vmem:[%s247 + $0x118] sm:$0xf]
      %v344 = vld [vmem:[%s247 + $0x11c] sm:$0xf]
      %v345 = vld [vmem:[%s247 + $0x120] sm:$0xf]
      %v346 = vld [vmem:[%s247 + $0x124] sm:$0xf]
      %v347 = vld [vmem:[%s247 + $0x128] sm:$0xf]
      %v348 = vld [vmem:[%s247 + $0x12c] sm:$0xf]
      %v349 = vld [vmem:[%s247 + $0x130] sm:$0xf]
      %v350 = vld [vmem:[%s247 + $0x134] sm:$0xf]
      %v351 = vld [vmem:[%s247 + $0x138] sm:$0xf]
      %v352 = vld [vmem:[%s247 + $0x13c] sm:$0xf]
      %v353 = vld [vmem:[%s247 + $0x140] sm:$0xf]
      %v354 = vld [vmem:[%s247 + $0x144] sm:$0xf]
      %v355 = vld [vmem:[%s247 + $0x148] sm:$0xf]
      %v356 = vld [vmem:[%s247 + $0x14c] sm:$0xf]
      %v357 = vld [vmem:[%s247 + $0x150] sm:$0xf]
      %v358 = vld [vmem:[%s247 + $0x154] sm:$0xf]
      %v359 = vld [vmem:[%s247 + $0x158] sm:$0xf]
      %v360 = vld [vmem:[%s247 + $0x15c] sm:$0xf]
      %v361 = vld [vmem:[%s247 + $0x160] sm:$0xf]
      %v362 = vld [vmem:[%s247 + $0x164] sm:$0xf]
      %v363 = vld [vmem:[%s247 + $0x168] sm:$0xf]
      %v364 = vld [vmem:[%s247 + $0x16c] sm:$0xf]
      %v365 = vld [vmem:[%s247 + $0x170] sm:$0xf]
      %v366 = vld [vmem:[%s247 + $0x174] sm:$0xf]
      %v367 = vld [vmem:[%s247 + $0x178] sm:$0xf]
      %v368 = vld [vmem:[%s247 + $0x17c] sm:$0xf]
      %v369 = vld [vmem:[%s247 + $0x180] sm:$0xf]
      %v370 = vld [vmem:[%s247 + $0x184] sm:$0xf]
      %v371 = vld [vmem:[%s247 + $0x188] sm:$0xf]
      %v372 = vld [vmem:[%s247 + $0x18c] sm:$0xf]
      %v373 = vld [vmem:[%s247 + $0x190] sm:$0xf]
      %v374 = vld [vmem:[%s247 + $0x194] sm:$0xf]
      %v375 = vld [vmem:[%s247 + $0x198] sm:$0xf]
      %v376 = vld [vmem:[%s247 + $0x19c] sm:$0xf]
      %v377 = vld [vmem:[%s247 + $0x1a0] sm:$0xf]
      %v378 = vld [vmem:[%s247 + $0x1a4] sm:$0xf]
      %v379 = vld [vmem:[%s247 + $0x1a8] sm:$0xf]
      %v380 = vld [vmem:[%s247 + $0x1ac] sm:$0xf]
      %v381 = vld [vmem:[%s247 + $0x1b0] sm:$0xf]
      %v382 = vld [vmem:[%s247 + $0x1b4] sm:$0xf]
      %v383 = vld [vmem:[%s247 + $0x1b8] sm:$0xf]
      %v384 = vld [vmem:[%s247 + $0x1bc] sm:$0xf]
      %v385 = vld [vmem:[%s247 + $0x1c0] sm:$0xf]
      %v386 = vld [vmem:[%s247 + $0x1c4] sm:$0xf]
      %v387 = vld [vmem:[%s247 + $0x1c8] sm:$0xf]
      %v388 = vld [vmem:[%s247 + $0x1cc] sm:$0xf]
      %v389 = vld [vmem:[%s247 + $0x1d0] sm:$0xf]
      %v390 = vld [vmem:[%s247 + $0x1d4] sm:$0xf]
      %v391 = vld [vmem:[%s247 + $0x1d8] sm:$0xf]
      %v392 = vld [vmem:[%s247 + $0x1dc] sm:$0xf]
      %v393 = vld [vmem:[%s247 + $0x1e0] sm:$0xf]
      %v394 = vld [vmem:[%s247 + $0x1e4] sm:$0xf]
      %v395 = vld [vmem:[%s247 + $0x1e8] sm:$0xf]
      %v396 = vld [vmem:[%s247 + $0x1ec] sm:$0xf]
      %v397 = vld [vmem:[%s247 + $0x1f0] sm:$0xf]
      %v398 = vld [vmem:[%s247 + $0x1f4] sm:$0xf]
      %v399 = vld [vmem:[%s247 + $0x1f8] sm:$0xf]
      %v400 = vld [vmem:[%s247 + $0x1fc] sm:$0xf]
      %v401 = vld [vmem:[%s247 + $0x200] sm:$0xf]
      %v402 = vld [vmem:[%s247 + $0x204] sm:$0xf]
      %v403 = vld [vmem:[%s247 + $0x208] sm:$0xf]
      %v404 = vld [vmem:[%s247 + $0x20c] sm:$0xf]
      %v405 = vld [vmem:[%s247 + $0x210] sm:$0xf]
      %v406 = vld [vmem:[%s247 + $0x214] sm:$0xf]
      %v407 = vld [vmem:[%s247 + $0x218] sm:$0xf]
      %v408 = vld [vmem:[%s247 + $0x21c] sm:$0xf]
      %v409 = vld [vmem:[%s247 + $0x220] sm:$0xf]
      %v410 = vld [vmem:[%s247 + $0x224] sm:$0xf]
      %v411 = vld [vmem:[%s247 + $0x228] sm:$0xf]
      %v412 = vld [vmem:[%s247 + $0x22c] sm:$0xf]
      %v413 = vld [vmem:[%s247 + $0x230] sm:$0xf]
      %v414 = vld [vmem:[%s247 + $0x234] sm:$0xf]
      %v415 = vld [vmem:[%s247 + $0x238] sm:$0xf]
      %v416 = vld [vmem:[%s247 + $0x23c] sm:$0xf]
      %v417 = vld [vmem:[%s247 + $0x240] sm:$0xf]
      %v418 = vld [vmem:[%s247 + $0x244] sm:$0xf]
      %v419 = vld [vmem:[%s247 + $0x248] sm:$0xf]
      %v420 = vld [vmem:[%s247 + $0x24c] sm:$0xf]
      %v421 = vld [vmem:[%s247 + $0x250] sm:$0xf]
      %v422 = vld [vmem:[%s247 + $0x254] sm:$0xf]
      %v423 = vld [vmem:[%s247 + $0x258] sm:$0xf]
      %v424 = vld [vmem:[%s247 + $0x25c] sm:$0xf]
      %v425 = vld [vmem:[%s247 + $0x260] sm:$0xf]
      %v426 = vld [vmem:[%s247 + $0x264] sm:$0xf]
      %v427 = vld [vmem:[%s247 + $0x268] sm:$0xf]
      %v428 = vld [vmem:[%s247 + $0x26c] sm:$0xf]
      %v429 = vld [vmem:[%s247 + $0x270] sm:$0xf]
      %v430 = vld [vmem:[%s247 + $0x274] sm:$0xf]
      %v431 = vld [vmem:[%s247 + $0x278] sm:$0xf]
      %v432 = vld [vmem:[%s247 + $0x27c] sm:$0xf]
      %v433 = vld [vmem:[%s247 + $0x280] sm:$0xf]
      %v434 = vld [vmem:[%s247 + $0x284] sm:$0xf]
      %v435 = vld [vmem:[%s247 + $0x288] sm:$0xf]
      %v436 = vld [vmem:[%s247 + $0x28c] sm:$0xf]
      %v437 = vld [vmem:[%s247 + $0x290] sm:$0xf]
      %v438 = vld [vmem:[%s247 + $0x294] sm:$0xf]
      %v439 = vld [vmem:[%s247 + $0x298] sm:$0xf]
      %v440 = vld [vmem:[%s247 + $0x29c] sm:$0xf]
      %v441 = vld [vmem:[%s247 + $0x2a0] sm:$0xf]
      %v442 = vld [vmem:[%s247 + $0x2a4] sm:$0xf]
      %v443 = vld [vmem:[%s247 + $0x2a8] sm:$0xf]
      %v444 = vld [vmem:[%s247 + $0x2ac] sm:$0xf]
      %v445 = vld [vmem:[%s247 + $0x2b0] sm:$0xf]
      %v446 = vld [vmem:[%s247 + $0x2b4] sm:$0xf]
      %v447 = vld [vmem:[%s247 + $0x2b8] sm:$0xf]
      %v448 = vld [vmem:[%s247 + $0x2bc] sm:$0xf]
      %v449 = vld [vmem:[%s247 + $0x2c0] sm:$0xf]
      %v450 = vld [vmem:[%s247 + $0x2c4] sm:$0xf]
      %v451 = vld [vmem:[%s247 + $0x2c8] sm:$0xf]
      %v452 = vld [vmem:[%s247 + $0x2cc] sm:$0xf]
      %v453 = vld [vmem:[%s247 + $0x2d0] sm:$0xf]
      %v454 = vld [vmem:[%s247 + $0x2d4] sm:$0xf]
      %v455 = vld [vmem:[%s247 + $0x2d8] sm:$0xf]
      %v456 = vld [vmem:[%s247 + $0x2dc] sm:$0xf]
      %v457 = vld [vmem:[%s247 + $0x2e0] sm:$0xf]
      %v458 = vld [vmem:[%s247 + $0x2e4] sm:$0xf]
      %v459 = vld [vmem:[%s247 + $0x2e8] sm:$0xf]
      %v460 = vld [vmem:[%s247 + $0x2ec] sm:$0xf]
      %v461 = vld [vmem:[%s247 + $0x2f0] sm:$0xf]
      %v462 = vld [vmem:[%s247 + $0x2f4] sm:$0xf]
      %v463 = vld [vmem:[%s247 + $0x2f8] sm:$0xf]
      %v464 = vld [vmem:[%s247 + $0x2fc] sm:$0xf]
      %v465 = vld [vmem:[%s247 + $0x300] sm:$0xf]
      %v466 = vld [vmem:[%s247 + $0x304] sm:$0xf]
      %v467 = vld [vmem:[%s247 + $0x308] sm:$0xf]
      %v468 = vld [vmem:[%s247 + $0x30c] sm:$0xf]
      %v469 = vld [vmem:[%s247 + $0x310] sm:$0xf]
      %v470 = vld [vmem:[%s247 + $0x314] sm:$0xf]
      %v471 = vld [vmem:[%s247 + $0x318] sm:$0xf]
      %v472 = vld [vmem:[%s247 + $0x31c] sm:$0xf]
      %v473 = vld [vmem:[%s247 + $0x320] sm:$0xf]
      %v474 = vld [vmem:[%s247 + $0x324] sm:$0xf]
      %v475 = vld [vmem:[%s247 + $0x328] sm:$0xf]
      %v476 = vld [vmem:[%s247 + $0x32c] sm:$0xf]
      %v477 = vld [vmem:[%s247 + $0x330] sm:$0xf]
      %v478 = vld [vmem:[%s247 + $0x334] sm:$0xf]
      %v479 = vld [vmem:[%s247 + $0x338] sm:$0xf]
      %v480 = vld [vmem:[%s247 + $0x33c] sm:$0xf]
      %v481 = vld [vmem:[%s247 + $0x340] sm:$0xf]
      %v482 = vld [vmem:[%s247 + $0x344] sm:$0xf]
      %v483 = vld [vmem:[%s247 + $0x348] sm:$0xf]
      %v484 = vld [vmem:[%s247 + $0x34c] sm:$0xf]
      %v485 = vld [vmem:[%s247 + $0x350] sm:$0xf]
      %v486 = vld [vmem:[%s247 + $0x354] sm:$0xf]
      %v487 = vld [vmem:[%s247 + $0x358] sm:$0xf]
      %v488 = vld [vmem:[%s247 + $0x35c] sm:$0xf]
      %v489 = vld [vmem:[%s247 + $0x360] sm:$0xf]
      %v490 = vld [vmem:[%s247 + $0x364] sm:$0xf]
      %v491 = vld [vmem:[%s247 + $0x368] sm:$0xf]
      %v492 = vld [vmem:[%s247 + $0x36c] sm:$0xf]
      %v493 = vld [vmem:[%s247 + $0x370] sm:$0xf]
      %v494 = vld [vmem:[%s247 + $0x374] sm:$0xf]
      %v495 = vld [vmem:[%s247 + $0x378] sm:$0xf]
      %v496 = vld [vmem:[%s247 + $0x37c] sm:$0xf]
      %v497 = vld [vmem:[%s247 + $0x380] sm:$0xf]
      %v498 = vld [vmem:[%s247 + $0x384] sm:$0xf]
      %v499 = vld [vmem:[%s247 + $0x388] sm:$0xf]
      %v500 = vld [vmem:[%s247 + $0x38c] sm:$0xf]
      %v501 = vld [vmem:[%s247 + $0x390] sm:$0xf]
      %v502 = vld [vmem:[%s247 + $0x394] sm:$0xf]
      %v503 = vld [vmem:[%s247 + $0x398] sm:$0xf]
      %v504 = vld [vmem:[%s247 + $0x39c] sm:$0xf]
      %v505 = vld [vmem:[%s247 + $0x3a0] sm:$0xf]
      %v506 = vld [vmem:[%s247 + $0x3a4] sm:$0xf]
      %v507 = vld [vmem:[%s247 + $0x3a8] sm:$0xf]
      %v508 = vld [vmem:[%s247 + $0x3ac] sm:$0xf]
      %v509 = vld [vmem:[%s247 + $0x3b0] sm:$0xf]
      %v510 = vld [vmem:[%s247 + $0x3b4] sm:$0xf]
      %v511 = vld [vmem:[%s247 + $0x3b8] sm:$0xf]
      %v512 = vld [vmem:[%s247 + $0x3bc] sm:$0xf]
      %v513 = vld [vmem:[%s247 + $0x3c0] sm:$0xf]
      %v514 = vld [vmem:[%s247 + $0x3c4] sm:$0xf]
      %v515 = vld [vmem:[%s247 + $0x3c8] sm:$0xf]
      %v516 = vld [vmem:[%s247 + $0x3cc] sm:$0xf]
      %v517 = vld [vmem:[%s247 + $0x3d0] sm:$0xf]
      %v518 = vld [vmem:[%s247 + $0x3d4] sm:$0xf]
      %v519 = vld [vmem:[%s247 + $0x3d8] sm:$0xf]
      %v520 = vld [vmem:[%s247 + $0x3dc] sm:$0xf]
      %v521 = vld [vmem:[%s247 + $0x3e0] sm:$0xf]
      %v522 = vld [vmem:[%s247 + $0x3e4] sm:$0xf]
      %v523 = vld [vmem:[%s247 + $0x3e8] sm:$0xf]
      %v524 = vld [vmem:[%s247 + $0x3ec] sm:$0xf]
      %v525 = vld [vmem:[%s247 + $0x3f0] sm:$0xf]
      %v526 = vld [vmem:[%s247 + $0x3f4] sm:$0xf]
      %v527 = vld [vmem:[%s247 + $0x3f8] sm:$0xf]
      %v528 = vld [vmem:[%s247 + $0x3fc] sm:$0xf]
      %v537 = vunpack.c.l.b16 %v265
      %v538 = vunpack.c.h.b16 %v265
      %v539 = vunpack.c.l.b16 %v266
      %v540 = vunpack.c.h.b16 %v266
      %v541 = vunpack.c.l.b16 %v267
      %v542 = vunpack.c.h.b16 %v267
      %v543 = vunpack.c.l.b16 %v268
      %v544 = vunpack.c.h.b16 %v268
      %v545 = vunpack.c.l.b16 %v269
      %v546 = vunpack.c.h.b16 %v269
      %v547 = vunpack.c.l.b16 %v270
      %v548 = vunpack.c.h.b16 %v270
      %v549 = vunpack.c.l.b16 %v271
      %v550 = vunpack.c.h.b16 %v271
      %v551 = vunpack.c.l.b16 %v272
      %v552 = vunpack.c.h.b16 %v272
      %v553 = vpack.c.b16 %v537, %v537
      %v554 = vpack.c.b16 %v538, %v538
      %v555 = vpack.c.b16 %v539, %v539
      %v556 = vpack.c.b16 %v540, %v540
      %v557 = vpack.c.b16 %v541, %v541
      %v558 = vpack.c.b16 %v542, %v542
      %v559 = vpack.c.b16 %v543, %v543
      %v560 = vpack.c.b16 %v544, %v544
      %v561 = vpack.c.b16 %v545, %v545
      %v562 = vpack.c.b16 %v546, %v546
      %v563 = vpack.c.b16 %v547, %v547
      %v564 = vpack.c.b16 %v548, %v548
      %v565 = vpack.c.b16 %v549, %v549
      %v566 = vpack.c.b16 %v550, %v550
      %v567 = vpack.c.b16 %v551, %v551
      %v568 = vpack.c.b16 %v552, %v552
      %v841 = vunpack.c.l.b16 %v273
      %v842 = vunpack.c.l.b16 %v274
      %v843 = vunpack.c.l.b16 %v275
      %v844 = vunpack.c.l.b16 %v276
      %v845 = vunpack.c.l.b16 %v277
      %v846 = vunpack.c.l.b16 %v278
      %v847 = vunpack.c.l.b16 %v279
      %v848 = vunpack.c.l.b16 %v280
      %v849 = vunpack.c.l.b16 %v281
      %v850 = vunpack.c.l.b16 %v282
      %v851 = vunpack.c.l.b16 %v283
      %v852 = vunpack.c.l.b16 %v284
      %v853 = vunpack.c.l.b16 %v285
      %v854 = vunpack.c.l.b16 %v286
      %v855 = vunpack.c.l.b16 %v287
      %v856 = vunpack.c.l.b16 %v288
      %v857 = vunpack.c.l.b16 %v289
      %v858 = vunpack.c.l.b16 %v290
      %v859 = vunpack.c.l.b16 %v291
      %v860 = vunpack.c.l.b16 %v292
      %v861 = vunpack.c.l.b16 %v293
      %v862 = vunpack.c.l.b16 %v294
      %v863 = vunpack.c.l.b16 %v295
      %v864 = vunpack.c.l.b16 %v296
      %v865 = vunpack.c.l.b16 %v297
      %v866 = vunpack.c.l.b16 %v298
      %v867 = vunpack.c.l.b16 %v299
      %v868 = vunpack.c.l.b16 %v300
      %v869 = vunpack.c.l.b16 %v301
      %v870 = vunpack.c.l.b16 %v302
      %v871 = vunpack.c.l.b16 %v303
      %v872 = vunpack.c.l.b16 %v304
      %v873 = vunpack.c.l.b16 %v305
      %v874 = vunpack.c.l.b16 %v306
      %v875 = vunpack.c.l.b16 %v307
      %v876 = vunpack.c.l.b16 %v308
      %v877 = vunpack.c.l.b16 %v309
      %v878 = vunpack.c.l.b16 %v310
      %v879 = vunpack.c.l.b16 %v311
      %v880 = vunpack.c.l.b16 %v312
      %v881 = vunpack.c.l.b16 %v313
      %v882 = vunpack.c.l.b16 %v314
      %v883 = vunpack.c.l.b16 %v315
      %v884 = vunpack.c.l.b16 %v316
      %v885 = vunpack.c.l.b16 %v317
      %v886 = vunpack.c.l.b16 %v318
      %v887 = vunpack.c.l.b16 %v319
      %v888 = vunpack.c.l.b16 %v320
      %v889 = vunpack.c.l.b16 %v321
      %v890 = vunpack.c.l.b16 %v322
      %v891 = vunpack.c.l.b16 %v323
      %v892 = vunpack.c.l.b16 %v324
      %v893 = vunpack.c.l.b16 %v325
      %v894 = vunpack.c.l.b16 %v326
      %v895 = vunpack.c.l.b16 %v327
      %v896 = vunpack.c.l.b16 %v328
      %v897 = vunpack.c.l.b16 %v329
      %v898 = vunpack.c.l.b16 %v330
      %v899 = vunpack.c.l.b16 %v331
      %v900 = vunpack.c.l.b16 %v332
      %v901 = vunpack.c.l.b16 %v333
      %v902 = vunpack.c.l.b16 %v334
      %v903 = vunpack.c.l.b16 %v335
      %v904 = vunpack.c.l.b16 %v336
      %v905 = vunpack.c.l.b16 %v337
      %v906 = vunpack.c.l.b16 %v338
      %v907 = vunpack.c.l.b16 %v339
      %v908 = vunpack.c.l.b16 %v340
      %v909 = vunpack.c.l.b16 %v341
      %v910 = vunpack.c.l.b16 %v342
      %v911 = vunpack.c.l.b16 %v343
      %v912 = vunpack.c.l.b16 %v344
      %v913 = vunpack.c.l.b16 %v345
      %v914 = vunpack.c.l.b16 %v346
      %v915 = vunpack.c.l.b16 %v347
      %v916 = vunpack.c.l.b16 %v348
      %v917 = vunpack.c.l.b16 %v349
      %v918 = vunpack.c.l.b16 %v350
      %v919 = vunpack.c.l.b16 %v351
      %v920 = vunpack.c.l.b16 %v352
      %v921 = vunpack.c.l.b16 %v353
      %v922 = vunpack.c.l.b16 %v354
      %v923 = vunpack.c.l.b16 %v355
      %v924 = vunpack.c.l.b16 %v356
      %v925 = vunpack.c.l.b16 %v357
      %v926 = vunpack.c.l.b16 %v358
      %v927 = vunpack.c.l.b16 %v359
      %v928 = vunpack.c.l.b16 %v360
      %v929 = vunpack.c.l.b16 %v361
      %v930 = vunpack.c.l.b16 %v362
      %v931 = vunpack.c.l.b16 %v363
      %v932 = vunpack.c.l.b16 %v364
      %v933 = vunpack.c.l.b16 %v365
      %v934 = vunpack.c.l.b16 %v366
      %v935 = vunpack.c.l.b16 %v367
      %v936 = vunpack.c.l.b16 %v368
      %v937 = vunpack.c.l.b16 %v369
      %v938 = vunpack.c.l.b16 %v370
      %v939 = vunpack.c.l.b16 %v371
      %v940 = vunpack.c.l.b16 %v372
      %v941 = vunpack.c.l.b16 %v373
      %v942 = vunpack.c.l.b16 %v374
      %v943 = vunpack.c.l.b16 %v375
      %v944 = vunpack.c.l.b16 %v376
      %v945 = vunpack.c.l.b16 %v377
      %v946 = vunpack.c.l.b16 %v378
      %v947 = vunpack.c.l.b16 %v379
      %v948 = vunpack.c.l.b16 %v380
      %v949 = vunpack.c.l.b16 %v381
      %v950 = vunpack.c.l.b16 %v382
      %v951 = vunpack.c.l.b16 %v383
      %v952 = vunpack.c.l.b16 %v384
      %v953 = vunpack.c.l.b16 %v385
      %v954 = vunpack.c.l.b16 %v386
      %v955 = vunpack.c.l.b16 %v387
      %v956 = vunpack.c.l.b16 %v388
      %v957 = vunpack.c.l.b16 %v389
      %v958 = vunpack.c.l.b16 %v390
      %v959 = vunpack.c.l.b16 %v391
      %v960 = vunpack.c.l.b16 %v392
      %v961 = vunpack.c.l.b16 %v393
      %v962 = vunpack.c.l.b16 %v394
      %v963 = vunpack.c.l.b16 %v395
      %v964 = vunpack.c.l.b16 %v396
      %v965 = vunpack.c.l.b16 %v397
      %v966 = vunpack.c.l.b16 %v398
      %v967 = vunpack.c.l.b16 %v399
      %v968 = vunpack.c.l.b16 %v400
      %v969 = vunpack.c.l.b16 %v401
      %v970 = vunpack.c.l.b16 %v402
      %v971 = vunpack.c.l.b16 %v403
      %v972 = vunpack.c.l.b16 %v404
      %v973 = vunpack.c.l.b16 %v405
      %v974 = vunpack.c.l.b16 %v406
      %v975 = vunpack.c.l.b16 %v407
      %v976 = vunpack.c.l.b16 %v408
      %v977 = vunpack.c.l.b16 %v409
      %v978 = vunpack.c.l.b16 %v410
      %v979 = vunpack.c.l.b16 %v411
      %v980 = vunpack.c.l.b16 %v412
      %v981 = vunpack.c.l.b16 %v413
      %v982 = vunpack.c.l.b16 %v414
      %v983 = vunpack.c.l.b16 %v415
      %v984 = vunpack.c.l.b16 %v416
      %v985 = vunpack.c.l.b16 %v417
      %v986 = vunpack.c.l.b16 %v418
      %v987 = vunpack.c.l.b16 %v419
      %v988 = vunpack.c.l.b16 %v420
      %v989 = vunpack.c.l.b16 %v421
      %v990 = vunpack.c.l.b16 %v422
      %v991 = vunpack.c.l.b16 %v423
      %v992 = vunpack.c.l.b16 %v424
      %v993 = vunpack.c.l.b16 %v425
      %v994 = vunpack.c.l.b16 %v426
      %v995 = vunpack.c.l.b16 %v427
      %v996 = vunpack.c.l.b16 %v428
      %v997 = vunpack.c.l.b16 %v429
      %v998 = vunpack.c.l.b16 %v430
      %v999 = vunpack.c.l.b16 %v431
      %v1000 = vunpack.c.l.b16 %v432
      %v1001 = vunpack.c.l.b16 %v433
      %v1002 = vunpack.c.l.b16 %v434
      %v1003 = vunpack.c.l.b16 %v435
      %v1004 = vunpack.c.l.b16 %v436
      %v1005 = vunpack.c.l.b16 %v437
      %v1006 = vunpack.c.l.b16 %v438
      %v1007 = vunpack.c.l.b16 %v439
      %v1008 = vunpack.c.l.b16 %v440
      %v1009 = vunpack.c.l.b16 %v441
      %v1010 = vunpack.c.l.b16 %v442
      %v1011 = vunpack.c.l.b16 %v443
      %v1012 = vunpack.c.l.b16 %v444
      %v1013 = vunpack.c.l.b16 %v445
      %v1014 = vunpack.c.l.b16 %v446
      %v1015 = vunpack.c.l.b16 %v447
      %v1016 = vunpack.c.l.b16 %v448
      %v1017 = vunpack.c.l.b16 %v449
      %v1018 = vunpack.c.l.b16 %v450
      %v1019 = vunpack.c.l.b16 %v451
      %v1020 = vunpack.c.l.b16 %v452
      %v1021 = vunpack.c.l.b16 %v453
      %v1022 = vunpack.c.l.b16 %v454
      %v1023 = vunpack.c.l.b16 %v455
      %v1024 = vunpack.c.l.b16 %v456
      %v1025 = vunpack.c.l.b16 %v457
      %v1026 = vunpack.c.l.b16 %v458
      %v1027 = vunpack.c.l.b16 %v459
      %v1028 = vunpack.c.l.b16 %v460
      %v1029 = vunpack.c.l.b16 %v461
      %v1030 = vunpack.c.l.b16 %v462
      %v1031 = vunpack.c.l.b16 %v463
      %v1032 = vunpack.c.l.b16 %v464
      %v1033 = vunpack.c.l.b16 %v465
      %v1034 = vunpack.c.l.b16 %v466
      %v1035 = vunpack.c.l.b16 %v467
      %v1036 = vunpack.c.l.b16 %v468
      %v1037 = vunpack.c.l.b16 %v469
      %v1038 = vunpack.c.l.b16 %v470
      %v1039 = vunpack.c.l.b16 %v471
      %v1040 = vunpack.c.l.b16 %v472
      %v1041 = vunpack.c.l.b16 %v473
      %v1042 = vunpack.c.l.b16 %v474
      %v1043 = vunpack.c.l.b16 %v475
      %v1044 = vunpack.c.l.b16 %v476
      %v1045 = vunpack.c.l.b16 %v477
      %v1046 = vunpack.c.l.b16 %v478
      %v1047 = vunpack.c.l.b16 %v479
      %v1048 = vunpack.c.l.b16 %v480
      %v1049 = vunpack.c.l.b16 %v481
      %v1050 = vunpack.c.l.b16 %v482
      %v1051 = vunpack.c.l.b16 %v483
      %v1052 = vunpack.c.l.b16 %v484
      %v1053 = vunpack.c.l.b16 %v485
      %v1054 = vunpack.c.l.b16 %v486
      %v1055 = vunpack.c.l.b16 %v487
      %v1056 = vunpack.c.l.b16 %v488
      %v1057 = vunpack.c.l.b16 %v489
      %v1058 = vunpack.c.l.b16 %v490
      %v1059 = vunpack.c.l.b16 %v491
      %v1060 = vunpack.c.l.b16 %v492
      %v1061 = vunpack.c.l.b16 %v493
      %v1062 = vunpack.c.l.b16 %v494
      %v1063 = vunpack.c.l.b16 %v495
      %v1064 = vunpack.c.l.b16 %v496
      %v1065 = vunpack.c.l.b16 %v497
      %v1066 = vunpack.c.l.b16 %v498
      %v1067 = vunpack.c.l.b16 %v499
      %v1068 = vunpack.c.l.b16 %v500
      %v1069 = vunpack.c.l.b16 %v501
      %v1070 = vunpack.c.l.b16 %v502
      %v1071 = vunpack.c.l.b16 %v503
      %v1072 = vunpack.c.l.b16 %v504
      %v1073 = vunpack.c.l.b16 %v505
      %v1074 = vunpack.c.l.b16 %v506
      %v1075 = vunpack.c.l.b16 %v507
      %v1076 = vunpack.c.l.b16 %v508
      %v1077 = vunpack.c.l.b16 %v509
      %v1078 = vunpack.c.l.b16 %v510
      %v1079 = vunpack.c.l.b16 %v511
      %v1080 = vunpack.c.l.b16 %v512
      %v1081 = vunpack.c.l.b16 %v513
      %v1082 = vunpack.c.l.b16 %v514
      %v1083 = vunpack.c.l.b16 %v515
      %v1084 = vunpack.c.l.b16 %v516
      %v1085 = vunpack.c.l.b16 %v517
      %v1086 = vunpack.c.l.b16 %v518
      %v1087 = vunpack.c.l.b16 %v519
      %v1088 = vunpack.c.l.b16 %v520
      %v1089 = vunpack.c.l.b16 %v521
      %v1090 = vunpack.c.l.b16 %v522
      %v1091 = vunpack.c.l.b16 %v523
      %v1092 = vunpack.c.l.b16 %v524
      %v1093 = vunpack.c.l.b16 %v525
      %v1094 = vunpack.c.l.b16 %v526
      %v1095 = vunpack.c.l.b16 %v527
      %v1096 = vunpack.c.l.b16 %v528
      %v1097 = vpack.c.b16 %v842, %v841
      %v1098 = vpack.c.b16 %v844, %v843
      %v1099 = vpack.c.b16 %v846, %v845
      %v1100 = vpack.c.b16 %v848, %v847
      %v1101 = vpack.c.b16 %v850, %v849
      %v1102 = vpack.c.b16 %v852, %v851
      %v1103 = vpack.c.b16 %v854, %v853
      %v1104 = vpack.c.b16 %v856, %v855
      %v1105 = vpack.c.b16 %v858, %v857
      %v1106 = vpack.c.b16 %v860, %v859
      %v1107 = vpack.c.b16 %v862, %v861
      %v1108 = vpack.c.b16 %v864, %v863
      %v1109 = vpack.c.b16 %v866, %v865
      %v1110 = vpack.c.b16 %v868, %v867
      %v1111 = vpack.c.b16 %v870, %v869
      %v1112 = vpack.c.b16 %v872, %v871
      %v1113 = vpack.c.b16 %v874, %v873
      %v1114 = vpack.c.b16 %v876, %v875
      %v1115 = vpack.c.b16 %v878, %v877
      %v1116 = vpack.c.b16 %v880, %v879
      %v1117 = vpack.c.b16 %v882, %v881
      %v1118 = vpack.c.b16 %v884, %v883
      %v1119 = vpack.c.b16 %v886, %v885
      %v1120 = vpack.c.b16 %v888, %v887
      %v1121 = vpack.c.b16 %v890, %v889
      %v1122 = vpack.c.b16 %v892, %v891
      %v1123 = vpack.c.b16 %v894, %v893
      %v1124 = vpack.c.b16 %v896, %v895
      %v1125 = vpack.c.b16 %v898, %v897
      %v1126 = vpack.c.b16 %v900, %v899
      %v1127 = vpack.c.b16 %v902, %v901
      %v1128 = vpack.c.b16 %v904, %v903
      %v1129 = vpack.c.b16 %v906, %v905
      %v1130 = vpack.c.b16 %v908, %v907
      %v1131 = vpack.c.b16 %v910, %v909
      %v1132 = vpack.c.b16 %v912, %v911
      %v1133 = vpack.c.b16 %v914, %v913
      %v1134 = vpack.c.b16 %v916, %v915
      %v1135 = vpack.c.b16 %v918, %v917
      %v1136 = vpack.c.b16 %v920, %v919
      %v1137 = vpack.c.b16 %v922, %v921
      %v1138 = vpack.c.b16 %v924, %v923
      %v1139 = vpack.c.b16 %v926, %v925
      %v1140 = vpack.c.b16 %v928, %v927
      %v1141 = vpack.c.b16 %v930, %v929
      %v1142 = vpack.c.b16 %v932, %v931
      %v1143 = vpack.c.b16 %v934, %v933
      %v1144 = vpack.c.b16 %v936, %v935
      %v1145 = vpack.c.b16 %v938, %v937
      %v1146 = vpack.c.b16 %v940, %v939
      %v1147 = vpack.c.b16 %v942, %v941
      %v1148 = vpack.c.b16 %v944, %v943
      %v1149 = vpack.c.b16 %v946, %v945
      %v1150 = vpack.c.b16 %v948, %v947
      %v1151 = vpack.c.b16 %v950, %v949
      %v1152 = vpack.c.b16 %v952, %v951
      %v1153 = vpack.c.b16 %v954, %v953
      %v1154 = vpack.c.b16 %v956, %v955
      %v1155 = vpack.c.b16 %v958, %v957
      %v1156 = vpack.c.b16 %v960, %v959
      %v1157 = vpack.c.b16 %v962, %v961
      %v1158 = vpack.c.b16 %v964, %v963
      %v1159 = vpack.c.b16 %v966, %v965
      %v1160 = vpack.c.b16 %v968, %v967
      %v1161 = vpack.c.b16 %v970, %v969
      %v1162 = vpack.c.b16 %v972, %v971
      %v1163 = vpack.c.b16 %v974, %v973
      %v1164 = vpack.c.b16 %v976, %v975
      %v1165 = vpack.c.b16 %v978, %v977
      %v1166 = vpack.c.b16 %v980, %v979
      %v1167 = vpack.c.b16 %v982, %v981
      %v1168 = vpack.c.b16 %v984, %v983
      %v1169 = vpack.c.b16 %v986, %v985
      %v1170 = vpack.c.b16 %v988, %v987
      %v1171 = vpack.c.b16 %v990, %v989
      %v1172 = vpack.c.b16 %v992, %v991
      %v1173 = vpack.c.b16 %v994, %v993
      %v1174 = vpack.c.b16 %v996, %v995
      %v1175 = vpack.c.b16 %v998, %v997
      %v1176 = vpack.c.b16 %v1000, %v999
      %v1177 = vpack.c.b16 %v1002, %v1001
      %v1178 = vpack.c.b16 %v1004, %v1003
      %v1179 = vpack.c.b16 %v1006, %v1005
      %v1180 = vpack.c.b16 %v1008, %v1007
      %v1181 = vpack.c.b16 %v1010, %v1009
      %v1182 = vpack.c.b16 %v1012, %v1011
      %v1183 = vpack.c.b16 %v1014, %v1013
      %v1184 = vpack.c.b16 %v1016, %v1015
      %v1185 = vpack.c.b16 %v1018, %v1017
      %v1186 = vpack.c.b16 %v1020, %v1019
      %v1187 = vpack.c.b16 %v1022, %v1021
      %v1188 = vpack.c.b16 %v1024, %v1023
      %v1189 = vpack.c.b16 %v1026, %v1025
      %v1190 = vpack.c.b16 %v1028, %v1027
      %v1191 = vpack.c.b16 %v1030, %v1029
      %v1192 = vpack.c.b16 %v1032, %v1031
      %v1193 = vpack.c.b16 %v1034, %v1033
      %v1194 = vpack.c.b16 %v1036, %v1035
      %v1195 = vpack.c.b16 %v1038, %v1037
      %v1196 = vpack.c.b16 %v1040, %v1039
      %v1197 = vpack.c.b16 %v1042, %v1041
      %v1198 = vpack.c.b16 %v1044, %v1043
      %v1199 = vpack.c.b16 %v1046, %v1045
      %v1200 = vpack.c.b16 %v1048, %v1047
      %v1201 = vpack.c.b16 %v1050, %v1049
      %v1202 = vpack.c.b16 %v1052, %v1051
      %v1203 = vpack.c.b16 %v1054, %v1053
      %v1204 = vpack.c.b16 %v1056, %v1055
      %v1205 = vpack.c.b16 %v1058, %v1057
      %v1206 = vpack.c.b16 %v1060, %v1059
      %v1207 = vpack.c.b16 %v1062, %v1061
      %v1208 = vpack.c.b16 %v1064, %v1063
      %v1209 = vpack.c.b16 %v1066, %v1065
      %v1210 = vpack.c.b16 %v1068, %v1067
      %v1211 = vpack.c.b16 %v1070, %v1069
      %v1212 = vpack.c.b16 %v1072, %v1071
      %v1213 = vpack.c.b16 %v1074, %v1073
      %v1214 = vpack.c.b16 %v1076, %v1075
      %v1215 = vpack.c.b16 %v1078, %v1077
      %v1216 = vpack.c.b16 %v1080, %v1079
      %v1217 = vpack.c.b16 %v1082, %v1081
      %v1218 = vpack.c.b16 %v1084, %v1083
      %v1219 = vpack.c.b16 %v1086, %v1085
      %v1220 = vpack.c.b16 %v1088, %v1087
      %v1221 = vpack.c.b16 %v1090, %v1089
      %v1222 = vpack.c.b16 %v1092, %v1091
      %v1223 = vpack.c.b16 %v1094, %v1093
      %v1224 = vpack.c.b16 %v1096, %v1095
      %1353 = vmatpush.bf16.msra.mxu0 %v1104
      %1354 = vmatpush.bf16.msra.mxu0 %v1103
      %1355 = vmatpush.bf16.msra.mxu0 %v1102
      %1356 = vmatpush.bf16.msra.mxu0 %v1101
      %1357 = vmatpush.bf16.msra.mxu0 %v1100
      %1358 = vmatpush.bf16.msra.mxu0 %v1099
      %1359 = vmatpush.bf16.msra.mxu0 %v1098
      %1360 = vmatpush.bf16.msra.mxu0 %v1097
      %1361 = vmatmul.bf16.gmra.mxu0 %v553
      %v1362 = vpop.f32.mrf.mxu0
      %v1363 = vadd.f32 0.0, %v1362
      %v1364 = vpop.f32.mrf.mxu0
      %1365 = vdwg.mxu0
      %1366 = vmatpush.bf16.msra.mxu0 %v1112
      %1367 = vmatpush.bf16.msra.mxu0 %v1111
      %1368 = vmatpush.bf16.msra.mxu0 %v1110
      %1369 = vmatpush.bf16.msra.mxu0 %v1109
      %1370 = vmatpush.bf16.msra.mxu0 %v1108
      %1371 = vmatpush.bf16.msra.mxu0 %v1107
      %1372 = vmatpush.bf16.msra.mxu0 %v1106
      %1373 = vmatpush.bf16.msra.mxu0 %v1105
      %1374 = vmatmul.bf16.gmra.mxu0 %v554
      %v1375 = vpop.f32.mrf.mxu0
      %v1376 = vadd.f32 %v1363, %v1375
      %v1377 = vpop.f32.mrf.mxu0
      %1378 = vdwg.mxu0
      %1379 = vmatpush.bf16.msra.mxu0 %v1120
      %1380 = vmatpush.bf16.msra.mxu0 %v1119
      %1381 = vmatpush.bf16.msra.mxu0 %v1118
      %1382 = vmatpush.bf16.msra.mxu0 %v1117
      %1383 = vmatpush.bf16.msra.mxu0 %v1116
      %1384 = vmatpush.bf16.msra.mxu0 %v1115
      %1385 = vmatpush.bf16.msra.mxu0 %v1114
      %1386 = vmatpush.bf16.msra.mxu0 %v1113
      %1387 = vmatmul.bf16.gmra.mxu0 %v555
      %v1388 = vpop.f32.mrf.mxu0
      %v1389 = vadd.f32 %v1376, %v1388
      %v1390 = vpop.f32.mrf.mxu0
      %1391 = vdwg.mxu0
      %1392 = vmatpush.bf16.msra.mxu0 %v1128
      %1393 = vmatpush.bf16.msra.mxu0 %v1127
      %1394 = vmatpush.bf16.msra.mxu0 %v1126
      %1395 = vmatpush.bf16.msra.mxu0 %v1125
      %1396 = vmatpush.bf16.msra.mxu0 %v1124
      %1397 = vmatpush.bf16.msra.mxu0 %v1123
      %1398 = vmatpush.bf16.msra.mxu0 %v1122
      %1399 = vmatpush.bf16.msra.mxu0 %v1121
      %1400 = vmatmul.bf16.gmra.mxu0 %v556
      %v1401 = vpop.f32.mrf.mxu0
      %v1402 = vadd.f32 %v1389, %v1401
      %v1403 = vpop.f32.mrf.mxu0
      %1404 = vdwg.mxu0
      %1405 = vmatpush.bf16.msra.mxu0 %v1136
      %1406 = vmatpush.bf16.msra.mxu0 %v1135
      %1407 = vmatpush.bf16.msra.mxu0 %v1134
      %1408 = vmatpush.bf16.msra.mxu0 %v1133
      %1409 = vmatpush.bf16.msra.mxu0 %v1132
      %1410 = vmatpush.bf16.msra.mxu0 %v1131
      %1411 = vmatpush.bf16.msra.mxu0 %v1130
      %1412 = vmatpush.bf16.msra.mxu0 %v1129
      %1413 = vmatmul.bf16.gmra.mxu0 %v557
      %v1414 = vpop.f32.mrf.mxu0
      %v1415 = vadd.f32 %v1402, %v1414
      %v1416 = vpop.f32.mrf.mxu0
      %1417 = vdwg.mxu0
      %1418 = vmatpush.bf16.msra.mxu0 %v1144
      %1419 = vmatpush.bf16.msra.mxu0 %v1143
      %1420 = vmatpush.bf16.msra.mxu0 %v1142
      %1421 = vmatpush.bf16.msra.mxu0 %v1141
      %1422 = vmatpush.bf16.msra.mxu0 %v1140
      %1423 = vmatpush.bf16.msra.mxu0 %v1139
      %1424 = vmatpush.bf16.msra.mxu0 %v1138
      %1425 = vmatpush.bf16.msra.mxu0 %v1137
      %1426 = vmatmul.bf16.gmra.mxu0 %v558
      %v1427 = vpop.f32.mrf.mxu0
      %v1428 = vadd.f32 %v1415, %v1427
      %v1429 = vpop.f32.mrf.mxu0
      %1430 = vdwg.mxu0
      %1431 = vmatpush.bf16.msra.mxu0 %v1152
      %1432 = vmatpush.bf16.msra.mxu0 %v1151
      %1433 = vmatpush.bf16.msra.mxu0 %v1150
      %1434 = vmatpush.bf16.msra.mxu0 %v1149
      %1435 = vmatpush.bf16.msra.mxu0 %v1148
      %1436 = vmatpush.bf16.msra.mxu0 %v1147
      %1437 = vmatpush.bf16.msra.mxu0 %v1146
      %1438 = vmatpush.bf16.msra.mxu0 %v1145
      %1439 = vmatmul.bf16.gmra.mxu0 %v559
      %v1440 = vpop.f32.mrf.mxu0
      %v1441 = vadd.f32 %v1428, %v1440
      %v1442 = vpop.f32.mrf.mxu0
      %1443 = vdwg.mxu0
      %1444 = vmatpush.bf16.msra.mxu0 %v1160
      %1445 = vmatpush.bf16.msra.mxu0 %v1159
      %1446 = vmatpush.bf16.msra.mxu0 %v1158
      %1447 = vmatpush.bf16.msra.mxu0 %v1157
      %1448 = vmatpush.bf16.msra.mxu0 %v1156
      %1449 = vmatpush.bf16.msra.mxu0 %v1155
      %1450 = vmatpush.bf16.msra.mxu0 %v1154
      %1451 = vmatpush.bf16.msra.mxu0 %v1153
      %1452 = vmatmul.bf16.gmra.mxu0 %v560
      %v1453 = vpop.f32.mrf.mxu0
      %v1454 = vadd.f32 %v1441, %v1453
      %v1455 = vpop.f32.mrf.mxu0
      %1456 = vdwg.mxu0
      %1457 = vmatpush.bf16.msra.mxu0 %v1168
      %1458 = vmatpush.bf16.msra.mxu0 %v1167
      %1459 = vmatpush.bf16.msra.mxu0 %v1166
      %1460 = vmatpush.bf16.msra.mxu0 %v1165
      %1461 = vmatpush.bf16.msra.mxu0 %v1164
      %1462 = vmatpush.bf16.msra.mxu0 %v1163
      %1463 = vmatpush.bf16.msra.mxu0 %v1162
      %1464 = vmatpush.bf16.msra.mxu0 %v1161
      %1465 = vmatmul.bf16.gmra.mxu0 %v561
      %v1466 = vpop.f32.mrf.mxu0
      %v1467 = vadd.f32 %v1454, %v1466
      %v1468 = vpop.f32.mrf.mxu0
      %1469 = vdwg.mxu0
      %1470 = vmatpush.bf16.msra.mxu0 %v1176
      %1471 = vmatpush.bf16.msra.mxu0 %v1175
      %1472 = vmatpush.bf16.msra.mxu0 %v1174
      %1473 = vmatpush.bf16.msra.mxu0 %v1173
      %1474 = vmatpush.bf16.msra.mxu0 %v1172
      %1475 = vmatpush.bf16.msra.mxu0 %v1171
      %1476 = vmatpush.bf16.msra.mxu0 %v1170
      %1477 = vmatpush.bf16.msra.mxu0 %v1169
      %1478 = vmatmul.bf16.gmra.mxu0 %v562
      %v1479 = vpop.f32.mrf.mxu0
      %v1480 = vadd.f32 %v1467, %v1479
      %v1481 = vpop.f32.mrf.mxu0
      %1482 = vdwg.mxu0
      %1483 = vmatpush.bf16.msra.mxu0 %v1184
      %1484 = vmatpush.bf16.msra.mxu0 %v1183
      %1485 = vmatpush.bf16.msra.mxu0 %v1182
      %1486 = vmatpush.bf16.msra.mxu0 %v1181
      %1487 = vmatpush.bf16.msra.mxu0 %v1180
      %1488 = vmatpush.bf16.msra.mxu0 %v1179
      %1489 = vmatpush.bf16.msra.mxu0 %v1178
      %1490 = vmatpush.bf16.msra.mxu0 %v1177
      %1491 = vmatmul.bf16.gmra.mxu0 %v563
      %v1492 = vpop.f32.mrf.mxu0
      %v1493 = vadd.f32 %v1480, %v1492
      %v1494 = vpop.f32.mrf.mxu0
      %1495 = vdwg.mxu0
      %1496 = vmatpush.bf16.msra.mxu0 %v1192
      %1497 = vmatpush.bf16.msra.mxu0 %v1191
      %1498 = vmatpush.bf16.msra.mxu0 %v1190
      %1499 = vmatpush.bf16.msra.mxu0 %v1189
      %1500 = vmatpush.bf16.msra.mxu0 %v1188
      %1501 = vmatpush.bf16.msra.mxu0 %v1187
      %1502 = vmatpush.bf16.msra.mxu0 %v1186
      %1503 = vmatpush.bf16.msra.mxu0 %v1185
      %1504 = vmatmul.bf16.gmra.mxu0 %v564
      %v1505 = vpop.f32.mrf.mxu0
      %v1506 = vadd.f32 %v1493, %v1505
      %v1507 = vpop.f32.mrf.mxu0
      %1508 = vdwg.mxu0
      %1509 = vmatpush.bf16.msra.mxu0 %v1200
      %1510 = vmatpush.bf16.msra.mxu0 %v1199
      %1511 = vmatpush.bf16.msra.mxu0 %v1198
      %1512 = vmatpush.bf16.msra.mxu0 %v1197
      %1513 = vmatpush.bf16.msra.mxu0 %v1196
      %1514 = vmatpush.bf16.msra.mxu0 %v1195
      %1515 = vmatpush.bf16.msra.mxu0 %v1194
      %1516 = vmatpush.bf16.msra.mxu0 %v1193
      %1517 = vmatmul.bf16.gmra.mxu0 %v565
      %v1518 = vpop.f32.mrf.mxu0
      %v1519 = vadd.f32 %v1506, %v1518
      %v1520 = vpop.f32.mrf.mxu0
      %1521 = vdwg.mxu0
      %1522 = vmatpush.bf16.msra.mxu0 %v1208
      %1523 = vmatpush.bf16.msra.mxu0 %v1207
      %1524 = vmatpush.bf16.msra.mxu0 %v1206
      %1525 = vmatpush.bf16.msra.mxu0 %v1205
      %1526 = vmatpush.bf16.msra.mxu0 %v1204
      %1527 = vmatpush.bf16.msra.mxu0 %v1203
      %1528 = vmatpush.bf16.msra.mxu0 %v1202
      %1529 = vmatpush.bf16.msra.mxu0 %v1201
      %1530 = vmatmul.bf16.gmra.mxu0 %v566
      %v1531 = vpop.f32.mrf.mxu0
      %v1532 = vadd.f32 %v1519, %v1531
      %v1533 = vpop.f32.mrf.mxu0
      %1534 = vdwg.mxu0
      %1535 = vmatpush.bf16.msra.mxu0 %v1216
      %1536 = vmatpush.bf16.msra.mxu0 %v1215
      %1537 = vmatpush.bf16.msra.mxu0 %v1214
      %1538 = vmatpush.bf16.msra.mxu0 %v1213
      %1539 = vmatpush.bf16.msra.mxu0 %v1212
      %1540 = vmatpush.bf16.msra.mxu0 %v1211
      %1541 = vmatpush.bf16.msra.mxu0 %v1210
      %1542 = vmatpush.bf16.msra.mxu0 %v1209
      %1543 = vmatmul.bf16.gmra.mxu0 %v567
      %v1544 = vpop.f32.mrf.mxu0
      %v1545 = vadd.f32 %v1532, %v1544
      %v1546 = vpop.f32.mrf.mxu0
      %1547 = vdwg.mxu0
      %1548 = vmatpush.bf16.msra.mxu0 %v1224
      %1549 = vmatpush.bf16.msra.mxu0 %v1223
      %1550 = vmatpush.bf16.msra.mxu0 %v1222
      %1551 = vmatpush.bf16.msra.mxu0 %v1221
      %1552 = vmatpush.bf16.msra.mxu0 %v1220
      %1553 = vmatpush.bf16.msra.mxu0 %v1219
      %1554 = vmatpush.bf16.msra.mxu0 %v1218
      %1555 = vmatpush.bf16.msra.mxu0 %v1217
      %1556 = vmatmul.bf16.gmra.mxu0 %v568
      %v1557 = vpop.f32.mrf.mxu0
      %v1558 = vadd.f32 %v1545, %v1557
      %v1559 = vpop.f32.mrf.mxu0
      %1560 = vdwg.mxu0
      %v1561 = vadd.f32 %v264, %v1558
      %1562 = vst [vmem:[#allocation2] sm:$0xff] %v1561
      %p1563 = scmp.eq.s32.totalorder %s21, 3
      // Predicated region
      $region37: #{discriminator_forward.9} parent=31 // pred_check
        %p1564 = pneg %p1563
      $region38: #{discriminator_forward.9} parent=31 // pred_check_branch
        %1566 = sbr.rel (%p1564) target = $region40
      $region39: #{discriminator_forward.9} parent=31 // pred_region
        %v1567 = vld [vmem:[#allocation2] sm:$0xff]
        %v1568 = vld [vmem:[%s251] sm:$0x1]
        %v1570 = vperm.slane %v1568, 0
        %v1572 = vadd.f32 %v1567, %v1570
        %1573 = vst [vmem:[%s258] sm:$0xff] %v1572
      $region40: #{discriminator_forward.9} parent=31 // pred_fallthru
        _
      %p1574 = scmp.lt.s32.totalorder %s19, 0
      %s1575 = scalar_select %p1574, %s19, 0
      %p1576 = scmp.lt.s32.totalorder %s20, 0
      %s1577 = scalar_select %p1576, %s20, 0
      %s1578 = sadd.s32 %s1577, %s1575
      %s1579 = smul.addr %s1578, 8
      %s1580 = scalar_lea.vmem %s3, %s1579
      // Predicated region
      $region41: #{discriminator_forward.9} parent=31 // pred_check
        %p1581 = pneg %p135
      $region42: #{discriminator_forward.9} parent=31 // pred_check_branch
        %1583 = sbr.rel (%p1581) target = $region44
      $region43: #{discriminator_forward.9} parent=31 // pred_region
        _
      $region44: #{discriminator_forward.9} parent=31 // pred_fallthru
        _
      // Predicated region
      $region45: #{discriminator_forward.9} parent=31 // pred_check
        %p1584 = pneg %p135
      $region46: #{discriminator_forward.9} parent=31 // pred_check_branch
        %1586 = sbr.rel (%p1584) target = $region48
      $region47: #{discriminator_forward.9} parent=31 // pred_region
        %p1587 = scmp.lt.s32.totalorder %s19, 0
        %s1588 = scalar_select %p1587, %s19, 0
        %p1589 = scmp.lt.s32.totalorder %s20, 0
        %s1590 = scalar_select %p1589, %s20, 0
        %s1591 = sadd.s32 %s1590, %s1588
        %s1592 = smul.addr %s1591, 8
        %s1593 = scalar_lea.vmem %s3, %s1592
      $region48: #{discriminator_forward.9} parent=31 // pred_fallthru
        _
    $region32: #{discriminator_forward.9} parent=5 // pred_fallthru
      _
    %p1594 = scmp.le.s32.totalorder 2, %s9
    // Predicated region
    $region49: #{discriminator_forward.9} parent=5 // pred_check
      %p1595 = pneg %p1594
    $region50: #{discriminator_forward.9} parent=5 // pred_check_branch
      %1597 = sbr.rel (%p1595) target = $region52
    $region51: #{discriminator_forward.9} parent=5 // pred_region
      %s1598 = ssub.s32 %s9, 2
    $region52: #{discriminator_forward.9} parent=5 // pred_fallthru
      _
  $region6: #{discriminator_forward.9} parent=0 // loop_footer
    %s13 = sadd.s32 1, %s9
  $region7: #{discriminator_forward.9} parent=0 // loop_footer_branch
    %8 = sbr.rel target = $region3
  $region8: #{discriminator_forward.9} parent=0 // loop_exit
    _

// kernel: discriminator_forward.8
$region0: #{discriminator_forward.8}
  #allocation0 [shape = 'u32[]', space=smem, size = 0x4, offset = 0x4, fixed_abs, tag = 'smem constant byte address 0x4 - core index']
  #allocation1 [shape = 'u32[72,128]{1,0:T(1,128)}', space=vmem, size = 0x9000, scoped, tag = 'internal scratch']
  #allocation2 [shape = 'f32[24,512]{1,0:T(8,128)}', space=vmem, size = 0xc000, scoped, tag = 'scratch operand']
  %s0 = inlined_call_operand.vmem [shape: bf16[24,4096], index: 0, kind: input, shape index: {}]
  %s1 = inlined_call_operand.vmem [shape: bf16[4096,512], index: 1, kind: input, shape index: {}]
  %s2 = inlined_call_operand.vmem [shape: f32[1,512], index: 2, kind: input, shape index: {}]
  %s3 = inlined_call_operand.vmem [shape: f32[1,512], index: 3, kind: input, shape index: {}]
  %s4 = inlined_call_operand.vmem [shape: bf16[24,512], index: 4, kind: output, shape index: {}]
  %s5 = sld [smem:[#allocation0]]
  $region80: #{discriminator_forward.8} parent=0
    _
  %s7 = ssub.s32 1, %s5
  %s8 = scalar_select 0, %s7, %s5
  $region1: #{discriminator_forward.8} parent=0
    #allocation3 [shape = 'u8[196608]{0}', space=vmem, size = 0x30000, scoped, tag = 'input window, operand 0']
    loop: start=0, step=1, limit=4
    $region2: #{discriminator_forward.8} parent=1 // loop_pre_header
      _
    $region3: #{discriminator_forward.8} parent=1 // loop_header
      %s10 = sphi 0, %s14
      %p11 = scmp.ge.s32.totalorder %s10, 4
      %s17 = sphi 0, %s36
      %s18 = sphi 0, %s32
      %s19 = sphi 0, %s28
      %s20 = sphi 0, %s17
      %s21 = sphi 0, %s18
      %s22 = sphi 0, %s19
      %s23 = sphi 0, %s20
      %s24 = sphi 0, %s21
      %s25 = sphi 0, %s22
      %s41 = sphi 0, %s43
      %s44 = sphi 0, %s41
      %s45 = sphi 0, %s44
      %s61 = sphi 0, %s45
      %s69 = sphi 0, %s71
      %s72 = sphi 0, %s69
      %s73 = sphi 0, %s72
      %s89 = sphi 0, %s73
      %s95 = sphi 0, %s97
      %s98 = sphi 0, %s95
      %s99 = sphi 0, %s98
      %s115 = sphi 0, %s99
      %s121 = sphi 0, %s123
      %s124 = sphi 0, %s121
      %s125 = sphi 0, %s124
      %s141 = sphi 0, %s125
      %s149 = sphi 0, %s151
      %s152 = sphi 0, %s149
      %s153 = sphi 0, %s152
      %s169 = sphi 0, %s153
    $region4: #{discriminator_forward.8} parent=1 // loop_header_branch
      %13 = sbr.rel (%p11) target = $region8
    $region5: #{discriminator_forward.8} parent=1 // loop_body
      %s15 = ssub.s32 %s10, 1
      %s16 = ssub.s32 %s10, 2
      %s26 = sadd.s32 1, %s19
      %p27 = scmp.ge.s32.totalorder %s26, 2
      %s28 = scalar_select %p27, 0, %s26
      %s29 = sadd.s32 1, %s18
      %s30 = scalar_select %p27, %s29, %s18
      %p31 = scmp.ge.s32.totalorder %s30, 1
      %s32 = scalar_select %p31, 0, %s30
      %s33 = sadd.s32 1, %s17
      %s34 = scalar_select %p31, %s33, %s17
      %p35 = scmp.ge.s32.totalorder %s34, 1
      %s36 = scalar_select %p35, 0, %s34
      %s37 = ssub.s32 %s17, %s36
      %s38 = ssub.s32 %s19, %s28
      %s39 = sor.u32 %s37, %s38
      %p40 = scmp.eq.s32.totalorder %s39, 0
      %s42 = sadd.s32 %s41, 1
      %s43 = scalar_select %p40, %s41, %s42
      %p46 = pneg %p40
      %p47 = scmp.eq.s32.totalorder %s10, 1
      %p48 = por %p46, %p47
      %p49 = scmp.ne.s32.totalorder %s41, %s44
      %p50 = scmp.eq.s32.totalorder %s10, 0
      %p51 = por %p49, %p50
      %p52 = scmp.ne.s32.totalorder %s41, %s44
      %p53 = scmp.eq.s32.totalorder %s15, 1
      %p54 = por %p52, %p53
      %p55 = scmp.ne.s32.totalorder %s44, %s45
      %p56 = scmp.eq.s32.totalorder %s15, 0
      %p57 = por %p55, %p56
      %p58 = scmp.ne.s32.totalorder %s44, %s45
      %p59 = scmp.eq.s32.totalorder %s16, 1
      %p60 = por %p58, %p59
      %p62 = scmp.ne.s32.totalorder %s45, %s61
      %p63 = scmp.eq.s32.totalorder %s16, 0
      %p64 = por %p62, %p63
      %s65 = ssub.s32 %s19, %s28
      %s66 = ssub.s32 %s18, %s32
      %s67 = sor.u32 %s65, %s66
      %p68 = scmp.eq.s32.totalorder %s67, 0
      %s70 = sadd.s32 %s69, 1
      %s71 = scalar_select %p68, %s69, %s70
      %p74 = pneg %p68
      %p75 = scmp.eq.s32.totalorder %s10, 1
      %p76 = por %p74, %p75
      %p77 = scmp.ne.s32.totalorder %s69, %s72
      %p78 = scmp.eq.s32.totalorder %s10, 0
      %p79 = por %p77, %p78
      %p80 = scmp.ne.s32.totalorder %s69, %s72
      %p81 = scmp.eq.s32.totalorder %s15, 1
      %p82 = por %p80, %p81
      %p83 = scmp.ne.s32.totalorder %s72, %s73
      %p84 = scmp.eq.s32.totalorder %s15, 0
      %p85 = por %p83, %p84
      %p86 = scmp.ne.s32.totalorder %s72, %s73
      %p87 = scmp.eq.s32.totalorder %s16, 1
      %p88 = por %p86, %p87
      %p90 = scmp.ne.s32.totalorder %s73, %s89
      %p91 = scmp.eq.s32.totalorder %s16, 0
      %p92 = por %p90, %p91
      %s93 = ssub.s32 %s18, %s32
      %p94 = scmp.eq.s32.totalorder %s93, 0
      %s96 = sadd.s32 %s95, 1
      %s97 = scalar_select %p94, %s95, %s96
      %p100 = pneg %p94
      %p101 = scmp.eq.s32.totalorder %s10, 1
      %p102 = por %p100, %p101
      %p103 = scmp.ne.s32.totalorder %s95, %s98
      %p104 = scmp.eq.s32.totalorder %s10, 0
      %p105 = por %p103, %p104
      %p106 = scmp.ne.s32.totalorder %s95, %s98
      %p107 = scmp.eq.s32.totalorder %s15, 1
      %p108 = por %p106, %p107
      %p109 = scmp.ne.s32.totalorder %s98, %s99
      %p110 = scmp.eq.s32.totalorder %s15, 0
      %p111 = por %p109, %p110
      %p112 = scmp.ne.s32.totalorder %s98, %s99
      %p113 = scmp.eq.s32.totalorder %s16, 1
      %p114 = por %p112, %p113
      %p116 = scmp.ne.s32.totalorder %s99, %s115
      %p117 = scmp.eq.s32.totalorder %s16, 0
      %p118 = por %p116, %p117
      %s119 = ssub.s32 %s18, %s32
      %p120 = scmp.eq.s32.totalorder %s119, 0
      %s122 = sadd.s32 %s121, 1
      %s123 = scalar_select %p120, %s121, %s122
      %p126 = pneg %p120
      %p127 = scmp.eq.s32.totalorder %s10, 1
      %p128 = por %p126, %p127
      %p129 = scmp.ne.s32.totalorder %s121, %s124
      %p130 = scmp.eq.s32.totalorder %s10, 0
      %p131 = por %p129, %p130
      %p132 = scmp.ne.s32.totalorder %s121, %s124
      %p133 = scmp.eq.s32.totalorder %s15, 1
      %p134 = por %p132, %p133
      %p135 = scmp.ne.s32.totalorder %s124, %s125
      %p136 = scmp.eq.s32.totalorder %s15, 0
      %p137 = por %p135, %p136
      %p138 = scmp.ne.s32.totalorder %s124, %s125
      %p139 = scmp.eq.s32.totalorder %s16, 1
      %p140 = por %p138, %p139
      %p142 = scmp.ne.s32.totalorder %s125, %s141
      %p143 = scmp.eq.s32.totalorder %s16, 0
      %p144 = por %p142, %p143
      %s145 = ssub.s32 %s17, %s36
      %s146 = ssub.s32 %s18, %s32
      %s147 = sor.u32 %s145, %s146
      %p148 = scmp.eq.s32.totalorder %s147, 0
      %s150 = sadd.s32 %s149, 1
      %s151 = scalar_select %p148, %s149, %s150
      %p154 = pneg %p148
      %p155 = scmp.eq.s32.totalorder %s10, 1
      %p156 = por %p154, %p155
      %p157 = scmp.ne.s32.totalorder %s149, %s152
      %p158 = scmp.eq.s32.totalorder %s10, 0
      %p159 = por %p157, %p158
      %p160 = scmp.ne.s32.totalorder %s149, %s152
      %p161 = scmp.eq.s32.totalorder %s15, 1
      %p162 = por %p160, %p161
      %p163 = scmp.ne.s32.totalorder %s152, %s153
      %p164 = scmp.eq.s32.totalorder %s15, 0
      %p165 = por %p163, %p164
      %p166 = scmp.ne.s32.totalorder %s152, %s153
      %p167 = scmp.eq.s32.totalorder %s16, 1
      %p168 = por %p166, %p167
      %p170 = scmp.ne.s32.totalorder %s153, %s169
      %p171 = scmp.eq.s32.totalorder %s16, 0
      %p172 = por %p170, %p171
      %p173 = scmp.le.s32.totalorder 1, %s10
      %p174 = scmp.lt.s32.totalorder %s10, 3
      %p175 = pnand %p173, %p174
      %p176 = pneg %p175
      // Predicated region
      $region9: #{discriminator_forward.8} parent=5 // pred_check
        _
      $region10: #{discriminator_forward.8} parent=5 // pred_check_branch
        %178 = sbr.rel (%p175) target = $region12
      $region11: #{discriminator_forward.8} parent=5 // pred_region
        %s179 = ssub.s32 %s10, 1
        // Predicated region
        $region13: #{discriminator_forward.8} parent=11 // pred_check
          %p180 = pneg %p111
        $region14: #{discriminator_forward.8} parent=11 // pred_check_branch
          %182 = sbr.rel (%p180) target = $region16
        $region15: #{discriminator_forward.8} parent=11 // pred_region
          %s183 = smul.u32 4, %s21
          %p184 = scmp.lt.s32.totalorder %s183, 3
          %s185 = scalar_select %p184, %s183, 3
          %s186 = scalar_lea.vmem %s2, %s185
          %s187 = smul.u32 4, %s21
        $region16: #{discriminator_forward.8} parent=11 // pred_fallthru
          _
        // Predicated region
        $region17: #{discriminator_forward.8} parent=11 // pred_check
          %p188 = pneg %p137
        $region18: #{discriminator_forward.8} parent=11 // pred_check_branch
          %190 = sbr.rel (%p188) target = $region20
        $region19: #{discriminator_forward.8} parent=11 // pred_region
          %s191 = smul.u32 4, %s21
          %p192 = scmp.lt.s32.totalorder %s191, 3
          %s193 = scalar_select %p192, %s191, 3
          %s194 = scalar_lea.vmem %s3, %s193
          %s195 = smul.u32 4, %s21
        $region20: #{discriminator_forward.8} parent=11 // pred_fallthru
          _
      $region12: #{discriminator_forward.8} parent=5 // pred_fallthru
        _
      %p196 = scmp.lt.s32.totalorder %s10, 2
      // Predicated region
      $region21: #{discriminator_forward.8} parent=5 // pred_check
        %p197 = pneg %p196
      $region22: #{discriminator_forward.8} parent=5 // pred_check_branch
        %199 = sbr.rel (%p197) target = $region24
      $region23: #{discriminator_forward.8} parent=5 // pred_region
        // Predicated region
        $region25: #{discriminator_forward.8} parent=23 // pred_check
          %p200 = pneg %p51
        $region26: #{discriminator_forward.8} parent=23 // pred_check_branch
          %202 = sbr.rel (%p200) target = $region28
        $region27: #{discriminator_forward.8} parent=23 // pred_region
          %s203 = sand.u32 %s41, 1
          %s204 = sand.u32 %s41, 1
          %s205 = smul.addr %s204, 192
          %s206 = scalar_lea.vmem [#allocation3], %s205
          %s207 = smul.u32 3, %s17
          %s208 = smul.u32 16, %s19
          %s209 = smul.addr %s207, 32
          %s210 = sadd.s32 %s208, %s209
          %s211 = smul.addr %s210, 4
          %s212 = scalar_lea.vmem %s0, %s211
          // Predicated region
          $region29: #{discriminator_forward.8} parent=27 // pred_check
            _
          $region30: #{discriminator_forward.8} parent=27 // pred_check_branch
            %214 = sbr.rel (0) target = $region32
          $region31: #{discriminator_forward.8} parent=27 // pred_region
            // Predicated region
            $region33: #{discriminator_forward.8} parent=31 // pred_check
              _
            $region34: #{discriminator_forward.8} parent=31 // pred_check_branch
              %216 = sbr.rel (0) target = $region36
            $region35: #{discriminator_forward.8} parent=31 // pred_region
              loop: start=0, step=1, limit=1
              $region37: #{discriminator_forward.8} parent=35 // loop_pre_header
                _
              $region38: #{discriminator_forward.8} parent=35 // loop_header
                %s218 = sphi 0, %s222
                %p219 = scmp.ge.s32.totalorder %s218, 1
                %s223 = sphi %s212, %s212
                %s224 = sphi %s206, %s206
              $region39: #{discriminator_forward.8} parent=35 // loop_header_branch
                %221 = sbr.rel (%p219) target = $region43
              $region40: #{discriminator_forward.8} parent=35 // loop_body
                %v225 = vld [vmem:[%s223] sm:$0xff]
                %226 = vst [vmem:[%s224] sm:$0xff] %v225
                %v227 = vld [vmem:[%s223 + $0x8] sm:$0xff]
                %228 = vst [vmem:[%s224 + $0x8] sm:$0xff] %v227
                %v229 = vld [vmem:[%s223 + $0x10] sm:$0xff]
                %230 = vst [vmem:[%s224 + $0x10] sm:$0xff] %v229
                %v231 = vld [vmem:[%s223 + $0x18] sm:$0xff]
                %232 = vst [vmem:[%s224 + $0x18] sm:$0xff] %v231
                %v233 = vld [vmem:[%s223 + $0x20] sm:$0xff]
                %234 = vst [vmem:[%s224 + $0x20] sm:$0xff] %v233
                %v235 = vld [vmem:[%s223 + $0x28] sm:$0xff]
                %236 = vst [vmem:[%s224 + $0x28] sm:$0xff] %v235
                %v237 = vld [vmem:[%s223 + $0x30] sm:$0xff]
                %238 = vst [vmem:[%s224 + $0x30] sm:$0xff] %v237
                %v239 = vld [vmem:[%s223 + $0x38] sm:$0xff]
                %240 = vst [vmem:[%s224 + $0x38] sm:$0xff] %v239
                %v241 = vld [vmem:[%s223 + $0x80] sm:$0xff]
                %242 = vst [vmem:[%s224 + $0x40] sm:$0xff] %v241
                %v243 = vld [vmem:[%s223 + $0x88] sm:$0xff]
                %244 = vst [vmem:[%s224 + $0x48] sm:$0xff] %v243
                %v245 = vld [vmem:[%s223 + $0x90] sm:$0xff]
                %246 = vst [vmem:[%s224 + $0x50] sm:$0xff] %v245
                %v247 = vld [vmem:[%s223 + $0x98] sm:$0xff]
                %248 = vst [vmem:[%s224 + $0x58] sm:$0xff] %v247
                %v249 = vld [vmem:[%s223 + $0xa0] sm:$0xff]
                %250 = vst [vmem:[%s224 + $0x60] sm:$0xff] %v249
                %v251 = vld [vmem:[%s223 + $0xa8] sm:$0xff]
                %252 = vst [vmem:[%s224 + $0x68] sm:$0xff] %v251
                %v253 = vld [vmem:[%s223 + $0xb0] sm:$0xff]
                %254 = vst [vmem:[%s224 + $0x70] sm:$0xff] %v253
                %v255 = vld [vmem:[%s223 + $0xb8] sm:$0xff]
                %256 = vst [vmem:[%s224 + $0x78] sm:$0xff] %v255
                %v257 = vld [vmem:[%s223 + $0x100] sm:$0xff]
                %258 = vst [vmem:[%s224 + $0x80] sm:$0xff] %v257
                %v259 = vld [vmem:[%s223 + $0x108] sm:$0xff]
                %260 = vst [vmem:[%s224 + $0x88] sm:$0xff] %v259
                %v261 = vld [vmem:[%s223 + $0x110] sm:$0xff]
                %262 = vst [vmem:[%s224 + $0x90] sm:$0xff] %v261
                %v263 = vld [vmem:[%s223 + $0x118] sm:$0xff]
                %264 = vst [vmem:[%s224 + $0x98] sm:$0xff] %v263
                %v265 = vld [vmem:[%s223 + $0x120] sm:$0xff]
                %266 = vst [vmem:[%s224 + $0xa0] sm:$0xff] %v265
                %v267 = vld [vmem:[%s223 + $0x128] sm:$0xff]
                %268 = vst [vmem:[%s224 + $0xa8] sm:$0xff] %v267
                %v269 = vld [vmem:[%s223 + $0x130] sm:$0xff]
                %270 = vst [vmem:[%s224 + $0xb0] sm:$0xff] %v269
                %v271 = vld [vmem:[%s223 + $0x138] sm:$0xff]
                %272 = vst [vmem:[%s224 + $0xb8] sm:$0xff] %v271
              $region41: #{discriminator_forward.8} parent=35 // loop_footer
                %s222 = sadd.s32 1, %s218
              $region42: #{discriminator_forward.8} parent=35 // loop_footer_branch
                %217 = sbr.rel target = $region38
              $region43: #{discriminator_forward.8} parent=35 // loop_exit
                _
            $region36: #{discriminator_forward.8} parent=31 // pred_fallthru
              _
            // Predicated region
            $region44: #{discriminator_forward.8} parent=31 // pred_check
              _
            $region45: #{discriminator_forward.8} parent=31 // pred_check_branch
              %274 = sbr.rel target = $region47
            $region46: #{discriminator_forward.8} parent=31 // pred_region
              _
            $region47: #{discriminator_forward.8} parent=31 // pred_fallthru
              _
          $region32: #{discriminator_forward.8} parent=27 // pred_fallthru
            _
          %275 = vnop
        $region28: #{discriminator_forward.8} parent=23 // pred_fallthru
          _
        // Predicated region
        $region48: #{discriminator_forward.8} parent=23 // pred_check
          %p276 = pneg %p79
        $region49: #{discriminator_forward.8} parent=23 // pred_check_branch
          %278 = sbr.rel (%p276) target = $region51
        $region50: #{discriminator_forward.8} parent=23 // pred_region
          %s279 = smul.u32 256, %s19
          %s280 = smul.u32 4, %s18
          %p281 = scmp.lt.s32.totalorder %s279, 511
          %s282 = scalar_select %p281, %s279, 511
          %p283 = scmp.lt.s32.totalorder %s280, 3
          %s284 = scalar_select %p283, %s280, 3
          %s285 = smul.addr %s282, 4
          %s286 = sadd.s32 %s284, %s285
          %s287 = smul.addr %s286, 4
          %s288 = scalar_lea.vmem %s1, %s287
          %s289 = smul.u32 256, %s19
          %s290 = smul.u32 4, %s18
        $region51: #{discriminator_forward.8} parent=23 // pred_fallthru
          _
      $region24: #{discriminator_forward.8} parent=5 // pred_fallthru
        _
      %p291 = scmp.le.s32.totalorder 1, %s10
      %p292 = scmp.lt.s32.totalorder %s10, 3
      %p293 = pnand %p291, %p292
      %p294 = pneg %p293
      // Predicated region
      $region52: #{discriminator_forward.8} parent=5 // pred_check
        _
      $region53: #{discriminator_forward.8} parent=5 // pred_check_branch
        %296 = sbr.rel (%p293) target = $region55
      $region54: #{discriminator_forward.8} parent=5 // pred_region
        %s297 = ssub.s32 %s10, 1
        %s298 = sand.u32 %s44, 1
        %s299 = sand.u32 %s44, 1
        %s300 = smul.addr %s299, 192
        %s301 = scalar_lea.vmem [#allocation3], %s300
        // Predicated region
        $region56: #{discriminator_forward.8} parent=54 // pred_check
          %p302 = pneg %p57
        $region57: #{discriminator_forward.8} parent=54 // pred_check_branch
          %304 = sbr.rel (%p302) target = $region59
        $region58: #{discriminator_forward.8} parent=54 // pred_region
          _
        $region59: #{discriminator_forward.8} parent=54 // pred_fallthru
          _
        %s305 = sand.u32 %s44, 1
        %s306 = sand.u32 %s44, 1
        %s307 = smul.addr %s306, 192
        %s308 = scalar_lea.vmem [#allocation3], %s307
        %p309 = pneg %p57
        %p310 = pneg %p54
        %s311 = smul.u32 256, %s22
        %s312 = smul.u32 4, %s21
        %p313 = scmp.lt.s32.totalorder %s311, 511
        %s314 = scalar_select %p313, %s311, 511
        %p315 = scmp.lt.s32.totalorder %s312, 3
        %s316 = scalar_select %p315, %s312, 3
        %s317 = smul.addr %s314, 4
        %s318 = sadd.s32 %s316, %s317
        %s319 = smul.addr %s318, 4
        %s320 = scalar_lea.vmem %s1, %s319
        %p321 = pneg %p85
        %p322 = pneg %p82
        %s323 = smul.u32 4, %s21
        %p324 = scmp.lt.s32.totalorder %s323, 3
        %s325 = scalar_select %p324, %s323, 3
        %s326 = scalar_lea.vmem %s2, %s325
        %p327 = pneg %p111
        %p328 = pneg %p108
        %s329 = smul.u32 4, %s21
        %p330 = scmp.lt.s32.totalorder %s329, 3
        %s331 = scalar_select %p330, %s329, 3
        %s332 = scalar_lea.vmem %s3, %s331
        %p333 = pneg %p137
        %p334 = pneg %p134
        %p335 = pneg %p165
        %p336 = pneg %p162
        %s337 = smul.u32 3, %s20
        %s338 = smul.u32 4, %s21
        %p339 = scmp.lt.s32.totalorder %s337, 2
        %s340 = scalar_select %p339, %s337, 2
        %p341 = scmp.lt.s32.totalorder %s338, 3
        %s342 = scalar_select %p341, %s338, 3
        %s343 = smul.addr %s340, 4
        %s344 = sadd.s32 %s342, %s343
        %s345 = smul.addr %s344, 4
        %s346 = scalar_lea.vmem %s4, %s345
        %s347 = smul.u32 3, %s20
        %s348 = smul.u32 16, %s22
        %s349 = smul.u32 256, %s22
        %s350 = smul.u32 4, %s21
        %p351 = scmp.lt.s32.totalorder %s349, 511
        %s352 = scalar_select %p351, %s349, 511
        %p353 = scmp.lt.s32.totalorder %s350, 3
        %s354 = scalar_select %p353, %s350, 3
        %s355 = smul.addr %s352, 4
        %s356 = sadd.s32 %s354, %s355
        %s357 = smul.addr %s356, 4
        %s358 = scalar_lea.vmem %s1, %s357
        %s359 = smul.u32 256, %s22
        %s360 = smul.u32 4, %s21
        %s361 = smul.u32 4, %s21
        %p362 = scmp.lt.s32.totalorder %s361, 3
        %s363 = scalar_select %p362, %s361, 3
        %s364 = scalar_lea.vmem %s2, %s363
        %s365 = smul.u32 4, %s21
        %s366 = smul.u32 4, %s21
        %p367 = scmp.lt.s32.totalorder %s366, 3
        %s368 = scalar_select %p367, %s366, 3
        %s369 = scalar_lea.vmem %s3, %s368
        %s370 = smul.u32 4, %s21
        %s371 = smul.u32 3, %s20
        %s372 = smul.u32 4, %s21
        %p373 = scmp.lt.s32.totalorder %s371, 2
        %s374 = scalar_select %p373, %s371, 2
        %p375 = scmp.lt.s32.totalorder %s372, 3
        %s376 = scalar_select %p375, %s372, 3
        %s377 = smul.addr %s374, 4
        %s378 = sadd.s32 %s376, %s377
        %s379 = smul.addr %s378, 4
        %s380 = scalar_lea.vmem %s4, %s379
        %s381 = smul.u32 3, %s20
        %s382 = smul.u32 4, %s21
        %p383 = scmp.eq.s32.totalorder %s22, 0
        // Predicated region
        $region60: #{discriminator_forward.8} parent=54 // pred_check
          %p384 = pneg %p383
        $region61: #{discriminator_forward.8} parent=54 // pred_check_branch
          %386 = sbr.rel (%p384) target = $region63
        $region62: #{discriminator_forward.8} parent=54 // pred_region
          %387 = vst [vmem:[#allocation2] sm:$0xff] 0.0
          %388 = vst [vmem:[#allocation2 + $0x8] sm:$0xff] 0.0
          %389 = vst [vmem:[#allocation2 + $0x10] sm:$0xff] 0.0
          %390 = vst [vmem:[#allocation2 + $0x18] sm:$0xff] 0.0
          %391 = vst [vmem:[#allocation2 + $0x20] sm:$0xff] 0.0
          %392 = vst [vmem:[#allocation2 + $0x28] sm:$0xff] 0.0
          %393 = vst [vmem:[#allocation2 + $0x30] sm:$0xff] 0.0
          %394 = vst [vmem:[#allocation2 + $0x38] sm:$0xff] 0.0
          %395 = vst [vmem:[#allocation2 + $0x40] sm:$0xff] 0.0
          %396 = vst [vmem:[#allocation2 + $0x48] sm:$0xff] 0.0
          %397 = vst [vmem:[#allocation2 + $0x50] sm:$0xff] 0.0
          %398 = vst [vmem:[#allocation2 + $0x58] sm:$0xff] 0.0
        $region63: #{discriminator_forward.8} parent=54 // pred_fallthru
          _
        %v399 = vld [vmem:[#allocation2] sm:$0xff]
        %v400 = vld [vmem:[#allocation2 + $0x8] sm:$0xff]
        %v401 = vld [vmem:[#allocation2 + $0x10] sm:$0xff]
        %v402 = vld [vmem:[#allocation2 + $0x18] sm:$0xff]
        %v403 = vld [vmem:[#allocation2 + $0x20] sm:$0xff]
        %v404 = vld [vmem:[#allocation2 + $0x28] sm:$0xff]
        %v405 = vld [vmem:[#allocation2 + $0x30] sm:$0xff]
        %v406 = vld [vmem:[#allocation2 + $0x38] sm:$0xff]
        %v407 = vld [vmem:[#allocation2 + $0x40] sm:$0xff]
        %v408 = vld [vmem:[#allocation2 + $0x48] sm:$0xff]
        %v409 = vld [vmem:[#allocation2 + $0x50] sm:$0xff]
        %v410 = vld [vmem:[#allocation2 + $0x58] sm:$0xff]
        %v411 = vld [vmem:[%s301] sm:$0xff]
        %v412 = vld [vmem:[%s301 + $0x8] sm:$0xff]
        %v413 = vld [vmem:[%s301 + $0x10] sm:$0xff]
        %v414 = vld [vmem:[%s301 + $0x18] sm:$0xff]
        %v415 = vld [vmem:[%s301 + $0x20] sm:$0xff]
        %v416 = vld [vmem:[%s301 + $0x28] sm:$0xff]
        %v417 = vld [vmem:[%s301 + $0x30] sm:$0xff]
        %v418 = vld [vmem:[%s301 + $0x38] sm:$0xff]
        %v419 = vld [vmem:[%s301 + $0x40] sm:$0xff]
        %v420 = vld [vmem:[%s301 + $0x48] sm:$0xff]
        %v421 = vld [vmem:[%s301 + $0x50] sm:$0xff]
        %v422 = vld [vmem:[%s301 + $0x58] sm:$0xff]
        %v423 = vld [vmem:[%s301 + $0x60] sm:$0xff]
        %v424 = vld [vmem:[%s301 + $0x68] sm:$0xff]
        %v425 = vld [vmem:[%s301 + $0x70] sm:$0xff]
        %v426 = vld [vmem:[%s301 + $0x78] sm:$0xff]
        %v427 = vld [vmem:[%s301 + $0x80] sm:$0xff]
        %v428 = vld [vmem:[%s301 + $0x88] sm:$0xff]
        %v429 = vld [vmem:[%s301 + $0x90] sm:$0xff]
        %v430 = vld [vmem:[%s301 + $0x98] sm:$0xff]
        %v431 = vld [vmem:[%s301 + $0xa0] sm:$0xff]
        %v432 = vld [vmem:[%s301 + $0xa8] sm:$0xff]
        %v433 = vld [vmem:[%s301 + $0xb0] sm:$0xff]
        %v434 = vld [vmem:[%s301 + $0xb8] sm:$0xff]
        %v435 = vld [vmem:[%s358] sm:$0xff]
        %v436 = vld [vmem:[%s358 + $0x8] sm:$0xff]
        %v437 = vld [vmem:[%s358 + $0x10] sm:$0xff]
        %v438 = vld [vmem:[%s358 + $0x18] sm:$0xff]
        %v439 = vld [vmem:[%s358 + $0x20] sm:$0xff]
        %v440 = vld [vmem:[%s358 + $0x28] sm:$0xff]
        %v441 = vld [vmem:[%s358 + $0x30] sm:$0xff]
        %v442 = vld [vmem:[%s358 + $0x38] sm:$0xff]
        %v443 = vld [vmem:[%s358 + $0x40] sm:$0xff]
        %v444 = vld [vmem:[%s358 + $0x48] sm:$0xff]
        %v445 = vld [vmem:[%s358 + $0x50] sm:$0xff]
        %v446 = vld [vmem:[%s358 + $0x58] sm:$0xff]
        %v447 = vld [vmem:[%s358 + $0x60] sm:$0xff]
        %v448 = vld [vmem:[%s358 + $0x68] sm:$0xff]
        %v449 = vld [vmem:[%s358 + $0x70] sm:$0xff]
        %v450 = vld [vmem:[%s358 + $0x78] sm:$0xff]
        %v451 = vld [vmem:[%s358 + $0x80] sm:$0xff]
        %v452 = vld [vmem:[%s358 + $0x88] sm:$0xff]
        %v453 = vld [vmem:[%s358 + $0x90] sm:$0xff]
        %v454 = vld [vmem:[%s358 + $0x98] sm:$0xff]
        %v455 = vld [vmem:[%s358 + $0xa0] sm:$0xff]
        %v456 = vld [vmem:[%s358 + $0xa8] sm:$0xff]
        %v457 = vld [vmem:[%s358 + $0xb0] sm:$0xff]
        %v458 = vld [vmem:[%s358 + $0xb8] sm:$0xff]
        %v459 = vld [vmem:[%s358 + $0xc0] sm:$0xff]
        %v460 = vld [vmem:[%s358 + $0xc8] sm:$0xff]
        %v461 = vld [vmem:[%s358 + $0xd0] sm:$0xff]
        %v462 = vld [vmem:[%s358 + $0xd8] sm:$0xff]
        %v463 = vld [vmem:[%s358 + $0xe0] sm:$0xff]
        %v464 = vld [vmem:[%s358 + $0xe8] sm:$0xff]
        %v465 = vld [vmem:[%s358 + $0xf0] sm:$0xff]
        %v466 = vld [vmem:[%s358 + $0xf8] sm:$0xff]
        %v467 = vld [vmem:[%s358 + $0x100] sm:$0xff]
        %v468 = vld [vmem:[%s358 + $0x108] sm:$0xff]
        %v469 = vld [vmem:[%s358 + $0x110] sm:$0xff]
        %v470 = vld [vmem:[%s358 + $0x118] sm:$0xff]
        %v471 = vld [vmem:[%s358 + $0x120] sm:$0xff]
        %v472 = vld [vmem:[%s358 + $0x128] sm:$0xff]
        %v473 = vld [vmem:[%s358 + $0x130] sm:$0xff]
        %v474 = vld [vmem:[%s358 + $0x138] sm:$0xff]
        %v475 = vld [vmem:[%s358 + $0x140] sm:$0xff]
        %v476 = vld [vmem:[%s358 + $0x148] sm:$0xff]
        %v477 = vld [vmem:[%s358 + $0x150] sm:$0xff]
        %v478 = vld [vmem:[%s358 + $0x158] sm:$0xff]
        %v479 = vld [vmem:[%s358 + $0x160] sm:$0xff]
        %v480 = vld [vmem:[%s358 + $0x168] sm:$0xff]
        %v481 = vld [vmem:[%s358 + $0x170] sm:$0xff]
        %v482 = vld [vmem:[%s358 + $0x178] sm:$0xff]
        %v483 = vld [vmem:[%s358 + $0x180] sm:$0xff]
        %v484 = vld [vmem:[%s358 + $0x188] sm:$0xff]
        %v485 = vld [vmem:[%s358 + $0x190] sm:$0xff]
        %v486 = vld [vmem:[%s358 + $0x198] sm:$0xff]
        %v487 = vld [vmem:[%s358 + $0x1a0] sm:$0xff]
        %v488 = vld [vmem:[%s358 + $0x1a8] sm:$0xff]
        %v489 = vld [vmem:[%s358 + $0x1b0] sm:$0xff]
        %v490 = vld [vmem:[%s358 + $0x1b8] sm:$0xff]
        %v491 = vld [vmem:[%s358 + $0x1c0] sm:$0xff]
        %v492 = vld [vmem:[%s358 + $0x1c8] sm:$0xff]
        %v493 = vld [vmem:[%s358 + $0x1d0] sm:$0xff]
        %v494 = vld [vmem:[%s358 + $0x1d8] sm:$0xff]
        %v495 = vld [vmem:[%s358 + $0x1e0] sm:$0xff]
        %v496 = vld [vmem:[%s358 + $0x1e8] sm:$0xff]
        %v497 = vld [vmem:[%s358 + $0x1f0] sm:$0xff]
        %v498 = vld [vmem:[%s358 + $0x1f8] sm:$0xff]
        %v499 = vld [vmem:[%s358 + $0x200] sm:$0xff]
        %v500 = vld [vmem:[%s358 + $0x208] sm:$0xff]
        %v501 = vld [vmem:[%s358 + $0x210] sm:$0xff]
        %v502 = vld [vmem:[%s358 + $0x218] sm:$0xff]
        %v503 = vld [vmem:[%s358 + $0x220] sm:$0xff]
        %v504 = vld [vmem:[%s358 + $0x228] sm:$0xff]
        %v505 = vld [vmem:[%s358 + $0x230] sm:$0xff]
        %v506 = vld [vmem:[%s358 + $0x238] sm:$0xff]
        %v507 = vld [vmem:[%s358 + $0x240] sm:$0xff]
        %v508 = vld [vmem:[%s358 + $0x248] sm:$0xff]
        %v509 = vld [vmem:[%s358 + $0x250] sm:$0xff]
        %v510 = vld [vmem:[%s358 + $0x258] sm:$0xff]
        %v511 = vld [vmem:[%s358 + $0x260] sm:$0xff]
        %v512 = vld [vmem:[%s358 + $0x268] sm:$0xff]
        %v513 = vld [vmem:[%s358 + $0x270] sm:$0xff]
        %v514 = vld [vmem:[%s358 + $0x278] sm:$0xff]
        %v515 = vld [vmem:[%s358 + $0x280] sm:$0xff]
        %v516 = vld [vmem:[%s358 + $0x288] sm:$0xff]
        %v517 = vld [vmem:[%s358 + $0x290] sm:$0xff]
        %v518 = vld [vmem:[%s358 + $0x298] sm:$0xff]
        %v519 = vld [vmem:[%s358 + $0x2a0] sm:$0xff]
        %v520 = vld [vmem:[%s358 + $0x2a8] sm:$0xff]
        %v521 = vld [vmem:[%s358 + $0x2b0] sm:$0xff]
        %v522 = vld [vmem:[%s358 + $0x2b8] sm:$0xff]
        %v523 = vld [vmem:[%s358 + $0x2c0] sm:$0xff]
        %v524 = vld [vmem:[%s358 + $0x2c8] sm:$0xff]
        %v525 = vld [vmem:[%s358 + $0x2d0] sm:$0xff]
        %v526 = vld [vmem:[%s358 + $0x2d8] sm:$0xff]
        %v527 = vld [vmem:[%s358 + $0x2e0] sm:$0xff]
        %v528 = vld [vmem:[%s358 + $0x2e8] sm:$0xff]
        %v529 = vld [vmem:[%s358 + $0x2f0] sm:$0xff]
        %v530 = vld [vmem:[%s358 + $0x2f8] sm:$0xff]
        %v531 = vld [vmem:[%s358 + $0x300] sm:$0xff]
        %v532 = vld [vmem:[%s358 + $0x308] sm:$0xff]
        %v533 = vld [vmem:[%s358 + $0x310] sm:$0xff]
        %v534 = vld [vmem:[%s358 + $0x318] sm:$0xff]
        %v535 = vld [vmem:[%s358 + $0x320] sm:$0xff]
        %v536 = vld [vmem:[%s358 + $0x328] sm:$0xff]
        %v537 = vld [vmem:[%s358 + $0x330] sm:$0xff]
        %v538 = vld [vmem:[%s358 + $0x338] sm:$0xff]
        %v539 = vld [vmem:[%s358 + $0x340] sm:$0xff]
        %v540 = vld [vmem:[%s358 + $0x348] sm:$0xff]
        %v541 = vld [vmem:[%s358 + $0x350] sm:$0xff]
        %v542 = vld [vmem:[%s358 + $0x358] sm:$0xff]
        %v543 = vld [vmem:[%s358 + $0x360] sm:$0xff]
        %v544 = vld [vmem:[%s358 + $0x368] sm:$0xff]
        %v545 = vld [vmem:[%s358 + $0x370] sm:$0xff]
        %v546 = vld [vmem:[%s358 + $0x378] sm:$0xff]
        %v547 = vld [vmem:[%s358 + $0x380] sm:$0xff]
        %v548 = vld [vmem:[%s358 + $0x388] sm:$0xff]
        %v549 = vld [vmem:[%s358 + $0x390] sm:$0xff]
        %v550 = vld [vmem:[%s358 + $0x398] sm:$0xff]
        %v551 = vld [vmem:[%s358 + $0x3a0] sm:$0xff]
        %v552 = vld [vmem:[%s358 + $0x3a8] sm:$0xff]
        %v553 = vld [vmem:[%s358 + $0x3b0] sm:$0xff]
        %v554 = vld [vmem:[%s358 + $0x3b8] sm:$0xff]
        %v555 = vld [vmem:[%s358 + $0x3c0] sm:$0xff]
        %v556 = vld [vmem:[%s358 + $0x3c8] sm:$0xff]
        %v557 = vld [vmem:[%s358 + $0x3d0] sm:$0xff]
        %v558 = vld [vmem:[%s358 + $0x3d8] sm:$0xff]
        %v559 = vld [vmem:[%s358 + $0x3e0] sm:$0xff]
        %v560 = vld [vmem:[%s358 + $0x3e8] sm:$0xff]
        %v561 = vld [vmem:[%s358 + $0x3f0] sm:$0xff]
        %v562 = vld [vmem:[%s358 + $0x3f8] sm:$0xff]
        %v563 = vld [vmem:[%s358 + $0x400] sm:$0xff]
        %v564 = vld [vmem:[%s358 + $0x408] sm:$0xff]
        %v565 = vld [vmem:[%s358 + $0x410] sm:$0xff]
        %v566 = vld [vmem:[%s358 + $0x418] sm:$0xff]
        %v567 = vld [vmem:[%s358 + $0x420] sm:$0xff]
        %v568 = vld [vmem:[%s358 + $0x428] sm:$0xff]
        %v569 = vld [vmem:[%s358 + $0x430] sm:$0xff]
        %v570 = vld [vmem:[%s358 + $0x438] sm:$0xff]
        %v571 = vld [vmem:[%s358 + $0x440] sm:$0xff]
        %v572 = vld [vmem:[%s358 + $0x448] sm:$0xff]
        %v573 = vld [vmem:[%s358 + $0x450] sm:$0xff]
        %v574 = vld [vmem:[%s358 + $0x458] sm:$0xff]
        %v575 = vld [vmem:[%s358 + $0x460] sm:$0xff]
        %v576 = vld [vmem:[%s358 + $0x468] sm:$0xff]
        %v577 = vld [vmem:[%s358 + $0x470] sm:$0xff]
        %v578 = vld [vmem:[%s358 + $0x478] sm:$0xff]
        %v579 = vld [vmem:[%s358 + $0x480] sm:$0xff]
        %v580 = vld [vmem:[%s358 + $0x488] sm:$0xff]
        %v581 = vld [vmem:[%s358 + $0x490] sm:$0xff]
        %v582 = vld [vmem:[%s358 + $0x498] sm:$0xff]
        %v583 = vld [vmem:[%s358 + $0x4a0] sm:$0xff]
        %v584 = vld [vmem:[%s358 + $0x4a8] sm:$0xff]
        %v585 = vld [vmem:[%s358 + $0x4b0] sm:$0xff]
        %v586 = vld [vmem:[%s358 + $0x4b8] sm:$0xff]
        %v587 = vld [vmem:[%s358 + $0x4c0] sm:$0xff]
        %v588 = vld [vmem:[%s358 + $0x4c8] sm:$0xff]
        %v589 = vld [vmem:[%s358 + $0x4d0] sm:$0xff]
        %v590 = vld [vmem:[%s358 + $0x4d8] sm:$0xff]
        %v591 = vld [vmem:[%s358 + $0x4e0] sm:$0xff]
        %v592 = vld [vmem:[%s358 + $0x4e8] sm:$0xff]
        %v593 = vld [vmem:[%s358 + $0x4f0] sm:$0xff]
        %v594 = vld [vmem:[%s358 + $0x4f8] sm:$0xff]
        %v595 = vld [vmem:[%s358 + $0x500] sm:$0xff]
        %v596 = vld [vmem:[%s358 + $0x508] sm:$0xff]
        %v597 = vld [vmem:[%s358 + $0x510] sm:$0xff]
        %v598 = vld [vmem:[%s358 + $0x518] sm:$0xff]
        %v599 = vld [vmem:[%s358 + $0x520] sm:$0xff]
        %v600 = vld [vmem:[%s358 + $0x528] sm:$0xff]
        %v601 = vld [vmem:[%s358 + $0x530] sm:$0xff]
        %v602 = vld [vmem:[%s358 + $0x538] sm:$0xff]
        %v603 = vld [vmem:[%s358 + $0x540] sm:$0xff]
        %v604 = vld [vmem:[%s358 + $0x548] sm:$0xff]
        %v605 = vld [vmem:[%s358 + $0x550] sm:$0xff]
        %v606 = vld [vmem:[%s358 + $0x558] sm:$0xff]
        %v607 = vld [vmem:[%s358 + $0x560] sm:$0xff]
        %v608 = vld [vmem:[%s358 + $0x568] sm:$0xff]
        %v609 = vld [vmem:[%s358 + $0x570] sm:$0xff]
        %v610 = vld [vmem:[%s358 + $0x578] sm:$0xff]
        %v611 = vld [vmem:[%s358 + $0x580] sm:$0xff]
        %v612 = vld [vmem:[%s358 + $0x588] sm:$0xff]
        %v613 = vld [vmem:[%s358 + $0x590] sm:$0xff]
        %v614 = vld [vmem:[%s358 + $0x598] sm:$0xff]
        %v615 = vld [vmem:[%s358 + $0x5a0] sm:$0xff]
        %v616 = vld [vmem:[%s358 + $0x5a8] sm:$0xff]
        %v617 = vld [vmem:[%s358 + $0x5b0] sm:$0xff]
        %v618 = vld [vmem:[%s358 + $0x5b8] sm:$0xff]
        %v619 = vld [vmem:[%s358 + $0x5c0] sm:$0xff]
        %v620 = vld [vmem:[%s358 + $0x5c8] sm:$0xff]
        %v621 = vld [vmem:[%s358 + $0x5d0] sm:$0xff]
        %v622 = vld [vmem:[%s358 + $0x5d8] sm:$0xff]
        %v623 = vld [vmem:[%s358 + $0x5e0] sm:$0xff]
        %v624 = vld [vmem:[%s358 + $0x5e8] sm:$0xff]
        %v625 = vld [vmem:[%s358 + $0x5f0] sm:$0xff]
        %v626 = vld [vmem:[%s358 + $0x5f8] sm:$0xff]
        %v627 = vld [vmem:[%s358 + $0x600] sm:$0xff]
        %v628 = vld [vmem:[%s358 + $0x608] sm:$0xff]
        %v629 = vld [vmem:[%s358 + $0x610] sm:$0xff]
        %v630 = vld [vmem:[%s358 + $0x618] sm:$0xff]
        %v631 = vld [vmem:[%s358 + $0x620] sm:$0xff]
        %v632 = vld [vmem:[%s358 + $0x628] sm:$0xff]
        %v633 = vld [vmem:[%s358 + $0x630] sm:$0xff]
        %v634 = vld [vmem:[%s358 + $0x638] sm:$0xff]
        %v635 = vld [vmem:[%s358 + $0x640] sm:$0xff]
        %v636 = vld [vmem:[%s358 + $0x648] sm:$0xff]
        %v637 = vld [vmem:[%s358 + $0x650] sm:$0xff]
        %v638 = vld [vmem:[%s358 + $0x658] sm:$0xff]
        %v639 = vld [vmem:[%s358 + $0x660] sm:$0xff]
        %v640 = vld [vmem:[%s358 + $0x668] sm:$0xff]
        %v641 = vld [vmem:[%s358 + $0x670] sm:$0xff]
        %v642 = vld [vmem:[%s358 + $0x678] sm:$0xff]
        %v643 = vld [vmem:[%s358 + $0x680] sm:$0xff]
        %v644 = vld [vmem:[%s358 + $0x688] sm:$0xff]
        %v645 = vld [vmem:[%s358 + $0x690] sm:$0xff]
        %v646 = vld [vmem:[%s358 + $0x698] sm:$0xff]
        %v647 = vld [vmem:[%s358 + $0x6a0] sm:$0xff]
        %v648 = vld [vmem:[%s358 + $0x6a8] sm:$0xff]
        %v649 = vld [vmem:[%s358 + $0x6b0] sm:$0xff]
        %v650 = vld [vmem:[%s358 + $0x6b8] sm:$0xff]
        %v651 = vld [vmem:[%s358 + $0x6c0] sm:$0xff]
        %v652 = vld [vmem:[%s358 + $0x6c8] sm:$0xff]
        %v653 = vld [vmem:[%s358 + $0x6d0] sm:$0xff]
        %v654 = vld [vmem:[%s358 + $0x6d8] sm:$0xff]
        %v655 = vld [vmem:[%s358 + $0x6e0] sm:$0xff]
        %v656 = vld [vmem:[%s358 + $0x6e8] sm:$0xff]
        %v657 = vld [vmem:[%s358 + $0x6f0] sm:$0xff]
        %v658 = vld [vmem:[%s358 + $0x6f8] sm:$0xff]
        %v659 = vld [vmem:[%s358 + $0x700] sm:$0xff]
        %v660 = vld [vmem:[%s358 + $0x708] sm:$0xff]
        %v661 = vld [vmem:[%s358 + $0x710] sm:$0xff]
        %v662 = vld [vmem:[%s358 + $0x718] sm:$0xff]
        %v663 = vld [vmem:[%s358 + $0x720] sm:$0xff]
        %v664 = vld [vmem:[%s358 + $0x728] sm:$0xff]
        %v665 = vld [vmem:[%s358 + $0x730] sm:$0xff]
        %v666 = vld [vmem:[%s358 + $0x738] sm:$0xff]
        %v667 = vld [vmem:[%s358 + $0x740] sm:$0xff]
        %v668 = vld [vmem:[%s358 + $0x748] sm:$0xff]
        %v669 = vld [vmem:[%s358 + $0x750] sm:$0xff]
        %v670 = vld [vmem:[%s358 + $0x758] sm:$0xff]
        %v671 = vld [vmem:[%s358 + $0x760] sm:$0xff]
        %v672 = vld [vmem:[%s358 + $0x768] sm:$0xff]
        %v673 = vld [vmem:[%s358 + $0x770] sm:$0xff]
        %v674 = vld [vmem:[%s358 + $0x778] sm:$0xff]
        %v675 = vld [vmem:[%s358 + $0x780] sm:$0xff]
        %v676 = vld [vmem:[%s358 + $0x788] sm:$0xff]
        %v677 = vld [vmem:[%s358 + $0x790] sm:$0xff]
        %v678 = vld [vmem:[%s358 + $0x798] sm:$0xff]
        %v679 = vld [vmem:[%s358 + $0x7a0] sm:$0xff]
        %v680 = vld [vmem:[%s358 + $0x7a8] sm:$0xff]
        %v681 = vld [vmem:[%s358 + $0x7b0] sm:$0xff]
        %v682 = vld [vmem:[%s358 + $0x7b8] sm:$0xff]
        %v683 = vld [vmem:[%s358 + $0x7c0] sm:$0xff]
        %v684 = vld [vmem:[%s358 + $0x7c8] sm:$0xff]
        %v685 = vld [vmem:[%s358 + $0x7d0] sm:$0xff]
        %v686 = vld [vmem:[%s358 + $0x7d8] sm:$0xff]
        %v687 = vld [vmem:[%s358 + $0x7e0] sm:$0xff]
        %v688 = vld [vmem:[%s358 + $0x7e8] sm:$0xff]
        %v689 = vld [vmem:[%s358 + $0x7f0] sm:$0xff]
        %v690 = vld [vmem:[%s358 + $0x7f8] sm:$0xff]
        %v691 = vld [vmem:[%s358 + $0x800] sm:$0xff]
        %v692 = vld [vmem:[%s358 + $0x808] sm:$0xff]
        %v693 = vld [vmem:[%s358 + $0x810] sm:$0xff]
        %v694 = vld [vmem:[%s358 + $0x818] sm:$0xff]
        %v695 = vld [vmem:[%s358 + $0x820] sm:$0xff]
        %v696 = vld [vmem:[%s358 + $0x828] sm:$0xff]
        %v697 = vld [vmem:[%s358 + $0x830] sm:$0xff]
        %v698 = vld [vmem:[%s358 + $0x838] sm:$0xff]
        %v699 = vld [vmem:[%s358 + $0x840] sm:$0xff]
        %v700 = vld [vmem:[%s358 + $0x848] sm:$0xff]
        %v701 = vld [vmem:[%s358 + $0x850] sm:$0xff]
        %v702 = vld [vmem:[%s358 + $0x858] sm:$0xff]
        %v703 = vld [vmem:[%s358 + $0x860] sm:$0xff]
        %v704 = vld [vmem:[%s358 + $0x868] sm:$0xff]
        %v705 = vld [vmem:[%s358 + $0x870] sm:$0xff]
        %v706 = vld [vmem:[%s358 + $0x878] sm:$0xff]
        %v707 = vld [vmem:[%s358 + $0x880] sm:$0xff]
        %v708 = vld [vmem:[%s358 + $0x888] sm:$0xff]
        %v709 = vld [vmem:[%s358 + $0x890] sm:$0xff]
        %v710 = vld [vmem:[%s358 + $0x898] sm:$0xff]
        %v711 = vld [vmem:[%s358 + $0x8a0] sm:$0xff]
        %v712 = vld [vmem:[%s358 + $0x8a8] sm:$0xff]
        %v713 = vld [vmem:[%s358 + $0x8b0] sm:$0xff]
        %v714 = vld [vmem:[%s358 + $0x8b8] sm:$0xff]
        %v715 = vld [vmem:[%s358 + $0x8c0] sm:$0xff]
        %v716 = vld [vmem:[%s358 + $0x8c8] sm:$0xff]
        %v717 = vld [vmem:[%s358 + $0x8d0] sm:$0xff]
        %v718 = vld [vmem:[%s358 + $0x8d8] sm:$0xff]
        %v719 = vld [vmem:[%s358 + $0x8e0] sm:$0xff]
        %v720 = vld [vmem:[%s358 + $0x8e8] sm:$0xff]
        %v721 = vld [vmem:[%s358 + $0x8f0] sm:$0xff]
        %v722 = vld [vmem:[%s358 + $0x8f8] sm:$0xff]
        %v723 = vld [vmem:[%s358 + $0x900] sm:$0xff]
        %v724 = vld [vmem:[%s358 + $0x908] sm:$0xff]
        %v725 = vld [vmem:[%s358 + $0x910] sm:$0xff]
        %v726 = vld [vmem:[%s358 + $0x918] sm:$0xff]
        %v727 = vld [vmem:[%s358 + $0x920] sm:$0xff]
        %v728 = vld [vmem:[%s358 + $0x928] sm:$0xff]
        %v729 = vld [vmem:[%s358 + $0x930] sm:$0xff]
        %v730 = vld [vmem:[%s358 + $0x938] sm:$0xff]
        %v731 = vld [vmem:[%s358 + $0x940] sm:$0xff]
        %v732 = vld [vmem:[%s358 + $0x948] sm:$0xff]
        %v733 = vld [vmem:[%s358 + $0x950] sm:$0xff]
        %v734 = vld [vmem:[%s358 + $0x958] sm:$0xff]
        %v735 = vld [vmem:[%s358 + $0x960] sm:$0xff]
        %v736 = vld [vmem:[%s358 + $0x968] sm:$0xff]
        %v737 = vld [vmem:[%s358 + $0x970] sm:$0xff]
        %v738 = vld [vmem:[%s358 + $0x978] sm:$0xff]
        %v739 = vld [vmem:[%s358 + $0x980] sm:$0xff]
        %v740 = vld [vmem:[%s358 + $0x988] sm:$0xff]
        %v741 = vld [vmem:[%s358 + $0x990] sm:$0xff]
        %v742 = vld [vmem:[%s358 + $0x998] sm:$0xff]
        %v743 = vld [vmem:[%s358 + $0x9a0] sm:$0xff]
        %v744 = vld [vmem:[%s358 + $0x9a8] sm:$0xff]
        %v745 = vld [vmem:[%s358 + $0x9b0] sm:$0xff]
        %v746 = vld [vmem:[%s358 + $0x9b8] sm:$0xff]
        %v747 = vld [vmem:[%s358 + $0x9c0] sm:$0xff]
        %v748 = vld [vmem:[%s358 + $0x9c8] sm:$0xff]
        %v749 = vld [vmem:[%s358 + $0x9d0] sm:$0xff]
        %v750 = vld [vmem:[%s358 + $0x9d8] sm:$0xff]
        %v751 = vld [vmem:[%s358 + $0x9e0] sm:$0xff]
        %v752 = vld [vmem:[%s358 + $0x9e8] sm:$0xff]
        %v753 = vld [vmem:[%s358 + $0x9f0] sm:$0xff]
        %v754 = vld [vmem:[%s358 + $0x9f8] sm:$0xff]
        %v755 = vld [vmem:[%s358 + $0xa00] sm:$0xff]
        %v756 = vld [vmem:[%s358 + $0xa08] sm:$0xff]
        %v757 = vld [vmem:[%s358 + $0xa10] sm:$0xff]
        %v758 = vld [vmem:[%s358 + $0xa18] sm:$0xff]
        %v759 = vld [vmem:[%s358 + $0xa20] sm:$0xff]
        %v760 = vld [vmem:[%s358 + $0xa28] sm:$0xff]
        %v761 = vld [vmem:[%s358 + $0xa30] sm:$0xff]
        %v762 = vld [vmem:[%s358 + $0xa38] sm:$0xff]
        %v763 = vld [vmem:[%s358 + $0xa40] sm:$0xff]
        %v764 = vld [vmem:[%s358 + $0xa48] sm:$0xff]
        %v765 = vld [vmem:[%s358 + $0xa50] sm:$0xff]
        %v766 = vld [vmem:[%s358 + $0xa58] sm:$0xff]
        %v767 = vld [vmem:[%s358 + $0xa60] sm:$0xff]
        %v768 = vld [vmem:[%s358 + $0xa68] sm:$0xff]
        %v769 = vld [vmem:[%s358 + $0xa70] sm:$0xff]
        %v770 = vld [vmem:[%s358 + $0xa78] sm:$0xff]
        %v771 = vld [vmem:[%s358 + $0xa80] sm:$0xff]
        %v772 = vld [vmem:[%s358 + $0xa88] sm:$0xff]
        %v773 = vld [vmem:[%s358 + $0xa90] sm:$0xff]
        %v774 = vld [vmem:[%s358 + $0xa98] sm:$0xff]
        %v775 = vld [vmem:[%s358 + $0xaa0] sm:$0xff]
        %v776 = vld [vmem:[%s358 + $0xaa8] sm:$0xff]
        %v777 = vld [vmem:[%s358 + $0xab0] sm:$0xff]
        %v778 = vld [vmem:[%s358 + $0xab8] sm:$0xff]
        %v779 = vld [vmem:[%s358 + $0xac0] sm:$0xff]
        %v780 = vld [vmem:[%s358 + $0xac8] sm:$0xff]
        %v781 = vld [vmem:[%s358 + $0xad0] sm:$0xff]
        %v782 = vld [vmem:[%s358 + $0xad8] sm:$0xff]
        %v783 = vld [vmem:[%s358 + $0xae0] sm:$0xff]
        %v784 = vld [vmem:[%s358 + $0xae8] sm:$0xff]
        %v785 = vld [vmem:[%s358 + $0xaf0] sm:$0xff]
        %v786 = vld [vmem:[%s358 + $0xaf8] sm:$0xff]
        %v787 = vld [vmem:[%s358 + $0xb00] sm:$0xff]
        %v788 = vld [vmem:[%s358 + $0xb08] sm:$0xff]
        %v789 = vld [vmem:[%s358 + $0xb10] sm:$0xff]
        %v790 = vld [vmem:[%s358 + $0xb18] sm:$0xff]
        %v791 = vld [vmem:[%s358 + $0xb20] sm:$0xff]
        %v792 = vld [vmem:[%s358 + $0xb28] sm:$0xff]
        %v793 = vld [vmem:[%s358 + $0xb30] sm:$0xff]
        %v794 = vld [vmem:[%s358 + $0xb38] sm:$0xff]
        %v795 = vld [vmem:[%s358 + $0xb40] sm:$0xff]
        %v796 = vld [vmem:[%s358 + $0xb48] sm:$0xff]
        %v797 = vld [vmem:[%s358 + $0xb50] sm:$0xff]
        %v798 = vld [vmem:[%s358 + $0xb58] sm:$0xff]
        %v799 = vld [vmem:[%s358 + $0xb60] sm:$0xff]
        %v800 = vld [vmem:[%s358 + $0xb68] sm:$0xff]
        %v801 = vld [vmem:[%s358 + $0xb70] sm:$0xff]
        %v802 = vld [vmem:[%s358 + $0xb78] sm:$0xff]
        %v803 = vld [vmem:[%s358 + $0xb80] sm:$0xff]
        %v804 = vld [vmem:[%s358 + $0xb88] sm:$0xff]
        %v805 = vld [vmem:[%s358 + $0xb90] sm:$0xff]
        %v806 = vld [vmem:[%s358 + $0xb98] sm:$0xff]
        %v807 = vld [vmem:[%s358 + $0xba0] sm:$0xff]
        %v808 = vld [vmem:[%s358 + $0xba8] sm:$0xff]
        %v809 = vld [vmem:[%s358 + $0xbb0] sm:$0xff]
        %v810 = vld [vmem:[%s358 + $0xbb8] sm:$0xff]
        %v811 = vld [vmem:[%s358 + $0xbc0] sm:$0xff]
        %v812 = vld [vmem:[%s358 + $0xbc8] sm:$0xff]
        %v813 = vld [vmem:[%s358 + $0xbd0] sm:$0xff]
        %v814 = vld [vmem:[%s358 + $0xbd8] sm:$0xff]
        %v815 = vld [vmem:[%s358 + $0xbe0] sm:$0xff]
        %v816 = vld [vmem:[%s358 + $0xbe8] sm:$0xff]
        %v817 = vld [vmem:[%s358 + $0xbf0] sm:$0xff]
        %v818 = vld [vmem:[%s358 + $0xbf8] sm:$0xff]
        %v819 = vld [vmem:[%s358 + $0xc00] sm:$0xff]
        %v820 = vld [vmem:[%s358 + $0xc08] sm:$0xff]
        %v821 = vld [vmem:[%s358 + $0xc10] sm:$0xff]
        %v822 = vld [vmem:[%s358 + $0xc18] sm:$0xff]
        %v823 = vld [vmem:[%s358 + $0xc20] sm:$0xff]
        %v824 = vld [vmem:[%s358 + $0xc28] sm:$0xff]
        %v825 = vld [vmem:[%s358 + $0xc30] sm:$0xff]
        %v826 = vld [vmem:[%s358 + $0xc38] sm:$0xff]
        %v827 = vld [vmem:[%s358 + $0xc40] sm:$0xff]
        %v828 = vld [vmem:[%s358 + $0xc48] sm:$0xff]
        %v829 = vld [vmem:[%s358 + $0xc50] sm:$0xff]
        %v830 = vld [vmem:[%s358 + $0xc58] sm:$0xff]
        %v831 = vld [vmem:[%s358 + $0xc60] sm:$0xff]
        %v832 = vld [vmem:[%s358 + $0xc68] sm:$0xff]
        %v833 = vld [vmem:[%s358 + $0xc70] sm:$0xff]
        %v834 = vld [vmem:[%s358 + $0xc78] sm:$0xff]
        %v835 = vld [vmem:[%s358 + $0xc80] sm:$0xff]
        %v836 = vld [vmem:[%s358 + $0xc88] sm:$0xff]
        %v837 = vld [vmem:[%s358 + $0xc90] sm:$0xff]
        %v838 = vld [vmem:[%s358 + $0xc98] sm:$0xff]
        %v839 = vld [vmem:[%s358 + $0xca0] sm:$0xff]
        %v840 = vld [vmem:[%s358 + $0xca8] sm:$0xff]
        %v841 = vld [vmem:[%s358 + $0xcb0] sm:$0xff]
        %v842 = vld [vmem:[%s358 + $0xcb8] sm:$0xff]
        %v843 = vld [vmem:[%s358 + $0xcc0] sm:$0xff]
        %v844 = vld [vmem:[%s358 + $0xcc8] sm:$0xff]
        %v845 = vld [vmem:[%s358 + $0xcd0] sm:$0xff]
        %v846 = vld [vmem:[%s358 + $0xcd8] sm:$0xff]
        %v847 = vld [vmem:[%s358 + $0xce0] sm:$0xff]
        %v848 = vld [vmem:[%s358 + $0xce8] sm:$0xff]
        %v849 = vld [vmem:[%s358 + $0xcf0] sm:$0xff]
        %v850 = vld [vmem:[%s358 + $0xcf8] sm:$0xff]
        %v851 = vld [vmem:[%s358 + $0xd00] sm:$0xff]
        %v852 = vld [vmem:[%s358 + $0xd08] sm:$0xff]
        %v853 = vld [vmem:[%s358 + $0xd10] sm:$0xff]
        %v854 = vld [vmem:[%s358 + $0xd18] sm:$0xff]
        %v855 = vld [vmem:[%s358 + $0xd20] sm:$0xff]
        %v856 = vld [vmem:[%s358 + $0xd28] sm:$0xff]
        %v857 = vld [vmem:[%s358 + $0xd30] sm:$0xff]
        %v858 = vld [vmem:[%s358 + $0xd38] sm:$0xff]
        %v859 = vld [vmem:[%s358 + $0xd40] sm:$0xff]
        %v860 = vld [vmem:[%s358 + $0xd48] sm:$0xff]
        %v861 = vld [vmem:[%s358 + $0xd50] sm:$0xff]
        %v862 = vld [vmem:[%s358 + $0xd58] sm:$0xff]
        %v863 = vld [vmem:[%s358 + $0xd60] sm:$0xff]
        %v864 = vld [vmem:[%s358 + $0xd68] sm:$0xff]
        %v865 = vld [vmem:[%s358 + $0xd70] sm:$0xff]
        %v866 = vld [vmem:[%s358 + $0xd78] sm:$0xff]
        %v867 = vld [vmem:[%s358 + $0xd80] sm:$0xff]
        %v868 = vld [vmem:[%s358 + $0xd88] sm:$0xff]
        %v869 = vld [vmem:[%s358 + $0xd90] sm:$0xff]
        %v870 = vld [vmem:[%s358 + $0xd98] sm:$0xff]
        %v871 = vld [vmem:[%s358 + $0xda0] sm:$0xff]
        %v872 = vld [vmem:[%s358 + $0xda8] sm:$0xff]
        %v873 = vld [vmem:[%s358 + $0xdb0] sm:$0xff]
        %v874 = vld [vmem:[%s358 + $0xdb8] sm:$0xff]
        %v875 = vld [vmem:[%s358 + $0xdc0] sm:$0xff]
        %v876 = vld [vmem:[%s358 + $0xdc8] sm:$0xff]
        %v877 = vld [vmem:[%s358 + $0xdd0] sm:$0xff]
        %v878 = vld [vmem:[%s358 + $0xdd8] sm:$0xff]
        %v879 = vld [vmem:[%s358 + $0xde0] sm:$0xff]
        %v880 = vld [vmem:[%s358 + $0xde8] sm:$0xff]
        %v881 = vld [vmem:[%s358 + $0xdf0] sm:$0xff]
        %v882 = vld [vmem:[%s358 + $0xdf8] sm:$0xff]
        %v883 = vld [vmem:[%s358 + $0xe00] sm:$0xff]
        %v884 = vld [vmem:[%s358 + $0xe08] sm:$0xff]
        %v885 = vld [vmem:[%s358 + $0xe10] sm:$0xff]
        %v886 = vld [vmem:[%s358 + $0xe18] sm:$0xff]
        %v887 = vld [vmem:[%s358 + $0xe20] sm:$0xff]
        %v888 = vld [vmem:[%s358 + $0xe28] sm:$0xff]
        %v889 = vld [vmem:[%s358 + $0xe30] sm:$0xff]
        %v890 = vld [vmem:[%s358 + $0xe38] sm:$0xff]
        %v891 = vld [vmem:[%s358 + $0xe40] sm:$0xff]
        %v892 = vld [vmem:[%s358 + $0xe48] sm:$0xff]
        %v893 = vld [vmem:[%s358 + $0xe50] sm:$0xff]
        %v894 = vld [vmem:[%s358 + $0xe58] sm:$0xff]
        %v895 = vld [vmem:[%s358 + $0xe60] sm:$0xff]
        %v896 = vld [vmem:[%s358 + $0xe68] sm:$0xff]
        %v897 = vld [vmem:[%s358 + $0xe70] sm:$0xff]
        %v898 = vld [vmem:[%s358 + $0xe78] sm:$0xff]
        %v899 = vld [vmem:[%s358 + $0xe80] sm:$0xff]
        %v900 = vld [vmem:[%s358 + $0xe88] sm:$0xff]
        %v901 = vld [vmem:[%s358 + $0xe90] sm:$0xff]
        %v902 = vld [vmem:[%s358 + $0xe98] sm:$0xff]
        %v903 = vld [vmem:[%s358 + $0xea0] sm:$0xff]
        %v904 = vld [vmem:[%s358 + $0xea8] sm:$0xff]
        %v905 = vld [vmem:[%s358 + $0xeb0] sm:$0xff]
        %v906 = vld [vmem:[%s358 + $0xeb8] sm:$0xff]
        %v907 = vld [vmem:[%s358 + $0xec0] sm:$0xff]
        %v908 = vld [vmem:[%s358 + $0xec8] sm:$0xff]
        %v909 = vld [vmem:[%s358 + $0xed0] sm:$0xff]
        %v910 = vld [vmem:[%s358 + $0xed8] sm:$0xff]
        %v911 = vld [vmem:[%s358 + $0xee0] sm:$0xff]
        %v912 = vld [vmem:[%s358 + $0xee8] sm:$0xff]
        %v913 = vld [vmem:[%s358 + $0xef0] sm:$0xff]
        %v914 = vld [vmem:[%s358 + $0xef8] sm:$0xff]
        %v915 = vld [vmem:[%s358 + $0xf00] sm:$0xff]
        %v916 = vld [vmem:[%s358 + $0xf08] sm:$0xff]
        %v917 = vld [vmem:[%s358 + $0xf10] sm:$0xff]
        %v918 = vld [vmem:[%s358 + $0xf18] sm:$0xff]
        %v919 = vld [vmem:[%s358 + $0xf20] sm:$0xff]
        %v920 = vld [vmem:[%s358 + $0xf28] sm:$0xff]
        %v921 = vld [vmem:[%s358 + $0xf30] sm:$0xff]
        %v922 = vld [vmem:[%s358 + $0xf38] sm:$0xff]
        %v923 = vld [vmem:[%s358 + $0xf40] sm:$0xff]
        %v924 = vld [vmem:[%s358 + $0xf48] sm:$0xff]
        %v925 = vld [vmem:[%s358 + $0xf50] sm:$0xff]
        %v926 = vld [vmem:[%s358 + $0xf58] sm:$0xff]
        %v927 = vld [vmem:[%s358 + $0xf60] sm:$0xff]
        %v928 = vld [vmem:[%s358 + $0xf68] sm:$0xff]
        %v929 = vld [vmem:[%s358 + $0xf70] sm:$0xff]
        %v930 = vld [vmem:[%s358 + $0xf78] sm:$0xff]
        %v931 = vld [vmem:[%s358 + $0xf80] sm:$0xff]
        %v932 = vld [vmem:[%s358 + $0xf88] sm:$0xff]
        %v933 = vld [vmem:[%s358 + $0xf90] sm:$0xff]
        %v934 = vld [vmem:[%s358 + $0xf98] sm:$0xff]
        %v935 = vld [vmem:[%s358 + $0xfa0] sm:$0xff]
        %v936 = vld [vmem:[%s358 + $0xfa8] sm:$0xff]
        %v937 = vld [vmem:[%s358 + $0xfb0] sm:$0xff]
        %v938 = vld [vmem:[%s358 + $0xfb8] sm:$0xff]
        %v939 = vld [vmem:[%s358 + $0xfc0] sm:$0xff]
        %v940 = vld [vmem:[%s358 + $0xfc8] sm:$0xff]
        %v941 = vld [vmem:[%s358 + $0xfd0] sm:$0xff]
        %v942 = vld [vmem:[%s358 + $0xfd8] sm:$0xff]
        %v943 = vld [vmem:[%s358 + $0xfe0] sm:$0xff]
        %v944 = vld [vmem:[%s358 + $0xfe8] sm:$0xff]
        %v945 = vld [vmem:[%s358 + $0xff0] sm:$0xff]
        %v946 = vld [vmem:[%s358 + $0xff8] sm:$0xff]
        %v971 = vunpack.c.l.b16 %v411
        %v972 = vunpack.c.h.b16 %v411
        %v973 = vunpack.c.l.b16 %v412
        %v974 = vunpack.c.h.b16 %v412
        %v975 = vunpack.c.l.b16 %v413
        %v976 = vunpack.c.h.b16 %v413
        %v977 = vunpack.c.l.b16 %v414
        %v978 = vunpack.c.h.b16 %v414
        %v979 = vunpack.c.l.b16 %v415
        %v980 = vunpack.c.h.b16 %v415
        %v981 = vunpack.c.l.b16 %v416
        %v982 = vunpack.c.h.b16 %v416
        %v983 = vunpack.c.l.b16 %v417
        %v984 = vunpack.c.h.b16 %v417
        %v985 = vunpack.c.l.b16 %v418
        %v986 = vunpack.c.h.b16 %v418
        %v987 = vunpack.c.l.b16 %v419
        %v988 = vunpack.c.h.b16 %v419
        %v989 = vunpack.c.l.b16 %v420
        %v990 = vunpack.c.h.b16 %v420
        %v991 = vunpack.c.l.b16 %v421
        %v992 = vunpack.c.h.b16 %v421
        %v993 = vunpack.c.l.b16 %v422
        %v994 = vunpack.c.h.b16 %v422
        %v995 = vunpack.c.l.b16 %v423
        %v996 = vunpack.c.h.b16 %v423
        %v997 = vunpack.c.l.b16 %v424
        %v998 = vunpack.c.h.b16 %v424
        %v999 = vunpack.c.l.b16 %v425
        %v1000 = vunpack.c.h.b16 %v425
        %v1001 = vunpack.c.l.b16 %v426
        %v1002 = vunpack.c.h.b16 %v426
        %v1003 = vunpack.c.l.b16 %v427
        %v1004 = vunpack.c.h.b16 %v427
        %v1005 = vunpack.c.l.b16 %v428
        %v1006 = vunpack.c.h.b16 %v428
        %v1007 = vunpack.c.l.b16 %v429
        %v1008 = vunpack.c.h.b16 %v429
        %v1009 = vunpack.c.l.b16 %v430
        %v1010 = vunpack.c.h.b16 %v430
        %v1011 = vunpack.c.l.b16 %v431
        %v1012 = vunpack.c.h.b16 %v431
        %v1013 = vunpack.c.l.b16 %v432
        %v1014 = vunpack.c.h.b16 %v432
        %v1015 = vunpack.c.l.b16 %v433
        %v1016 = vunpack.c.h.b16 %v433
        %v1017 = vunpack.c.l.b16 %v434
        %v1018 = vunpack.c.h.b16 %v434
        %v1019 = vpack.c.b16 %v987, %v971
        %v1020 = vpack.c.b16 %v988, %v972
        %v1021 = vpack.c.b16 %v989, %v973
        %v1022 = vpack.c.b16 %v990, %v974
        %v1023 = vpack.c.b16 %v991, %v975
        %v1024 = vpack.c.b16 %v992, %v976
        %v1025 = vpack.c.b16 %v993, %v977
        %v1026 = vpack.c.b16 %v994, %v978
        %v1027 = vpack.c.b16 %v995, %v979
        %v1028 = vpack.c.b16 %v996, %v980
        %v1029 = vpack.c.b16 %v997, %v981
        %v1030 = vpack.c.b16 %v998, %v982
        %v1031 = vpack.c.b16 %v999, %v983
        %v1032 = vpack.c.b16 %v1000, %v984
        %v1033 = vpack.c.b16 %v1001, %v985
        %v1034 = vpack.c.b16 %v1002, %v986
        %v1035 = vpack.c.b16 %v1003, %v1003
        %v1036 = vpack.c.b16 %v1004, %v1004
        %v1037 = vpack.c.b16 %v1005, %v1005
        %v1038 = vpack.c.b16 %v1006, %v1006
        %v1039 = vpack.c.b16 %v1007, %v1007
        %v1040 = vpack.c.b16 %v1008, %v1008
        %v1041 = vpack.c.b16 %v1009, %v1009
        %v1042 = vpack.c.b16 %v1010, %v1010
        %v1043 = vpack.c.b16 %v1011, %v1011
        %v1044 = vpack.c.b16 %v1012, %v1012
        %v1045 = vpack.c.b16 %v1013, %v1013
        %v1046 = vpack.c.b16 %v1014, %v1014
        %v1047 = vpack.c.b16 %v1015, %v1015
        %v1048 = vpack.c.b16 %v1016, %v1016
        %v1049 = vpack.c.b16 %v1017, %v1017
        %v1050 = vpack.c.b16 %v1018, %v1018
        %v1595 = vunpack.c.l.b16 %v435
        %v1596 = vunpack.c.h.b16 %v435
        %v1597 = vunpack.c.l.b16 %v436
        %v1598 = vunpack.c.h.b16 %v436
        %v1599 = vunpack.c.l.b16 %v437
        %v1600 = vunpack.c.h.b16 %v437
        %v1601 = vunpack.c.l.b16 %v438
        %v1602 = vunpack.c.h.b16 %v438
        %v1603 = vunpack.c.l.b16 %v439
        %v1604 = vunpack.c.h.b16 %v439
        %v1605 = vunpack.c.l.b16 %v440
        %v1606 = vunpack.c.h.b16 %v440
        %v1607 = vunpack.c.l.b16 %v441
        %v1608 = vunpack.c.h.b16 %v441
        %v1609 = vunpack.c.l.b16 %v442
        %v1610 = vunpack.c.h.b16 %v442
        %v1611 = vunpack.c.l.b16 %v443
        %v1612 = vunpack.c.h.b16 %v443
        %v1613 = vunpack.c.l.b16 %v444
        %v1614 = vunpack.c.h.b16 %v444
        %v1615 = vunpack.c.l.b16 %v445
        %v1616 = vunpack.c.h.b16 %v445
        %v1617 = vunpack.c.l.b16 %v446
        %v1618 = vunpack.c.h.b16 %v446
        %v1619 = vunpack.c.l.b16 %v447
        %v1620 = vunpack.c.h.b16 %v447
        %v1621 = vunpack.c.l.b16 %v448
        %v1622 = vunpack.c.h.b16 %v448
        %v1623 = vunpack.c.l.b16 %v449
        %v1624 = vunpack.c.h.b16 %v449
        %v1625 = vunpack.c.l.b16 %v450
        %v1626 = vunpack.c.h.b16 %v450
        %v1627 = vunpack.c.l.b16 %v451
        %v1628 = vunpack.c.h.b16 %v451
        %v1629 = vunpack.c.l.b16 %v452
        %v1630 = vunpack.c.h.b16 %v452
        %v1631 = vunpack.c.l.b16 %v453
        %v1632 = vunpack.c.h.b16 %v453
        %v1633 = vunpack.c.l.b16 %v454
        %v1634 = vunpack.c.h.b16 %v454
        %v1635 = vunpack.c.l.b16 %v455
        %v1636 = vunpack.c.h.b16 %v455
        %v1637 = vunpack.c.l.b16 %v456
        %v1638 = vunpack.c.h.b16 %v456
        %v1639 = vunpack.c.l.b16 %v457
        %v1640 = vunpack.c.h.b16 %v457
        %v1641 = vunpack.c.l.b16 %v458
        %v1642 = vunpack.c.h.b16 %v458
        %v1643 = vunpack.c.l.b16 %v459
        %v1644 = vunpack.c.h.b16 %v459
        %v1645 = vunpack.c.l.b16 %v460
        %v1646 = vunpack.c.h.b16 %v460
        %v1647 = vunpack.c.l.b16 %v461
        %v1648 = vunpack.c.h.b16 %v461
        %v1649 = vunpack.c.l.b16 %v462
        %v1650 = vunpack.c.h.b16 %v462
        %v1651 = vunpack.c.l.b16 %v463
        %v1652 = vunpack.c.h.b16 %v463
        %v1653 = vunpack.c.l.b16 %v464
        %v1654 = vunpack.c.h.b16 %v464
        %v1655 = vunpack.c.l.b16 %v465
        %v1656 = vunpack.c.h.b16 %v465
        %v1657 = vunpack.c.l.b16 %v466
        %v1658 = vunpack.c.h.b16 %v466
        %v1659 = vunpack.c.l.b16 %v467
        %v1660 = vunpack.c.h.b16 %v467
        %v1661 = vunpack.c.l.b16 %v468
        %v1662 = vunpack.c.h.b16 %v468
        %v1663 = vunpack.c.l.b16 %v469
        %v1664 = vunpack.c.h.b16 %v469
        %v1665 = vunpack.c.l.b16 %v470
        %v1666 = vunpack.c.h.b16 %v470
        %v1667 = vunpack.c.l.b16 %v471
        %v1668 = vunpack.c.h.b16 %v471
        %v1669 = vunpack.c.l.b16 %v472
        %v1670 = vunpack.c.h.b16 %v472
        %v1671 = vunpack.c.l.b16 %v473
        %v1672 = vunpack.c.h.b16 %v473
        %v1673 = vunpack.c.l.b16 %v474
        %v1674 = vunpack.c.h.b16 %v474
        %v1675 = vunpack.c.l.b16 %v475
        %v1676 = vunpack.c.h.b16 %v475
        %v1677 = vunpack.c.l.b16 %v476
        %v1678 = vunpack.c.h.b16 %v476
        %v1679 = vunpack.c.l.b16 %v477
        %v1680 = vunpack.c.h.b16 %v477
        %v1681 = vunpack.c.l.b16 %v478
        %v1682 = vunpack.c.h.b16 %v478
        %v1683 = vunpack.c.l.b16 %v479
        %v1684 = vunpack.c.h.b16 %v479
        %v1685 = vunpack.c.l.b16 %v480
        %v1686 = vunpack.c.h.b16 %v480
        %v1687 = vunpack.c.l.b16 %v481
        %v1688 = vunpack.c.h.b16 %v481
        %v1689 = vunpack.c.l.b16 %v482
        %v1690 = vunpack.c.h.b16 %v482
        %v1691 = vunpack.c.l.b16 %v483
        %v1692 = vunpack.c.h.b16 %v483
        %v1693 = vunpack.c.l.b16 %v484
        %v1694 = vunpack.c.h.b16 %v484
        %v1695 = vunpack.c.l.b16 %v485
        %v1696 = vunpack.c.h.b16 %v485
        %v1697 = vunpack.c.l.b16 %v486
        %v1698 = vunpack.c.h.b16 %v486
        %v1699 = vunpack.c.l.b16 %v487
        %v1700 = vunpack.c.h.b16 %v487
        %v1701 = vunpack.c.l.b16 %v488
        %v1702 = vunpack.c.h.b16 %v488
        %v1703 = vunpack.c.l.b16 %v489
        %v1704 = vunpack.c.h.b16 %v489
        %v1705 = vunpack.c.l.b16 %v490
        %v1706 = vunpack.c.h.b16 %v490
        %v1707 = vunpack.c.l.b16 %v491
        %v1708 = vunpack.c.h.b16 %v491
        %v1709 = vunpack.c.l.b16 %v492
        %v1710 = vunpack.c.h.b16 %v492
        %v1711 = vunpack.c.l.b16 %v493
        %v1712 = vunpack.c.h.b16 %v493
        %v1713 = vunpack.c.l.b16 %v494
        %v1714 = vunpack.c.h.b16 %v494
        %v1715 = vunpack.c.l.b16 %v495
        %v1716 = vunpack.c.h.b16 %v495
        %v1717 = vunpack.c.l.b16 %v496
        %v1718 = vunpack.c.h.b16 %v496
        %v1719 = vunpack.c.l.b16 %v497
        %v1720 = vunpack.c.h.b16 %v497
        %v1721 = vunpack.c.l.b16 %v498
        %v1722 = vunpack.c.h.b16 %v498
        %v1723 = vunpack.c.l.b16 %v499
        %v1724 = vunpack.c.h.b16 %v499
        %v1725 = vunpack.c.l.b16 %v500
        %v1726 = vunpack.c.h.b16 %v500
        %v1727 = vunpack.c.l.b16 %v501
        %v1728 = vunpack.c.h.b16 %v501
        %v1729 = vunpack.c.l.b16 %v502
        %v1730 = vunpack.c.h.b16 %v502
        %v1731 = vunpack.c.l.b16 %v503
        %v1732 = vunpack.c.h.b16 %v503
        %v1733 = vunpack.c.l.b16 %v504
        %v1734 = vunpack.c.h.b16 %v504
        %v1735 = vunpack.c.l.b16 %v505
        %v1736 = vunpack.c.h.b16 %v505
        %v1737 = vunpack.c.l.b16 %v506
        %v1738 = vunpack.c.h.b16 %v506
        %v1739 = vunpack.c.l.b16 %v507
        %v1740 = vunpack.c.h.b16 %v507
        %v1741 = vunpack.c.l.b16 %v508
        %v1742 = vunpack.c.h.b16 %v508
        %v1743 = vunpack.c.l.b16 %v509
        %v1744 = vunpack.c.h.b16 %v509
        %v1745 = vunpack.c.l.b16 %v510
        %v1746 = vunpack.c.h.b16 %v510
        %v1747 = vunpack.c.l.b16 %v511
        %v1748 = vunpack.c.h.b16 %v511
        %v1749 = vunpack.c.l.b16 %v512
        %v1750 = vunpack.c.h.b16 %v512
        %v1751 = vunpack.c.l.b16 %v513
        %v1752 = vunpack.c.h.b16 %v513
        %v1753 = vunpack.c.l.b16 %v514
        %v1754 = vunpack.c.h.b16 %v514
        %v1755 = vunpack.c.l.b16 %v515
        %v1756 = vunpack.c.h.b16 %v515
        %v1757 = vunpack.c.l.b16 %v516
        %v1758 = vunpack.c.h.b16 %v516
        %v1759 = vunpack.c.l.b16 %v517
        %v1760 = vunpack.c.h.b16 %v517
        %v1761 = vunpack.c.l.b16 %v518
        %v1762 = vunpack.c.h.b16 %v518
        %v1763 = vunpack.c.l.b16 %v519
        %v1764 = vunpack.c.h.b16 %v519
        %v1765 = vunpack.c.l.b16 %v520
        %v1766 = vunpack.c.h.b16 %v520
        %v1767 = vunpack.c.l.b16 %v521
        %v1768 = vunpack.c.h.b16 %v521
        %v1769 = vunpack.c.l.b16 %v522
        %v1770 = vunpack.c.h.b16 %v522
        %v1771 = vunpack.c.l.b16 %v523
        %v1772 = vunpack.c.h.b16 %v523
        %v1773 = vunpack.c.l.b16 %v524
        %v1774 = vunpack.c.h.b16 %v524
        %v1775 = vunpack.c.l.b16 %v525
        %v1776 = vunpack.c.h.b16 %v525
        %v1777 = vunpack.c.l.b16 %v526
        %v1778 = vunpack.c.h.b16 %v526
        %v1779 = vunpack.c.l.b16 %v527
        %v1780 = vunpack.c.h.b16 %v527
        %v1781 = vunpack.c.l.b16 %v528
        %v1782 = vunpack.c.h.b16 %v528
        %v1783 = vunpack.c.l.b16 %v529
        %v1784 = vunpack.c.h.b16 %v529
        %v1785 = vunpack.c.l.b16 %v530
        %v1786 = vunpack.c.h.b16 %v530
        %v1787 = vunpack.c.l.b16 %v531
        %v1788 = vunpack.c.h.b16 %v531
        %v1789 = vunpack.c.l.b16 %v532
        %v1790 = vunpack.c.h.b16 %v532
        %v1791 = vunpack.c.l.b16 %v533
        %v1792 = vunpack.c.h.b16 %v533
        %v1793 = vunpack.c.l.b16 %v534
        %v1794 = vunpack.c.h.b16 %v534
        %v1795 = vunpack.c.l.b16 %v535
        %v1796 = vunpack.c.h.b16 %v535
        %v1797 = vunpack.c.l.b16 %v536
        %v1798 = vunpack.c.h.b16 %v536
        %v1799 = vunpack.c.l.b16 %v537
        %v1800 = vunpack.c.h.b16 %v537
        %v1801 = vunpack.c.l.b16 %v538
        %v1802 = vunpack.c.h.b16 %v538
        %v1803 = vunpack.c.l.b16 %v539
        %v1804 = vunpack.c.h.b16 %v539
        %v1805 = vunpack.c.l.b16 %v540
        %v1806 = vunpack.c.h.b16 %v540
        %v1807 = vunpack.c.l.b16 %v541
        %v1808 = vunpack.c.h.b16 %v541
        %v1809 = vunpack.c.l.b16 %v542
        %v1810 = vunpack.c.h.b16 %v542
        %v1811 = vunpack.c.l.b16 %v543
        %v1812 = vunpack.c.h.b16 %v543
        %v1813 = vunpack.c.l.b16 %v544
        %v1814 = vunpack.c.h.b16 %v544
        %v1815 = vunpack.c.l.b16 %v545
        %v1816 = vunpack.c.h.b16 %v545
        %v1817 = vunpack.c.l.b16 %v546
        %v1818 = vunpack.c.h.b16 %v546
        %v1819 = vunpack.c.l.b16 %v547
        %v1820 = vunpack.c.h.b16 %v547
        %v1821 = vunpack.c.l.b16 %v548
        %v1822 = vunpack.c.h.b16 %v548
        %v1823 = vunpack.c.l.b16 %v549
        %v1824 = vunpack.c.h.b16 %v549
        %v1825 = vunpack.c.l.b16 %v550
        %v1826 = vunpack.c.h.b16 %v550
        %v1827 = vunpack.c.l.b16 %v551
        %v1828 = vunpack.c.h.b16 %v551
        %v1829 = vunpack.c.l.b16 %v552
        %v1830 = vunpack.c.h.b16 %v552
        %v1831 = vunpack.c.l.b16 %v553
        %v1832 = vunpack.c.h.b16 %v553
        %v1833 = vunpack.c.l.b16 %v554
        %v1834 = vunpack.c.h.b16 %v554
        %v1835 = vunpack.c.l.b16 %v555
        %v1836 = vunpack.c.h.b16 %v555
        %v1837 = vunpack.c.l.b16 %v556
        %v1838 = vunpack.c.h.b16 %v556
        %v1839 = vunpack.c.l.b16 %v557
        %v1840 = vunpack.c.h.b16 %v557
        %v1841 = vunpack.c.l.b16 %v558
        %v1842 = vunpack.c.h.b16 %v558
        %v1843 = vunpack.c.l.b16 %v559
        %v1844 = vunpack.c.h.b16 %v559
        %v1845 = vunpack.c.l.b16 %v560
        %v1846 = vunpack.c.h.b16 %v560
        %v1847 = vunpack.c.l.b16 %v561
        %v1848 = vunpack.c.h.b16 %v561
        %v1849 = vunpack.c.l.b16 %v562
        %v1850 = vunpack.c.h.b16 %v562
        %v1851 = vunpack.c.l.b16 %v563
        %v1852 = vunpack.c.h.b16 %v563
        %v1853 = vunpack.c.l.b16 %v564
        %v1854 = vunpack.c.h.b16 %v564
        %v1855 = vunpack.c.l.b16 %v565
        %v1856 = vunpack.c.h.b16 %v565
        %v1857 = vunpack.c.l.b16 %v566
        %v1858 = vunpack.c.h.b16 %v566
        %v1859 = vunpack.c.l.b16 %v567
        %v1860 = vunpack.c.h.b16 %v567
        %v1861 = vunpack.c.l.b16 %v568
        %v1862 = vunpack.c.h.b16 %v568
        %v1863 = vunpack.c.l.b16 %v569
        %v1864 = vunpack.c.h.b16 %v569
        %v1865 = vunpack.c.l.b16 %v570
        %v1866 = vunpack.c.h.b16 %v570
        %v1867 = vunpack.c.l.b16 %v571
        %v1868 = vunpack.c.h.b16 %v571
        %v1869 = vunpack.c.l.b16 %v572
        %v1870 = vunpack.c.h.b16 %v572
        %v1871 = vunpack.c.l.b16 %v573
        %v1872 = vunpack.c.h.b16 %v573
        %v1873 = vunpack.c.l.b16 %v574
        %v1874 = vunpack.c.h.b16 %v574
        %v1875 = vunpack.c.l.b16 %v575
        %v1876 = vunpack.c.h.b16 %v575
        %v1877 = vunpack.c.l.b16 %v576
        %v1878 = vunpack.c.h.b16 %v576
        %v1879 = vunpack.c.l.b16 %v577
        %v1880 = vunpack.c.h.b16 %v577
        %v1881 = vunpack.c.l.b16 %v578
        %v1882 = vunpack.c.h.b16 %v578
        %v1883 = vunpack.c.l.b16 %v579
        %v1884 = vunpack.c.h.b16 %v579
        %v1885 = vunpack.c.l.b16 %v580
        %v1886 = vunpack.c.h.b16 %v580
        %v1887 = vunpack.c.l.b16 %v581
        %v1888 = vunpack.c.h.b16 %v581
        %v1889 = vunpack.c.l.b16 %v582
        %v1890 = vunpack.c.h.b16 %v582
        %v1891 = vunpack.c.l.b16 %v583
        %v1892 = vunpack.c.h.b16 %v583
        %v1893 = vunpack.c.l.b16 %v584
        %v1894 = vunpack.c.h.b16 %v584
        %v1895 = vunpack.c.l.b16 %v585
        %v1896 = vunpack.c.h.b16 %v585
        %v1897 = vunpack.c.l.b16 %v586
        %v1898 = vunpack.c.h.b16 %v586
        %v1899 = vunpack.c.l.b16 %v587
        %v1900 = vunpack.c.h.b16 %v587
        %v1901 = vunpack.c.l.b16 %v588
        %v1902 = vunpack.c.h.b16 %v588
        %v1903 = vunpack.c.l.b16 %v589
        %v1904 = vunpack.c.h.b16 %v589
        %v1905 = vunpack.c.l.b16 %v590
        %v1906 = vunpack.c.h.b16 %v590
        %v1907 = vunpack.c.l.b16 %v591
        %v1908 = vunpack.c.h.b16 %v591
        %v1909 = vunpack.c.l.b16 %v592
        %v1910 = vunpack.c.h.b16 %v592
        %v1911 = vunpack.c.l.b16 %v593
        %v1912 = vunpack.c.h.b16 %v593
        %v1913 = vunpack.c.l.b16 %v594
        %v1914 = vunpack.c.h.b16 %v594
        %v1915 = vunpack.c.l.b16 %v595
        %v1916 = vunpack.c.h.b16 %v595
        %v1917 = vunpack.c.l.b16 %v596
        %v1918 = vunpack.c.h.b16 %v596
        %v1919 = vunpack.c.l.b16 %v597
        %v1920 = vunpack.c.h.b16 %v597
        %v1921 = vunpack.c.l.b16 %v598
        %v1922 = vunpack.c.h.b16 %v598
        %v1923 = vunpack.c.l.b16 %v599
        %v1924 = vunpack.c.h.b16 %v599
        %v1925 = vunpack.c.l.b16 %v600
        %v1926 = vunpack.c.h.b16 %v600
        %v1927 = vunpack.c.l.b16 %v601
        %v1928 = vunpack.c.h.b16 %v601
        %v1929 = vunpack.c.l.b16 %v602
        %v1930 = vunpack.c.h.b16 %v602
        %v1931 = vunpack.c.l.b16 %v603
        %v1932 = vunpack.c.h.b16 %v603
        %v1933 = vunpack.c.l.b16 %v604
        %v1934 = vunpack.c.h.b16 %v604
        %v1935 = vunpack.c.l.b16 %v605
        %v1936 = vunpack.c.h.b16 %v605
        %v1937 = vunpack.c.l.b16 %v606
        %v1938 = vunpack.c.h.b16 %v606
        %v1939 = vunpack.c.l.b16 %v607
        %v1940 = vunpack.c.h.b16 %v607
        %v1941 = vunpack.c.l.b16 %v608
        %v1942 = vunpack.c.h.b16 %v608
        %v1943 = vunpack.c.l.b16 %v609
        %v1944 = vunpack.c.h.b16 %v609
        %v1945 = vunpack.c.l.b16 %v610
        %v1946 = vunpack.c.h.b16 %v610
        %v1947 = vunpack.c.l.b16 %v611
        %v1948 = vunpack.c.h.b16 %v611
        %v1949 = vunpack.c.l.b16 %v612
        %v1950 = vunpack.c.h.b16 %v612
        %v1951 = vunpack.c.l.b16 %v613
        %v1952 = vunpack.c.h.b16 %v613
        %v1953 = vunpack.c.l.b16 %v614
        %v1954 = vunpack.c.h.b16 %v614
        %v1955 = vunpack.c.l.b16 %v615
        %v1956 = vunpack.c.h.b16 %v615
        %v1957 = vunpack.c.l.b16 %v616
        %v1958 = vunpack.c.h.b16 %v616
        %v1959 = vunpack.c.l.b16 %v617
        %v1960 = vunpack.c.h.b16 %v617
        %v1961 = vunpack.c.l.b16 %v618
        %v1962 = vunpack.c.h.b16 %v618
        %v1963 = vunpack.c.l.b16 %v619
        %v1964 = vunpack.c.h.b16 %v619
        %v1965 = vunpack.c.l.b16 %v620
        %v1966 = vunpack.c.h.b16 %v620
        %v1967 = vunpack.c.l.b16 %v621
        %v1968 = vunpack.c.h.b16 %v621
        %v1969 = vunpack.c.l.b16 %v622
        %v1970 = vunpack.c.h.b16 %v622
        %v1971 = vunpack.c.l.b16 %v623
        %v1972 = vunpack.c.h.b16 %v623
        %v1973 = vunpack.c.l.b16 %v624
        %v1974 = vunpack.c.h.b16 %v624
        %v1975 = vunpack.c.l.b16 %v625
        %v1976 = vunpack.c.h.b16 %v625
        %v1977 = vunpack.c.l.b16 %v626
        %v1978 = vunpack.c.h.b16 %v626
        %v1979 = vunpack.c.l.b16 %v627
        %v1980 = vunpack.c.h.b16 %v627
        %v1981 = vunpack.c.l.b16 %v628
        %v1982 = vunpack.c.h.b16 %v628
        %v1983 = vunpack.c.l.b16 %v629
        %v1984 = vunpack.c.h.b16 %v629
        %v1985 = vunpack.c.l.b16 %v630
        %v1986 = vunpack.c.h.b16 %v630
        %v1987 = vunpack.c.l.b16 %v631
        %v1988 = vunpack.c.h.b16 %v631
        %v1989 = vunpack.c.l.b16 %v632
        %v1990 = vunpack.c.h.b16 %v632
        %v1991 = vunpack.c.l.b16 %v633
        %v1992 = vunpack.c.h.b16 %v633
        %v1993 = vunpack.c.l.b16 %v634
        %v1994 = vunpack.c.h.b16 %v634
        %v1995 = vunpack.c.l.b16 %v635
        %v1996 = vunpack.c.h.b16 %v635
        %v1997 = vunpack.c.l.b16 %v636
        %v1998 = vunpack.c.h.b16 %v636
        %v1999 = vunpack.c.l.b16 %v637
        %v2000 = vunpack.c.h.b16 %v637
        %v2001 = vunpack.c.l.b16 %v638
        %v2002 = vunpack.c.h.b16 %v638
        %v2003 = vunpack.c.l.b16 %v639
        %v2004 = vunpack.c.h.b16 %v639
        %v2005 = vunpack.c.l.b16 %v640
        %v2006 = vunpack.c.h.b16 %v640
        %v2007 = vunpack.c.l.b16 %v641
        %v2008 = vunpack.c.h.b16 %v641
        %v2009 = vunpack.c.l.b16 %v642
        %v2010 = vunpack.c.h.b16 %v642
        %v2011 = vunpack.c.l.b16 %v643
        %v2012 = vunpack.c.h.b16 %v643
        %v2013 = vunpack.c.l.b16 %v644
        %v2014 = vunpack.c.h.b16 %v644
        %v2015 = vunpack.c.l.b16 %v645
        %v2016 = vunpack.c.h.b16 %v645
        %v2017 = vunpack.c.l.b16 %v646
        %v2018 = vunpack.c.h.b16 %v646
        %v2019 = vunpack.c.l.b16 %v647
        %v2020 = vunpack.c.h.b16 %v647
        %v2021 = vunpack.c.l.b16 %v648
        %v2022 = vunpack.c.h.b16 %v648
        %v2023 = vunpack.c.l.b16 %v649
        %v2024 = vunpack.c.h.b16 %v649
        %v2025 = vunpack.c.l.b16 %v650
        %v2026 = vunpack.c.h.b16 %v650
        %v2027 = vunpack.c.l.b16 %v651
        %v2028 = vunpack.c.h.b16 %v651
        %v2029 = vunpack.c.l.b16 %v652
        %v2030 = vunpack.c.h.b16 %v652
        %v2031 = vunpack.c.l.b16 %v653
        %v2032 = vunpack.c.h.b16 %v653
        %v2033 = vunpack.c.l.b16 %v654
        %v2034 = vunpack.c.h.b16 %v654
        %v2035 = vunpack.c.l.b16 %v655
        %v2036 = vunpack.c.h.b16 %v655
        %v2037 = vunpack.c.l.b16 %v656
        %v2038 = vunpack.c.h.b16 %v656
        %v2039 = vunpack.c.l.b16 %v657
        %v2040 = vunpack.c.h.b16 %v657
        %v2041 = vunpack.c.l.b16 %v658
        %v2042 = vunpack.c.h.b16 %v658
        %v2043 = vunpack.c.l.b16 %v659
        %v2044 = vunpack.c.h.b16 %v659
        %v2045 = vunpack.c.l.b16 %v660
        %v2046 = vunpack.c.h.b16 %v660
        %v2047 = vunpack.c.l.b16 %v661
        %v2048 = vunpack.c.h.b16 %v661
        %v2049 = vunpack.c.l.b16 %v662
        %v2050 = vunpack.c.h.b16 %v662
        %v2051 = vunpack.c.l.b16 %v663
        %v2052 = vunpack.c.h.b16 %v663
        %v2053 = vunpack.c.l.b16 %v664
        %v2054 = vunpack.c.h.b16 %v664
        %v2055 = vunpack.c.l.b16 %v665
        %v2056 = vunpack.c.h.b16 %v665
        %v2057 = vunpack.c.l.b16 %v666
        %v2058 = vunpack.c.h.b16 %v666
        %v2059 = vunpack.c.l.b16 %v667
        %v2060 = vunpack.c.h.b16 %v667
        %v2061 = vunpack.c.l.b16 %v668
        %v2062 = vunpack.c.h.b16 %v668
        %v2063 = vunpack.c.l.b16 %v669
        %v2064 = vunpack.c.h.b16 %v669
        %v2065 = vunpack.c.l.b16 %v670
        %v2066 = vunpack.c.h.b16 %v670
        %v2067 = vunpack.c.l.b16 %v671
        %v2068 = vunpack.c.h.b16 %v671
        %v2069 = vunpack.c.l.b16 %v672
        %v2070 = vunpack.c.h.b16 %v672
        %v2071 = vunpack.c.l.b16 %v673
        %v2072 = vunpack.c.h.b16 %v673
        %v2073 = vunpack.c.l.b16 %v674
        %v2074 = vunpack.c.h.b16 %v674
        %v2075 = vunpack.c.l.b16 %v675
        %v2076 = vunpack.c.h.b16 %v675
        %v2077 = vunpack.c.l.b16 %v676
        %v2078 = vunpack.c.h.b16 %v676
        %v2079 = vunpack.c.l.b16 %v677
        %v2080 = vunpack.c.h.b16 %v677
        %v2081 = vunpack.c.l.b16 %v678
        %v2082 = vunpack.c.h.b16 %v678
        %v2083 = vunpack.c.l.b16 %v679
        %v2084 = vunpack.c.h.b16 %v679
        %v2085 = vunpack.c.l.b16 %v680
        %v2086 = vunpack.c.h.b16 %v680
        %v2087 = vunpack.c.l.b16 %v681
        %v2088 = vunpack.c.h.b16 %v681
        %v2089 = vunpack.c.l.b16 %v682
        %v2090 = vunpack.c.h.b16 %v682
        %v2091 = vunpack.c.l.b16 %v683
        %v2092 = vunpack.c.h.b16 %v683
        %v2093 = vunpack.c.l.b16 %v684
        %v2094 = vunpack.c.h.b16 %v684
        %v2095 = vunpack.c.l.b16 %v685
        %v2096 = vunpack.c.h.b16 %v685
        %v2097 = vunpack.c.l.b16 %v686
        %v2098 = vunpack.c.h.b16 %v686
        %v2099 = vunpack.c.l.b16 %v687
        %v2100 = vunpack.c.h.b16 %v687
        %v2101 = vunpack.c.l.b16 %v688
        %v2102 = vunpack.c.h.b16 %v688
        %v2103 = vunpack.c.l.b16 %v689
        %v2104 = vunpack.c.h.b16 %v689
        %v2105 = vunpack.c.l.b16 %v690
        %v2106 = vunpack.c.h.b16 %v690
        %v2107 = vunpack.c.l.b16 %v691
        %v2108 = vunpack.c.h.b16 %v691
        %v2109 = vunpack.c.l.b16 %v692
        %v2110 = vunpack.c.h.b16 %v692
        %v2111 = vunpack.c.l.b16 %v693
        %v2112 = vunpack.c.h.b16 %v693
        %v2113 = vunpack.c.l.b16 %v694
        %v2114 = vunpack.c.h.b16 %v694
        %v2115 = vunpack.c.l.b16 %v695
        %v2116 = vunpack.c.h.b16 %v695
        %v2117 = vunpack.c.l.b16 %v696
        %v2118 = vunpack.c.h.b16 %v696
        %v2119 = vunpack.c.l.b16 %v697
        %v2120 = vunpack.c.h.b16 %v697
        %v2121 = vunpack.c.l.b16 %v698
        %v2122 = vunpack.c.h.b16 %v698
        %v2123 = vunpack.c.l.b16 %v699
        %v2124 = vunpack.c.h.b16 %v699
        %v2125 = vunpack.c.l.b16 %v700
        %v2126 = vunpack.c.h.b16 %v700
        %v2127 = vunpack.c.l.b16 %v701
        %v2128 = vunpack.c.h.b16 %v701
        %v2129 = vunpack.c.l.b16 %v702
        %v2130 = vunpack.c.h.b16 %v702
        %v2131 = vunpack.c.l.b16 %v703
        %v2132 = vunpack.c.h.b16 %v703
        %v2133 = vunpack.c.l.b16 %v704
        %v2134 = vunpack.c.h.b16 %v704
        %v2135 = vunpack.c.l.b16 %v705
        %v2136 = vunpack.c.h.b16 %v705
        %v2137 = vunpack.c.l.b16 %v706
        %v2138 = vunpack.c.h.b16 %v706
        %v2139 = vunpack.c.l.b16 %v707
        %v2140 = vunpack.c.h.b16 %v707
        %v2141 = vunpack.c.l.b16 %v708
        %v2142 = vunpack.c.h.b16 %v708
        %v2143 = vunpack.c.l.b16 %v709
        %v2144 = vunpack.c.h.b16 %v709
        %v2145 = vunpack.c.l.b16 %v710
        %v2146 = vunpack.c.h.b16 %v710
        %v2147 = vunpack.c.l.b16 %v711
        %v2148 = vunpack.c.h.b16 %v711
        %v2149 = vunpack.c.l.b16 %v712
        %v2150 = vunpack.c.h.b16 %v712
        %v2151 = vunpack.c.l.b16 %v713
        %v2152 = vunpack.c.h.b16 %v713
        %v2153 = vunpack.c.l.b16 %v714
        %v2154 = vunpack.c.h.b16 %v714
        %v2155 = vunpack.c.l.b16 %v715
        %v2156 = vunpack.c.h.b16 %v715
        %v2157 = vunpack.c.l.b16 %v716
        %v2158 = vunpack.c.h.b16 %v716
        %v2159 = vunpack.c.l.b16 %v717
        %v2160 = vunpack.c.h.b16 %v717
        %v2161 = vunpack.c.l.b16 %v718
        %v2162 = vunpack.c.h.b16 %v718
        %v2163 = vunpack.c.l.b16 %v719
        %v2164 = vunpack.c.h.b16 %v719
        %v2165 = vunpack.c.l.b16 %v720
        %v2166 = vunpack.c.h.b16 %v720
        %v2167 = vunpack.c.l.b16 %v721
        %v2168 = vunpack.c.h.b16 %v721
        %v2169 = vunpack.c.l.b16 %v722
        %v2170 = vunpack.c.h.b16 %v722
        %v2171 = vunpack.c.l.b16 %v723
        %v2172 = vunpack.c.h.b16 %v723
        %v2173 = vunpack.c.l.b16 %v724
        %v2174 = vunpack.c.h.b16 %v724
        %v2175 = vunpack.c.l.b16 %v725
        %v2176 = vunpack.c.h.b16 %v725
        %v2177 = vunpack.c.l.b16 %v726
        %v2178 = vunpack.c.h.b16 %v726
        %v2179 = vunpack.c.l.b16 %v727
        %v2180 = vunpack.c.h.b16 %v727
        %v2181 = vunpack.c.l.b16 %v728
        %v2182 = vunpack.c.h.b16 %v728
        %v2183 = vunpack.c.l.b16 %v729
        %v2184 = vunpack.c.h.b16 %v729
        %v2185 = vunpack.c.l.b16 %v730
        %v2186 = vunpack.c.h.b16 %v730
        %v2187 = vunpack.c.l.b16 %v731
        %v2188 = vunpack.c.h.b16 %v731
        %v2189 = vunpack.c.l.b16 %v732
        %v2190 = vunpack.c.h.b16 %v732
        %v2191 = vunpack.c.l.b16 %v733
        %v2192 = vunpack.c.h.b16 %v733
        %v2193 = vunpack.c.l.b16 %v734
        %v2194 = vunpack.c.h.b16 %v734
        %v2195 = vunpack.c.l.b16 %v735
        %v2196 = vunpack.c.h.b16 %v735
        %v2197 = vunpack.c.l.b16 %v736
        %v2198 = vunpack.c.h.b16 %v736
        %v2199 = vunpack.c.l.b16 %v737
        %v2200 = vunpack.c.h.b16 %v737
        %v2201 = vunpack.c.l.b16 %v738
        %v2202 = vunpack.c.h.b16 %v738
        %v2203 = vunpack.c.l.b16 %v739
        %v2204 = vunpack.c.h.b16 %v739
        %v2205 = vunpack.c.l.b16 %v740
        %v2206 = vunpack.c.h.b16 %v740
        %v2207 = vunpack.c.l.b16 %v741
        %v2208 = vunpack.c.h.b16 %v741
        %v2209 = vunpack.c.l.b16 %v742
        %v2210 = vunpack.c.h.b16 %v742
        %v2211 = vunpack.c.l.b16 %v743
        %v2212 = vunpack.c.h.b16 %v743
        %v2213 = vunpack.c.l.b16 %v744
        %v2214 = vunpack.c.h.b16 %v744
        %v2215 = vunpack.c.l.b16 %v745
        %v2216 = vunpack.c.h.b16 %v745
        %v2217 = vunpack.c.l.b16 %v746
        %v2218 = vunpack.c.h.b16 %v746
        %v2219 = vunpack.c.l.b16 %v747
        %v2220 = vunpack.c.h.b16 %v747
        %v2221 = vunpack.c.l.b16 %v748
        %v2222 = vunpack.c.h.b16 %v748
        %v2223 = vunpack.c.l.b16 %v749
        %v2224 = vunpack.c.h.b16 %v749
        %v2225 = vunpack.c.l.b16 %v750
        %v2226 = vunpack.c.h.b16 %v750
        %v2227 = vunpack.c.l.b16 %v751
        %v2228 = vunpack.c.h.b16 %v751
        %v2229 = vunpack.c.l.b16 %v752
        %v2230 = vunpack.c.h.b16 %v752
        %v2231 = vunpack.c.l.b16 %v753
        %v2232 = vunpack.c.h.b16 %v753
        %v2233 = vunpack.c.l.b16 %v754
        %v2234 = vunpack.c.h.b16 %v754
        %v2235 = vunpack.c.l.b16 %v755
        %v2236 = vunpack.c.h.b16 %v755
        %v2237 = vunpack.c.l.b16 %v756
        %v2238 = vunpack.c.h.b16 %v756
        %v2239 = vunpack.c.l.b16 %v757
        %v2240 = vunpack.c.h.b16 %v757
        %v2241 = vunpack.c.l.b16 %v758
        %v2242 = vunpack.c.h.b16 %v758
        %v2243 = vunpack.c.l.b16 %v759
        %v2244 = vunpack.c.h.b16 %v759
        %v2245 = vunpack.c.l.b16 %v760
        %v2246 = vunpack.c.h.b16 %v760
        %v2247 = vunpack.c.l.b16 %v761
        %v2248 = vunpack.c.h.b16 %v761
        %v2249 = vunpack.c.l.b16 %v762
        %v2250 = vunpack.c.h.b16 %v762
        %v2251 = vunpack.c.l.b16 %v763
        %v2252 = vunpack.c.h.b16 %v763
        %v2253 = vunpack.c.l.b16 %v764
        %v2254 = vunpack.c.h.b16 %v764
        %v2255 = vunpack.c.l.b16 %v765
        %v2256 = vunpack.c.h.b16 %v765
        %v2257 = vunpack.c.l.b16 %v766
        %v2258 = vunpack.c.h.b16 %v766
        %v2259 = vunpack.c.l.b16 %v767
        %v2260 = vunpack.c.h.b16 %v767
        %v2261 = vunpack.c.l.b16 %v768
        %v2262 = vunpack.c.h.b16 %v768
        %v2263 = vunpack.c.l.b16 %v769
        %v2264 = vunpack.c.h.b16 %v769
        %v2265 = vunpack.c.l.b16 %v770
        %v2266 = vunpack.c.h.b16 %v770
        %v2267 = vunpack.c.l.b16 %v771
        %v2268 = vunpack.c.h.b16 %v771
        %v2269 = vunpack.c.l.b16 %v772
        %v2270 = vunpack.c.h.b16 %v772
        %v2271 = vunpack.c.l.b16 %v773
        %v2272 = vunpack.c.h.b16 %v773
        %v2273 = vunpack.c.l.b16 %v774
        %v2274 = vunpack.c.h.b16 %v774
        %v2275 = vunpack.c.l.b16 %v775
        %v2276 = vunpack.c.h.b16 %v775
        %v2277 = vunpack.c.l.b16 %v776
        %v2278 = vunpack.c.h.b16 %v776
        %v2279 = vunpack.c.l.b16 %v777
        %v2280 = vunpack.c.h.b16 %v777
        %v2281 = vunpack.c.l.b16 %v778
        %v2282 = vunpack.c.h.b16 %v778
        %v2283 = vunpack.c.l.b16 %v779
        %v2284 = vunpack.c.h.b16 %v779
        %v2285 = vunpack.c.l.b16 %v780
        %v2286 = vunpack.c.h.b16 %v780
        %v2287 = vunpack.c.l.b16 %v781
        %v2288 = vunpack.c.h.b16 %v781
        %v2289 = vunpack.c.l.b16 %v782
        %v2290 = vunpack.c.h.b16 %v782
        %v2291 = vunpack.c.l.b16 %v783
        %v2292 = vunpack.c.h.b16 %v783
        %v2293 = vunpack.c.l.b16 %v784
        %v2294 = vunpack.c.h.b16 %v784
        %v2295 = vunpack.c.l.b16 %v785
        %v2296 = vunpack.c.h.b16 %v785
        %v2297 = vunpack.c.l.b16 %v786
        %v2298 = vunpack.c.h.b16 %v786
        %v2299 = vunpack.c.l.b16 %v787
        %v2300 = vunpack.c.h.b16 %v787
        %v2301 = vunpack.c.l.b16 %v788
        %v2302 = vunpack.c.h.b16 %v788
        %v2303 = vunpack.c.l.b16 %v789
        %v2304 = vunpack.c.h.b16 %v789
        %v2305 = vunpack.c.l.b16 %v790
        %v2306 = vunpack.c.h.b16 %v790
        %v2307 = vunpack.c.l.b16 %v791
        %v2308 = vunpack.c.h.b16 %v791
        %v2309 = vunpack.c.l.b16 %v792
        %v2310 = vunpack.c.h.b16 %v792
        %v2311 = vunpack.c.l.b16 %v793
        %v2312 = vunpack.c.h.b16 %v793
        %v2313 = vunpack.c.l.b16 %v794
        %v2314 = vunpack.c.h.b16 %v794
        %v2315 = vunpack.c.l.b16 %v795
        %v2316 = vunpack.c.h.b16 %v795
        %v2317 = vunpack.c.l.b16 %v796
        %v2318 = vunpack.c.h.b16 %v796
        %v2319 = vunpack.c.l.b16 %v797
        %v2320 = vunpack.c.h.b16 %v797
        %v2321 = vunpack.c.l.b16 %v798
        %v2322 = vunpack.c.h.b16 %v798
        %v2323 = vunpack.c.l.b16 %v799
        %v2324 = vunpack.c.h.b16 %v799
        %v2325 = vunpack.c.l.b16 %v800
        %v2326 = vunpack.c.h.b16 %v800
        %v2327 = vunpack.c.l.b16 %v801
        %v2328 = vunpack.c.h.b16 %v801
        %v2329 = vunpack.c.l.b16 %v802
        %v2330 = vunpack.c.h.b16 %v802
        %v2331 = vunpack.c.l.b16 %v803
        %v2332 = vunpack.c.h.b16 %v803
        %v2333 = vunpack.c.l.b16 %v804
        %v2334 = vunpack.c.h.b16 %v804
        %v2335 = vunpack.c.l.b16 %v805
        %v2336 = vunpack.c.h.b16 %v805
        %v2337 = vunpack.c.l.b16 %v806
        %v2338 = vunpack.c.h.b16 %v806
        %v2339 = vunpack.c.l.b16 %v807
        %v2340 = vunpack.c.h.b16 %v807
        %v2341 = vunpack.c.l.b16 %v808
        %v2342 = vunpack.c.h.b16 %v808
        %v2343 = vunpack.c.l.b16 %v809
        %v2344 = vunpack.c.h.b16 %v809
        %v2345 = vunpack.c.l.b16 %v810
        %v2346 = vunpack.c.h.b16 %v810
        %v2347 = vunpack.c.l.b16 %v811
        %v2348 = vunpack.c.h.b16 %v811
        %v2349 = vunpack.c.l.b16 %v812
        %v2350 = vunpack.c.h.b16 %v812
        %v2351 = vunpack.c.l.b16 %v813
        %v2352 = vunpack.c.h.b16 %v813
        %v2353 = vunpack.c.l.b16 %v814
        %v2354 = vunpack.c.h.b16 %v814
        %v2355 = vunpack.c.l.b16 %v815
        %v2356 = vunpack.c.h.b16 %v815
        %v2357 = vunpack.c.l.b16 %v816
        %v2358 = vunpack.c.h.b16 %v816
        %v2359 = vunpack.c.l.b16 %v817
        %v2360 = vunpack.c.h.b16 %v817
        %v2361 = vunpack.c.l.b16 %v818
        %v2362 = vunpack.c.h.b16 %v818
        %v2363 = vunpack.c.l.b16 %v819
        %v2364 = vunpack.c.h.b16 %v819
        %v2365 = vunpack.c.l.b16 %v820
        %v2366 = vunpack.c.h.b16 %v820
        %v2367 = vunpack.c.l.b16 %v821
        %v2368 = vunpack.c.h.b16 %v821
        %v2369 = vunpack.c.l.b16 %v822
        %v2370 = vunpack.c.h.b16 %v822
        %v2371 = vunpack.c.l.b16 %v823
        %v2372 = vunpack.c.h.b16 %v823
        %v2373 = vunpack.c.l.b16 %v824
        %v2374 = vunpack.c.h.b16 %v824
        %v2375 = vunpack.c.l.b16 %v825
        %v2376 = vunpack.c.h.b16 %v825
        %v2377 = vunpack.c.l.b16 %v826
        %v2378 = vunpack.c.h.b16 %v826
        %v2379 = vunpack.c.l.b16 %v827
        %v2380 = vunpack.c.h.b16 %v827
        %v2381 = vunpack.c.l.b16 %v828
        %v2382 = vunpack.c.h.b16 %v828
        %v2383 = vunpack.c.l.b16 %v829
        %v2384 = vunpack.c.h.b16 %v829
        %v2385 = vunpack.c.l.b16 %v830
        %v2386 = vunpack.c.h.b16 %v830
        %v2387 = vunpack.c.l.b16 %v831
        %v2388 = vunpack.c.h.b16 %v831
        %v2389 = vunpack.c.l.b16 %v832
        %v2390 = vunpack.c.h.b16 %v832
        %v2391 = vunpack.c.l.b16 %v833
        %v2392 = vunpack.c.h.b16 %v833
        %v2393 = vunpack.c.l.b16 %v834
        %v2394 = vunpack.c.h.b16 %v834
        %v2395 = vunpack.c.l.b16 %v835
        %v2396 = vunpack.c.h.b16 %v835
        %v2397 = vunpack.c.l.b16 %v836
        %v2398 = vunpack.c.h.b16 %v836
        %v2399 = vunpack.c.l.b16 %v837
        %v2400 = vunpack.c.h.b16 %v837
        %v2401 = vunpack.c.l.b16 %v838
        %v2402 = vunpack.c.h.b16 %v838
        %v2403 = vunpack.c.l.b16 %v839
        %v2404 = vunpack.c.h.b16 %v839
        %v2405 = vunpack.c.l.b16 %v840
        %v2406 = vunpack.c.h.b16 %v840
        %v2407 = vunpack.c.l.b16 %v841
        %v2408 = vunpack.c.h.b16 %v841
        %v2409 = vunpack.c.l.b16 %v842
        %v2410 = vunpack.c.h.b16 %v842
        %v2411 = vunpack.c.l.b16 %v843
        %v2412 = vunpack.c.h.b16 %v843
        %v2413 = vunpack.c.l.b16 %v844
        %v2414 = vunpack.c.h.b16 %v844
        %v2415 = vunpack.c.l.b16 %v845
        %v2416 = vunpack.c.h.b16 %v845
        %v2417 = vunpack.c.l.b16 %v846
        %v2418 = vunpack.c.h.b16 %v846
        %v2419 = vunpack.c.l.b16 %v847
        %v2420 = vunpack.c.h.b16 %v847
        %v2421 = vunpack.c.l.b16 %v848
        %v2422 = vunpack.c.h.b16 %v848
        %v2423 = vunpack.c.l.b16 %v849
        %v2424 = vunpack.c.h.b16 %v849
        %v2425 = vunpack.c.l.b16 %v850
        %v2426 = vunpack.c.h.b16 %v850
        %v2427 = vunpack.c.l.b16 %v851
        %v2428 = vunpack.c.h.b16 %v851
        %v2429 = vunpack.c.l.b16 %v852
        %v2430 = vunpack.c.h.b16 %v852
        %v2431 = vunpack.c.l.b16 %v853
        %v2432 = vunpack.c.h.b16 %v853
        %v2433 = vunpack.c.l.b16 %v854
        %v2434 = vunpack.c.h.b16 %v854
        %v2435 = vunpack.c.l.b16 %v855
        %v2436 = vunpack.c.h.b16 %v855
        %v2437 = vunpack.c.l.b16 %v856
        %v2438 = vunpack.c.h.b16 %v856
        %v2439 = vunpack.c.l.b16 %v857
        %v2440 = vunpack.c.h.b16 %v857
        %v2441 = vunpack.c.l.b16 %v858
        %v2442 = vunpack.c.h.b16 %v858
        %v2443 = vunpack.c.l.b16 %v859
        %v2444 = vunpack.c.h.b16 %v859
        %v2445 = vunpack.c.l.b16 %v860
        %v2446 = vunpack.c.h.b16 %v860
        %v2447 = vunpack.c.l.b16 %v861
        %v2448 = vunpack.c.h.b16 %v861
        %v2449 = vunpack.c.l.b16 %v862
        %v2450 = vunpack.c.h.b16 %v862
        %v2451 = vunpack.c.l.b16 %v863
        %v2452 = vunpack.c.h.b16 %v863
        %v2453 = vunpack.c.l.b16 %v864
        %v2454 = vunpack.c.h.b16 %v864
        %v2455 = vunpack.c.l.b16 %v865
        %v2456 = vunpack.c.h.b16 %v865
        %v2457 = vunpack.c.l.b16 %v866
        %v2458 = vunpack.c.h.b16 %v866
        %v2459 = vunpack.c.l.b16 %v867
        %v2460 = vunpack.c.h.b16 %v867
        %v2461 = vunpack.c.l.b16 %v868
        %v2462 = vunpack.c.h.b16 %v868
        %v2463 = vunpack.c.l.b16 %v869
        %v2464 = vunpack.c.h.b16 %v869
        %v2465 = vunpack.c.l.b16 %v870
        %v2466 = vunpack.c.h.b16 %v870
        %v2467 = vunpack.c.l.b16 %v871
        %v2468 = vunpack.c.h.b16 %v871
        %v2469 = vunpack.c.l.b16 %v872
        %v2470 = vunpack.c.h.b16 %v872
        %v2471 = vunpack.c.l.b16 %v873
        %v2472 = vunpack.c.h.b16 %v873
        %v2473 = vunpack.c.l.b16 %v874
        %v2474 = vunpack.c.h.b16 %v874
        %v2475 = vunpack.c.l.b16 %v875
        %v2476 = vunpack.c.h.b16 %v875
        %v2477 = vunpack.c.l.b16 %v876
        %v2478 = vunpack.c.h.b16 %v876
        %v2479 = vunpack.c.l.b16 %v877
        %v2480 = vunpack.c.h.b16 %v877
        %v2481 = vunpack.c.l.b16 %v878
        %v2482 = vunpack.c.h.b16 %v878
        %v2483 = vunpack.c.l.b16 %v879
        %v2484 = vunpack.c.h.b16 %v879
        %v2485 = vunpack.c.l.b16 %v880
        %v2486 = vunpack.c.h.b16 %v880
        %v2487 = vunpack.c.l.b16 %v881
        %v2488 = vunpack.c.h.b16 %v881
        %v2489 = vunpack.c.l.b16 %v882
        %v2490 = vunpack.c.h.b16 %v882
        %v2491 = vunpack.c.l.b16 %v883
        %v2492 = vunpack.c.h.b16 %v883
        %v2493 = vunpack.c.l.b16 %v884
        %v2494 = vunpack.c.h.b16 %v884
        %v2495 = vunpack.c.l.b16 %v885
        %v2496 = vunpack.c.h.b16 %v885
        %v2497 = vunpack.c.l.b16 %v886
        %v2498 = vunpack.c.h.b16 %v886
        %v2499 = vunpack.c.l.b16 %v887
        %v2500 = vunpack.c.h.b16 %v887
        %v2501 = vunpack.c.l.b16 %v888
        %v2502 = vunpack.c.h.b16 %v888
        %v2503 = vunpack.c.l.b16 %v889
        %v2504 = vunpack.c.h.b16 %v889
        %v2505 = vunpack.c.l.b16 %v890
        %v2506 = vunpack.c.h.b16 %v890
        %v2507 = vunpack.c.l.b16 %v891
        %v2508 = vunpack.c.h.b16 %v891
        %v2509 = vunpack.c.l.b16 %v892
        %v2510 = vunpack.c.h.b16 %v892
        %v2511 = vunpack.c.l.b16 %v893
        %v2512 = vunpack.c.h.b16 %v893
        %v2513 = vunpack.c.l.b16 %v894
        %v2514 = vunpack.c.h.b16 %v894
        %v2515 = vunpack.c.l.b16 %v895
        %v2516 = vunpack.c.h.b16 %v895
        %v2517 = vunpack.c.l.b16 %v896
        %v2518 = vunpack.c.h.b16 %v896
        %v2519 = vunpack.c.l.b16 %v897
        %v2520 = vunpack.c.h.b16 %v897
        %v2521 = vunpack.c.l.b16 %v898
        %v2522 = vunpack.c.h.b16 %v898
        %v2523 = vunpack.c.l.b16 %v899
        %v2524 = vunpack.c.h.b16 %v899
        %v2525 = vunpack.c.l.b16 %v900
        %v2526 = vunpack.c.h.b16 %v900
        %v2527 = vunpack.c.l.b16 %v901
        %v2528 = vunpack.c.h.b16 %v901
        %v2529 = vunpack.c.l.b16 %v902
        %v2530 = vunpack.c.h.b16 %v902
        %v2531 = vunpack.c.l.b16 %v903
        %v2532 = vunpack.c.h.b16 %v903
        %v2533 = vunpack.c.l.b16 %v904
        %v2534 = vunpack.c.h.b16 %v904
        %v2535 = vunpack.c.l.b16 %v905
        %v2536 = vunpack.c.h.b16 %v905
        %v2537 = vunpack.c.l.b16 %v906
        %v2538 = vunpack.c.h.b16 %v906
        %v2539 = vunpack.c.l.b16 %v907
        %v2540 = vunpack.c.h.b16 %v907
        %v2541 = vunpack.c.l.b16 %v908
        %v2542 = vunpack.c.h.b16 %v908
        %v2543 = vunpack.c.l.b16 %v909
        %v2544 = vunpack.c.h.b16 %v909
        %v2545 = vunpack.c.l.b16 %v910
        %v2546 = vunpack.c.h.b16 %v910
        %v2547 = vunpack.c.l.b16 %v911
        %v2548 = vunpack.c.h.b16 %v911
        %v2549 = vunpack.c.l.b16 %v912
        %v2550 = vunpack.c.h.b16 %v912
        %v2551 = vunpack.c.l.b16 %v913
        %v2552 = vunpack.c.h.b16 %v913
        %v2553 = vunpack.c.l.b16 %v914
        %v2554 = vunpack.c.h.b16 %v914
        %v2555 = vunpack.c.l.b16 %v915
        %v2556 = vunpack.c.h.b16 %v915
        %v2557 = vunpack.c.l.b16 %v916
        %v2558 = vunpack.c.h.b16 %v916
        %v2559 = vunpack.c.l.b16 %v917
        %v2560 = vunpack.c.h.b16 %v917
        %v2561 = vunpack.c.l.b16 %v918
        %v2562 = vunpack.c.h.b16 %v918
        %v2563 = vunpack.c.l.b16 %v919
        %v2564 = vunpack.c.h.b16 %v919
        %v2565 = vunpack.c.l.b16 %v920
        %v2566 = vunpack.c.h.b16 %v920
        %v2567 = vunpack.c.l.b16 %v921
        %v2568 = vunpack.c.h.b16 %v921
        %v2569 = vunpack.c.l.b16 %v922
        %v2570 = vunpack.c.h.b16 %v922
        %v2571 = vunpack.c.l.b16 %v923
        %v2572 = vunpack.c.h.b16 %v923
        %v2573 = vunpack.c.l.b16 %v924
        %v2574 = vunpack.c.h.b16 %v924
        %v2575 = vunpack.c.l.b16 %v925
        %v2576 = vunpack.c.h.b16 %v925
        %v2577 = vunpack.c.l.b16 %v926
        %v2578 = vunpack.c.h.b16 %v926
        %v2579 = vunpack.c.l.b16 %v927
        %v2580 = vunpack.c.h.b16 %v927
        %v2581 = vunpack.c.l.b16 %v928
        %v2582 = vunpack.c.h.b16 %v928
        %v2583 = vunpack.c.l.b16 %v929
        %v2584 = vunpack.c.h.b16 %v929
        %v2585 = vunpack.c.l.b16 %v930
        %v2586 = vunpack.c.h.b16 %v930
        %v2587 = vunpack.c.l.b16 %v931
        %v2588 = vunpack.c.h.b16 %v931
        %v2589 = vunpack.c.l.b16 %v932
        %v2590 = vunpack.c.h.b16 %v932
        %v2591 = vunpack.c.l.b16 %v933
        %v2592 = vunpack.c.h.b16 %v933
        %v2593 = vunpack.c.l.b16 %v934
        %v2594 = vunpack.c.h.b16 %v934
        %v2595 = vunpack.c.l.b16 %v935
        %v2596 = vunpack.c.h.b16 %v935
        %v2597 = vunpack.c.l.b16 %v936
        %v2598 = vunpack.c.h.b16 %v936
        %v2599 = vunpack.c.l.b16 %v937
        %v2600 = vunpack.c.h.b16 %v937
        %v2601 = vunpack.c.l.b16 %v938
        %v2602 = vunpack.c.h.b16 %v938
        %v2603 = vunpack.c.l.b16 %v939
        %v2604 = vunpack.c.h.b16 %v939
        %v2605 = vunpack.c.l.b16 %v940
        %v2606 = vunpack.c.h.b16 %v940
        %v2607 = vunpack.c.l.b16 %v941
        %v2608 = vunpack.c.h.b16 %v941
        %v2609 = vunpack.c.l.b16 %v942
        %v2610 = vunpack.c.h.b16 %v942
        %v2611 = vunpack.c.l.b16 %v943
        %v2612 = vunpack.c.h.b16 %v943
        %v2613 = vunpack.c.l.b16 %v944
        %v2614 = vunpack.c.h.b16 %v944
        %v2615 = vunpack.c.l.b16 %v945
        %v2616 = vunpack.c.h.b16 %v945
        %v2617 = vunpack.c.l.b16 %v946
        %v2618 = vunpack.c.h.b16 %v946
        %v2619 = vpack.c.b16 %v1599, %v1595
        %v2620 = vpack.c.b16 %v1600, %v1596
        %v2621 = vpack.c.b16 %v1601, %v1597
        %v2622 = vpack.c.b16 %v1602, %v1598
        %v2623 = vpack.c.b16 %v1607, %v1603
        %v2624 = vpack.c.b16 %v1608, %v1604
        %v2625 = vpack.c.b16 %v1609, %v1605
        %v2626 = vpack.c.b16 %v1610, %v1606
        %v2627 = vpack.c.b16 %v1615, %v1611
        %v2628 = vpack.c.b16 %v1616, %v1612
        %v2629 = vpack.c.b16 %v1617, %v1613
        %v2630 = vpack.c.b16 %v1618, %v1614
        %v2631 = vpack.c.b16 %v1623, %v1619
        %v2632 = vpack.c.b16 %v1624, %v1620
        %v2633 = vpack.c.b16 %v1625, %v1621
        %v2634 = vpack.c.b16 %v1626, %v1622
        %v2635 = vpack.c.b16 %v1631, %v1627
        %v2636 = vpack.c.b16 %v1632, %v1628
        %v2637 = vpack.c.b16 %v1633, %v1629
        %v2638 = vpack.c.b16 %v1634, %v1630
        %v2639 = vpack.c.b16 %v1639, %v1635
        %v2640 = vpack.c.b16 %v1640, %v1636
        %v2641 = vpack.c.b16 %v1641, %v1637
        %v2642 = vpack.c.b16 %v1642, %v1638
        %v2643 = vpack.c.b16 %v1647, %v1643
        %v2644 = vpack.c.b16 %v1648, %v1644
        %v2645 = vpack.c.b16 %v1649, %v1645
        %v2646 = vpack.c.b16 %v1650, %v1646
        %v2647 = vpack.c.b16 %v1655, %v1651
        %v2648 = vpack.c.b16 %v1656, %v1652
        %v2649 = vpack.c.b16 %v1657, %v1653
        %v2650 = vpack.c.b16 %v1658, %v1654
        %v2651 = vpack.c.b16 %v1663, %v1659
        %v2652 = vpack.c.b16 %v1664, %v1660
        %v2653 = vpack.c.b16 %v1665, %v1661
        %v2654 = vpack.c.b16 %v1666, %v1662
        %v2655 = vpack.c.b16 %v1671, %v1667
        %v2656 = vpack.c.b16 %v1672, %v1668
        %v2657 = vpack.c.b16 %v1673, %v1669
        %v2658 = vpack.c.b16 %v1674, %v1670
        %v2659 = vpack.c.b16 %v1679, %v1675
        %v2660 = vpack.c.b16 %v1680, %v1676
        %v2661 = vpack.c.b16 %v1681, %v1677
        %v2662 = vpack.c.b16 %v1682, %v1678
        %v2663 = vpack.c.b16 %v1687, %v1683
        %v2664 = vpack.c.b16 %v1688, %v1684
        %v2665 = vpack.c.b16 %v1689, %v1685
        %v2666 = vpack.c.b16 %v1690, %v1686
        %v2667 = vpack.c.b16 %v1695, %v1691
        %v2668 = vpack.c.b16 %v1696, %v1692
        %v2669 = vpack.c.b16 %v1697, %v1693
        %v2670 = vpack.c.b16 %v1698, %v1694
        %v2671 = vpack.c.b16 %v1703, %v1699
        %v2672 = vpack.c.b16 %v1704, %v1700
        %v2673 = vpack.c.b16 %v1705, %v1701
        %v2674 = vpack.c.b16 %v1706, %v1702
        %v2675 = vpack.c.b16 %v1711, %v1707
        %v2676 = vpack.c.b16 %v1712, %v1708
        %v2677 = vpack.c.b16 %v1713, %v1709
        %v2678 = vpack.c.b16 %v1714, %v1710
        %v2679 = vpack.c.b16 %v1719, %v1715
        %v2680 = vpack.c.b16 %v1720, %v1716
        %v2681 = vpack.c.b16 %v1721, %v1717
        %v2682 = vpack.c.b16 %v1722, %v1718
        %v2683 = vpack.c.b16 %v1727, %v1723
        %v2684 = vpack.c.b16 %v1728, %v1724
        %v2685 = vpack.c.b16 %v1729, %v1725
        %v2686 = vpack.c.b16 %v1730, %v1726
        %v2687 = vpack.c.b16 %v1735, %v1731
        %v2688 = vpack.c.b16 %v1736, %v1732
        %v2689 = vpack.c.b16 %v1737, %v1733
        %v2690 = vpack.c.b16 %v1738, %v1734
        %v2691 = vpack.c.b16 %v1743, %v1739
        %v2692 = vpack.c.b16 %v1744, %v1740
        %v2693 = vpack.c.b16 %v1745, %v1741
        %v2694 = vpack.c.b16 %v1746, %v1742
        %v2695 = vpack.c.b16 %v1751, %v1747
        %v2696 = vpack.c.b16 %v1752, %v1748
        %v2697 = vpack.c.b16 %v1753, %v1749
        %v2698 = vpack.c.b16 %v1754, %v1750
        %v2699 = vpack.c.b16 %v1759, %v1755
        %v2700 = vpack.c.b16 %v1760, %v1756
        %v2701 = vpack.c.b16 %v1761, %v1757
        %v2702 = vpack.c.b16 %v1762, %v1758
        %v2703 = vpack.c.b16 %v1767, %v1763
        %v2704 = vpack.c.b16 %v1768, %v1764
        %v2705 = vpack.c.b16 %v1769, %v1765
        %v2706 = vpack.c.b16 %v1770, %v1766
        %v2707 = vpack.c.b16 %v1775, %v1771
        %v2708 = vpack.c.b16 %v1776, %v1772
        %v2709 = vpack.c.b16 %v1777, %v1773
        %v2710 = vpack.c.b16 %v1778, %v1774
        %v2711 = vpack.c.b16 %v1783, %v1779
        %v2712 = vpack.c.b16 %v1784, %v1780
        %v2713 = vpack.c.b16 %v1785, %v1781
        %v2714 = vpack.c.b16 %v1786, %v1782
        %v2715 = vpack.c.b16 %v1791, %v1787
        %v2716 = vpack.c.b16 %v1792, %v1788
        %v2717 = vpack.c.b16 %v1793, %v1789
        %v2718 = vpack.c.b16 %v1794, %v1790
        %v2719 = vpack.c.b16 %v1799, %v1795
        %v2720 = vpack.c.b16 %v1800, %v1796
        %v2721 = vpack.c.b16 %v1801, %v1797
        %v2722 = vpack.c.b16 %v1802, %v1798
        %v2723 = vpack.c.b16 %v1807, %v1803
        %v2724 = vpack.c.b16 %v1808, %v1804
        %v2725 = vpack.c.b16 %v1809, %v1805
        %v2726 = vpack.c.b16 %v1810, %v1806
        %v2727 = vpack.c.b16 %v1815, %v1811
        %v2728 = vpack.c.b16 %v1816, %v1812
        %v2729 = vpack.c.b16 %v1817, %v1813
        %v2730 = vpack.c.b16 %v1818, %v1814
        %v2731 = vpack.c.b16 %v1823, %v1819
        %v2732 = vpack.c.b16 %v1824, %v1820
        %v2733 = vpack.c.b16 %v1825, %v1821
        %v2734 = vpack.c.b16 %v1826, %v1822
        %v2735 = vpack.c.b16 %v1831, %v1827
        %v2736 = vpack.c.b16 %v1832, %v1828
        %v2737 = vpack.c.b16 %v1833, %v1829
        %v2738 = vpack.c.b16 %v1834, %v1830
        %v2739 = vpack.c.b16 %v1839, %v1835
        %v2740 = vpack.c.b16 %v1840, %v1836
        %v2741 = vpack.c.b16 %v1841, %v1837
        %v2742 = vpack.c.b16 %v1842, %v1838
        %v2743 = vpack.c.b16 %v1847, %v1843
        %v2744 = vpack.c.b16 %v1848, %v1844
        %v2745 = vpack.c.b16 %v1849, %v1845
        %v2746 = vpack.c.b16 %v1850, %v1846
        %v2747 = vpack.c.b16 %v1855, %v1851
        %v2748 = vpack.c.b16 %v1856, %v1852
        %v2749 = vpack.c.b16 %v1857, %v1853
        %v2750 = vpack.c.b16 %v1858, %v1854
        %v2751 = vpack.c.b16 %v1863, %v1859
        %v2752 = vpack.c.b16 %v1864, %v1860
        %v2753 = vpack.c.b16 %v1865, %v1861
        %v2754 = vpack.c.b16 %v1866, %v1862
        %v2755 = vpack.c.b16 %v1871, %v1867
        %v2756 = vpack.c.b16 %v1872, %v1868
        %v2757 = vpack.c.b16 %v1873, %v1869
        %v2758 = vpack.c.b16 %v1874, %v1870
        %v2759 = vpack.c.b16 %v1879, %v1875
        %v2760 = vpack.c.b16 %v1880, %v1876
        %v2761 = vpack.c.b16 %v1881, %v1877
        %v2762 = vpack.c.b16 %v1882, %v1878
        %v2763 = vpack.c.b16 %v1887, %v1883
        %v2764 = vpack.c.b16 %v1888, %v1884
        %v2765 = vpack.c.b16 %v1889, %v1885
        %v2766 = vpack.c.b16 %v1890, %v1886
        %v2767 = vpack.c.b16 %v1895, %v1891
        %v2768 = vpack.c.b16 %v1896, %v1892
        %v2769 = vpack.c.b16 %v1897, %v1893
        %v2770 = vpack.c.b16 %v1898, %v1894
        %v2771 = vpack.c.b16 %v1903, %v1899
        %v2772 = vpack.c.b16 %v1904, %v1900
        %v2773 = vpack.c.b16 %v1905, %v1901
        %v2774 = vpack.c.b16 %v1906, %v1902
        %v2775 = vpack.c.b16 %v1911, %v1907
        %v2776 = vpack.c.b16 %v1912, %v1908
        %v2777 = vpack.c.b16 %v1913, %v1909
        %v2778 = vpack.c.b16 %v1914, %v1910
        %v2779 = vpack.c.b16 %v1919, %v1915
        %v2780 = vpack.c.b16 %v1920, %v1916
        %v2781 = vpack.c.b16 %v1921, %v1917
        %v2782 = vpack.c.b16 %v1922, %v1918
        %v2783 = vpack.c.b16 %v1927, %v1923
        %v2784 = vpack.c.b16 %v1928, %v1924
        %v2785 = vpack.c.b16 %v1929, %v1925
        %v2786 = vpack.c.b16 %v1930, %v1926
        %v2787 = vpack.c.b16 %v1935, %v1931
        %v2788 = vpack.c.b16 %v1936, %v1932
        %v2789 = vpack.c.b16 %v1937, %v1933
        %v2790 = vpack.c.b16 %v1938, %v1934
        %v2791 = vpack.c.b16 %v1943, %v1939
        %v2792 = vpack.c.b16 %v1944, %v1940
        %v2793 = vpack.c.b16 %v1945, %v1941
        %v2794 = vpack.c.b16 %v1946, %v1942
        %v2795 = vpack.c.b16 %v1951, %v1947
        %v2796 = vpack.c.b16 %v1952, %v1948
        %v2797 = vpack.c.b16 %v1953, %v1949
        %v2798 = vpack.c.b16 %v1954, %v1950
        %v2799 = vpack.c.b16 %v1959, %v1955
        %v2800 = vpack.c.b16 %v1960, %v1956
        %v2801 = vpack.c.b16 %v1961, %v1957
        %v2802 = vpack.c.b16 %v1962, %v1958
        %v2803 = vpack.c.b16 %v1967, %v1963
        %v2804 = vpack.c.b16 %v1968, %v1964
        %v2805 = vpack.c.b16 %v1969, %v1965
        %v2806 = vpack.c.b16 %v1970, %v1966
        %v2807 = vpack.c.b16 %v1975, %v1971
        %v2808 = vpack.c.b16 %v1976, %v1972
        %v2809 = vpack.c.b16 %v1977, %v1973
        %v2810 = vpack.c.b16 %v1978, %v1974
        %v2811 = vpack.c.b16 %v1983, %v1979
        %v2812 = vpack.c.b16 %v1984, %v1980
        %v2813 = vpack.c.b16 %v1985, %v1981
        %v2814 = vpack.c.b16 %v1986, %v1982
        %v2815 = vpack.c.b16 %v1991, %v1987
        %v2816 = vpack.c.b16 %v1992, %v1988
        %v2817 = vpack.c.b16 %v1993, %v1989
        %v2818 = vpack.c.b16 %v1994, %v1990
        %v2819 = vpack.c.b16 %v1999, %v1995
        %v2820 = vpack.c.b16 %v2000, %v1996
        %v2821 = vpack.c.b16 %v2001, %v1997
        %v2822 = vpack.c.b16 %v2002, %v1998
        %v2823 = vpack.c.b16 %v2007, %v2003
        %v2824 = vpack.c.b16 %v2008, %v2004
        %v2825 = vpack.c.b16 %v2009, %v2005
        %v2826 = vpack.c.b16 %v2010, %v2006
        %v2827 = vpack.c.b16 %v2015, %v2011
        %v2828 = vpack.c.b16 %v2016, %v2012
        %v2829 = vpack.c.b16 %v2017, %v2013
        %v2830 = vpack.c.b16 %v2018, %v2014
        %v2831 = vpack.c.b16 %v2023, %v2019
        %v2832 = vpack.c.b16 %v2024, %v2020
        %v2833 = vpack.c.b16 %v2025, %v2021
        %v2834 = vpack.c.b16 %v2026, %v2022
        %v2835 = vpack.c.b16 %v2031, %v2027
        %v2836 = vpack.c.b16 %v2032, %v2028
        %v2837 = vpack.c.b16 %v2033, %v2029
        %v2838 = vpack.c.b16 %v2034, %v2030
        %v2839 = vpack.c.b16 %v2039, %v2035
        %v2840 = vpack.c.b16 %v2040, %v2036
        %v2841 = vpack.c.b16 %v2041, %v2037
        %v2842 = vpack.c.b16 %v2042, %v2038
        %v2843 = vpack.c.b16 %v2047, %v2043
        %v2844 = vpack.c.b16 %v2048, %v2044
        %v2845 = vpack.c.b16 %v2049, %v2045
        %v2846 = vpack.c.b16 %v2050, %v2046
        %v2847 = vpack.c.b16 %v2055, %v2051
        %v2848 = vpack.c.b16 %v2056, %v2052
        %v2849 = vpack.c.b16 %v2057, %v2053
        %v2850 = vpack.c.b16 %v2058, %v2054
        %v2851 = vpack.c.b16 %v2063, %v2059
        %v2852 = vpack.c.b16 %v2064, %v2060
        %v2853 = vpack.c.b16 %v2065, %v2061
        %v2854 = vpack.c.b16 %v2066, %v2062
        %v2855 = vpack.c.b16 %v2071, %v2067
        %v2856 = vpack.c.b16 %v2072, %v2068
        %v2857 = vpack.c.b16 %v2073, %v2069
        %v2858 = vpack.c.b16 %v2074, %v2070
        %v2859 = vpack.c.b16 %v2079, %v2075
        %v2860 = vpack.c.b16 %v2080, %v2076
        %v2861 = vpack.c.b16 %v2081, %v2077
        %v2862 = vpack.c.b16 %v2082, %v2078
        %v2863 = vpack.c.b16 %v2087, %v2083
        %v2864 = vpack.c.b16 %v2088, %v2084
        %v2865 = vpack.c.b16 %v2089, %v2085
        %v2866 = vpack.c.b16 %v2090, %v2086
        %v2867 = vpack.c.b16 %v2095, %v2091
        %v2868 = vpack.c.b16 %v2096, %v2092
        %v2869 = vpack.c.b16 %v2097, %v2093
        %v2870 = vpack.c.b16 %v2098, %v2094
        %v2871 = vpack.c.b16 %v2103, %v2099
        %v2872 = vpack.c.b16 %v2104, %v2100
        %v2873 = vpack.c.b16 %v2105, %v2101
        %v2874 = vpack.c.b16 %v2106, %v2102
        %v2875 = vpack.c.b16 %v2111, %v2107
        %v2876 = vpack.c.b16 %v2112, %v2108
        %v2877 = vpack.c.b16 %v2113, %v2109
        %v2878 = vpack.c.b16 %v2114, %v2110
        %v2879 = vpack.c.b16 %v2119, %v2115
        %v2880 = vpack.c.b16 %v2120, %v2116
        %v2881 = vpack.c.b16 %v2121, %v2117
        %v2882 = vpack.c.b16 %v2122, %v2118
        %v2883 = vpack.c.b16 %v2127, %v2123
        %v2884 = vpack.c.b16 %v2128, %v2124
        %v2885 = vpack.c.b16 %v2129, %v2125
        %v2886 = vpack.c.b16 %v2130, %v2126
        %v2887 = vpack.c.b16 %v2135, %v2131
        %v2888 = vpack.c.b16 %v2136, %v2132
        %v2889 = vpack.c.b16 %v2137, %v2133
        %v2890 = vpack.c.b16 %v2138, %v2134
        %v2891 = vpack.c.b16 %v2143, %v2139
        %v2892 = vpack.c.b16 %v2144, %v2140
        %v2893 = vpack.c.b16 %v2145, %v2141
        %v2894 = vpack.c.b16 %v2146, %v2142
        %v2895 = vpack.c.b16 %v2151, %v2147
        %v2896 = vpack.c.b16 %v2152, %v2148
        %v2897 = vpack.c.b16 %v2153, %v2149
        %v2898 = vpack.c.b16 %v2154, %v2150
        %v2899 = vpack.c.b16 %v2159, %v2155
        %v2900 = vpack.c.b16 %v2160, %v2156
        %v2901 = vpack.c.b16 %v2161, %v2157
        %v2902 = vpack.c.b16 %v2162, %v2158
        %v2903 = vpack.c.b16 %v2167, %v2163
        %v2904 = vpack.c.b16 %v2168, %v2164
        %v2905 = vpack.c.b16 %v2169, %v2165
        %v2906 = vpack.c.b16 %v2170, %v2166
        %v2907 = vpack.c.b16 %v2175, %v2171
        %v2908 = vpack.c.b16 %v2176, %v2172
        %v2909 = vpack.c.b16 %v2177, %v2173
        %v2910 = vpack.c.b16 %v2178, %v2174
        %v2911 = vpack.c.b16 %v2183, %v2179
        %v2912 = vpack.c.b16 %v2184, %v2180
        %v2913 = vpack.c.b16 %v2185, %v2181
        %v2914 = vpack.c.b16 %v2186, %v2182
        %v2915 = vpack.c.b16 %v2191, %v2187
        %v2916 = vpack.c.b16 %v2192, %v2188
        %v2917 = vpack.c.b16 %v2193, %v2189
        %v2918 = vpack.c.b16 %v2194, %v2190
        %v2919 = vpack.c.b16 %v2199, %v2195
        %v2920 = vpack.c.b16 %v2200, %v2196
        %v2921 = vpack.c.b16 %v2201, %v2197
        %v2922 = vpack.c.b16 %v2202, %v2198
        %v2923 = vpack.c.b16 %v2207, %v2203
        %v2924 = vpack.c.b16 %v2208, %v2204
        %v2925 = vpack.c.b16 %v2209, %v2205
        %v2926 = vpack.c.b16 %v2210, %v2206
        %v2927 = vpack.c.b16 %v2215, %v2211
        %v2928 = vpack.c.b16 %v2216, %v2212
        %v2929 = vpack.c.b16 %v2217, %v2213
        %v2930 = vpack.c.b16 %v2218, %v2214
        %v2931 = vpack.c.b16 %v2223, %v2219
        %v2932 = vpack.c.b16 %v2224, %v2220
        %v2933 = vpack.c.b16 %v2225, %v2221
        %v2934 = vpack.c.b16 %v2226, %v2222
        %v2935 = vpack.c.b16 %v2231, %v2227
        %v2936 = vpack.c.b16 %v2232, %v2228
        %v2937 = vpack.c.b16 %v2233, %v2229
        %v2938 = vpack.c.b16 %v2234, %v2230
        %v2939 = vpack.c.b16 %v2239, %v2235
        %v2940 = vpack.c.b16 %v2240, %v2236
        %v2941 = vpack.c.b16 %v2241, %v2237
        %v2942 = vpack.c.b16 %v2242, %v2238
        %v2943 = vpack.c.b16 %v2247, %v2243
        %v2944 = vpack.c.b16 %v2248, %v2244
        %v2945 = vpack.c.b16 %v2249, %v2245
        %v2946 = vpack.c.b16 %v2250, %v2246
        %v2947 = vpack.c.b16 %v2255, %v2251
        %v2948 = vpack.c.b16 %v2256, %v2252
        %v2949 = vpack.c.b16 %v2257, %v2253
        %v2950 = vpack.c.b16 %v2258, %v2254
        %v2951 = vpack.c.b16 %v2263, %v2259
        %v2952 = vpack.c.b16 %v2264, %v2260
        %v2953 = vpack.c.b16 %v2265, %v2261
        %v2954 = vpack.c.b16 %v2266, %v2262
        %v2955 = vpack.c.b16 %v2271, %v2267
        %v2956 = vpack.c.b16 %v2272, %v2268
        %v2957 = vpack.c.b16 %v2273, %v2269
        %v2958 = vpack.c.b16 %v2274, %v2270
        %v2959 = vpack.c.b16 %v2279, %v2275
        %v2960 = vpack.c.b16 %v2280, %v2276
        %v2961 = vpack.c.b16 %v2281, %v2277
        %v2962 = vpack.c.b16 %v2282, %v2278
        %v2963 = vpack.c.b16 %v2287, %v2283
        %v2964 = vpack.c.b16 %v2288, %v2284
        %v2965 = vpack.c.b16 %v2289, %v2285
        %v2966 = vpack.c.b16 %v2290, %v2286
        %v2967 = vpack.c.b16 %v2295, %v2291
        %v2968 = vpack.c.b16 %v2296, %v2292
        %v2969 = vpack.c.b16 %v2297, %v2293
        %v2970 = vpack.c.b16 %v2298, %v2294
        %v2971 = vpack.c.b16 %v2303, %v2299
        %v2972 = vpack.c.b16 %v2304, %v2300
        %v2973 = vpack.c.b16 %v2305, %v2301
        %v2974 = vpack.c.b16 %v2306, %v2302
        %v2975 = vpack.c.b16 %v2311, %v2307
        %v2976 = vpack.c.b16 %v2312, %v2308
        %v2977 = vpack.c.b16 %v2313, %v2309
        %v2978 = vpack.c.b16 %v2314, %v2310
        %v2979 = vpack.c.b16 %v2319, %v2315
        %v2980 = vpack.c.b16 %v2320, %v2316
        %v2981 = vpack.c.b16 %v2321, %v2317
        %v2982 = vpack.c.b16 %v2322, %v2318
        %v2983 = vpack.c.b16 %v2327, %v2323
        %v2984 = vpack.c.b16 %v2328, %v2324
        %v2985 = vpack.c.b16 %v2329, %v2325
        %v2986 = vpack.c.b16 %v2330, %v2326
        %v2987 = vpack.c.b16 %v2335, %v2331
        %v2988 = vpack.c.b16 %v2336, %v2332
        %v2989 = vpack.c.b16 %v2337, %v2333
        %v2990 = vpack.c.b16 %v2338, %v2334
        %v2991 = vpack.c.b16 %v2343, %v2339
        %v2992 = vpack.c.b16 %v2344, %v2340
        %v2993 = vpack.c.b16 %v2345, %v2341
        %v2994 = vpack.c.b16 %v2346, %v2342
        %v2995 = vpack.c.b16 %v2351, %v2347
        %v2996 = vpack.c.b16 %v2352, %v2348
        %v2997 = vpack.c.b16 %v2353, %v2349
        %v2998 = vpack.c.b16 %v2354, %v2350
        %v2999 = vpack.c.b16 %v2359, %v2355
        %v3000 = vpack.c.b16 %v2360, %v2356
        %v3001 = vpack.c.b16 %v2361, %v2357
        %v3002 = vpack.c.b16 %v2362, %v2358
        %v3003 = vpack.c.b16 %v2367, %v2363
        %v3004 = vpack.c.b16 %v2368, %v2364
        %v3005 = vpack.c.b16 %v2369, %v2365
        %v3006 = vpack.c.b16 %v2370, %v2366
        %v3007 = vpack.c.b16 %v2375, %v2371
        %v3008 = vpack.c.b16 %v2376, %v2372
        %v3009 = vpack.c.b16 %v2377, %v2373
        %v3010 = vpack.c.b16 %v2378, %v2374
        %v3011 = vpack.c.b16 %v2383, %v2379
        %v3012 = vpack.c.b16 %v2384, %v2380
        %v3013 = vpack.c.b16 %v2385, %v2381
        %v3014 = vpack.c.b16 %v2386, %v2382
        %v3015 = vpack.c.b16 %v2391, %v2387
        %v3016 = vpack.c.b16 %v2392, %v2388
        %v3017 = vpack.c.b16 %v2393, %v2389
        %v3018 = vpack.c.b16 %v2394, %v2390
        %v3019 = vpack.c.b16 %v2399, %v2395
        %v3020 = vpack.c.b16 %v2400, %v2396
        %v3021 = vpack.c.b16 %v2401, %v2397
        %v3022 = vpack.c.b16 %v2402, %v2398
        %v3023 = vpack.c.b16 %v2407, %v2403
        %v3024 = vpack.c.b16 %v2408, %v2404
        %v3025 = vpack.c.b16 %v2409, %v2405
        %v3026 = vpack.c.b16 %v2410, %v2406
        %v3027 = vpack.c.b16 %v2415, %v2411
        %v3028 = vpack.c.b16 %v2416, %v2412
        %v3029 = vpack.c.b16 %v2417, %v2413
        %v3030 = vpack.c.b16 %v2418, %v2414
        %v3031 = vpack.c.b16 %v2423, %v2419
        %v3032 = vpack.c.b16 %v2424, %v2420
        %v3033 = vpack.c.b16 %v2425, %v2421
        %v3034 = vpack.c.b16 %v2426, %v2422
        %v3035 = vpack.c.b16 %v2431, %v2427
        %v3036 = vpack.c.b16 %v2432, %v2428
        %v3037 = vpack.c.b16 %v2433, %v2429
        %v3038 = vpack.c.b16 %v2434, %v2430
        %v3039 = vpack.c.b16 %v2439, %v2435
        %v3040 = vpack.c.b16 %v2440, %v2436
        %v3041 = vpack.c.b16 %v2441, %v2437
        %v3042 = vpack.c.b16 %v2442, %v2438
        %v3043 = vpack.c.b16 %v2447, %v2443
        %v3044 = vpack.c.b16 %v2448, %v2444
        %v3045 = vpack.c.b16 %v2449, %v2445
        %v3046 = vpack.c.b16 %v2450, %v2446
        %v3047 = vpack.c.b16 %v2455, %v2451
        %v3048 = vpack.c.b16 %v2456, %v2452
        %v3049 = vpack.c.b16 %v2457, %v2453
        %v3050 = vpack.c.b16 %v2458, %v2454
        %v3051 = vpack.c.b16 %v2463, %v2459
        %v3052 = vpack.c.b16 %v2464, %v2460
        %v3053 = vpack.c.b16 %v2465, %v2461
        %v3054 = vpack.c.b16 %v2466, %v2462
        %v3055 = vpack.c.b16 %v2471, %v2467
        %v3056 = vpack.c.b16 %v2472, %v2468
        %v3057 = vpack.c.b16 %v2473, %v2469
        %v3058 = vpack.c.b16 %v2474, %v2470
        %v3059 = vpack.c.b16 %v2479, %v2475
        %v3060 = vpack.c.b16 %v2480, %v2476
        %v3061 = vpack.c.b16 %v2481, %v2477
        %v3062 = vpack.c.b16 %v2482, %v2478
        %v3063 = vpack.c.b16 %v2487, %v2483
        %v3064 = vpack.c.b16 %v2488, %v2484
        %v3065 = vpack.c.b16 %v2489, %v2485
        %v3066 = vpack.c.b16 %v2490, %v2486
        %v3067 = vpack.c.b16 %v2495, %v2491
        %v3068 = vpack.c.b16 %v2496, %v2492
        %v3069 = vpack.c.b16 %v2497, %v2493
        %v3070 = vpack.c.b16 %v2498, %v2494
        %v3071 = vpack.c.b16 %v2503, %v2499
        %v3072 = vpack.c.b16 %v2504, %v2500
        %v3073 = vpack.c.b16 %v2505, %v2501
        %v3074 = vpack.c.b16 %v2506, %v2502
        %v3075 = vpack.c.b16 %v2511, %v2507
        %v3076 = vpack.c.b16 %v2512, %v2508
        %v3077 = vpack.c.b16 %v2513, %v2509
        %v3078 = vpack.c.b16 %v2514, %v2510
        %v3079 = vpack.c.b16 %v2519, %v2515
        %v3080 = vpack.c.b16 %v2520, %v2516
        %v3081 = vpack.c.b16 %v2521, %v2517
        %v3082 = vpack.c.b16 %v2522, %v2518
        %v3083 = vpack.c.b16 %v2527, %v2523
        %v3084 = vpack.c.b16 %v2528, %v2524
        %v3085 = vpack.c.b16 %v2529, %v2525
        %v3086 = vpack.c.b16 %v2530, %v2526
        %v3087 = vpack.c.b16 %v2535, %v2531
        %v3088 = vpack.c.b16 %v2536, %v2532
        %v3089 = vpack.c.b16 %v2537, %v2533
        %v3090 = vpack.c.b16 %v2538, %v2534
        %v3091 = vpack.c.b16 %v2543, %v2539
        %v3092 = vpack.c.b16 %v2544, %v2540
        %v3093 = vpack.c.b16 %v2545, %v2541
        %v3094 = vpack.c.b16 %v2546, %v2542
        %v3095 = vpack.c.b16 %v2551, %v2547
        %v3096 = vpack.c.b16 %v2552, %v2548
        %v3097 = vpack.c.b16 %v2553, %v2549
        %v3098 = vpack.c.b16 %v2554, %v2550
        %v3099 = vpack.c.b16 %v2559, %v2555
        %v3100 = vpack.c.b16 %v2560, %v2556
        %v3101 = vpack.c.b16 %v2561, %v2557
        %v3102 = vpack.c.b16 %v2562, %v2558
        %v3103 = vpack.c.b16 %v2567, %v2563
        %v3104 = vpack.c.b16 %v2568, %v2564
        %v3105 = vpack.c.b16 %v2569, %v2565
        %v3106 = vpack.c.b16 %v2570, %v2566
        %v3107 = vpack.c.b16 %v2575, %v2571
        %v3108 = vpack.c.b16 %v2576, %v2572
        %v3109 = vpack.c.b16 %v2577, %v2573
        %v3110 = vpack.c.b16 %v2578, %v2574
        %v3111 = vpack.c.b16 %v2583, %v2579
        %v3112 = vpack.c.b16 %v2584, %v2580
        %v3113 = vpack.c.b16 %v2585, %v2581
        %v3114 = vpack.c.b16 %v2586, %v2582
        %v3115 = vpack.c.b16 %v2591, %v2587
        %v3116 = vpack.c.b16 %v2592, %v2588
        %v3117 = vpack.c.b16 %v2593, %v2589
        %v3118 = vpack.c.b16 %v2594, %v2590
        %v3119 = vpack.c.b16 %v2599, %v2595
        %v3120 = vpack.c.b16 %v2600, %v2596
        %v3121 = vpack.c.b16 %v2601, %v2597
        %v3122 = vpack.c.b16 %v2602, %v2598
        %v3123 = vpack.c.b16 %v2607, %v2603
        %v3124 = vpack.c.b16 %v2608, %v2604
        %v3125 = vpack.c.b16 %v2609, %v2605
        %v3126 = vpack.c.b16 %v2610, %v2606
        %v3127 = vpack.c.b16 %v2615, %v2611
        %v3128 = vpack.c.b16 %v2616, %v2612
        %v3129 = vpack.c.b16 %v2617, %v2613
        %v3130 = vpack.c.b16 %v2618, %v2614
        %3643 = vmatpush.bf16.msra.mxu0 %v2647
        %3644 = vmatpush.bf16.msra.mxu0 %v2643
        %3645 = vmatpush.bf16.msra.mxu0 %v2639
        %3646 = vmatpush.bf16.msra.mxu0 %v2635
        %3647 = vmatpush.bf16.msra.mxu0 %v2631
        %3648 = vmatpush.bf16.msra.mxu0 %v2627
        %3649 = vmatpush.bf16.msra.mxu0 %v2623
        %3650 = vmatpush.bf16.msra.mxu0 %v2619
        %3651 = vmatmul.bf16.gmra.mxu0 %v1019
        %v3652 = vpop.f32.mrf.mxu0
        %v3653 = vadd.f32 0.0, %v3652
        %v3654 = vpop.f32.mrf.mxu0
        %v3655 = vadd.f32 0.0, %v3654
        %3656 = vmatmul.bf16.gmra.mxu0 %v1035
        %v3657 = vpop.f32.mrf.mxu0
        %v3658 = vadd.f32 0.0, %v3657
        %v3659 = vpop.f32.mrf.mxu0
        %3660 = vdwg.mxu0
        %3661 = vmatpush.bf16.msra.mxu0 %v2679
        %3662 = vmatpush.bf16.msra.mxu0 %v2675
        %3663 = vmatpush.bf16.msra.mxu0 %v2671
        %3664 = vmatpush.bf16.msra.mxu0 %v2667
        %3665 = vmatpush.bf16.msra.mxu0 %v2663
        %3666 = vmatpush.bf16.msra.mxu0 %v2659
        %3667 = vmatpush.bf16.msra.mxu0 %v2655
        %3668 = vmatpush.bf16.msra.mxu0 %v2651
        %3669 = vmatmul.bf16.gmra.mxu0 %v1020
        %v3670 = vpop.f32.mrf.mxu0
        %v3671 = vadd.f32 %v3653, %v3670
        %v3672 = vpop.f32.mrf.mxu0
        %v3673 = vadd.f32 %v3655, %v3672
        %3674 = vmatmul.bf16.gmra.mxu0 %v1036
        %v3675 = vpop.f32.mrf.mxu0
        %v3676 = vadd.f32 %v3658, %v3675
        %v3677 = vpop.f32.mrf.mxu0
        %3678 = vdwg.mxu0
        %3679 = vmatpush.bf16.msra.mxu0 %v2711
        %3680 = vmatpush.bf16.msra.mxu0 %v2707
        %3681 = vmatpush.bf16.msra.mxu0 %v2703
        %3682 = vmatpush.bf16.msra.mxu0 %v2699
        %3683 = vmatpush.bf16.msra.mxu0 %v2695
        %3684 = vmatpush.bf16.msra.mxu0 %v2691
        %3685 = vmatpush.bf16.msra.mxu0 %v2687
        %3686 = vmatpush.bf16.msra.mxu0 %v2683
        %3687 = vmatmul.bf16.gmra.mxu0 %v1021
        %v3688 = vpop.f32.mrf.mxu0
        %v3689 = vadd.f32 %v3671, %v3688
        %v3690 = vpop.f32.mrf.mxu0
        %v3691 = vadd.f32 %v3673, %v3690
        %3692 = vmatmul.bf16.gmra.mxu0 %v1037
        %v3693 = vpop.f32.mrf.mxu0
        %v3694 = vadd.f32 %v3676, %v3693
        %v3695 = vpop.f32.mrf.mxu0
        %3696 = vdwg.mxu0
        %3697 = vmatpush.bf16.msra.mxu0 %v2743
        %3698 = vmatpush.bf16.msra.mxu0 %v2739
        %3699 = vmatpush.bf16.msra.mxu0 %v2735
        %3700 = vmatpush.bf16.msra.mxu0 %v2731
        %3701 = vmatpush.bf16.msra.mxu0 %v2727
        %3702 = vmatpush.bf16.msra.mxu0 %v2723
        %3703 = vmatpush.bf16.msra.mxu0 %v2719
        %3704 = vmatpush.bf16.msra.mxu0 %v2715
        %3705 = vmatmul.bf16.gmra.mxu0 %v1022
        %v3706 = vpop.f32.mrf.mxu0
        %v3707 = vadd.f32 %v3689, %v3706
        %v3708 = vpop.f32.mrf.mxu0
        %v3709 = vadd.f32 %v3691, %v3708
        %3710 = vmatmul.bf16.gmra.mxu0 %v1038
        %v3711 = vpop.f32.mrf.mxu0
        %v3712 = vadd.f32 %v3694, %v3711
        %v3713 = vpop.f32.mrf.mxu0
        %3714 = vdwg.mxu0
        %3715 = vmatpush.bf16.msra.mxu0 %v2775
        %3716 = vmatpush.bf16.msra.mxu0 %v2771
        %3717 = vmatpush.bf16.msra.mxu0 %v2767
        %3718 = vmatpush.bf16.msra.mxu0 %v2763
        %3719 = vmatpush.bf16.msra.mxu0 %v2759
        %3720 = vmatpush.bf16.msra.mxu0 %v2755
        %3721 = vmatpush.bf16.msra.mxu0 %v2751
        %3722 = vmatpush.bf16.msra.mxu0 %v2747
        %3723 = vmatmul.bf16.gmra.mxu0 %v1023
        %v3724 = vpop.f32.mrf.mxu0
        %v3725 = vadd.f32 %v3707, %v3724
        %v3726 = vpop.f32.mrf.mxu0
        %v3727 = vadd.f32 %v3709, %v3726
        %3728 = vmatmul.bf16.gmra.mxu0 %v1039
        %v3729 = vpop.f32.mrf.mxu0
        %v3730 = vadd.f32 %v3712, %v3729
        %v3731 = vpop.f32.mrf.mxu0
        %3732 = vdwg.mxu0
        %3733 = vmatpush.bf16.msra.mxu0 %v2807
        %3734 = vmatpush.bf16.msra.mxu0 %v2803
        %3735 = vmatpush.bf16.msra.mxu0 %v2799
        %3736 = vmatpush.bf16.msra.mxu0 %v2795
        %3737 = vmatpush.bf16.msra.mxu0 %v2791
        %3738 = vmatpush.bf16.msra.mxu0 %v2787
        %3739 = vmatpush.bf16.msra.mxu0 %v2783
        %3740 = vmatpush.bf16.msra.mxu0 %v2779
        %3741 = vmatmul.bf16.gmra.mxu0 %v1024
        %v3742 = vpop.f32.mrf.mxu0
        %v3743 = vadd.f32 %v3725, %v3742
        %v3744 = vpop.f32.mrf.mxu0
        %v3745 = vadd.f32 %v3727, %v3744
        %3746 = vmatmul.bf16.gmra.mxu0 %v1040
        %v3747 = vpop.f32.mrf.mxu0
        %v3748 = vadd.f32 %v3730, %v3747
        %v3749 = vpop.f32.mrf.mxu0
        %3750 = vdwg.mxu0
        %3751 = vmatpush.bf16.msra.mxu0 %v2839
        %3752 = vmatpush.bf16.msra.mxu0 %v2835
        %3753 = vmatpush.bf16.msra.mxu0 %v2831
        %3754 = vmatpush.bf16.msra.mxu0 %v2827
        %3755 = vmatpush.bf16.msra.mxu0 %v2823
        %3756 = vmatpush.bf16.msra.mxu0 %v2819
        %3757 = vmatpush.bf16.msra.mxu0 %v2815
        %3758 = vmatpush.bf16.msra.mxu0 %v2811
        %3759 = vmatmul.bf16.gmra.mxu0 %v1025
        %v3760 = vpop.f32.mrf.mxu0
        %v3761 = vadd.f32 %v3743, %v3760
        %v3762 = vpop.f32.mrf.mxu0
        %v3763 = vadd.f32 %v3745, %v3762
        %3764 = vmatmul.bf16.gmra.mxu0 %v1041
        %v3765 = vpop.f32.mrf.mxu0
        %v3766 = vadd.f32 %v3748, %v3765
        %v3767 = vpop.f32.mrf.mxu0
        %3768 = vdwg.mxu0
        %3769 = vmatpush.bf16.msra.mxu0 %v2871
        %3770 = vmatpush.bf16.msra.mxu0 %v2867
        %3771 = vmatpush.bf16.msra.mxu0 %v2863
        %3772 = vmatpush.bf16.msra.mxu0 %v2859
        %3773 = vmatpush.bf16.msra.mxu0 %v2855
        %3774 = vmatpush.bf16.msra.mxu0 %v2851
        %3775 = vmatpush.bf16.msra.mxu0 %v2847
        %3776 = vmatpush.bf16.msra.mxu0 %v2843
        %3777 = vmatmul.bf16.gmra.mxu0 %v1026
        %v3778 = vpop.f32.mrf.mxu0
        %v3779 = vadd.f32 %v3761, %v3778
        %v3780 = vpop.f32.mrf.mxu0
        %v3781 = vadd.f32 %v3763, %v3780
        %3782 = vmatmul.bf16.gmra.mxu0 %v1042
        %v3783 = vpop.f32.mrf.mxu0
        %v3784 = vadd.f32 %v3766, %v3783
        %v3785 = vpop.f32.mrf.mxu0
        %3786 = vdwg.mxu0
        %3787 = vmatpush.bf16.msra.mxu0 %v2903
        %3788 = vmatpush.bf16.msra.mxu0 %v2899
        %3789 = vmatpush.bf16.msra.mxu0 %v2895
        %3790 = vmatpush.bf16.msra.mxu0 %v2891
        %3791 = vmatpush.bf16.msra.mxu0 %v2887
        %3792 = vmatpush.bf16.msra.mxu0 %v2883
        %3793 = vmatpush.bf16.msra.mxu0 %v2879
        %3794 = vmatpush.bf16.msra.mxu0 %v2875
        %3795 = vmatmul.bf16.gmra.mxu0 %v1027
        %v3796 = vpop.f32.mrf.mxu0
        %v3797 = vadd.f32 %v3779, %v3796
        %v3798 = vpop.f32.mrf.mxu0
        %v3799 = vadd.f32 %v3781, %v3798
        %3800 = vmatmul.bf16.gmra.mxu0 %v1043
        %v3801 = vpop.f32.mrf.mxu0
        %v3802 = vadd.f32 %v3784, %v3801
        %v3803 = vpop.f32.mrf.mxu0
        %3804 = vdwg.mxu0
        %3805 = vmatpush.bf16.msra.mxu0 %v2935
        %3806 = vmatpush.bf16.msra.mxu0 %v2931
        %3807 = vmatpush.bf16.msra.mxu0 %v2927
        %3808 = vmatpush.bf16.msra.mxu0 %v2923
        %3809 = vmatpush.bf16.msra.mxu0 %v2919
        %3810 = vmatpush.bf16.msra.mxu0 %v2915
        %3811 = vmatpush.bf16.msra.mxu0 %v2911
        %3812 = vmatpush.bf16.msra.mxu0 %v2907
        %3813 = vmatmul.bf16.gmra.mxu0 %v1028
        %v3814 = vpop.f32.mrf.mxu0
        %v3815 = vadd.f32 %v3797, %v3814
        %v3816 = vpop.f32.mrf.mxu0
        %v3817 = vadd.f32 %v3799, %v3816
        %3818 = vmatmul.bf16.gmra.mxu0 %v1044
        %v3819 = vpop.f32.mrf.mxu0
        %v3820 = vadd.f32 %v3802, %v3819
        %v3821 = vpop.f32.mrf.mxu0
        %3822 = vdwg.mxu0
        %3823 = vmatpush.bf16.msra.mxu0 %v2967
        %3824 = vmatpush.bf16.msra.mxu0 %v2963
        %3825 = vmatpush.bf16.msra.mxu0 %v2959
        %3826 = vmatpush.bf16.msra.mxu0 %v2955
        %3827 = vmatpush.bf16.msra.mxu0 %v2951
        %3828 = vmatpush.bf16.msra.mxu0 %v2947
        %3829 = vmatpush.bf16.msra.mxu0 %v2943
        %3830 = vmatpush.bf16.msra.mxu0 %v2939
        %3831 = vmatmul.bf16.gmra.mxu0 %v1029
        %v3832 = vpop.f32.mrf.mxu0
        %v3833 = vadd.f32 %v3815, %v3832
        %v3834 = vpop.f32.mrf.mxu0
        %v3835 = vadd.f32 %v3817, %v3834
        %3836 = vmatmul.bf16.gmra.mxu0 %v1045
        %v3837 = vpop.f32.mrf.mxu0
        %v3838 = vadd.f32 %v3820, %v3837
        %v3839 = vpop.f32.mrf.mxu0
        %3840 = vdwg.mxu0
        %3841 = vmatpush.bf16.msra.mxu0 %v2999
        %3842 = vmatpush.bf16.msra.mxu0 %v2995
        %3843 = vmatpush.bf16.msra.mxu0 %v2991
        %3844 = vmatpush.bf16.msra.mxu0 %v2987
        %3845 = vmatpush.bf16.msra.mxu0 %v2983
        %3846 = vmatpush.bf16.msra.mxu0 %v2979
        %3847 = vmatpush.bf16.msra.mxu0 %v2975
        %3848 = vmatpush.bf16.msra.mxu0 %v2971
        %3849 = vmatmul.bf16.gmra.mxu0 %v1030
        %v3850 = vpop.f32.mrf.mxu0
        %v3851 = vadd.f32 %v3833, %v3850
        %v3852 = vpop.f32.mrf.mxu0
        %v3853 = vadd.f32 %v3835, %v3852
        %3854 = vmatmul.bf16.gmra.mxu0 %v1046
        %v3855 = vpop.f32.mrf.mxu0
        %v3856 = vadd.f32 %v3838, %v3855
        %v3857 = vpop.f32.mrf.mxu0
        %3858 = vdwg.mxu0
        %3859 = vmatpush.bf16.msra.mxu0 %v3031
        %3860 = vmatpush.bf16.msra.mxu0 %v3027
        %3861 = vmatpush.bf16.msra.mxu0 %v3023
        %3862 = vmatpush.bf16.msra.mxu0 %v3019
        %3863 = vmatpush.bf16.msra.mxu0 %v3015
        %3864 = vmatpush.bf16.msra.mxu0 %v3011
        %3865 = vmatpush.bf16.msra.mxu0 %v3007
        %3866 = vmatpush.bf16.msra.mxu0 %v3003
        %3867 = vmatmul.bf16.gmra.mxu0 %v1031
        %v3868 = vpop.f32.mrf.mxu0
        %v3869 = vadd.f32 %v3851, %v3868
        %v3870 = vpop.f32.mrf.mxu0
        %v3871 = vadd.f32 %v3853, %v3870
        %3872 = vmatmul.bf16.gmra.mxu0 %v1047
        %v3873 = vpop.f32.mrf.mxu0
        %v3874 = vadd.f32 %v3856, %v3873
        %v3875 = vpop.f32.mrf.mxu0
        %3876 = vdwg.mxu0
        %3877 = vmatpush.bf16.msra.mxu0 %v3063
        %3878 = vmatpush.bf16.msra.mxu0 %v3059
        %3879 = vmatpush.bf16.msra.mxu0 %v3055
        %3880 = vmatpush.bf16.msra.mxu0 %v3051
        %3881 = vmatpush.bf16.msra.mxu0 %v3047
        %3882 = vmatpush.bf16.msra.mxu0 %v3043
        %3883 = vmatpush.bf16.msra.mxu0 %v3039
        %3884 = vmatpush.bf16.msra.mxu0 %v3035
        %3885 = vmatmul.bf16.gmra.mxu0 %v1032
        %v3886 = vpop.f32.mrf.mxu0
        %v3887 = vadd.f32 %v3869, %v3886
        %v3888 = vpop.f32.mrf.mxu0
        %v3889 = vadd.f32 %v3871, %v3888
        %3890 = vmatmul.bf16.gmra.mxu0 %v1048
        %v3891 = vpop.f32.mrf.mxu0
        %v3892 = vadd.f32 %v3874, %v3891
        %v3893 = vpop.f32.mrf.mxu0
        %3894 = vdwg.mxu0
        %3895 = vmatpush.bf16.msra.mxu0 %v3095
        %3896 = vmatpush.bf16.msra.mxu0 %v3091
        %3897 = vmatpush.bf16.msra.mxu0 %v3087
        %3898 = vmatpush.bf16.msra.mxu0 %v3083
        %3899 = vmatpush.bf16.msra.mxu0 %v3079
        %3900 = vmatpush.bf16.msra.mxu0 %v3075
        %3901 = vmatpush.bf16.msra.mxu0 %v3071
        %3902 = vmatpush.bf16.msra.mxu0 %v3067
        %3903 = vmatmul.bf16.gmra.mxu0 %v1033
        %v3904 = vpop.f32.mrf.mxu0
        %v3905 = vadd.f32 %v3887, %v3904
        %v3906 = vpop.f32.mrf.mxu0
        %v3907 = vadd.f32 %v3889, %v3906
        %3908 = vmatmul.bf16.gmra.mxu0 %v1049
        %v3909 = vpop.f32.mrf.mxu0
        %v3910 = vadd.f32 %v3892, %v3909
        %v3911 = vpop.f32.mrf.mxu0
        %3912 = vdwg.mxu0
        %3913 = vmatpush.bf16.msra.mxu0 %v3127
        %3914 = vmatpush.bf16.msra.mxu0 %v3123
        %3915 = vmatpush.bf16.msra.mxu0 %v3119
        %3916 = vmatpush.bf16.msra.mxu0 %v3115
        %3917 = vmatpush.bf16.msra.mxu0 %v3111
        %3918 = vmatpush.bf16.msra.mxu0 %v3107
        %3919 = vmatpush.bf16.msra.mxu0 %v3103
        %3920 = vmatpush.bf16.msra.mxu0 %v3099
        %3921 = vmatmul.bf16.gmra.mxu0 %v1034
        %v3922 = vpop.f32.mrf.mxu0
        %v3923 = vadd.f32 %v3905, %v3922
        %v3924 = vpop.f32.mrf.mxu0
        %v3925 = vadd.f32 %v3907, %v3924
        %3926 = vmatmul.bf16.gmra.mxu0 %v1050
        %v3927 = vpop.f32.mrf.mxu0
        %v3928 = vadd.f32 %v3910, %v3927
        %v3929 = vpop.f32.mrf.mxu0
        %3930 = vdwg.mxu0
        %3931 = vmatpush.bf16.msra.mxu0 %v2648
        %3932 = vmatpush.bf16.msra.mxu0 %v2644
        %3933 = vmatpush.bf16.msra.mxu0 %v2640
        %3934 = vmatpush.bf16.msra.mxu0 %v2636
        %3935 = vmatpush.bf16.msra.mxu0 %v2632
        %3936 = vmatpush.bf16.msra.mxu0 %v2628
        %3937 = vmatpush.bf16.msra.mxu0 %v2624
        %3938 = vmatpush.bf16.msra.mxu0 %v2620
        %3939 = vmatmul.bf16.gmra.mxu0 %v1019
        %v3940 = vpop.f32.mrf.mxu0
        %v3941 = vadd.f32 0.0, %v3940
        %v3942 = vpop.f32.mrf.mxu0
        %v3943 = vadd.f32 0.0, %v3942
        %3944 = vmatmul.bf16.gmra.mxu0 %v1035
        %v3945 = vpop.f32.mrf.mxu0
        %v3946 = vadd.f32 0.0, %v3945
        %v3947 = vpop.f32.mrf.mxu0
        %3948 = vdwg.mxu0
        %3949 = vmatpush.bf16.msra.mxu0 %v2680
        %3950 = vmatpush.bf16.msra.mxu0 %v2676
        %3951 = vmatpush.bf16.msra.mxu0 %v2672
        %3952 = vmatpush.bf16.msra.mxu0 %v2668
        %3953 = vmatpush.bf16.msra.mxu0 %v2664
        %3954 = vmatpush.bf16.msra.mxu0 %v2660
        %3955 = vmatpush.bf16.msra.mxu0 %v2656
        %3956 = vmatpush.bf16.msra.mxu0 %v2652
        %3957 = vmatmul.bf16.gmra.mxu0 %v1020
        %v3958 = vpop.f32.mrf.mxu0
        %v3959 = vadd.f32 %v3941, %v3958
        %v3960 = vpop.f32.mrf.mxu0
        %v3961 = vadd.f32 %v3943, %v3960
        %3962 = vmatmul.bf16.gmra.mxu0 %v1036
        %v3963 = vpop.f32.mrf.mxu0
        %v3964 = vadd.f32 %v3946, %v3963
        %v3965 = vpop.f32.mrf.mxu0
        %3966 = vdwg.mxu0
        %3967 = vmatpush.bf16.msra.mxu0 %v2712
        %3968 = vmatpush.bf16.msra.mxu0 %v2708
        %3969 = vmatpush.bf16.msra.mxu0 %v2704
        %3970 = vmatpush.bf16.msra.mxu0 %v2700
        %3971 = vmatpush.bf16.msra.mxu0 %v2696
        %3972 = vmatpush.bf16.msra.mxu0 %v2692
        %3973 = vmatpush.bf16.msra.mxu0 %v2688
        %3974 = vmatpush.bf16.msra.mxu0 %v2684
        %3975 = vmatmul.bf16.gmra.mxu0 %v1021
        %v3976 = vpop.f32.mrf.mxu0
        %v3977 = vadd.f32 %v3959, %v3976
        %v3978 = vpop.f32.mrf.mxu0
        %v3979 = vadd.f32 %v3961, %v3978
        %3980 = vmatmul.bf16.gmra.mxu0 %v1037
        %v3981 = vpop.f32.mrf.mxu0
        %v3982 = vadd.f32 %v3964, %v3981
        %v3983 = vpop.f32.mrf.mxu0
        %3984 = vdwg.mxu0
        %3985 = vmatpush.bf16.msra.mxu0 %v2744
        %3986 = vmatpush.bf16.msra.mxu0 %v2740
        %3987 = vmatpush.bf16.msra.mxu0 %v2736
        %3988 = vmatpush.bf16.msra.mxu0 %v2732
        %3989 = vmatpush.bf16.msra.mxu0 %v2728
        %3990 = vmatpush.bf16.msra.mxu0 %v2724
        %3991 = vmatpush.bf16.msra.mxu0 %v2720
        %3992 = vmatpush.bf16.msra.mxu0 %v2716
        %3993 = vmatmul.bf16.gmra.mxu0 %v1022
        %v3994 = vpop.f32.mrf.mxu0
        %v3995 = vadd.f32 %v3977, %v3994
        %v3996 = vpop.f32.mrf.mxu0
        %v3997 = vadd.f32 %v3979, %v3996
        %3998 = vmatmul.bf16.gmra.mxu0 %v1038
        %v3999 = vpop.f32.mrf.mxu0
        %v4000 = vadd.f32 %v3982, %v3999
        %v4001 = vpop.f32.mrf.mxu0
        %4002 = vdwg.mxu0
        %4003 = vmatpush.bf16.msra.mxu0 %v2776
        %4004 = vmatpush.bf16.msra.mxu0 %v2772
        %4005 = vmatpush.bf16.msra.mxu0 %v2768
        %4006 = vmatpush.bf16.msra.mxu0 %v2764
        %4007 = vmatpush.bf16.msra.mxu0 %v2760
        %4008 = vmatpush.bf16.msra.mxu0 %v2756
        %4009 = vmatpush.bf16.msra.mxu0 %v2752
        %4010 = vmatpush.bf16.msra.mxu0 %v2748
        %4011 = vmatmul.bf16.gmra.mxu0 %v1023
        %v4012 = vpop.f32.mrf.mxu0
        %v4013 = vadd.f32 %v3995, %v4012
        %v4014 = vpop.f32.mrf.mxu0
        %v4015 = vadd.f32 %v3997, %v4014
        %4016 = vmatmul.bf16.gmra.mxu0 %v1039
        %v4017 = vpop.f32.mrf.mxu0
        %v4018 = vadd.f32 %v4000, %v4017
        %v4019 = vpop.f32.mrf.mxu0
        %4020 = vdwg.mxu0
        %4021 = vmatpush.bf16.msra.mxu0 %v2808
        %4022 = vmatpush.bf16.msra.mxu0 %v2804
        %4023 = vmatpush.bf16.msra.mxu0 %v2800
        %4024 = vmatpush.bf16.msra.mxu0 %v2796
        %4025 = vmatpush.bf16.msra.mxu0 %v2792
        %4026 = vmatpush.bf16.msra.mxu0 %v2788
        %4027 = vmatpush.bf16.msra.mxu0 %v2784
        %4028 = vmatpush.bf16.msra.mxu0 %v2780
        %4029 = vmatmul.bf16.gmra.mxu0 %v1024
        %v4030 = vpop.f32.mrf.mxu0
        %v4031 = vadd.f32 %v4013, %v4030
        %v4032 = vpop.f32.mrf.mxu0
        %v4033 = vadd.f32 %v4015, %v4032
        %4034 = vmatmul.bf16.gmra.mxu0 %v1040
        %v4035 = vpop.f32.mrf.mxu0
        %v4036 = vadd.f32 %v4018, %v4035
        %v4037 = vpop.f32.mrf.mxu0
        %4038 = vdwg.mxu0
        %4039 = vmatpush.bf16.msra.mxu0 %v2840
        %4040 = vmatpush.bf16.msra.mxu0 %v2836
        %4041 = vmatpush.bf16.msra.mxu0 %v2832
        %4042 = vmatpush.bf16.msra.mxu0 %v2828
        %4043 = vmatpush.bf16.msra.mxu0 %v2824
        %4044 = vmatpush.bf16.msra.mxu0 %v2820
        %4045 = vmatpush.bf16.msra.mxu0 %v2816
        %4046 = vmatpush.bf16.msra.mxu0 %v2812
        %4047 = vmatmul.bf16.gmra.mxu0 %v1025
        %v4048 = vpop.f32.mrf.mxu0
        %v4049 = vadd.f32 %v4031, %v4048
        %v4050 = vpop.f32.mrf.mxu0
        %v4051 = vadd.f32 %v4033, %v4050
        %4052 = vmatmul.bf16.gmra.mxu0 %v1041
        %v4053 = vpop.f32.mrf.mxu0
        %v4054 = vadd.f32 %v4036, %v4053
        %v4055 = vpop.f32.mrf.mxu0
        %4056 = vdwg.mxu0
        %4057 = vmatpush.bf16.msra.mxu0 %v2872
        %4058 = vmatpush.bf16.msra.mxu0 %v2868
        %4059 = vmatpush.bf16.msra.mxu0 %v2864
        %4060 = vmatpush.bf16.msra.mxu0 %v2860
        %4061 = vmatpush.bf16.msra.mxu0 %v2856
        %4062 = vmatpush.bf16.msra.mxu0 %v2852
        %4063 = vmatpush.bf16.msra.mxu0 %v2848
        %4064 = vmatpush.bf16.msra.mxu0 %v2844
        %4065 = vmatmul.bf16.gmra.mxu0 %v1026
        %v4066 = vpop.f32.mrf.mxu0
        %v4067 = vadd.f32 %v4049, %v4066
        %v4068 = vpop.f32.mrf.mxu0
        %v4069 = vadd.f32 %v4051, %v4068
        %4070 = vmatmul.bf16.gmra.mxu0 %v1042
        %v4071 = vpop.f32.mrf.mxu0
        %v4072 = vadd.f32 %v4054, %v4071
        %v4073 = vpop.f32.mrf.mxu0
        %4074 = vdwg.mxu0
        %4075 = vmatpush.bf16.msra.mxu0 %v2904
        %4076 = vmatpush.bf16.msra.mxu0 %v2900
        %4077 = vmatpush.bf16.msra.mxu0 %v2896
        %4078 = vmatpush.bf16.msra.mxu0 %v2892
        %4079 = vmatpush.bf16.msra.mxu0 %v2888
        %4080 = vmatpush.bf16.msra.mxu0 %v2884
        %4081 = vmatpush.bf16.msra.mxu0 %v2880
        %4082 = vmatpush.bf16.msra.mxu0 %v2876
        %4083 = vmatmul.bf16.gmra.mxu0 %v1027
        %v4084 = vpop.f32.mrf.mxu0
        %v4085 = vadd.f32 %v4067, %v4084
        %v4086 = vpop.f32.mrf.mxu0
        %v4087 = vadd.f32 %v4069, %v4086
        %4088 = vmatmul.bf16.gmra.mxu0 %v1043
        %v4089 = vpop.f32.mrf.mxu0
        %v4090 = vadd.f32 %v4072, %v4089
        %v4091 = vpop.f32.mrf.mxu0
        %4092 = vdwg.mxu0
        %4093 = vmatpush.bf16.msra.mxu0 %v2936
        %4094 = vmatpush.bf16.msra.mxu0 %v2932
        %4095 = vmatpush.bf16.msra.mxu0 %v2928
        %4096 = vmatpush.bf16.msra.mxu0 %v2924
        %4097 = vmatpush.bf16.msra.mxu0 %v2920
        %4098 = vmatpush.bf16.msra.mxu0 %v2916
        %4099 = vmatpush.bf16.msra.mxu0 %v2912
        %4100 = vmatpush.bf16.msra.mxu0 %v2908
        %4101 = vmatmul.bf16.gmra.mxu0 %v1028
        %v4102 = vpop.f32.mrf.mxu0
        %v4103 = vadd.f32 %v4085, %v4102
        %v4104 = vpop.f32.mrf.mxu0
        %v4105 = vadd.f32 %v4087, %v4104
        %4106 = vmatmul.bf16.gmra.mxu0 %v1044
        %v4107 = vpop.f32.mrf.mxu0
        %v4108 = vadd.f32 %v4090, %v4107
        %v4109 = vpop.f32.mrf.mxu0
        %4110 = vdwg.mxu0
        %4111 = vmatpush.bf16.msra.mxu0 %v2968
        %4112 = vmatpush.bf16.msra.mxu0 %v2964
        %4113 = vmatpush.bf16.msra.mxu0 %v2960
        %4114 = vmatpush.bf16.msra.mxu0 %v2956
        %4115 = vmatpush.bf16.msra.mxu0 %v2952
        %4116 = vmatpush.bf16.msra.mxu0 %v2948
        %4117 = vmatpush.bf16.msra.mxu0 %v2944
        %4118 = vmatpush.bf16.msra.mxu0 %v2940
        %4119 = vmatmul.bf16.gmra.mxu0 %v1029
        %v4120 = vpop.f32.mrf.mxu0
        %v4121 = vadd.f32 %v4103, %v4120
        %v4122 = vpop.f32.mrf.mxu0
        %v4123 = vadd.f32 %v4105, %v4122
        %4124 = vmatmul.bf16.gmra.mxu0 %v1045
        %v4125 = vpop.f32.mrf.mxu0
        %v4126 = vadd.f32 %v4108, %v4125
        %v4127 = vpop.f32.mrf.mxu0
        %4128 = vdwg.mxu0
        %4129 = vmatpush.bf16.msra.mxu0 %v3000
        %4130 = vmatpush.bf16.msra.mxu0 %v2996
        %4131 = vmatpush.bf16.msra.mxu0 %v2992
        %4132 = vmatpush.bf16.msra.mxu0 %v2988
        %4133 = vmatpush.bf16.msra.mxu0 %v2984
        %4134 = vmatpush.bf16.msra.mxu0 %v2980
        %4135 = vmatpush.bf16.msra.mxu0 %v2976
        %4136 = vmatpush.bf16.msra.mxu0 %v2972
        %4137 = vmatmul.bf16.gmra.mxu0 %v1030
        %v4138 = vpop.f32.mrf.mxu0
        %v4139 = vadd.f32 %v4121, %v4138
        %v4140 = vpop.f32.mrf.mxu0
        %v4141 = vadd.f32 %v4123, %v4140
        %4142 = vmatmul.bf16.gmra.mxu0 %v1046
        %v4143 = vpop.f32.mrf.mxu0
        %v4144 = vadd.f32 %v4126, %v4143
        %v4145 = vpop.f32.mrf.mxu0
        %4146 = vdwg.mxu0
        %4147 = vmatpush.bf16.msra.mxu0 %v3032
        %4148 = vmatpush.bf16.msra.mxu0 %v3028
        %4149 = vmatpush.bf16.msra.mxu0 %v3024
        %4150 = vmatpush.bf16.msra.mxu0 %v3020
        %4151 = vmatpush.bf16.msra.mxu0 %v3016
        %4152 = vmatpush.bf16.msra.mxu0 %v3012
        %4153 = vmatpush.bf16.msra.mxu0 %v3008
        %4154 = vmatpush.bf16.msra.mxu0 %v3004
        %4155 = vmatmul.bf16.gmra.mxu0 %v1031
        %v4156 = vpop.f32.mrf.mxu0
        %v4157 = vadd.f32 %v4139, %v4156
        %v4158 = vpop.f32.mrf.mxu0
        %v4159 = vadd.f32 %v4141, %v4158
        %4160 = vmatmul.bf16.gmra.mxu0 %v1047
        %v4161 = vpop.f32.mrf.mxu0
        %v4162 = vadd.f32 %v4144, %v4161
        %v4163 = vpop.f32.mrf.mxu0
        %4164 = vdwg.mxu0
        %4165 = vmatpush.bf16.msra.mxu0 %v3064
        %4166 = vmatpush.bf16.msra.mxu0 %v3060
        %4167 = vmatpush.bf16.msra.mxu0 %v3056
        %4168 = vmatpush.bf16.msra.mxu0 %v3052
        %4169 = vmatpush.bf16.msra.mxu0 %v3048
        %4170 = vmatpush.bf16.msra.mxu0 %v3044
        %4171 = vmatpush.bf16.msra.mxu0 %v3040
        %4172 = vmatpush.bf16.msra.mxu0 %v3036
        %4173 = vmatmul.bf16.gmra.mxu0 %v1032
        %v4174 = vpop.f32.mrf.mxu0
        %v4175 = vadd.f32 %v4157, %v4174
        %v4176 = vpop.f32.mrf.mxu0
        %v4177 = vadd.f32 %v4159, %v4176
        %4178 = vmatmul.bf16.gmra.mxu0 %v1048
        %v4179 = vpop.f32.mrf.mxu0
        %v4180 = vadd.f32 %v4162, %v4179
        %v4181 = vpop.f32.mrf.mxu0
        %4182 = vdwg.mxu0
        %4183 = vmatpush.bf16.msra.mxu0 %v3096
        %4184 = vmatpush.bf16.msra.mxu0 %v3092
        %4185 = vmatpush.bf16.msra.mxu0 %v3088
        %4186 = vmatpush.bf16.msra.mxu0 %v3084
        %4187 = vmatpush.bf16.msra.mxu0 %v3080
        %4188 = vmatpush.bf16.msra.mxu0 %v3076
        %4189 = vmatpush.bf16.msra.mxu0 %v3072
        %4190 = vmatpush.bf16.msra.mxu0 %v3068
        %4191 = vmatmul.bf16.gmra.mxu0 %v1033
        %v4192 = vpop.f32.mrf.mxu0
        %v4193 = vadd.f32 %v4175, %v4192
        %v4194 = vpop.f32.mrf.mxu0
        %v4195 = vadd.f32 %v4177, %v4194
        %4196 = vmatmul.bf16.gmra.mxu0 %v1049
        %v4197 = vpop.f32.mrf.mxu0
        %v4198 = vadd.f32 %v4180, %v4197
        %v4199 = vpop.f32.mrf.mxu0
        %4200 = vdwg.mxu0
        %4201 = vmatpush.bf16.msra.mxu0 %v3128
        %4202 = vmatpush.bf16.msra.mxu0 %v3124
        %4203 = vmatpush.bf16.msra.mxu0 %v3120
        %4204 = vmatpush.bf16.msra.mxu0 %v3116
        %4205 = vmatpush.bf16.msra.mxu0 %v3112
        %4206 = vmatpush.bf16.msra.mxu0 %v3108
        %4207 = vmatpush.bf16.msra.mxu0 %v3104
        %4208 = vmatpush.bf16.msra.mxu0 %v3100
        %4209 = vmatmul.bf16.gmra.mxu0 %v1034
        %v4210 = vpop.f32.mrf.mxu0
        %v4211 = vadd.f32 %v4193, %v4210
        %v4212 = vpop.f32.mrf.mxu0
        %v4213 = vadd.f32 %v4195, %v4212
        %4214 = vmatmul.bf16.gmra.mxu0 %v1050
        %v4215 = vpop.f32.mrf.mxu0
        %v4216 = vadd.f32 %v4198, %v4215
        %v4217 = vpop.f32.mrf.mxu0
        %4218 = vdwg.mxu0
        %4219 = vmatpush.bf16.msra.mxu0 %v2649
        %4220 = vmatpush.bf16.msra.mxu0 %v2645
        %4221 = vmatpush.bf16.msra.mxu0 %v2641
        %4222 = vmatpush.bf16.msra.mxu0 %v2637
        %4223 = vmatpush.bf16.msra.mxu0 %v2633
        %4224 = vmatpush.bf16.msra.mxu0 %v2629
        %4225 = vmatpush.bf16.msra.mxu0 %v2625
        %4226 = vmatpush.bf16.msra.mxu0 %v2621
        %4227 = vmatmul.bf16.gmra.mxu0 %v1019
        %v4228 = vpop.f32.mrf.mxu0
        %v4229 = vadd.f32 0.0, %v4228
        %v4230 = vpop.f32.mrf.mxu0
        %v4231 = vadd.f32 0.0, %v4230
        %4232 = vmatmul.bf16.gmra.mxu0 %v1035
        %v4233 = vpop.f32.mrf.mxu0
        %v4234 = vadd.f32 0.0, %v4233
        %v4235 = vpop.f32.mrf.mxu0
        %4236 = vdwg.mxu0
        %4237 = vmatpush.bf16.msra.mxu0 %v2681
        %4238 = vmatpush.bf16.msra.mxu0 %v2677
        %4239 = vmatpush.bf16.msra.mxu0 %v2673
        %4240 = vmatpush.bf16.msra.mxu0 %v2669
        %4241 = vmatpush.bf16.msra.mxu0 %v2665
        %4242 = vmatpush.bf16.msra.mxu0 %v2661
        %4243 = vmatpush.bf16.msra.mxu0 %v2657
        %4244 = vmatpush.bf16.msra.mxu0 %v2653
        %4245 = vmatmul.bf16.gmra.mxu0 %v1020
        %v4246 = vpop.f32.mrf.mxu0
        %v4247 = vadd.f32 %v4229, %v4246
        %v4248 = vpop.f32.mrf.mxu0
        %v4249 = vadd.f32 %v4231, %v4248
        %4250 = vmatmul.bf16.gmra.mxu0 %v1036
        %v4251 = vpop.f32.mrf.mxu0
        %v4252 = vadd.f32 %v4234, %v4251
        %v4253 = vpop.f32.mrf.mxu0
        %4254 = vdwg.mxu0
        %4255 = vmatpush.bf16.msra.mxu0 %v2713
        %4256 = vmatpush.bf16.msra.mxu0 %v2709
        %4257 = vmatpush.bf16.msra.mxu0 %v2705
        %4258 = vmatpush.bf16.msra.mxu0 %v2701
        %4259 = vmatpush.bf16.msra.mxu0 %v2697
        %4260 = vmatpush.bf16.msra.mxu0 %v2693
        %4261 = vmatpush.bf16.msra.mxu0 %v2689
        %4262 = vmatpush.bf16.msra.mxu0 %v2685
        %4263 = vmatmul.bf16.gmra.mxu0 %v1021
        %v4264 = vpop.f32.mrf.mxu0
        %v4265 = vadd.f32 %v4247, %v4264
        %v4266 = vpop.f32.mrf.mxu0
        %v4267 = vadd.f32 %v4249, %v4266
        %4268 = vmatmul.bf16.gmra.mxu0 %v1037
        %v4269 = vpop.f32.mrf.mxu0
        %v4270 = vadd.f32 %v4252, %v4269
        %v4271 = vpop.f32.mrf.mxu0
        %4272 = vdwg.mxu0
        %4273 = vmatpush.bf16.msra.mxu0 %v2745
        %4274 = vmatpush.bf16.msra.mxu0 %v2741
        %4275 = vmatpush.bf16.msra.mxu0 %v2737
        %4276 = vmatpush.bf16.msra.mxu0 %v2733
        %4277 = vmatpush.bf16.msra.mxu0 %v2729
        %4278 = vmatpush.bf16.msra.mxu0 %v2725
        %4279 = vmatpush.bf16.msra.mxu0 %v2721
        %4280 = vmatpush.bf16.msra.mxu0 %v2717
        %4281 = vmatmul.bf16.gmra.mxu0 %v1022
        %v4282 = vpop.f32.mrf.mxu0
        %v4283 = vadd.f32 %v4265, %v4282
        %v4284 = vpop.f32.mrf.mxu0
        %v4285 = vadd.f32 %v4267, %v4284
        %4286 = vmatmul.bf16.gmra.mxu0 %v1038
        %v4287 = vpop.f32.mrf.mxu0
        %v4288 = vadd.f32 %v4270, %v4287
        %v4289 = vpop.f32.mrf.mxu0
        %4290 = vdwg.mxu0
        %4291 = vmatpush.bf16.msra.mxu0 %v2777
        %4292 = vmatpush.bf16.msra.mxu0 %v2773
        %4293 = vmatpush.bf16.msra.mxu0 %v2769
        %4294 = vmatpush.bf16.msra.mxu0 %v2765
        %4295 = vmatpush.bf16.msra.mxu0 %v2761
        %4296 = vmatpush.bf16.msra.mxu0 %v2757
        %4297 = vmatpush.bf16.msra.mxu0 %v2753
        %4298 = vmatpush.bf16.msra.mxu0 %v2749
        %4299 = vmatmul.bf16.gmra.mxu0 %v1023
        %v4300 = vpop.f32.mrf.mxu0
        %v4301 = vadd.f32 %v4283, %v4300
        %v4302 = vpop.f32.mrf.mxu0
        %v4303 = vadd.f32 %v4285, %v4302
        %4304 = vmatmul.bf16.gmra.mxu0 %v1039
        %v4305 = vpop.f32.mrf.mxu0
        %v4306 = vadd.f32 %v4288, %v4305
        %v4307 = vpop.f32.mrf.mxu0
        %4308 = vdwg.mxu0
        %4309 = vmatpush.bf16.msra.mxu0 %v2809
        %4310 = vmatpush.bf16.msra.mxu0 %v2805
        %4311 = vmatpush.bf16.msra.mxu0 %v2801
        %4312 = vmatpush.bf16.msra.mxu0 %v2797
        %4313 = vmatpush.bf16.msra.mxu0 %v2793
        %4314 = vmatpush.bf16.msra.mxu0 %v2789
        %4315 = vmatpush.bf16.msra.mxu0 %v2785
        %4316 = vmatpush.bf16.msra.mxu0 %v2781
        %4317 = vmatmul.bf16.gmra.mxu0 %v1024
        %v4318 = vpop.f32.mrf.mxu0
        %v4319 = vadd.f32 %v4301, %v4318
        %v4320 = vpop.f32.mrf.mxu0
        %v4321 = vadd.f32 %v4303, %v4320
        %4322 = vmatmul.bf16.gmra.mxu0 %v1040
        %v4323 = vpop.f32.mrf.mxu0
        %v4324 = vadd.f32 %v4306, %v4323
        %v4325 = vpop.f32.mrf.mxu0
        %4326 = vdwg.mxu0
        %4327 = vmatpush.bf16.msra.mxu0 %v2841
        %4328 = vmatpush.bf16.msra.mxu0 %v2837
        %4329 = vmatpush.bf16.msra.mxu0 %v2833
        %4330 = vmatpush.bf16.msra.mxu0 %v2829
        %4331 = vmatpush.bf16.msra.mxu0 %v2825
        %4332 = vmatpush.bf16.msra.mxu0 %v2821
        %4333 = vmatpush.bf16.msra.mxu0 %v2817
        %4334 = vmatpush.bf16.msra.mxu0 %v2813
        %4335 = vmatmul.bf16.gmra.mxu0 %v1025
        %v4336 = vpop.f32.mrf.mxu0
        %v4337 = vadd.f32 %v4319, %v4336
        %v4338 = vpop.f32.mrf.mxu0
        %v4339 = vadd.f32 %v4321, %v4338
        %4340 = vmatmul.bf16.gmra.mxu0 %v1041
        %v4341 = vpop.f32.mrf.mxu0
        %v4342 = vadd.f32 %v4324, %v4341
        %v4343 = vpop.f32.mrf.mxu0
        %4344 = vdwg.mxu0
        %4345 = vmatpush.bf16.msra.mxu0 %v2873
        %4346 = vmatpush.bf16.msra.mxu0 %v2869
        %4347 = vmatpush.bf16.msra.mxu0 %v2865
        %4348 = vmatpush.bf16.msra.mxu0 %v2861
        %4349 = vmatpush.bf16.msra.mxu0 %v2857
        %4350 = vmatpush.bf16.msra.mxu0 %v2853
        %4351 = vmatpush.bf16.msra.mxu0 %v2849
        %4352 = vmatpush.bf16.msra.mxu0 %v2845
        %4353 = vmatmul.bf16.gmra.mxu0 %v1026
        %v4354 = vpop.f32.mrf.mxu0
        %v4355 = vadd.f32 %v4337, %v4354
        %v4356 = vpop.f32.mrf.mxu0
        %v4357 = vadd.f32 %v4339, %v4356
        %4358 = vmatmul.bf16.gmra.mxu0 %v1042
        %v4359 = vpop.f32.mrf.mxu0
        %v4360 = vadd.f32 %v4342, %v4359
        %v4361 = vpop.f32.mrf.mxu0
        %4362 = vdwg.mxu0
        %4363 = vmatpush.bf16.msra.mxu0 %v2905
        %4364 = vmatpush.bf16.msra.mxu0 %v2901
        %4365 = vmatpush.bf16.msra.mxu0 %v2897
        %4366 = vmatpush.bf16.msra.mxu0 %v2893
        %4367 = vmatpush.bf16.msra.mxu0 %v2889
        %4368 = vmatpush.bf16.msra.mxu0 %v2885
        %4369 = vmatpush.bf16.msra.mxu0 %v2881
        %4370 = vmatpush.bf16.msra.mxu0 %v2877
        %4371 = vmatmul.bf16.gmra.mxu0 %v1027
        %v4372 = vpop.f32.mrf.mxu0
        %v4373 = vadd.f32 %v4355, %v4372
        %v4374 = vpop.f32.mrf.mxu0
        %v4375 = vadd.f32 %v4357, %v4374
        %4376 = vmatmul.bf16.gmra.mxu0 %v1043
        %v4377 = vpop.f32.mrf.mxu0
        %v4378 = vadd.f32 %v4360, %v4377
        %v4379 = vpop.f32.mrf.mxu0
        %4380 = vdwg.mxu0
        %4381 = vmatpush.bf16.msra.mxu0 %v2937
        %4382 = vmatpush.bf16.msra.mxu0 %v2933
        %4383 = vmatpush.bf16.msra.mxu0 %v2929
        %4384 = vmatpush.bf16.msra.mxu0 %v2925
        %4385 = vmatpush.bf16.msra.mxu0 %v2921
        %4386 = vmatpush.bf16.msra.mxu0 %v2917
        %4387 = vmatpush.bf16.msra.mxu0 %v2913
        %4388 = vmatpush.bf16.msra.mxu0 %v2909
        %4389 = vmatmul.bf16.gmra.mxu0 %v1028
        %v4390 = vpop.f32.mrf.mxu0
        %v4391 = vadd.f32 %v4373, %v4390
        %v4392 = vpop.f32.mrf.mxu0
        %v4393 = vadd.f32 %v4375, %v4392
        %4394 = vmatmul.bf16.gmra.mxu0 %v1044
        %v4395 = vpop.f32.mrf.mxu0
        %v4396 = vadd.f32 %v4378, %v4395
        %v4397 = vpop.f32.mrf.mxu0
        %4398 = vdwg.mxu0
        %4399 = vmatpush.bf16.msra.mxu0 %v2969
        %4400 = vmatpush.bf16.msra.mxu0 %v2965
        %4401 = vmatpush.bf16.msra.mxu0 %v2961
        %4402 = vmatpush.bf16.msra.mxu0 %v2957
        %4403 = vmatpush.bf16.msra.mxu0 %v2953
        %4404 = vmatpush.bf16.msra.mxu0 %v2949
        %4405 = vmatpush.bf16.msra.mxu0 %v2945
        %4406 = vmatpush.bf16.msra.mxu0 %v2941
        %4407 = vmatmul.bf16.gmra.mxu0 %v1029
        %v4408 = vpop.f32.mrf.mxu0
        %v4409 = vadd.f32 %v4391, %v4408
        %v4410 = vpop.f32.mrf.mxu0
        %v4411 = vadd.f32 %v4393, %v4410
        %4412 = vmatmul.bf16.gmra.mxu0 %v1045
        %v4413 = vpop.f32.mrf.mxu0
        %v4414 = vadd.f32 %v4396, %v4413
        %v4415 = vpop.f32.mrf.mxu0
        %4416 = vdwg.mxu0
        %4417 = vmatpush.bf16.msra.mxu0 %v3001
        %4418 = vmatpush.bf16.msra.mxu0 %v2997
        %4419 = vmatpush.bf16.msra.mxu0 %v2993
        %4420 = vmatpush.bf16.msra.mxu0 %v2989
        %4421 = vmatpush.bf16.msra.mxu0 %v2985
        %4422 = vmatpush.bf16.msra.mxu0 %v2981
        %4423 = vmatpush.bf16.msra.mxu0 %v2977
        %4424 = vmatpush.bf16.msra.mxu0 %v2973
        %4425 = vmatmul.bf16.gmra.mxu0 %v1030
        %v4426 = vpop.f32.mrf.mxu0
        %v4427 = vadd.f32 %v4409, %v4426
        %v4428 = vpop.f32.mrf.mxu0
        %v4429 = vadd.f32 %v4411, %v4428
        %4430 = vmatmul.bf16.gmra.mxu0 %v1046
        %v4431 = vpop.f32.mrf.mxu0
        %v4432 = vadd.f32 %v4414, %v4431
        %v4433 = vpop.f32.mrf.mxu0
        %4434 = vdwg.mxu0
        %4435 = vmatpush.bf16.msra.mxu0 %v3033
        %4436 = vmatpush.bf16.msra.mxu0 %v3029
        %4437 = vmatpush.bf16.msra.mxu0 %v3025
        %4438 = vmatpush.bf16.msra.mxu0 %v3021
        %4439 = vmatpush.bf16.msra.mxu0 %v3017
        %4440 = vmatpush.bf16.msra.mxu0 %v3013
        %4441 = vmatpush.bf16.msra.mxu0 %v3009
        %4442 = vmatpush.bf16.msra.mxu0 %v3005
        %4443 = vmatmul.bf16.gmra.mxu0 %v1031
        %v4444 = vpop.f32.mrf.mxu0
        %v4445 = vadd.f32 %v4427, %v4444
        %v4446 = vpop.f32.mrf.mxu0
        %v4447 = vadd.f32 %v4429, %v4446
        %4448 = vmatmul.bf16.gmra.mxu0 %v1047
        %v4449 = vpop.f32.mrf.mxu0
        %v4450 = vadd.f32 %v4432, %v4449
        %v4451 = vpop.f32.mrf.mxu0
        %4452 = vdwg.mxu0
        %4453 = vmatpush.bf16.msra.mxu0 %v3065
        %4454 = vmatpush.bf16.msra.mxu0 %v3061
        %4455 = vmatpush.bf16.msra.mxu0 %v3057
        %4456 = vmatpush.bf16.msra.mxu0 %v3053
        %4457 = vmatpush.bf16.msra.mxu0 %v3049
        %4458 = vmatpush.bf16.msra.mxu0 %v3045
        %4459 = vmatpush.bf16.msra.mxu0 %v3041
        %4460 = vmatpush.bf16.msra.mxu0 %v3037
        %4461 = vmatmul.bf16.gmra.mxu0 %v1032
        %v4462 = vpop.f32.mrf.mxu0
        %v4463 = vadd.f32 %v4445, %v4462
        %v4464 = vpop.f32.mrf.mxu0
        %v4465 = vadd.f32 %v4447, %v4464
        %4466 = vmatmul.bf16.gmra.mxu0 %v1048
        %v4467 = vpop.f32.mrf.mxu0
        %v4468 = vadd.f32 %v4450, %v4467
        %v4469 = vpop.f32.mrf.mxu0
        %4470 = vdwg.mxu0
        %4471 = vmatpush.bf16.msra.mxu0 %v3097
        %4472 = vmatpush.bf16.msra.mxu0 %v3093
        %4473 = vmatpush.bf16.msra.mxu0 %v3089
        %4474 = vmatpush.bf16.msra.mxu0 %v3085
        %4475 = vmatpush.bf16.msra.mxu0 %v3081
        %4476 = vmatpush.bf16.msra.mxu0 %v3077
        %4477 = vmatpush.bf16.msra.mxu0 %v3073
        %4478 = vmatpush.bf16.msra.mxu0 %v3069
        %4479 = vmatmul.bf16.gmra.mxu0 %v1033
        %v4480 = vpop.f32.mrf.mxu0
        %v4481 = vadd.f32 %v4463, %v4480
        %v4482 = vpop.f32.mrf.mxu0
        %v4483 = vadd.f32 %v4465, %v4482
        %4484 = vmatmul.bf16.gmra.mxu0 %v1049
        %v4485 = vpop.f32.mrf.mxu0
        %v4486 = vadd.f32 %v4468, %v4485
        %v4487 = vpop.f32.mrf.mxu0
        %4488 = vdwg.mxu0
        %4489 = vmatpush.bf16.msra.mxu0 %v3129
        %4490 = vmatpush.bf16.msra.mxu0 %v3125
        %4491 = vmatpush.bf16.msra.mxu0 %v3121
        %4492 = vmatpush.bf16.msra.mxu0 %v3117
        %4493 = vmatpush.bf16.msra.mxu0 %v3113
        %4494 = vmatpush.bf16.msra.mxu0 %v3109
        %4495 = vmatpush.bf16.msra.mxu0 %v3105
        %4496 = vmatpush.bf16.msra.mxu0 %v3101
        %4497 = vmatmul.bf16.gmra.mxu0 %v1034
        %v4498 = vpop.f32.mrf.mxu0
        %v4499 = vadd.f32 %v4481, %v4498
        %v4500 = vpop.f32.mrf.mxu0
        %v4501 = vadd.f32 %v4483, %v4500
        %4502 = vmatmul.bf16.gmra.mxu0 %v1050
        %v4503 = vpop.f32.mrf.mxu0
        %v4504 = vadd.f32 %v4486, %v4503
        %v4505 = vpop.f32.mrf.mxu0
        %4506 = vdwg.mxu0
        %4507 = vmatpush.bf16.msra.mxu0 %v2650
        %4508 = vmatpush.bf16.msra.mxu0 %v2646
        %4509 = vmatpush.bf16.msra.mxu0 %v2642
        %4510 = vmatpush.bf16.msra.mxu0 %v2638
        %4511 = vmatpush.bf16.msra.mxu0 %v2634
        %4512 = vmatpush.bf16.msra.mxu0 %v2630
        %4513 = vmatpush.bf16.msra.mxu0 %v2626
        %4514 = vmatpush.bf16.msra.mxu0 %v2622
        %4515 = vmatmul.bf16.gmra.mxu0 %v1019
        %v4516 = vpop.f32.mrf.mxu0
        %v4517 = vadd.f32 0.0, %v4516
        %v4518 = vpop.f32.mrf.mxu0
        %v4519 = vadd.f32 0.0, %v4518
        %4520 = vmatmul.bf16.gmra.mxu0 %v1035
        %v4521 = vpop.f32.mrf.mxu0
        %v4522 = vadd.f32 0.0, %v4521
        %v4523 = vpop.f32.mrf.mxu0
        %4524 = vdwg.mxu0
        %4525 = vmatpush.bf16.msra.mxu0 %v2682
        %4526 = vmatpush.bf16.msra.mxu0 %v2678
        %4527 = vmatpush.bf16.msra.mxu0 %v2674
        %4528 = vmatpush.bf16.msra.mxu0 %v2670
        %4529 = vmatpush.bf16.msra.mxu0 %v2666
        %4530 = vmatpush.bf16.msra.mxu0 %v2662
        %4531 = vmatpush.bf16.msra.mxu0 %v2658
        %4532 = vmatpush.bf16.msra.mxu0 %v2654
        %4533 = vmatmul.bf16.gmra.mxu0 %v1020
        %v4534 = vpop.f32.mrf.mxu0
        %v4535 = vadd.f32 %v4517, %v4534
        %v4536 = vpop.f32.mrf.mxu0
        %v4537 = vadd.f32 %v4519, %v4536
        %4538 = vmatmul.bf16.gmra.mxu0 %v1036
        %v4539 = vpop.f32.mrf.mxu0
        %v4540 = vadd.f32 %v4522, %v4539
        %v4541 = vpop.f32.mrf.mxu0
        %4542 = vdwg.mxu0
        %4543 = vmatpush.bf16.msra.mxu0 %v2714
        %4544 = vmatpush.bf16.msra.mxu0 %v2710
        %4545 = vmatpush.bf16.msra.mxu0 %v2706
        %4546 = vmatpush.bf16.msra.mxu0 %v2702
        %4547 = vmatpush.bf16.msra.mxu0 %v2698
        %4548 = vmatpush.bf16.msra.mxu0 %v2694
        %4549 = vmatpush.bf16.msra.mxu0 %v2690
        %4550 = vmatpush.bf16.msra.mxu0 %v2686
        %4551 = vmatmul.bf16.gmra.mxu0 %v1021
        %v4552 = vpop.f32.mrf.mxu0
        %v4553 = vadd.f32 %v4535, %v4552
        %v4554 = vpop.f32.mrf.mxu0
        %v4555 = vadd.f32 %v4537, %v4554
        %4556 = vmatmul.bf16.gmra.mxu0 %v1037
        %v4557 = vpop.f32.mrf.mxu0
        %v4558 = vadd.f32 %v4540, %v4557
        %v4559 = vpop.f32.mrf.mxu0
        %4560 = vdwg.mxu0
        %4561 = vmatpush.bf16.msra.mxu0 %v2746
        %4562 = vmatpush.bf16.msra.mxu0 %v2742
        %4563 = vmatpush.bf16.msra.mxu0 %v2738
        %4564 = vmatpush.bf16.msra.mxu0 %v2734
        %4565 = vmatpush.bf16.msra.mxu0 %v2730
        %4566 = vmatpush.bf16.msra.mxu0 %v2726
        %4567 = vmatpush.bf16.msra.mxu0 %v2722
        %4568 = vmatpush.bf16.msra.mxu0 %v2718
        %4569 = vmatmul.bf16.gmra.mxu0 %v1022
        %v4570 = vpop.f32.mrf.mxu0
        %v4571 = vadd.f32 %v4553, %v4570
        %v4572 = vpop.f32.mrf.mxu0
        %v4573 = vadd.f32 %v4555, %v4572
        %4574 = vmatmul.bf16.gmra.mxu0 %v1038
        %v4575 = vpop.f32.mrf.mxu0
        %v4576 = vadd.f32 %v4558, %v4575
        %v4577 = vpop.f32.mrf.mxu0
        %4578 = vdwg.mxu0
        %4579 = vmatpush.bf16.msra.mxu0 %v2778
        %4580 = vmatpush.bf16.msra.mxu0 %v2774
        %4581 = vmatpush.bf16.msra.mxu0 %v2770
        %4582 = vmatpush.bf16.msra.mxu0 %v2766
        %4583 = vmatpush.bf16.msra.mxu0 %v2762
        %4584 = vmatpush.bf16.msra.mxu0 %v2758
        %4585 = vmatpush.bf16.msra.mxu0 %v2754
        %4586 = vmatpush.bf16.msra.mxu0 %v2750
        %4587 = vmatmul.bf16.gmra.mxu0 %v1023
        %v4588 = vpop.f32.mrf.mxu0
        %v4589 = vadd.f32 %v4571, %v4588
        %v4590 = vpop.f32.mrf.mxu0
        %v4591 = vadd.f32 %v4573, %v4590
        %4592 = vmatmul.bf16.gmra.mxu0 %v1039
        %v4593 = vpop.f32.mrf.mxu0
        %v4594 = vadd.f32 %v4576, %v4593
        %v4595 = vpop.f32.mrf.mxu0
        %4596 = vdwg.mxu0
        %4597 = vmatpush.bf16.msra.mxu0 %v2810
        %4598 = vmatpush.bf16.msra.mxu0 %v2806
        %4599 = vmatpush.bf16.msra.mxu0 %v2802
        %4600 = vmatpush.bf16.msra.mxu0 %v2798
        %4601 = vmatpush.bf16.msra.mxu0 %v2794
        %4602 = vmatpush.bf16.msra.mxu0 %v2790
        %4603 = vmatpush.bf16.msra.mxu0 %v2786
        %4604 = vmatpush.bf16.msra.mxu0 %v2782
        %4605 = vmatmul.bf16.gmra.mxu0 %v1024
        %v4606 = vpop.f32.mrf.mxu0
        %v4607 = vadd.f32 %v4589, %v4606
        %v4608 = vpop.f32.mrf.mxu0
        %v4609 = vadd.f32 %v4591, %v4608
        %4610 = vmatmul.bf16.gmra.mxu0 %v1040
        %v4611 = vpop.f32.mrf.mxu0
        %v4612 = vadd.f32 %v4594, %v4611
        %v4613 = vpop.f32.mrf.mxu0
        %4614 = vdwg.mxu0
        %4615 = vmatpush.bf16.msra.mxu0 %v2842
        %4616 = vmatpush.bf16.msra.mxu0 %v2838
        %4617 = vmatpush.bf16.msra.mxu0 %v2834
        %4618 = vmatpush.bf16.msra.mxu0 %v2830
        %4619 = vmatpush.bf16.msra.mxu0 %v2826
        %4620 = vmatpush.bf16.msra.mxu0 %v2822
        %4621 = vmatpush.bf16.msra.mxu0 %v2818
        %4622 = vmatpush.bf16.msra.mxu0 %v2814
        %4623 = vmatmul.bf16.gmra.mxu0 %v1025
        %v4624 = vpop.f32.mrf.mxu0
        %v4625 = vadd.f32 %v4607, %v4624
        %v4626 = vpop.f32.mrf.mxu0
        %v4627 = vadd.f32 %v4609, %v4626
        %4628 = vmatmul.bf16.gmra.mxu0 %v1041
        %v4629 = vpop.f32.mrf.mxu0
        %v4630 = vadd.f32 %v4612, %v4629
        %v4631 = vpop.f32.mrf.mxu0
        %4632 = vdwg.mxu0
        %4633 = vmatpush.bf16.msra.mxu0 %v2874
        %4634 = vmatpush.bf16.msra.mxu0 %v2870
        %4635 = vmatpush.bf16.msra.mxu0 %v2866
        %4636 = vmatpush.bf16.msra.mxu0 %v2862
        %4637 = vmatpush.bf16.msra.mxu0 %v2858
        %4638 = vmatpush.bf16.msra.mxu0 %v2854
        %4639 = vmatpush.bf16.msra.mxu0 %v2850
        %4640 = vmatpush.bf16.msra.mxu0 %v2846
        %4641 = vmatmul.bf16.gmra.mxu0 %v1026
        %v4642 = vpop.f32.mrf.mxu0
        %v4643 = vadd.f32 %v4625, %v4642
        %v4644 = vpop.f32.mrf.mxu0
        %v4645 = vadd.f32 %v4627, %v4644
        %4646 = vmatmul.bf16.gmra.mxu0 %v1042
        %v4647 = vpop.f32.mrf.mxu0
        %v4648 = vadd.f32 %v4630, %v4647
        %v4649 = vpop.f32.mrf.mxu0
        %4650 = vdwg.mxu0
        %4651 = vmatpush.bf16.msra.mxu0 %v2906
        %4652 = vmatpush.bf16.msra.mxu0 %v2902
        %4653 = vmatpush.bf16.msra.mxu0 %v2898
        %4654 = vmatpush.bf16.msra.mxu0 %v2894
        %4655 = vmatpush.bf16.msra.mxu0 %v2890
        %4656 = vmatpush.bf16.msra.mxu0 %v2886
        %4657 = vmatpush.bf16.msra.mxu0 %v2882
        %4658 = vmatpush.bf16.msra.mxu0 %v2878
        %4659 = vmatmul.bf16.gmra.mxu0 %v1027
        %v4660 = vpop.f32.mrf.mxu0
        %v4661 = vadd.f32 %v4643, %v4660
        %v4662 = vpop.f32.mrf.mxu0
        %v4663 = vadd.f32 %v4645, %v4662
        %4664 = vmatmul.bf16.gmra.mxu0 %v1043
        %v4665 = vpop.f32.mrf.mxu0
        %v4666 = vadd.f32 %v4648, %v4665
        %v4667 = vpop.f32.mrf.mxu0
        %4668 = vdwg.mxu0
        %4669 = vmatpush.bf16.msra.mxu0 %v2938
        %4670 = vmatpush.bf16.msra.mxu0 %v2934
        %4671 = vmatpush.bf16.msra.mxu0 %v2930
        %4672 = vmatpush.bf16.msra.mxu0 %v2926
        %4673 = vmatpush.bf16.msra.mxu0 %v2922
        %4674 = vmatpush.bf16.msra.mxu0 %v2918
        %4675 = vmatpush.bf16.msra.mxu0 %v2914
        %4676 = vmatpush.bf16.msra.mxu0 %v2910
        %4677 = vmatmul.bf16.gmra.mxu0 %v1028
        %v4678 = vpop.f32.mrf.mxu0
        %v4679 = vadd.f32 %v4661, %v4678
        %v4680 = vpop.f32.mrf.mxu0
        %v4681 = vadd.f32 %v4663, %v4680
        %4682 = vmatmul.bf16.gmra.mxu0 %v1044
        %v4683 = vpop.f32.mrf.mxu0
        %v4684 = vadd.f32 %v4666, %v4683
        %v4685 = vpop.f32.mrf.mxu0
        %4686 = vdwg.mxu0
        %4687 = vmatpush.bf16.msra.mxu0 %v2970
        %4688 = vmatpush.bf16.msra.mxu0 %v2966
        %4689 = vmatpush.bf16.msra.mxu0 %v2962
        %4690 = vmatpush.bf16.msra.mxu0 %v2958
        %4691 = vmatpush.bf16.msra.mxu0 %v2954
        %4692 = vmatpush.bf16.msra.mxu0 %v2950
        %4693 = vmatpush.bf16.msra.mxu0 %v2946
        %4694 = vmatpush.bf16.msra.mxu0 %v2942
        %4695 = vmatmul.bf16.gmra.mxu0 %v1029
        %v4696 = vpop.f32.mrf.mxu0
        %v4697 = vadd.f32 %v4679, %v4696
        %v4698 = vpop.f32.mrf.mxu0
        %v4699 = vadd.f32 %v4681, %v4698
        %4700 = vmatmul.bf16.gmra.mxu0 %v1045
        %v4701 = vpop.f32.mrf.mxu0
        %v4702 = vadd.f32 %v4684, %v4701
        %v4703 = vpop.f32.mrf.mxu0
        %4704 = vdwg.mxu0
        %4705 = vmatpush.bf16.msra.mxu0 %v3002
        %4706 = vmatpush.bf16.msra.mxu0 %v2998
        %4707 = vmatpush.bf16.msra.mxu0 %v2994
        %4708 = vmatpush.bf16.msra.mxu0 %v2990
        %4709 = vmatpush.bf16.msra.mxu0 %v2986
        %4710 = vmatpush.bf16.msra.mxu0 %v2982
        %4711 = vmatpush.bf16.msra.mxu0 %v2978
        %4712 = vmatpush.bf16.msra.mxu0 %v2974
        %4713 = vmatmul.bf16.gmra.mxu0 %v1030
        %v4714 = vpop.f32.mrf.mxu0
        %v4715 = vadd.f32 %v4697, %v4714
        %v4716 = vpop.f32.mrf.mxu0
        %v4717 = vadd.f32 %v4699, %v4716
        %4718 = vmatmul.bf16.gmra.mxu0 %v1046
        %v4719 = vpop.f32.mrf.mxu0
        %v4720 = vadd.f32 %v4702, %v4719
        %v4721 = vpop.f32.mrf.mxu0
        %4722 = vdwg.mxu0
        %4723 = vmatpush.bf16.msra.mxu0 %v3034
        %4724 = vmatpush.bf16.msra.mxu0 %v3030
        %4725 = vmatpush.bf16.msra.mxu0 %v3026
        %4726 = vmatpush.bf16.msra.mxu0 %v3022
        %4727 = vmatpush.bf16.msra.mxu0 %v3018
        %4728 = vmatpush.bf16.msra.mxu0 %v3014
        %4729 = vmatpush.bf16.msra.mxu0 %v3010
        %4730 = vmatpush.bf16.msra.mxu0 %v3006
        %4731 = vmatmul.bf16.gmra.mxu0 %v1031
        %v4732 = vpop.f32.mrf.mxu0
        %v4733 = vadd.f32 %v4715, %v4732
        %v4734 = vpop.f32.mrf.mxu0
        %v4735 = vadd.f32 %v4717, %v4734
        %4736 = vmatmul.bf16.gmra.mxu0 %v1047
        %v4737 = vpop.f32.mrf.mxu0
        %v4738 = vadd.f32 %v4720, %v4737
        %v4739 = vpop.f32.mrf.mxu0
        %4740 = vdwg.mxu0
        %4741 = vmatpush.bf16.msra.mxu0 %v3066
        %4742 = vmatpush.bf16.msra.mxu0 %v3062
        %4743 = vmatpush.bf16.msra.mxu0 %v3058
        %4744 = vmatpush.bf16.msra.mxu0 %v3054
        %4745 = vmatpush.bf16.msra.mxu0 %v3050
        %4746 = vmatpush.bf16.msra.mxu0 %v3046
        %4747 = vmatpush.bf16.msra.mxu0 %v3042
        %4748 = vmatpush.bf16.msra.mxu0 %v3038
        %4749 = vmatmul.bf16.gmra.mxu0 %v1032
        %v4750 = vpop.f32.mrf.mxu0
        %v4751 = vadd.f32 %v4733, %v4750
        %v4752 = vpop.f32.mrf.mxu0
        %v4753 = vadd.f32 %v4735, %v4752
        %4754 = vmatmul.bf16.gmra.mxu0 %v1048
        %v4755 = vpop.f32.mrf.mxu0
        %v4756 = vadd.f32 %v4738, %v4755
        %v4757 = vpop.f32.mrf.mxu0
        %4758 = vdwg.mxu0
        %4759 = vmatpush.bf16.msra.mxu0 %v3098
        %4760 = vmatpush.bf16.msra.mxu0 %v3094
        %4761 = vmatpush.bf16.msra.mxu0 %v3090
        %4762 = vmatpush.bf16.msra.mxu0 %v3086
        %4763 = vmatpush.bf16.msra.mxu0 %v3082
        %4764 = vmatpush.bf16.msra.mxu0 %v3078
        %4765 = vmatpush.bf16.msra.mxu0 %v3074
        %4766 = vmatpush.bf16.msra.mxu0 %v3070
        %4767 = vmatmul.bf16.gmra.mxu0 %v1033
        %v4768 = vpop.f32.mrf.mxu0
        %v4769 = vadd.f32 %v4751, %v4768
        %v4770 = vpop.f32.mrf.mxu0
        %v4771 = vadd.f32 %v4753, %v4770
        %4772 = vmatmul.bf16.gmra.mxu0 %v1049
        %v4773 = vpop.f32.mrf.mxu0
        %v4774 = vadd.f32 %v4756, %v4773
        %v4775 = vpop.f32.mrf.mxu0
        %4776 = vdwg.mxu0
        %4777 = vmatpush.bf16.msra.mxu0 %v3130
        %4778 = vmatpush.bf16.msra.mxu0 %v3126
        %4779 = vmatpush.bf16.msra.mxu0 %v3122
        %4780 = vmatpush.bf16.msra.mxu0 %v3118
        %4781 = vmatpush.bf16.msra.mxu0 %v3114
        %4782 = vmatpush.bf16.msra.mxu0 %v3110
        %4783 = vmatpush.bf16.msra.mxu0 %v3106
        %4784 = vmatpush.bf16.msra.mxu0 %v3102
        %4785 = vmatmul.bf16.gmra.mxu0 %v1034
        %v4786 = vpop.f32.mrf.mxu0
        %v4787 = vadd.f32 %v4769, %v4786
        %v4788 = vpop.f32.mrf.mxu0
        %v4789 = vadd.f32 %v4771, %v4788
        %4790 = vmatmul.bf16.gmra.mxu0 %v1050
        %v4791 = vpop.f32.mrf.mxu0
        %v4792 = vadd.f32 %v4774, %v4791
        %v4793 = vpop.f32.mrf.mxu0
        %4794 = vdwg.mxu0
        %v4795 = vadd.f32 %v399, %v3923
        %v4796 = vadd.f32 %v400, %v4211
        %v4797 = vadd.f32 %v401, %v4499
        %v4798 = vadd.f32 %v402, %v4787
        %v4799 = vadd.f32 %v403, %v3925
        %v4800 = vadd.f32 %v404, %v4213
        %v4801 = vadd.f32 %v405, %v4501
        %v4802 = vadd.f32 %v406, %v4789
        %v4803 = vadd.f32 %v407, %v3928
        %v4804 = vadd.f32 %v408, %v4216
        %v4805 = vadd.f32 %v409, %v4504
        %v4806 = vadd.f32 %v410, %v4792
        %4807 = vst [vmem:[#allocation2] sm:$0xff] %v4795
        %4808 = vst [vmem:[#allocation2 + $0x8] sm:$0xff] %v4796
        %4809 = vst [vmem:[#allocation2 + $0x10] sm:$0xff] %v4797
        %4810 = vst [vmem:[#allocation2 + $0x18] sm:$0xff] %v4798
        %4811 = vst [vmem:[#allocation2 + $0x20] sm:$0xff] %v4799
        %4812 = vst [vmem:[#allocation2 + $0x28] sm:$0xff] %v4800
        %4813 = vst [vmem:[#allocation2 + $0x30] sm:$0xff] %v4801
        %4814 = vst [vmem:[#allocation2 + $0x38] sm:$0xff] %v4802
        %4815 = vst [vmem:[#allocation2 + $0x40] sm:$0xff] %v4803
        %4816 = vst [vmem:[#allocation2 + $0x48] sm:$0xff] %v4804
        %4817 = vst [vmem:[#allocation2 + $0x50] sm:$0xff] %v4805
        %4818 = vst [vmem:[#allocation2 + $0x58] sm:$0xff] %v4806
        %p4819 = scmp.eq.s32.totalorder %s22, 1
        // Predicated region
        $region64: #{discriminator_forward.8} parent=54 // pred_check
          %p4820 = pneg %p4819
        $region65: #{discriminator_forward.8} parent=54 // pred_check_branch
          %4822 = sbr.rel (%p4820) target = $region67
        $region66: #{discriminator_forward.8} parent=54 // pred_region
          %v4823 = vld [vmem:[#allocation2] sm:$0xff]
          %v4824 = vld [vmem:[#allocation2 + $0x8] sm:$0xff]
          %v4825 = vld [vmem:[#allocation2 + $0x10] sm:$0xff]
          %v4826 = vld [vmem:[#allocation2 + $0x18] sm:$0xff]
          %v4827 = vld [vmem:[#allocation2 + $0x20] sm:$0xff]
          %v4828 = vld [vmem:[#allocation2 + $0x28] sm:$0xff]
          %v4829 = vld [vmem:[#allocation2 + $0x30] sm:$0xff]
          %v4830 = vld [vmem:[#allocation2 + $0x38] sm:$0xff]
          %v4831 = vld [vmem:[#allocation2 + $0x40] sm:$0xff]
          %v4832 = vld [vmem:[#allocation2 + $0x48] sm:$0xff]
          %v4833 = vld [vmem:[#allocation2 + $0x50] sm:$0xff]
          %v4834 = vld [vmem:[#allocation2 + $0x58] sm:$0xff]
          %v4835 = vadd.f32 %v4823, %v4827
          %v4836 = vadd.f32 %v4835, %v4831
          %v4837 = vrot.slane %v4836, 4
          %v4838 = vadd.f32 %v4836, %v4837
          %v4839 = vrot.slane %v4838, 2
          %v4840 = vadd.f32 %v4838, %v4839
          %v4841 = vrot.slane %v4840, 1
          %v4842 = vadd.f32 %v4840, %v4841
          %v4843 = vadd.f32 %v4824, %v4828
          %v4844 = vadd.f32 %v4843, %v4832
          %v4845 = vrot.slane %v4844, 4
          %v4846 = vadd.f32 %v4844, %v4845
          %v4847 = vrot.slane %v4846, 2
          %v4848 = vadd.f32 %v4846, %v4847
          %v4849 = vrot.slane %v4848, 1
          %v4850 = vadd.f32 %v4848, %v4849
          %v4851 = vadd.f32 %v4825, %v4829
          %v4852 = vadd.f32 %v4851, %v4833
          %v4853 = vrot.slane %v4852, 4
          %v4854 = vadd.f32 %v4852, %v4853
          %v4855 = vrot.slane %v4854, 2
          %v4856 = vadd.f32 %v4854, %v4855
          %v4857 = vrot.slane %v4856, 1
          %v4858 = vadd.f32 %v4856, %v4857
          %v4859 = vadd.f32 %v4826, %v4830
          %v4860 = vadd.f32 %v4859, %v4834
          %v4861 = vrot.slane %v4860, 4
          %v4862 = vadd.f32 %v4860, %v4861
          %v4863 = vrot.slane %v4862, 2
          %v4864 = vadd.f32 %v4862, %v4863
          %v4865 = vrot.slane %v4864, 1
          %v4866 = vadd.f32 %v4864, %v4865
          %v4867 = vmul.f32 %v4842, 0.055555556
          %v4868 = vmul.f32 %v4850, 0.055555556
          %v4869 = vmul.f32 %v4858, 0.055555556
          %v4870 = vmul.f32 %v4866, 0.055555556
          %v4871 = vlaneseq
          %v4872 = vshrl.u32 %v4871, 7
          %v4873 = vadd.s32 %v4872, 8
          %v4874 = vadd.s32 %v4872, 16
          %vm4875 = vcmp.lt.s32.totalorder %v4872, 18
          %vm4876 = vcmp.lt.s32.totalorder %v4873, 18
          %vm4877 = vcmp.lt.s32.totalorder %v4874, 18
          %v4878 = vsub.f32 %v4823, %v4867
          %v4879 = vsub.f32 %v4824, %v4868
          %v4880 = vsub.f32 %v4825, %v4869
          %v4881 = vsub.f32 %v4826, %v4870
          %v4882 = vsub.f32 %v4827, %v4867
          %v4883 = vsub.f32 %v4828, %v4868
          %v4884 = vsub.f32 %v4829, %v4869
          %v4885 = vsub.f32 %v4830, %v4870
          %v4886 = vsub.f32 %v4831, %v4867
          %v4887 = vsub.f32 %v4832, %v4868
          %v4888 = vsub.f32 %v4833, %v4869
          %v4889 = vsub.f32 %v4834, %v4870
          %v4890 = vsel %vm4875, %v4878, 0.0
          %v4891 = vsel %vm4875, %v4879, 0.0
          %v4892 = vsel %vm4875, %v4880, 0.0
          %v4893 = vsel %vm4875, %v4881, 0.0
          %v4894 = vsel %vm4876, %v4882, 0.0
          %v4895 = vsel %vm4876, %v4883, 0.0
          %v4896 = vsel %vm4876, %v4884, 0.0
          %v4897 = vsel %vm4876, %v4885, 0.0
          %v4898 = vsel %vm4877, %v4886, 0.0
          %v4899 = vsel %vm4877, %v4887, 0.0
          %v4900 = vsel %vm4877, %v4888, 0.0
          %v4901 = vsel %vm4877, %v4889, 0.0
          %v4902 = vmul.f32 %v4890, %v4890
          %v4903 = vmul.f32 %v4891, %v4891
          %v4904 = vmul.f32 %v4892, %v4892
          %v4905 = vmul.f32 %v4893, %v4893
          %v4906 = vmul.f32 %v4894, %v4894
          %v4907 = vmul.f32 %v4895, %v4895
          %v4908 = vmul.f32 %v4896, %v4896
          %v4909 = vmul.f32 %v4897, %v4897
          %v4910 = vmul.f32 %v4898, %v4898
          %v4911 = vmul.f32 %v4899, %v4899
          %v4912 = vmul.f32 %v4900, %v4900
          %v4913 = vmul.f32 %v4901, %v4901
          %v4914 = vadd.f32 %v4902, %v4906
          %v4915 = vadd.f32 %v4914, %v4910
          %v4916 = vrot.slane %v4915, 4
          %v4917 = vadd.f32 %v4915, %v4916
          %v4918 = vrot.slane %v4917, 2
          %v4919 = vadd.f32 %v4917, %v4918
          %v4920 = vrot.slane %v4919, 1
          %v4921 = vadd.f32 %v4919, %v4920
          %v4922 = vadd.f32 %v4903, %v4907
          %v4923 = vadd.f32 %v4922, %v4911
          %v4924 = vrot.slane %v4923, 4
          %v4925 = vadd.f32 %v4923, %v4924
          %v4926 = vrot.slane %v4925, 2
          %v4927 = vadd.f32 %v4925, %v4926
          %v4928 = vrot.slane %v4927, 1
          %v4929 = vadd.f32 %v4927, %v4928
          %v4930 = vadd.f32 %v4904, %v4908
          %v4931 = vadd.f32 %v4930, %v4912
          %v4932 = vrot.slane %v4931, 4
          %v4933 = vadd.f32 %v4931, %v4932
          %v4934 = vrot.slane %v4933, 2
          %v4935 = vadd.f32 %v4933, %v4934
          %v4936 = vrot.slane %v4935, 1
          %v4937 = vadd.f32 %v4935, %v4936
          %v4938 = vadd.f32 %v4905, %v4909
          %v4939 = vadd.f32 %v4938, %v4913
          %v4940 = vrot.slane %v4939, 4
          %v4941 = vadd.f32 %v4939, %v4940
          %v4942 = vrot.slane %v4941, 2
          %v4943 = vadd.f32 %v4941, %v4942
          %v4944 = vrot.slane %v4943, 1
          %v4945 = vadd.f32 %v4943, %v4944
          %v4946 = vmul.f32 %v4921, 0.055555556
          %v4947 = vmul.f32 %v4929, 0.055555556
          %v4948 = vmul.f32 %v4937, 0.055555556
          %v4949 = vmul.f32 %v4945, 0.055555556
          %v4950 = vadd.f32 %v4946, 1e-05
          %v4951 = vadd.f32 %v4947, 1e-05
          %v4952 = vadd.f32 %v4948, 1e-05
          %v4953 = vadd.f32 %v4949, 1e-05
          %v4954 = vrsqrt.pop %v4950
          %v4955 = vmul.f32 %v4954, %v4950
          %v4956 = vmul.f32 %v4955, %v4954
          %v4957 = vmul.f32 0.5, %v4956
          %v4958 = vsub.f32 1.5, %v4957
          %v4959 = vmul.f32 %v4954, %v4958
          %vm4960 = vweird.f32 %v4950
          %vm4961 = vweird.f32 %v4954
          %vm4962 = vmor %vm4960, %vm4961
          %v4963 = vsel %vm4962, %v4954, %v4959
          %v4964 = vrsqrt.pop %v4951
          %v4965 = vmul.f32 %v4964, %v4951
          %v4966 = vmul.f32 %v4965, %v4964
          %v4967 = vmul.f32 0.5, %v4966
          %v4968 = vsub.f32 1.5, %v4967
          %v4969 = vmul.f32 %v4964, %v4968
          %vm4970 = vweird.f32 %v4951
          %vm4971 = vweird.f32 %v4964
          %vm4972 = vmor %vm4970, %vm4971
          %v4973 = vsel %vm4972, %v4964, %v4969
          %v4974 = vrsqrt.pop %v4952
          %v4975 = vmul.f32 %v4974, %v4952
          %v4976 = vmul.f32 %v4975, %v4974
          %v4977 = vmul.f32 0.5, %v4976
          %v4978 = vsub.f32 1.5, %v4977
          %v4979 = vmul.f32 %v4974, %v4978
          %vm4980 = vweird.f32 %v4952
          %vm4981 = vweird.f32 %v4974
          %vm4982 = vmor %vm4980, %vm4981
          %v4983 = vsel %vm4982, %v4974, %v4979
          %v4984 = vrsqrt.pop %v4953
          %v4985 = vmul.f32 %v4984, %v4953
          %v4986 = vmul.f32 %v4985, %v4984
          %v4987 = vmul.f32 0.5, %v4986
          %v4988 = vsub.f32 1.5, %v4987
          %v4989 = vmul.f32 %v4984, %v4988
          %vm4990 = vweird.f32 %v4953
          %vm4991 = vweird.f32 %v4984
          %vm4992 = vmor %vm4990, %vm4991
          %v4993 = vsel %vm4992, %v4984, %v4989
          %v4994 = vld [vmem:[%s364] sm:$0xf]
          %v4996 = vperm.slane %v4994, 0
          %v4997 = vperm.slane %v4994, 1
          %v4998 = vperm.slane %v4994, 2
          %v4999 = vperm.slane %v4994, 3
          %v5004 = vmul.f32 %v4963, %v4996
          %v5005 = vmul.f32 %v4973, %v4997
          %v5006 = vmul.f32 %v4983, %v4998
          %v5007 = vmul.f32 %v4993, %v4999
          %v5008 = vperm.slane %v5004, 0
          %v5009 = vperm.slane %v5005, 0
          %v5010 = vperm.slane %v5006, 0
          %v5011 = vperm.slane %v5007, 0
          %v5012 = vmul.f32 %v4890, %v5008
          %v5013 = vmul.f32 %v4891, %v5009
          %v5014 = vmul.f32 %v4892, %v5010
          %v5015 = vmul.f32 %v4893, %v5011
          %v5016 = vmul.f32 %v4894, %v5008
          %v5017 = vmul.f32 %v4895, %v5009
          %v5018 = vmul.f32 %v4896, %v5010
          %v5019 = vmul.f32 %v4897, %v5011
          %v5020 = vmul.f32 %v4898, %v5008
          %v5021 = vmul.f32 %v4899, %v5009
          %v5022 = vmul.f32 %v4900, %v5010
          %v5023 = vmul.f32 %v4901, %v5011
          %v5024 = vld [vmem:[%s369] sm:$0xf]
          %v5026 = vperm.slane %v5024, 0
          %v5027 = vperm.slane %v5024, 1
          %v5028 = vperm.slane %v5024, 2
          %v5029 = vperm.slane %v5024, 3
          %v5034 = vadd.f32 %v5012, %v5026
          %v5035 = vadd.f32 %v5013, %v5027
          %v5036 = vadd.f32 %v5014, %v5028
          %v5037 = vadd.f32 %v5015, %v5029
          %v5038 = vadd.f32 %v5016, %v5026
          %v5039 = vadd.f32 %v5017, %v5027
          %v5040 = vadd.f32 %v5018, %v5028
          %v5041 = vadd.f32 %v5019, %v5029
          %v5042 = vadd.f32 %v5020, %v5026
          %v5043 = vadd.f32 %v5021, %v5027
          %v5044 = vadd.f32 %v5022, %v5028
          %v5045 = vadd.f32 %v5023, %v5029
          %vm5046 = vcmp.ge.f32.partialorder %v5034, 0.0
          %vm5047 = vcmp.ge.f32.partialorder %v5035, 0.0
          %vm5048 = vcmp.ge.f32.partialorder %v5036, 0.0
          %vm5049 = vcmp.ge.f32.partialorder %v5037, 0.0
          %vm5050 = vcmp.ge.f32.partialorder %v5038, 0.0
          %vm5051 = vcmp.ge.f32.partialorder %v5039, 0.0
          %vm5052 = vcmp.ge.f32.partialorder %v5040, 0.0
          %vm5053 = vcmp.ge.f32.partialorder %v5041, 0.0
          %vm5054 = vcmp.ge.f32.partialorder %v5042, 0.0
          %vm5055 = vcmp.ge.f32.partialorder %v5043, 0.0
          %vm5056 = vcmp.ge.f32.partialorder %v5044, 0.0
          %vm5057 = vcmp.ge.f32.partialorder %v5045, 0.0
          %v5058 = vmul.f32 %v5034, 0.2
          %v5059 = vmul.f32 %v5035, 0.2
          %v5060 = vmul.f32 %v5036, 0.2
          %v5061 = vmul.f32 %v5037, 0.2
          %v5062 = vmul.f32 %v5038, 0.2
          %v5063 = vmul.f32 %v5039, 0.2
          %v5064 = vmul.f32 %v5040, 0.2
          %v5065 = vmul.f32 %v5041, 0.2
          %v5066 = vmul.f32 %v5042, 0.2
          %v5067 = vmul.f32 %v5043, 0.2
          %v5068 = vmul.f32 %v5044, 0.2
          %v5069 = vmul.f32 %v5045, 0.2
          %v5070 = vsel %vm5046, %v5034, %v5058
          %v5071 = vsel %vm5047, %v5035, %v5059
          %v5072 = vsel %vm5048, %v5036, %v5060
          %v5073 = vsel %vm5049, %v5037, %v5061
          %v5074 = vsel %vm5050, %v5038, %v5062
          %v5075 = vsel %vm5051, %v5039, %v5063
          %v5076 = vsel %vm5052, %v5040, %v5064
          %v5077 = vsel %vm5053, %v5041, %v5065
          %v5078 = vsel %vm5054, %v5042, %v5066
          %v5079 = vsel %vm5055, %v5043, %v5067
          %v5080 = vsel %vm5056, %v5044, %v5068
          %v5081 = vsel %vm5057, %v5045, %v5069
          %v5082 = vpack.c.bf16 %v5071, %v5070
          %v5083 = vpack.c.bf16 %v5073, %v5072
          %v5084 = vpack.c.bf16 %v5075, %v5074
          %v5085 = vpack.c.bf16 %v5077, %v5076
          %v5086 = vpack.c.bf16 %v5079, %v5078
          %v5087 = vpack.c.bf16 %v5081, %v5080
          %5088 = vst [vmem:[%s380] sm:$0xff] %v5082
          %5089 = vst [vmem:[%s380 + $0x8] sm:$0xff] %v5083
          %5090 = vst [vmem:[%s380 + $0x10] sm:$0xff] %v5084
          %5091 = vst [vmem:[%s380 + $0x18] sm:$0xff] %v5085
          %5092 = vst [vmem:[%s380 + $0x20] sm:$0xff] %v5086
          %5093 = vst [vmem:[%s380 + $0x28] sm:$0xff] %v5087
        $region67: #{discriminator_forward.8} parent=54 // pred_fallthru
          _
        %s5094 = smul.u32 3, %s20
        %s5095 = smul.u32 4, %s21
        %p5096 = scmp.lt.s32.totalorder %s5094, 2
        %s5097 = scalar_select %p5096, %s5094, 2
        %p5098 = scmp.lt.s32.totalorder %s5095, 3
        %s5099 = scalar_select %p5098, %s5095, 3
        %s5100 = smul.addr %s5097, 4
        %s5101 = sadd.s32 %s5099, %s5100
        %s5102 = smul.addr %s5101, 4
        %s5103 = scalar_lea.vmem %s4, %s5102
        // Predicated region
        $region68: #{discriminator_forward.8} parent=54 // pred_check
          %p5104 = pneg %p162
        $region69: #{discriminator_forward.8} parent=54 // pred_check_branch
          %5106 = sbr.rel (%p5104) target = $region71
        $region70: #{discriminator_forward.8} parent=54 // pred_region
          %s5107 = smul.u32 3, %s20
          %s5108 = smul.u32 4, %s21
        $region71: #{discriminator_forward.8} parent=54 // pred_fallthru
          _
        // Predicated region
        $region72: #{discriminator_forward.8} parent=54 // pred_check
          %p5109 = pneg %p162
        $region73: #{discriminator_forward.8} parent=54 // pred_check_branch
          %5111 = sbr.rel (%p5109) target = $region75
        $region74: #{discriminator_forward.8} parent=54 // pred_region
          %s5112 = smul.u32 3, %s20
          %s5113 = smul.u32 4, %s21
          %p5114 = scmp.lt.s32.totalorder %s5112, 2
          %s5115 = scalar_select %p5114, %s5112, 2
          %p5116 = scmp.lt.s32.totalorder %s5113, 3
          %s5117 = scalar_select %p5116, %s5113, 3
          %s5118 = smul.addr %s5115, 4
          %s5119 = sadd.s32 %s5117, %s5118
          %s5120 = smul.addr %s5119, 4
          %s5121 = scalar_lea.vmem %s4, %s5120
        $region75: #{discriminator_forward.8} parent=54 // pred_fallthru
          _
      $region55: #{discriminator_forward.8} parent=5 // pred_fallthru
        _
      %p5122 = scmp.le.s32.totalorder 2, %s10
      // Predicated region
      $region76: #{discriminator_forward.8} parent=5 // pred_check
        %p5123 = pneg %p5122
      $region77: #{discriminator_forward.8} parent=5 // pred_check_branch
        %5125 = sbr.rel (%p5123) target = $region79
      $region78: #{discriminator_forward.8} parent=5 // pred_region
        %s5126 = ssub.s32 %s10, 2
      $region79: #{discriminator_forward.8} parent=5 // pred_fallthru
        _
    $region6: #{discriminator_forward.8} parent=1 // loop_footer
      %s14 = sadd.s32 1, %s10
    $region7: #{discriminator_forward.8} parent=1 // loop_footer_branch
      %9 = sbr.rel target = $region3
    $region8: #{discriminator_forward.8} parent=1 // loop_exit
      _

</llo_original>
